<compile_context>
chip_gen: v7x
topology: tpu7x:2x2x1
jax: 0.10.0
libtpu: 0.0.40
codegen_flags: <defaults>
</compile_context>

<pallas_src>
import jax
import jax.numpy as jnp
from jax.experimental import pallas as pl
from jax.experimental.pallas import tpu as pltpu


# ------------------------------ Pallas kernel --------------------------------

def _lenet5_kernel(x_ref, w1_ref, b1_ref, w2_ref, b2_ref,
                   fw1_ref, fb1_ref, fw2_ref, fb2_ref, fw3_ref, fb3_ref,
                   o_ref, hp1_ref, hp2_ref):
    """Fused LeNet-5 forward for one batch tile.

    x_ref  : (TB, 24, 28, 5)  input with the 5 conv1 row-taps in the lane dim
    w1_ref : (25, 6)   conv1 weights, rows ordered (kw, kh)
    w2_ref : (150, 16) conv2 weights, rows ordered (kh, kw, ci)
    fw1_ref: (256, 120) fc1 weights, rows ordered (h, w, c)
    fw2_ref: (120, 84), fw3_ref: (84, 10)
    b*_ref : (1, N) biases
    o_ref  : (TB, 1, 10) output logits
    hp1_ref: (TB, 12, 24, 6) VMEM scratch (H-pooled conv1)
    hp2_ref: (TB, 4, 8, 16)  VMEM scratch (H-pooled conv2)
    """
    TB = x_ref.shape[0]

    # ---------------- conv1: 5x5 valid, Cin=1, Cout=6 (+ bias) ---------------
    xv = x_ref[...]                                  # (TB, 24, 28, 5)
    w1v = w1_ref[...]                                # (25, 6)
    acc1 = jnp.zeros((TB * 24 * 24, 6), jnp.float32)
    for kw in range(5):
        xs = xv[:, :, kw:kw + 24, :].reshape(TB * 24 * 24, 5)
        acc1 = acc1 + jnp.dot(xs, w1v[5 * kw:5 * kw + 5, :],
                              preferred_element_type=jnp.float32)
    y1 = (acc1 + b1_ref[...]).reshape(TB, 24, 24, 6)  # NHWC, 24x24x6

    # ---------------- maxpool1 (2x2, stride 2) -------------------------------
    for i in range(12):                               # pool over H
        hp1_ref[:, i, :, :] = jnp.maximum(y1[:, 2 * i, :, :],
                                          y1[:, 2 * i + 1, :, :])
    p1 = jnp.maximum(hp1_ref[:, :, pl.ds(0, 12, stride=2), :],
                     hp1_ref[:, :, pl.ds(1, 12, stride=2), :])  # (TB,12,12,6)

    # ---------------- conv2: 5x5 valid, Cin=6, Cout=16 (+ bias) --------------
    w2v = w2_ref[...]                                 # (150, 16)
    acc2 = jnp.zeros((TB * 8 * 8, 16), jnp.float32)
    for kh in range(5):
        for kw in range(5):
            t = kh * 5 + kw
            ps = p1[:, kh:kh + 8, kw:kw + 8, :].reshape(TB * 8 * 8, 6)
            acc2 = acc2 + jnp.dot(ps, w2v[6 * t:6 * t + 6, :],
                                  preferred_element_type=jnp.float32)
    y2 = (acc2 + b2_ref[...]).reshape(TB, 8, 8, 16)   # NHWC, 8x8x16

    # ---------------- maxpool2 (2x2, stride 2) -------------------------------
    for i in range(4):                                # pool over H
        hp2_ref[:, i, :, :] = jnp.maximum(y2[:, 2 * i, :, :],
                                          y2[:, 2 * i + 1, :, :])
    p2 = jnp.maximum(hp2_ref[:, :, pl.ds(0, 4, stride=2), :],
                     hp2_ref[:, :, pl.ds(1, 4, stride=2), :])   # (TB,4,4,16)

    # ---------------- fc1 (flatten folded into the accumulation) -------------
    fw1v = fw1_ref[...]                               # (256, 120), rows (h,w,c)
    h1 = jnp.zeros((TB, 120), jnp.float32) + fb1_ref[...]
    for h in range(4):
        for w in range(4):
            idx = h * 4 + w
            vec = p2[:, h, w, :]                      # (TB, 16)
            h1 = h1 + jnp.dot(vec, fw1v[16 * idx:16 * idx + 16, :],
                              preferred_element_type=jnp.float32)

    # ---------------- fc2, fc3 ------------------------------------------------
    h2 = jnp.dot(h1, fw2_ref[...],
                 preferred_element_type=jnp.float32) + fb2_ref[...]
    h3 = jnp.dot(h2, fw3_ref[...],
                 preferred_element_type=jnp.float32) + fb3_ref[...]

    o_ref[:, 0, :] = h3.astype(o_ref.dtype)


# ------------------------------- wrapper --------------------------------------

def _pick_tb(batch):
    """Batch tile: small enough for VMEM everywhere, grid >= 2 when possible."""
    for tb in (4, 2, 1):
        if batch % tb == 0 and (batch // tb >= 2 or tb == 1):
            return tb
    return 1


def lenet5_forward(x, params):
    """x: (B, 1, 28, 28) NCHW float32 -> logits (B, 10)."""
    (w1, b1, w2, b2, fw1, fb1, fw2, fb2, fw3, fb3) = params
    B = x.shape[0]
    assert x.shape[1:] == (1, 28, 28), x.shape
    TB = _pick_tb(B)
    n_blocks = B // TB

    # --- cheap glue: input repack + weight packing (all tiny, done in XLA) ---
    x2 = x.reshape(B, 28, 28).astype(jnp.float32)
    # pack the 5 conv1 row-taps into the lane dim: (B, 24, 28, 5), 5x of 3 KiB
    x_cols = jnp.stack([x2[:, kh:kh + 24, :] for kh in range(5)], axis=-1)

    w1p = jnp.transpose(w1[:, 0, :, :], (2, 1, 0)).reshape(25, 6)    # (kw,kh)->rows
    w2p = jnp.transpose(w2, (2, 3, 1, 0)).reshape(150, 16)           # (kh,kw,ci)->rows
    fw1p = jnp.transpose(fw1.reshape(120, 16, 4, 4),
                         (2, 3, 1, 0)).reshape(256, 120)             # (h,w,c)->rows
    fw2p = fw2.T                                                     # (120, 84)
    fw3p = fw3.T                                                     # (84, 10)

    b1r, b2r = b1.reshape(1, 6), b2.reshape(1, 16)
    fb1r, fb2r, fb3r = fb1.reshape(1, 120), fb2.reshape(1, 84), fb3.reshape(1, 10)

    out = pl.pallas_call(
        _lenet5_kernel,
        grid=(n_blocks,),
        in_specs=[
            pl.BlockSpec((TB, 24, 28, 5), lambda i: (i, 0, 0, 0)),
            pl.BlockSpec((25, 6), lambda i: (0, 0)),
            pl.BlockSpec((1, 6), lambda i: (0, 0)),
            pl.BlockSpec((150, 16), lambda i: (0, 0)),
            pl.BlockSpec((1, 16), lambda i: (0, 0)),
            pl.BlockSpec((256, 120), lambda i: (0, 0)),
            pl.BlockSpec((1, 120), lambda i: (0, 0)),
            pl.BlockSpec((120, 84), lambda i: (0, 0)),
            pl.BlockSpec((1, 84), lambda i: (0, 0)),
            pl.BlockSpec((84, 10), lambda i: (0, 0)),
            pl.BlockSpec((1, 10), lambda i: (0, 0)),
        ],
        out_specs=pl.BlockSpec((TB, 1, 10), lambda i: (i, 0, 0)),
        out_shape=jax.ShapeDtypeStruct((B, 1, 10), jnp.float32),
        scratch_shapes=[
            pltpu.VMEM((TB, 12, 24, 6), jnp.float32),
            pltpu.VMEM((TB, 4, 8, 16), jnp.float32),
        ],
        compiler_params=pltpu.CompilerParams(
            dimension_semantics=("parallel",)),
    )(x_cols, w1p, b1r, w2p, b2r, fw1p, fb1r, fw2p, fb2r, fw3p, fb3r)

    return out.reshape(B, 10)


# --------------------------- params & reference --------------------------------

def init_params(key):
    """Deterministic init mimicking PyTorch defaults (U(-1/sqrt(fan_in), +))."""
    def uinit(k, shape, fan_in):
        bound = 1.0 / (fan_in ** 0.5)
        return jax.random.uniform(k, shape, jnp.float32, -bound, bound)

    ks = jax.random.split(key, 10)
    w1 = uinit(ks[0], (6, 1, 5, 5), 1 * 5 * 5)
    b1 = uinit(ks[1], (6,), 1 * 5 * 5)
    w2 = uinit(ks[2], (16, 6, 5, 5), 6 * 5 * 5)
    b2 = uinit(ks[3], (16,), 6 * 5 * 5)
    fw1 = uinit(ks[4], (120, 256), 256)
    fb1 = uinit(ks[5], (120,), 256)
    fw2 = uinit(ks[6], (84, 120), 120)
    fb2 = uinit(ks[7], (84,), 120)
    fw3 = uinit(ks[8], (10, 84), 84)
    fb3 = uinit(ks[9], (10,), 84)
    return (w1, b1, w2, b2, fw1, fb1, fw2, fb2, fw3, fb3)


def reference_forward(x, params):
    """Pure-JAX/XLA reference matching the PyTorch module semantics."""
    (w1, b1, w2, b2, fw1, fb1, fw2, fb2, fw3, fb3) = params
    dn = ('NCHW', 'OIHW', 'NCHW')
    y = jax.lax.conv_general_dilated(x, w1, (1, 1), 'VALID', dimension_numbers=dn)
    y = y + b1[None, :, None, None]
    y = jax.lax.reduce_window(y, -jnp.inf, jax.lax.max,
                              (1, 1, 2, 2), (1, 1, 2, 2), 'VALID')
    y = jax.lax.conv_general_dilated(y, w2, (1, 1), 'VALID', dimension_numbers=dn)
    y = y + b2[None, :, None, None]
    y = jax.lax.reduce_window(y, -jnp.inf, jax.lax.max,
                              (1, 1, 2, 2), (1, 1, 2, 2), 'VALID')
    y = y.reshape(y.shape[0], -1)
    y = y @ fw1.T + fb1
    y = y @ fw2.T + fb2
    y = y @ fw3.T + fb3
    return y


# ---------------------------------- main ----------------------------------------

if __name__ == "__main__":
    key = jax.random.PRNGKey(0)
    k_params, k_x = jax.random.split(key)
    params = init_params(k_params)

    # LeNet-5 requires 28x28 single-channel input (flatten -> 4*4*16 = 256).
    x = jax.random.normal(k_x, (2, 1, 28, 28), dtype=jnp.float32)

    fwd = jax.jit(lenet5_forward)
    out = jax.block_until_ready(fwd(x, params))
    assert out.shape == (2, 10), out.shape

    ref = jax.block_until_ready(reference_forward(x, params))
    assert jnp.allclose(out, ref, rtol=1e-3, atol=1e-3), (
        "Pallas output does not match reference")

    print("KERNEL_OK")
</pallas_src>

<mosaic_0001>
module attributes {stable_mosaic.version = 11 : i64} {
  func.func @_lenet5_kernel(%arg0: i32, %arg1: memref<1x24x28x5xf32, #tpu.memory_space<vmem>>, %arg2: memref<25x6xf32, #tpu.memory_space<vmem>>, %arg3: memref<1x6xf32, #tpu.memory_space<vmem>>, %arg4: memref<150x16xf32, #tpu.memory_space<vmem>>, %arg5: memref<1x16xf32, #tpu.memory_space<vmem>>, %arg6: memref<256x120xf32, #tpu.memory_space<vmem>>, %arg7: memref<1x120xf32, #tpu.memory_space<vmem>>, %arg8: memref<120x84xf32, #tpu.memory_space<vmem>>, %arg9: memref<1x84xf32, #tpu.memory_space<vmem>>, %arg10: memref<84x10xf32, #tpu.memory_space<vmem>>, %arg11: memref<1x10xf32, #tpu.memory_space<vmem>>, %arg12: memref<1x1x10xf32, #tpu.memory_space<vmem>>, %arg13: memref<1x12x24x6xf32, #tpu.memory_space<vmem>>, %arg14: memref<1x4x8x16xf32, #tpu.memory_space<vmem>>) attributes {dimension_semantics = [#tpu.dimension_semantics<parallel>], iteration_bounds = array<i64: 2>, scalar_prefetch = 0 : i64, scratch_operands = 2 : i64, tpu.core_type = #tpu.core_type<tc>, window_params = [{transform_indices = @transform_0, window_bounds = array<i64: 1, 24, 28, 5>}, {pipeline_mode = #tpu.pipeline_mode<synchronous>, transform_indices = @transform_1, window_bounds = array<i64: 25, 6>}, {pipeline_mode = #tpu.pipeline_mode<synchronous>, transform_indices = @transform_2, window_bounds = array<i64: 1, 6>}, {pipeline_mode = #tpu.pipeline_mode<synchronous>, transform_indices = @transform_3, window_bounds = array<i64: 150, 16>}, {pipeline_mode = #tpu.pipeline_mode<synchronous>, transform_indices = @transform_4, window_bounds = array<i64: 1, 16>}, {pipeline_mode = #tpu.pipeline_mode<synchronous>, transform_indices = @transform_5, window_bounds = array<i64: 256, 120>}, {pipeline_mode = #tpu.pipeline_mode<synchronous>, transform_indices = @transform_6, window_bounds = array<i64: 1, 120>}, {pipeline_mode = #tpu.pipeline_mode<synchronous>, transform_indices = @transform_7, window_bounds = array<i64: 120, 84>}, {pipeline_mode = #tpu.pipeline_mode<synchronous>, transform_indices = @transform_8, window_bounds = array<i64: 1, 84>}, {pipeline_mode = #tpu.pipeline_mode<synchronous>, transform_indices = @transform_9, window_bounds = array<i64: 84, 10>}, {pipeline_mode = #tpu.pipeline_mode<synchronous>, transform_indices = @transform_10, window_bounds = array<i64: 1, 10>}, {transform_indices = @transform_11, window_bounds = array<i64: 1, 1, 10>}]} {
    %c0 = arith.constant 0 : index
    %c0_0 = arith.constant 0 : index
    %c0_1 = arith.constant 0 : index
    %c0_2 = arith.constant 0 : index
    %0 = vector.load %arg1[%c0, %c0_0, %c0_1, %c0_2] : memref<1x24x28x5xf32, #tpu.memory_space<vmem>>, vector<1x24x28x5xf32>
    %c0_3 = arith.constant 0 : index
    %c0_4 = arith.constant 0 : index
    %1 = vector.load %arg2[%c0_3, %c0_4] : memref<25x6xf32, #tpu.memory_space<vmem>>, vector<25x6xf32>
    %cst = arith.constant 0.000000e+00 : f32
    %2 = vector.broadcast %cst : f32 to vector<576x6xf32>
    %3 = vector.extract_strided_slice %0 {offsets = [0, 0, 0, 0], sizes = [1, 24, 24, 5], strides = [1, 1, 1, 1]} : vector<1x24x28x5xf32> to vector<1x24x24x5xf32>
    %4 = vector.shape_cast %3 : vector<1x24x24x5xf32> to vector<576x5xf32>
    %5 = vector.extract_strided_slice %1 {offsets = [0, 0], sizes = [5, 6], strides = [1, 1]} : vector<25x6xf32> to vector<5x6xf32>
    %cst_5 = arith.constant dense<0.000000e+00> : vector<576x6xf32>
    %6 = tpu.matmul %4, %5, %cst_5 {dimension_numbers = #tpu.dot_dimension_numbers<[1], [0], [0], [1], [0, 0, 1, 1], [], []>} : vector<576x5xf32>, vector<5x6xf32>, vector<576x6xf32> -> vector<576x6xf32>
    %7 = arith.addf %2, %6 : vector<576x6xf32>
    %8 = vector.extract_strided_slice %0 {offsets = [0, 0, 1, 0], sizes = [1, 24, 24, 5], strides = [1, 1, 1, 1]} : vector<1x24x28x5xf32> to vector<1x24x24x5xf32>
    %9 = vector.shape_cast %8 : vector<1x24x24x5xf32> to vector<576x5xf32>
    %10 = vector.extract_strided_slice %1 {offsets = [5, 0], sizes = [5, 6], strides = [1, 1]} : vector<25x6xf32> to vector<5x6xf32>
    %cst_6 = arith.constant dense<0.000000e+00> : vector<576x6xf32>
    %11 = tpu.matmul %9, %10, %cst_6 {dimension_numbers = #tpu.dot_dimension_numbers<[1], [0], [0], [1], [0, 0, 1, 1], [], []>} : vector<576x5xf32>, vector<5x6xf32>, vector<576x6xf32> -> vector<576x6xf32>
    %12 = arith.addf %7, %11 : vector<576x6xf32>
    %13 = vector.extract_strided_slice %0 {offsets = [0, 0, 2, 0], sizes = [1, 24, 24, 5], strides = [1, 1, 1, 1]} : vector<1x24x28x5xf32> to vector<1x24x24x5xf32>
    %14 = vector.shape_cast %13 : vector<1x24x24x5xf32> to vector<576x5xf32>
    %15 = vector.extract_strided_slice %1 {offsets = [10, 0], sizes = [5, 6], strides = [1, 1]} : vector<25x6xf32> to vector<5x6xf32>
    %cst_7 = arith.constant dense<0.000000e+00> : vector<576x6xf32>
    %16 = tpu.matmul %14, %15, %cst_7 {dimension_numbers = #tpu.dot_dimension_numbers<[1], [0], [0], [1], [0, 0, 1, 1], [], []>} : vector<576x5xf32>, vector<5x6xf32>, vector<576x6xf32> -> vector<576x6xf32>
    %17 = arith.addf %12, %16 : vector<576x6xf32>
    %18 = vector.extract_strided_slice %0 {offsets = [0, 0, 3, 0], sizes = [1, 24, 24, 5], strides = [1, 1, 1, 1]} : vector<1x24x28x5xf32> to vector<1x24x24x5xf32>
    %19 = vector.shape_cast %18 : vector<1x24x24x5xf32> to vector<576x5xf32>
    %20 = vector.extract_strided_slice %1 {offsets = [15, 0], sizes = [5, 6], strides = [1, 1]} : vector<25x6xf32> to vector<5x6xf32>
    %cst_8 = arith.constant dense<0.000000e+00> : vector<576x6xf32>
    %21 = tpu.matmul %19, %20, %cst_8 {dimension_numbers = #tpu.dot_dimension_numbers<[1], [0], [0], [1], [0, 0, 1, 1], [], []>} : vector<576x5xf32>, vector<5x6xf32>, vector<576x6xf32> -> vector<576x6xf32>
    %22 = arith.addf %17, %21 : vector<576x6xf32>
    %23 = vector.extract_strided_slice %0 {offsets = [0, 0, 4, 0], sizes = [1, 24, 24, 5], strides = [1, 1, 1, 1]} : vector<1x24x28x5xf32> to vector<1x24x24x5xf32>
    %24 = vector.shape_cast %23 : vector<1x24x24x5xf32> to vector<576x5xf32>
    %25 = vector.extract_strided_slice %1 {offsets = [20, 0], sizes = [5, 6], strides = [1, 1]} : vector<25x6xf32> to vector<5x6xf32>
    %cst_9 = arith.constant dense<0.000000e+00> : vector<576x6xf32>
    %26 = tpu.matmul %24, %25, %cst_9 {dimension_numbers = #tpu.dot_dimension_numbers<[1], [0], [0], [1], [0, 0, 1, 1], [], []>} : vector<576x5xf32>, vector<5x6xf32>, vector<576x6xf32> -> vector<576x6xf32>
    %27 = arith.addf %22, %26 : vector<576x6xf32>
    %c0_10 = arith.constant 0 : index
    %c0_11 = arith.constant 0 : index
    %28 = vector.load %arg3[%c0_10, %c0_11] : memref<1x6xf32, #tpu.memory_space<vmem>>, vector<1x6xf32>
    %29 = vector.broadcast %28 : vector<1x6xf32> to vector<576x6xf32>
    %30 = arith.addf %27, %29 : vector<576x6xf32>
    %31 = vector.shape_cast %30 : vector<576x6xf32> to vector<1x24x24x6xf32>
    %32 = vector.extract_strided_slice %31 {offsets = [0, 0, 0, 0], sizes = [1, 1, 24, 6], strides = [1, 1, 1, 1]} : vector<1x24x24x6xf32> to vector<1x1x24x6xf32>
    %33 = vector.shape_cast %32 : vector<1x1x24x6xf32> to vector<1x24x6xf32>
    %34 = vector.extract_strided_slice %31 {offsets = [0, 1, 0, 0], sizes = [1, 1, 24, 6], strides = [1, 1, 1, 1]} : vector<1x24x24x6xf32> to vector<1x1x24x6xf32>
    %35 = vector.shape_cast %34 : vector<1x1x24x6xf32> to vector<1x24x6xf32>
    %36 = arith.maximumf %33, %35 : vector<1x24x6xf32>
    %c0_12 = arith.constant 0 : index
    %c0_13 = arith.constant 0 : index
    %c0_14 = arith.constant 0 : index
    %c0_15 = arith.constant 0 : index
    %37 = vector.load %arg13[%c0_12, %c0_13, %c0_14, %c0_15] : memref<1x12x24x6xf32, #tpu.memory_space<vmem>>, vector<1x1x24x6xf32>
    %38 = vector.shape_cast %37 : vector<1x1x24x6xf32> to vector<1x24x6xf32>
    %39 = vector.shape_cast %36 : vector<1x24x6xf32> to vector<1x1x24x6xf32>
    tpu.vector_store %arg13[%c0_12, %c0_13, %c0_14, %c0_15], %39 {strides = array<i32>} : memref<1x12x24x6xf32, #tpu.memory_space<vmem>>, vector<1x1x24x6xf32>,
    %40 = vector.extract_strided_slice %31 {offsets = [0, 2, 0, 0], sizes = [1, 1, 24, 6], strides = [1, 1, 1, 1]} : vector<1x24x24x6xf32> to vector<1x1x24x6xf32>
    %41 = vector.shape_cast %40 : vector<1x1x24x6xf32> to vector<1x24x6xf32>
    %42 = vector.extract_strided_slice %31 {offsets = [0, 3, 0, 0], sizes = [1, 1, 24, 6], strides = [1, 1, 1, 1]} : vector<1x24x24x6xf32> to vector<1x1x24x6xf32>
    %43 = vector.shape_cast %42 : vector<1x1x24x6xf32> to vector<1x24x6xf32>
    %44 = arith.maximumf %41, %43 : vector<1x24x6xf32>
    %c0_16 = arith.constant 0 : index
    %c1 = arith.constant 1 : index
    %c0_17 = arith.constant 0 : index
    %c0_18 = arith.constant 0 : index
    %45 = vector.load %arg13[%c0_16, %c1, %c0_17, %c0_18] : memref<1x12x24x6xf32, #tpu.memory_space<vmem>>, vector<1x1x24x6xf32>
    %46 = vector.shape_cast %45 : vector<1x1x24x6xf32> to vector<1x24x6xf32>
    %47 = vector.shape_cast %44 : vector<1x24x6xf32> to vector<1x1x24x6xf32>
    tpu.vector_store %arg13[%c0_16, %c1, %c0_17, %c0_18], %47 {strides = array<i32>} : memref<1x12x24x6xf32, #tpu.memory_space<vmem>>, vector<1x1x24x6xf32>,
    %48 = vector.extract_strided_slice %31 {offsets = [0, 4, 0, 0], sizes = [1, 1, 24, 6], strides = [1, 1, 1, 1]} : vector<1x24x24x6xf32> to vector<1x1x24x6xf32>
    %49 = vector.shape_cast %48 : vector<1x1x24x6xf32> to vector<1x24x6xf32>
    %50 = vector.extract_strided_slice %31 {offsets = [0, 5, 0, 0], sizes = [1, 1, 24, 6], strides = [1, 1, 1, 1]} : vector<1x24x24x6xf32> to vector<1x1x24x6xf32>
    %51 = vector.shape_cast %50 : vector<1x1x24x6xf32> to vector<1x24x6xf32>
    %52 = arith.maximumf %49, %51 : vector<1x24x6xf32>
    %c0_19 = arith.constant 0 : index
    %c2 = arith.constant 2 : index
    %c0_20 = arith.constant 0 : index
    %c0_21 = arith.constant 0 : index
    %53 = vector.load %arg13[%c0_19, %c2, %c0_20, %c0_21] : memref<1x12x24x6xf32, #tpu.memory_space<vmem>>, vector<1x1x24x6xf32>
    %54 = vector.shape_cast %53 : vector<1x1x24x6xf32> to vector<1x24x6xf32>
    %55 = vector.shape_cast %52 : vector<1x24x6xf32> to vector<1x1x24x6xf32>
    tpu.vector_store %arg13[%c0_19, %c2, %c0_20, %c0_21], %55 {strides = array<i32>} : memref<1x12x24x6xf32, #tpu.memory_space<vmem>>, vector<1x1x24x6xf32>,
    %56 = vector.extract_strided_slice %31 {offsets = [0, 6, 0, 0], sizes = [1, 1, 24, 6], strides = [1, 1, 1, 1]} : vector<1x24x24x6xf32> to vector<1x1x24x6xf32>
    %57 = vector.shape_cast %56 : vector<1x1x24x6xf32> to vector<1x24x6xf32>
    %58 = vector.extract_strided_slice %31 {offsets = [0, 7, 0, 0], sizes = [1, 1, 24, 6], strides = [1, 1, 1, 1]} : vector<1x24x24x6xf32> to vector<1x1x24x6xf32>
    %59 = vector.shape_cast %58 : vector<1x1x24x6xf32> to vector<1x24x6xf32>
    %60 = arith.maximumf %57, %59 : vector<1x24x6xf32>
    %c0_22 = arith.constant 0 : index
    %c3 = arith.constant 3 : index
    %c0_23 = arith.constant 0 : index
    %c0_24 = arith.constant 0 : index
    %61 = vector.load %arg13[%c0_22, %c3, %c0_23, %c0_24] : memref<1x12x24x6xf32, #tpu.memory_space<vmem>>, vector<1x1x24x6xf32>
    %62 = vector.shape_cast %61 : vector<1x1x24x6xf32> to vector<1x24x6xf32>
    %63 = vector.shape_cast %60 : vector<1x24x6xf32> to vector<1x1x24x6xf32>
    tpu.vector_store %arg13[%c0_22, %c3, %c0_23, %c0_24], %63 {strides = array<i32>} : memref<1x12x24x6xf32, #tpu.memory_space<vmem>>, vector<1x1x24x6xf32>,
    %64 = vector.extract_strided_slice %31 {offsets = [0, 8, 0, 0], sizes = [1, 1, 24, 6], strides = [1, 1, 1, 1]} : vector<1x24x24x6xf32> to vector<1x1x24x6xf32>
    %65 = vector.shape_cast %64 : vector<1x1x24x6xf32> to vector<1x24x6xf32>
    %66 = vector.extract_strided_slice %31 {offsets = [0, 9, 0, 0], sizes = [1, 1, 24, 6], strides = [1, 1, 1, 1]} : vector<1x24x24x6xf32> to vector<1x1x24x6xf32>
    %67 = vector.shape_cast %66 : vector<1x1x24x6xf32> to vector<1x24x6xf32>
    %68 = arith.maximumf %65, %67 : vector<1x24x6xf32>
    %c0_25 = arith.constant 0 : index
    %c4 = arith.constant 4 : index
    %c0_26 = arith.constant 0 : index
    %c0_27 = arith.constant 0 : index
    %69 = vector.load %arg13[%c0_25, %c4, %c0_26, %c0_27] : memref<1x12x24x6xf32, #tpu.memory_space<vmem>>, vector<1x1x24x6xf32>
    %70 = vector.shape_cast %69 : vector<1x1x24x6xf32> to vector<1x24x6xf32>
    %71 = vector.shape_cast %68 : vector<1x24x6xf32> to vector<1x1x24x6xf32>
    tpu.vector_store %arg13[%c0_25, %c4, %c0_26, %c0_27], %71 {strides = array<i32>} : memref<1x12x24x6xf32, #tpu.memory_space<vmem>>, vector<1x1x24x6xf32>,
    %72 = vector.extract_strided_slice %31 {offsets = [0, 10, 0, 0], sizes = [1, 1, 24, 6], strides = [1, 1, 1, 1]} : vector<1x24x24x6xf32> to vector<1x1x24x6xf32>
    %73 = vector.shape_cast %72 : vector<1x1x24x6xf32> to vector<1x24x6xf32>
    %74 = vector.extract_strided_slice %31 {offsets = [0, 11, 0, 0], sizes = [1, 1, 24, 6], strides = [1, 1, 1, 1]} : vector<1x24x24x6xf32> to vector<1x1x24x6xf32>
    %75 = vector.shape_cast %74 : vector<1x1x24x6xf32> to vector<1x24x6xf32>
    %76 = arith.maximumf %73, %75 : vector<1x24x6xf32>
    %c0_28 = arith.constant 0 : index
    %c5 = arith.constant 5 : index
    %c0_29 = arith.constant 0 : index
    %c0_30 = arith.constant 0 : index
    %77 = vector.load %arg13[%c0_28, %c5, %c0_29, %c0_30] : memref<1x12x24x6xf32, #tpu.memory_space<vmem>>, vector<1x1x24x6xf32>
    %78 = vector.shape_cast %77 : vector<1x1x24x6xf32> to vector<1x24x6xf32>
    %79 = vector.shape_cast %76 : vector<1x24x6xf32> to vector<1x1x24x6xf32>
    tpu.vector_store %arg13[%c0_28, %c5, %c0_29, %c0_30], %79 {strides = array<i32>} : memref<1x12x24x6xf32, #tpu.memory_space<vmem>>, vector<1x1x24x6xf32>,
    %80 = vector.extract_strided_slice %31 {offsets = [0, 12, 0, 0], sizes = [1, 1, 24, 6], strides = [1, 1, 1, 1]} : vector<1x24x24x6xf32> to vector<1x1x24x6xf32>
    %81 = vector.shape_cast %80 : vector<1x1x24x6xf32> to vector<1x24x6xf32>
    %82 = vector.extract_strided_slice %31 {offsets = [0, 13, 0, 0], sizes = [1, 1, 24, 6], strides = [1, 1, 1, 1]} : vector<1x24x24x6xf32> to vector<1x1x24x6xf32>
    %83 = vector.shape_cast %82 : vector<1x1x24x6xf32> to vector<1x24x6xf32>
    %84 = arith.maximumf %81, %83 : vector<1x24x6xf32>
    %c0_31 = arith.constant 0 : index
    %c6 = arith.constant 6 : index
    %c0_32 = arith.constant 0 : index
    %c0_33 = arith.constant 0 : index
    %85 = vector.load %arg13[%c0_31, %c6, %c0_32, %c0_33] : memref<1x12x24x6xf32, #tpu.memory_space<vmem>>, vector<1x1x24x6xf32>
    %86 = vector.shape_cast %85 : vector<1x1x24x6xf32> to vector<1x24x6xf32>
    %87 = vector.shape_cast %84 : vector<1x24x6xf32> to vector<1x1x24x6xf32>
    tpu.vector_store %arg13[%c0_31, %c6, %c0_32, %c0_33], %87 {strides = array<i32>} : memref<1x12x24x6xf32, #tpu.memory_space<vmem>>, vector<1x1x24x6xf32>,
    %88 = vector.extract_strided_slice %31 {offsets = [0, 14, 0, 0], sizes = [1, 1, 24, 6], strides = [1, 1, 1, 1]} : vector<1x24x24x6xf32> to vector<1x1x24x6xf32>
    %89 = vector.shape_cast %88 : vector<1x1x24x6xf32> to vector<1x24x6xf32>
    %90 = vector.extract_strided_slice %31 {offsets = [0, 15, 0, 0], sizes = [1, 1, 24, 6], strides = [1, 1, 1, 1]} : vector<1x24x24x6xf32> to vector<1x1x24x6xf32>
    %91 = vector.shape_cast %90 : vector<1x1x24x6xf32> to vector<1x24x6xf32>
    %92 = arith.maximumf %89, %91 : vector<1x24x6xf32>
    %c0_34 = arith.constant 0 : index
    %c7 = arith.constant 7 : index
    %c0_35 = arith.constant 0 : index
    %c0_36 = arith.constant 0 : index
    %93 = vector.load %arg13[%c0_34, %c7, %c0_35, %c0_36] : memref<1x12x24x6xf32, #tpu.memory_space<vmem>>, vector<1x1x24x6xf32>
    %94 = vector.shape_cast %93 : vector<1x1x24x6xf32> to vector<1x24x6xf32>
    %95 = vector.shape_cast %92 : vector<1x24x6xf32> to vector<1x1x24x6xf32>
    tpu.vector_store %arg13[%c0_34, %c7, %c0_35, %c0_36], %95 {strides = array<i32>} : memref<1x12x24x6xf32, #tpu.memory_space<vmem>>, vector<1x1x24x6xf32>,
    %96 = vector.extract_strided_slice %31 {offsets = [0, 16, 0, 0], sizes = [1, 1, 24, 6], strides = [1, 1, 1, 1]} : vector<1x24x24x6xf32> to vector<1x1x24x6xf32>
    %97 = vector.shape_cast %96 : vector<1x1x24x6xf32> to vector<1x24x6xf32>
    %98 = vector.extract_strided_slice %31 {offsets = [0, 17, 0, 0], sizes = [1, 1, 24, 6], strides = [1, 1, 1, 1]} : vector<1x24x24x6xf32> to vector<1x1x24x6xf32>
    %99 = vector.shape_cast %98 : vector<1x1x24x6xf32> to vector<1x24x6xf32>
    %100 = arith.maximumf %97, %99 : vector<1x24x6xf32>
    %c0_37 = arith.constant 0 : index
    %c8 = arith.constant 8 : index
    %c0_38 = arith.constant 0 : index
    %c0_39 = arith.constant 0 : index
    %101 = vector.load %arg13[%c0_37, %c8, %c0_38, %c0_39] : memref<1x12x24x6xf32, #tpu.memory_space<vmem>>, vector<1x1x24x6xf32>
    %102 = vector.shape_cast %101 : vector<1x1x24x6xf32> to vector<1x24x6xf32>
    %103 = vector.shape_cast %100 : vector<1x24x6xf32> to vector<1x1x24x6xf32>
    tpu.vector_store %arg13[%c0_37, %c8, %c0_38, %c0_39], %103 {strides = array<i32>} : memref<1x12x24x6xf32, #tpu.memory_space<vmem>>, vector<1x1x24x6xf32>,
    %104 = vector.extract_strided_slice %31 {offsets = [0, 18, 0, 0], sizes = [1, 1, 24, 6], strides = [1, 1, 1, 1]} : vector<1x24x24x6xf32> to vector<1x1x24x6xf32>
    %105 = vector.shape_cast %104 : vector<1x1x24x6xf32> to vector<1x24x6xf32>
    %106 = vector.extract_strided_slice %31 {offsets = [0, 19, 0, 0], sizes = [1, 1, 24, 6], strides = [1, 1, 1, 1]} : vector<1x24x24x6xf32> to vector<1x1x24x6xf32>
    %107 = vector.shape_cast %106 : vector<1x1x24x6xf32> to vector<1x24x6xf32>
    %108 = arith.maximumf %105, %107 : vector<1x24x6xf32>
    %c0_40 = arith.constant 0 : index
    %c9 = arith.constant 9 : index
    %c0_41 = arith.constant 0 : index
    %c0_42 = arith.constant 0 : index
    %109 = vector.load %arg13[%c0_40, %c9, %c0_41, %c0_42] : memref<1x12x24x6xf32, #tpu.memory_space<vmem>>, vector<1x1x24x6xf32>
    %110 = vector.shape_cast %109 : vector<1x1x24x6xf32> to vector<1x24x6xf32>
    %111 = vector.shape_cast %108 : vector<1x24x6xf32> to vector<1x1x24x6xf32>
    tpu.vector_store %arg13[%c0_40, %c9, %c0_41, %c0_42], %111 {strides = array<i32>} : memref<1x12x24x6xf32, #tpu.memory_space<vmem>>, vector<1x1x24x6xf32>,
    %112 = vector.extract_strided_slice %31 {offsets = [0, 20, 0, 0], sizes = [1, 1, 24, 6], strides = [1, 1, 1, 1]} : vector<1x24x24x6xf32> to vector<1x1x24x6xf32>
    %113 = vector.shape_cast %112 : vector<1x1x24x6xf32> to vector<1x24x6xf32>
    %114 = vector.extract_strided_slice %31 {offsets = [0, 21, 0, 0], sizes = [1, 1, 24, 6], strides = [1, 1, 1, 1]} : vector<1x24x24x6xf32> to vector<1x1x24x6xf32>
    %115 = vector.shape_cast %114 : vector<1x1x24x6xf32> to vector<1x24x6xf32>
    %116 = arith.maximumf %113, %115 : vector<1x24x6xf32>
    %c0_43 = arith.constant 0 : index
    %c10 = arith.constant 10 : index
    %c0_44 = arith.constant 0 : index
    %c0_45 = arith.constant 0 : index
    %117 = vector.load %arg13[%c0_43, %c10, %c0_44, %c0_45] : memref<1x12x24x6xf32, #tpu.memory_space<vmem>>, vector<1x1x24x6xf32>
    %118 = vector.shape_cast %117 : vector<1x1x24x6xf32> to vector<1x24x6xf32>
    %119 = vector.shape_cast %116 : vector<1x24x6xf32> to vector<1x1x24x6xf32>
    tpu.vector_store %arg13[%c0_43, %c10, %c0_44, %c0_45], %119 {strides = array<i32>} : memref<1x12x24x6xf32, #tpu.memory_space<vmem>>, vector<1x1x24x6xf32>,
    %120 = vector.extract_strided_slice %31 {offsets = [0, 22, 0, 0], sizes = [1, 1, 24, 6], strides = [1, 1, 1, 1]} : vector<1x24x24x6xf32> to vector<1x1x24x6xf32>
    %121 = vector.shape_cast %120 : vector<1x1x24x6xf32> to vector<1x24x6xf32>
    %122 = vector.extract_strided_slice %31 {offsets = [0, 23, 0, 0], sizes = [1, 1, 24, 6], strides = [1, 1, 1, 1]} : vector<1x24x24x6xf32> to vector<1x1x24x6xf32>
    %123 = vector.shape_cast %122 : vector<1x1x24x6xf32> to vector<1x24x6xf32>
    %124 = arith.maximumf %121, %123 : vector<1x24x6xf32>
    %c0_46 = arith.constant 0 : index
    %c11 = arith.constant 11 : index
    %c0_47 = arith.constant 0 : index
    %c0_48 = arith.constant 0 : index
    %125 = vector.load %arg13[%c0_46, %c11, %c0_47, %c0_48] : memref<1x12x24x6xf32, #tpu.memory_space<vmem>>, vector<1x1x24x6xf32>
    %126 = vector.shape_cast %125 : vector<1x1x24x6xf32> to vector<1x24x6xf32>
    %127 = vector.shape_cast %124 : vector<1x24x6xf32> to vector<1x1x24x6xf32>
    tpu.vector_store %arg13[%c0_46, %c11, %c0_47, %c0_48], %127 {strides = array<i32>} : memref<1x12x24x6xf32, #tpu.memory_space<vmem>>, vector<1x1x24x6xf32>,
    %c0_49 = arith.constant 0 : index
    %c0_50 = arith.constant 0 : index
    %c0_51 = arith.constant 0 : index
    %c0_52 = arith.constant 0 : index
    %128 = tpu.strided_load %arg13[%c0_49, %c0_50, %c0_51, %c0_52] {strides = array<i32: 1, 1, 2, 1>} : memref<1x12x24x6xf32, #tpu.memory_space<vmem>>, vector<1x12x12x6xf32>
    %c0_53 = arith.constant 0 : index
    %c0_54 = arith.constant 0 : index
    %c1_55 = arith.constant 1 : index
    %c0_56 = arith.constant 0 : index
    %129 = tpu.strided_load %arg13[%c0_53, %c0_54, %c1_55, %c0_56] {strides = array<i32: 1, 1, 2, 1>} : memref<1x12x24x6xf32, #tpu.memory_space<vmem>>, vector<1x12x12x6xf32>
    %130 = arith.maximumf %128, %129 : vector<1x12x12x6xf32>
    %c0_57 = arith.constant 0 : index
    %c0_58 = arith.constant 0 : index
    %131 = vector.load %arg4[%c0_57, %c0_58] : memref<150x16xf32, #tpu.memory_space<vmem>>, vector<150x16xf32>
    %cst_59 = arith.constant 0.000000e+00 : f32
    %132 = vector.broadcast %cst_59 : f32 to vector<64x16xf32>
    %133 = vector.extract_strided_slice %130 {offsets = [0, 0, 0, 0], sizes = [1, 8, 8, 6], strides = [1, 1, 1, 1]} : vector<1x12x12x6xf32> to vector<1x8x8x6xf32>
    %134 = vector.shape_cast %133 : vector<1x8x8x6xf32> to vector<64x6xf32>
    %135 = vector.extract_strided_slice %131 {offsets = [0, 0], sizes = [6, 16], strides = [1, 1]} : vector<150x16xf32> to vector<6x16xf32>
    %cst_60 = arith.constant dense<0.000000e+00> : vector<64x16xf32>
    %136 = tpu.matmul %134, %135, %cst_60 {dimension_numbers = #tpu.dot_dimension_numbers<[1], [0], [0], [1], [0, 0, 1, 1], [], []>} : vector<64x6xf32>, vector<6x16xf32>, vector<64x16xf32> -> vector<64x16xf32>
    %137 = arith.addf %132, %136 : vector<64x16xf32>
    %138 = vector.extract_strided_slice %130 {offsets = [0, 0, 1, 0], sizes = [1, 8, 8, 6], strides = [1, 1, 1, 1]} : vector<1x12x12x6xf32> to vector<1x8x8x6xf32>
    %139 = vector.shape_cast %138 : vector<1x8x8x6xf32> to vector<64x6xf32>
    %140 = vector.extract_strided_slice %131 {offsets = [6, 0], sizes = [6, 16], strides = [1, 1]} : vector<150x16xf32> to vector<6x16xf32>
    %cst_61 = arith.constant dense<0.000000e+00> : vector<64x16xf32>
    %141 = tpu.matmul %139, %140, %cst_61 {dimension_numbers = #tpu.dot_dimension_numbers<[1], [0], [0], [1], [0, 0, 1, 1], [], []>} : vector<64x6xf32>, vector<6x16xf32>, vector<64x16xf32> -> vector<64x16xf32>
    %142 = arith.addf %137, %141 : vector<64x16xf32>
    %143 = vector.extract_strided_slice %130 {offsets = [0, 0, 2, 0], sizes = [1, 8, 8, 6], strides = [1, 1, 1, 1]} : vector<1x12x12x6xf32> to vector<1x8x8x6xf32>
    %144 = vector.shape_cast %143 : vector<1x8x8x6xf32> to vector<64x6xf32>
    %145 = vector.extract_strided_slice %131 {offsets = [12, 0], sizes = [6, 16], strides = [1, 1]} : vector<150x16xf32> to vector<6x16xf32>
    %cst_62 = arith.constant dense<0.000000e+00> : vector<64x16xf32>
    %146 = tpu.matmul %144, %145, %cst_62 {dimension_numbers = #tpu.dot_dimension_numbers<[1], [0], [0], [1], [0, 0, 1, 1], [], []>} : vector<64x6xf32>, vector<6x16xf32>, vector<64x16xf32> -> vector<64x16xf32>
    %147 = arith.addf %142, %146 : vector<64x16xf32>
    %148 = vector.extract_strided_slice %130 {offsets = [0, 0, 3, 0], sizes = [1, 8, 8, 6], strides = [1, 1, 1, 1]} : vector<1x12x12x6xf32> to vector<1x8x8x6xf32>
    %149 = vector.shape_cast %148 : vector<1x8x8x6xf32> to vector<64x6xf32>
    %150 = vector.extract_strided_slice %131 {offsets = [18, 0], sizes = [6, 16], strides = [1, 1]} : vector<150x16xf32> to vector<6x16xf32>
    %cst_63 = arith.constant dense<0.000000e+00> : vector<64x16xf32>
    %151 = tpu.matmul %149, %150, %cst_63 {dimension_numbers = #tpu.dot_dimension_numbers<[1], [0], [0], [1], [0, 0, 1, 1], [], []>} : vector<64x6xf32>, vector<6x16xf32>, vector<64x16xf32> -> vector<64x16xf32>
    %152 = arith.addf %147, %151 : vector<64x16xf32>
    %153 = vector.extract_strided_slice %130 {offsets = [0, 0, 4, 0], sizes = [1, 8, 8, 6], strides = [1, 1, 1, 1]} : vector<1x12x12x6xf32> to vector<1x8x8x6xf32>
    %154 = vector.shape_cast %153 : vector<1x8x8x6xf32> to vector<64x6xf32>
    %155 = vector.extract_strided_slice %131 {offsets = [24, 0], sizes = [6, 16], strides = [1, 1]} : vector<150x16xf32> to vector<6x16xf32>
    %cst_64 = arith.constant dense<0.000000e+00> : vector<64x16xf32>
    %156 = tpu.matmul %154, %155, %cst_64 {dimension_numbers = #tpu.dot_dimension_numbers<[1], [0], [0], [1], [0, 0, 1, 1], [], []>} : vector<64x6xf32>, vector<6x16xf32>, vector<64x16xf32> -> vector<64x16xf32>
    %157 = arith.addf %152, %156 : vector<64x16xf32>
    %158 = vector.extract_strided_slice %130 {offsets = [0, 1, 0, 0], sizes = [1, 8, 8, 6], strides = [1, 1, 1, 1]} : vector<1x12x12x6xf32> to vector<1x8x8x6xf32>
    %159 = vector.shape_cast %158 : vector<1x8x8x6xf32> to vector<64x6xf32>
    %160 = vector.extract_strided_slice %131 {offsets = [30, 0], sizes = [6, 16], strides = [1, 1]} : vector<150x16xf32> to vector<6x16xf32>
    %cst_65 = arith.constant dense<0.000000e+00> : vector<64x16xf32>
    %161 = tpu.matmul %159, %160, %cst_65 {dimension_numbers = #tpu.dot_dimension_numbers<[1], [0], [0], [1], [0, 0, 1, 1], [], []>} : vector<64x6xf32>, vector<6x16xf32>, vector<64x16xf32> -> vector<64x16xf32>
    %162 = arith.addf %157, %161 : vector<64x16xf32>
    %163 = vector.extract_strided_slice %130 {offsets = [0, 1, 1, 0], sizes = [1, 8, 8, 6], strides = [1, 1, 1, 1]} : vector<1x12x12x6xf32> to vector<1x8x8x6xf32>
    %164 = vector.shape_cast %163 : vector<1x8x8x6xf32> to vector<64x6xf32>
    %165 = vector.extract_strided_slice %131 {offsets = [36, 0], sizes = [6, 16], strides = [1, 1]} : vector<150x16xf32> to vector<6x16xf32>
    %cst_66 = arith.constant dense<0.000000e+00> : vector<64x16xf32>
    %166 = tpu.matmul %164, %165, %cst_66 {dimension_numbers = #tpu.dot_dimension_numbers<[1], [0], [0], [1], [0, 0, 1, 1], [], []>} : vector<64x6xf32>, vector<6x16xf32>, vector<64x16xf32> -> vector<64x16xf32>
    %167 = arith.addf %162, %166 : vector<64x16xf32>
    %168 = vector.extract_strided_slice %130 {offsets = [0, 1, 2, 0], sizes = [1, 8, 8, 6], strides = [1, 1, 1, 1]} : vector<1x12x12x6xf32> to vector<1x8x8x6xf32>
    %169 = vector.shape_cast %168 : vector<1x8x8x6xf32> to vector<64x6xf32>
    %170 = vector.extract_strided_slice %131 {offsets = [42, 0], sizes = [6, 16], strides = [1, 1]} : vector<150x16xf32> to vector<6x16xf32>
    %cst_67 = arith.constant dense<0.000000e+00> : vector<64x16xf32>
    %171 = tpu.matmul %169, %170, %cst_67 {dimension_numbers = #tpu.dot_dimension_numbers<[1], [0], [0], [1], [0, 0, 1, 1], [], []>} : vector<64x6xf32>, vector<6x16xf32>, vector<64x16xf32> -> vector<64x16xf32>
    %172 = arith.addf %167, %171 : vector<64x16xf32>
    %173 = vector.extract_strided_slice %130 {offsets = [0, 1, 3, 0], sizes = [1, 8, 8, 6], strides = [1, 1, 1, 1]} : vector<1x12x12x6xf32> to vector<1x8x8x6xf32>
    %174 = vector.shape_cast %173 : vector<1x8x8x6xf32> to vector<64x6xf32>
    %175 = vector.extract_strided_slice %131 {offsets = [48, 0], sizes = [6, 16], strides = [1, 1]} : vector<150x16xf32> to vector<6x16xf32>
    %cst_68 = arith.constant dense<0.000000e+00> : vector<64x16xf32>
    %176 = tpu.matmul %174, %175, %cst_68 {dimension_numbers = #tpu.dot_dimension_numbers<[1], [0], [0], [1], [0, 0, 1, 1], [], []>} : vector<64x6xf32>, vector<6x16xf32>, vector<64x16xf32> -> vector<64x16xf32>
    %177 = arith.addf %172, %176 : vector<64x16xf32>
    %178 = vector.extract_strided_slice %130 {offsets = [0, 1, 4, 0], sizes = [1, 8, 8, 6], strides = [1, 1, 1, 1]} : vector<1x12x12x6xf32> to vector<1x8x8x6xf32>
    %179 = vector.shape_cast %178 : vector<1x8x8x6xf32> to vector<64x6xf32>
    %180 = vector.extract_strided_slice %131 {offsets = [54, 0], sizes = [6, 16], strides = [1, 1]} : vector<150x16xf32> to vector<6x16xf32>
    %cst_69 = arith.constant dense<0.000000e+00> : vector<64x16xf32>
    %181 = tpu.matmul %179, %180, %cst_69 {dimension_numbers = #tpu.dot_dimension_numbers<[1], [0], [0], [1], [0, 0, 1, 1], [], []>} : vector<64x6xf32>, vector<6x16xf32>, vector<64x16xf32> -> vector<64x16xf32>
    %182 = arith.addf %177, %181 : vector<64x16xf32>
    %183 = vector.extract_strided_slice %130 {offsets = [0, 2, 0, 0], sizes = [1, 8, 8, 6], strides = [1, 1, 1, 1]} : vector<1x12x12x6xf32> to vector<1x8x8x6xf32>
    %184 = vector.shape_cast %183 : vector<1x8x8x6xf32> to vector<64x6xf32>
    %185 = vector.extract_strided_slice %131 {offsets = [60, 0], sizes = [6, 16], strides = [1, 1]} : vector<150x16xf32> to vector<6x16xf32>
    %cst_70 = arith.constant dense<0.000000e+00> : vector<64x16xf32>
    %186 = tpu.matmul %184, %185, %cst_70 {dimension_numbers = #tpu.dot_dimension_numbers<[1], [0], [0], [1], [0, 0, 1, 1], [], []>} : vector<64x6xf32>, vector<6x16xf32>, vector<64x16xf32> -> vector<64x16xf32>
    %187 = arith.addf %182, %186 : vector<64x16xf32>
    %188 = vector.extract_strided_slice %130 {offsets = [0, 2, 1, 0], sizes = [1, 8, 8, 6], strides = [1, 1, 1, 1]} : vector<1x12x12x6xf32> to vector<1x8x8x6xf32>
    %189 = vector.shape_cast %188 : vector<1x8x8x6xf32> to vector<64x6xf32>
    %190 = vector.extract_strided_slice %131 {offsets = [66, 0], sizes = [6, 16], strides = [1, 1]} : vector<150x16xf32> to vector<6x16xf32>
    %cst_71 = arith.constant dense<0.000000e+00> : vector<64x16xf32>
    %191 = tpu.matmul %189, %190, %cst_71 {dimension_numbers = #tpu.dot_dimension_numbers<[1], [0], [0], [1], [0, 0, 1, 1], [], []>} : vector<64x6xf32>, vector<6x16xf32>, vector<64x16xf32> -> vector<64x16xf32>
    %192 = arith.addf %187, %191 : vector<64x16xf32>
    %193 = vector.extract_strided_slice %130 {offsets = [0, 2, 2, 0], sizes = [1, 8, 8, 6], strides = [1, 1, 1, 1]} : vector<1x12x12x6xf32> to vector<1x8x8x6xf32>
    %194 = vector.shape_cast %193 : vector<1x8x8x6xf32> to vector<64x6xf32>
    %195 = vector.extract_strided_slice %131 {offsets = [72, 0], sizes = [6, 16], strides = [1, 1]} : vector<150x16xf32> to vector<6x16xf32>
    %cst_72 = arith.constant dense<0.000000e+00> : vector<64x16xf32>
    %196 = tpu.matmul %194, %195, %cst_72 {dimension_numbers = #tpu.dot_dimension_numbers<[1], [0], [0], [1], [0, 0, 1, 1], [], []>} : vector<64x6xf32>, vector<6x16xf32>, vector<64x16xf32> -> vector<64x16xf32>
    %197 = arith.addf %192, %196 : vector<64x16xf32>
    %198 = vector.extract_strided_slice %130 {offsets = [0, 2, 3, 0], sizes = [1, 8, 8, 6], strides = [1, 1, 1, 1]} : vector<1x12x12x6xf32> to vector<1x8x8x6xf32>
    %199 = vector.shape_cast %198 : vector<1x8x8x6xf32> to vector<64x6xf32>
    %200 = vector.extract_strided_slice %131 {offsets = [78, 0], sizes = [6, 16], strides = [1, 1]} : vector<150x16xf32> to vector<6x16xf32>
    %cst_73 = arith.constant dense<0.000000e+00> : vector<64x16xf32>
    %201 = tpu.matmul %199, %200, %cst_73 {dimension_numbers = #tpu.dot_dimension_numbers<[1], [0], [0], [1], [0, 0, 1, 1], [], []>} : vector<64x6xf32>, vector<6x16xf32>, vector<64x16xf32> -> vector<64x16xf32>
    %202 = arith.addf %197, %201 : vector<64x16xf32>
    %203 = vector.extract_strided_slice %130 {offsets = [0, 2, 4, 0], sizes = [1, 8, 8, 6], strides = [1, 1, 1, 1]} : vector<1x12x12x6xf32> to vector<1x8x8x6xf32>
    %204 = vector.shape_cast %203 : vector<1x8x8x6xf32> to vector<64x6xf32>
    %205 = vector.extract_strided_slice %131 {offsets = [84, 0], sizes = [6, 16], strides = [1, 1]} : vector<150x16xf32> to vector<6x16xf32>
    %cst_74 = arith.constant dense<0.000000e+00> : vector<64x16xf32>
    %206 = tpu.matmul %204, %205, %cst_74 {dimension_numbers = #tpu.dot_dimension_numbers<[1], [0], [0], [1], [0, 0, 1, 1], [], []>} : vector<64x6xf32>, vector<6x16xf32>, vector<64x16xf32> -> vector<64x16xf32>
    %207 = arith.addf %202, %206 : vector<64x16xf32>
    %208 = vector.extract_strided_slice %130 {offsets = [0, 3, 0, 0], sizes = [1, 8, 8, 6], strides = [1, 1, 1, 1]} : vector<1x12x12x6xf32> to vector<1x8x8x6xf32>
    %209 = vector.shape_cast %208 : vector<1x8x8x6xf32> to vector<64x6xf32>
    %210 = vector.extract_strided_slice %131 {offsets = [90, 0], sizes = [6, 16], strides = [1, 1]} : vector<150x16xf32> to vector<6x16xf32>
    %cst_75 = arith.constant dense<0.000000e+00> : vector<64x16xf32>
    %211 = tpu.matmul %209, %210, %cst_75 {dimension_numbers = #tpu.dot_dimension_numbers<[1], [0], [0], [1], [0, 0, 1, 1], [], []>} : vector<64x6xf32>, vector<6x16xf32>, vector<64x16xf32> -> vector<64x16xf32>
    %212 = arith.addf %207, %211 : vector<64x16xf32>
    %213 = vector.extract_strided_slice %130 {offsets = [0, 3, 1, 0], sizes = [1, 8, 8, 6], strides = [1, 1, 1, 1]} : vector<1x12x12x6xf32> to vector<1x8x8x6xf32>
    %214 = vector.shape_cast %213 : vector<1x8x8x6xf32> to vector<64x6xf32>
    %215 = vector.extract_strided_slice %131 {offsets = [96, 0], sizes = [6, 16], strides = [1, 1]} : vector<150x16xf32> to vector<6x16xf32>
    %cst_76 = arith.constant dense<0.000000e+00> : vector<64x16xf32>
    %216 = tpu.matmul %214, %215, %cst_76 {dimension_numbers = #tpu.dot_dimension_numbers<[1], [0], [0], [1], [0, 0, 1, 1], [], []>} : vector<64x6xf32>, vector<6x16xf32>, vector<64x16xf32> -> vector<64x16xf32>
    %217 = arith.addf %212, %216 : vector<64x16xf32>
    %218 = vector.extract_strided_slice %130 {offsets = [0, 3, 2, 0], sizes = [1, 8, 8, 6], strides = [1, 1, 1, 1]} : vector<1x12x12x6xf32> to vector<1x8x8x6xf32>
    %219 = vector.shape_cast %218 : vector<1x8x8x6xf32> to vector<64x6xf32>
    %220 = vector.extract_strided_slice %131 {offsets = [102, 0], sizes = [6, 16], strides = [1, 1]} : vector<150x16xf32> to vector<6x16xf32>
    %cst_77 = arith.constant dense<0.000000e+00> : vector<64x16xf32>
    %221 = tpu.matmul %219, %220, %cst_77 {dimension_numbers = #tpu.dot_dimension_numbers<[1], [0], [0], [1], [0, 0, 1, 1], [], []>} : vector<64x6xf32>, vector<6x16xf32>, vector<64x16xf32> -> vector<64x16xf32>
    %222 = arith.addf %217, %221 : vector<64x16xf32>
    %223 = vector.extract_strided_slice %130 {offsets = [0, 3, 3, 0], sizes = [1, 8, 8, 6], strides = [1, 1, 1, 1]} : vector<1x12x12x6xf32> to vector<1x8x8x6xf32>
    %224 = vector.shape_cast %223 : vector<1x8x8x6xf32> to vector<64x6xf32>
    %225 = vector.extract_strided_slice %131 {offsets = [108, 0], sizes = [6, 16], strides = [1, 1]} : vector<150x16xf32> to vector<6x16xf32>
    %cst_78 = arith.constant dense<0.000000e+00> : vector<64x16xf32>
    %226 = tpu.matmul %224, %225, %cst_78 {dimension_numbers = #tpu.dot_dimension_numbers<[1], [0], [0], [1], [0, 0, 1, 1], [], []>} : vector<64x6xf32>, vector<6x16xf32>, vector<64x16xf32> -> vector<64x16xf32>
    %227 = arith.addf %222, %226 : vector<64x16xf32>
    %228 = vector.extract_strided_slice %130 {offsets = [0, 3, 4, 0], sizes = [1, 8, 8, 6], strides = [1, 1, 1, 1]} : vector<1x12x12x6xf32> to vector<1x8x8x6xf32>
    %229 = vector.shape_cast %228 : vector<1x8x8x6xf32> to vector<64x6xf32>
    %230 = vector.extract_strided_slice %131 {offsets = [114, 0], sizes = [6, 16], strides = [1, 1]} : vector<150x16xf32> to vector<6x16xf32>
    %cst_79 = arith.constant dense<0.000000e+00> : vector<64x16xf32>
    %231 = tpu.matmul %229, %230, %cst_79 {dimension_numbers = #tpu.dot_dimension_numbers<[1], [0], [0], [1], [0, 0, 1, 1], [], []>} : vector<64x6xf32>, vector<6x16xf32>, vector<64x16xf32> -> vector<64x16xf32>
    %232 = arith.addf %227, %231 : vector<64x16xf32>
    %233 = vector.extract_strided_slice %130 {offsets = [0, 4, 0, 0], sizes = [1, 8, 8, 6], strides = [1, 1, 1, 1]} : vector<1x12x12x6xf32> to vector<1x8x8x6xf32>
    %234 = vector.shape_cast %233 : vector<1x8x8x6xf32> to vector<64x6xf32>
    %235 = vector.extract_strided_slice %131 {offsets = [120, 0], sizes = [6, 16], strides = [1, 1]} : vector<150x16xf32> to vector<6x16xf32>
    %cst_80 = arith.constant dense<0.000000e+00> : vector<64x16xf32>
    %236 = tpu.matmul %234, %235, %cst_80 {dimension_numbers = #tpu.dot_dimension_numbers<[1], [0], [0], [1], [0, 0, 1, 1], [], []>} : vector<64x6xf32>, vector<6x16xf32>, vector<64x16xf32> -> vector<64x16xf32>
    %237 = arith.addf %232, %236 : vector<64x16xf32>
    %238 = vector.extract_strided_slice %130 {offsets = [0, 4, 1, 0], sizes = [1, 8, 8, 6], strides = [1, 1, 1, 1]} : vector<1x12x12x6xf32> to vector<1x8x8x6xf32>
    %239 = vector.shape_cast %238 : vector<1x8x8x6xf32> to vector<64x6xf32>
    %240 = vector.extract_strided_slice %131 {offsets = [126, 0], sizes = [6, 16], strides = [1, 1]} : vector<150x16xf32> to vector<6x16xf32>
    %cst_81 = arith.constant dense<0.000000e+00> : vector<64x16xf32>
    %241 = tpu.matmul %239, %240, %cst_81 {dimension_numbers = #tpu.dot_dimension_numbers<[1], [0], [0], [1], [0, 0, 1, 1], [], []>} : vector<64x6xf32>, vector<6x16xf32>, vector<64x16xf32> -> vector<64x16xf32>
    %242 = arith.addf %237, %241 : vector<64x16xf32>
    %243 = vector.extract_strided_slice %130 {offsets = [0, 4, 2, 0], sizes = [1, 8, 8, 6], strides = [1, 1, 1, 1]} : vector<1x12x12x6xf32> to vector<1x8x8x6xf32>
    %244 = vector.shape_cast %243 : vector<1x8x8x6xf32> to vector<64x6xf32>
    %245 = vector.extract_strided_slice %131 {offsets = [132, 0], sizes = [6, 16], strides = [1, 1]} : vector<150x16xf32> to vector<6x16xf32>
    %cst_82 = arith.constant dense<0.000000e+00> : vector<64x16xf32>
    %246 = tpu.matmul %244, %245, %cst_82 {dimension_numbers = #tpu.dot_dimension_numbers<[1], [0], [0], [1], [0, 0, 1, 1], [], []>} : vector<64x6xf32>, vector<6x16xf32>, vector<64x16xf32> -> vector<64x16xf32>
    %247 = arith.addf %242, %246 : vector<64x16xf32>
    %248 = vector.extract_strided_slice %130 {offsets = [0, 4, 3, 0], sizes = [1, 8, 8, 6], strides = [1, 1, 1, 1]} : vector<1x12x12x6xf32> to vector<1x8x8x6xf32>
    %249 = vector.shape_cast %248 : vector<1x8x8x6xf32> to vector<64x6xf32>
    %250 = vector.extract_strided_slice %131 {offsets = [138, 0], sizes = [6, 16], strides = [1, 1]} : vector<150x16xf32> to vector<6x16xf32>
    %cst_83 = arith.constant dense<0.000000e+00> : vector<64x16xf32>
    %251 = tpu.matmul %249, %250, %cst_83 {dimension_numbers = #tpu.dot_dimension_numbers<[1], [0], [0], [1], [0, 0, 1, 1], [], []>} : vector<64x6xf32>, vector<6x16xf32>, vector<64x16xf32> -> vector<64x16xf32>
    %252 = arith.addf %247, %251 : vector<64x16xf32>
    %253 = vector.extract_strided_slice %130 {offsets = [0, 4, 4, 0], sizes = [1, 8, 8, 6], strides = [1, 1, 1, 1]} : vector<1x12x12x6xf32> to vector<1x8x8x6xf32>
    %254 = vector.shape_cast %253 : vector<1x8x8x6xf32> to vector<64x6xf32>
    %255 = vector.extract_strided_slice %131 {offsets = [144, 0], sizes = [6, 16], strides = [1, 1]} : vector<150x16xf32> to vector<6x16xf32>
    %cst_84 = arith.constant dense<0.000000e+00> : vector<64x16xf32>
    %256 = tpu.matmul %254, %255, %cst_84 {dimension_numbers = #tpu.dot_dimension_numbers<[1], [0], [0], [1], [0, 0, 1, 1], [], []>} : vector<64x6xf32>, vector<6x16xf32>, vector<64x16xf32> -> vector<64x16xf32>
    %257 = arith.addf %252, %256 : vector<64x16xf32>
    %c0_85 = arith.constant 0 : index
    %c0_86 = arith.constant 0 : index
    %258 = vector.load %arg5[%c0_85, %c0_86] : memref<1x16xf32, #tpu.memory_space<vmem>>, vector<1x16xf32>
    %259 = vector.broadcast %258 : vector<1x16xf32> to vector<64x16xf32>
    %260 = arith.addf %257, %259 : vector<64x16xf32>
    %261 = vector.shape_cast %260 : vector<64x16xf32> to vector<1x8x8x16xf32>
    %262 = vector.extract_strided_slice %261 {offsets = [0, 0, 0, 0], sizes = [1, 1, 8, 16], strides = [1, 1, 1, 1]} : vector<1x8x8x16xf32> to vector<1x1x8x16xf32>
    %263 = vector.shape_cast %262 : vector<1x1x8x16xf32> to vector<1x8x16xf32>
    %264 = vector.extract_strided_slice %261 {offsets = [0, 1, 0, 0], sizes = [1, 1, 8, 16], strides = [1, 1, 1, 1]} : vector<1x8x8x16xf32> to vector<1x1x8x16xf32>
    %265 = vector.shape_cast %264 : vector<1x1x8x16xf32> to vector<1x8x16xf32>
    %266 = arith.maximumf %263, %265 : vector<1x8x16xf32>
    %c0_87 = arith.constant 0 : index
    %c0_88 = arith.constant 0 : index
    %c0_89 = arith.constant 0 : index
    %c0_90 = arith.constant 0 : index
    %267 = vector.load %arg14[%c0_87, %c0_88, %c0_89, %c0_90] : memref<1x4x8x16xf32, #tpu.memory_space<vmem>>, vector<1x1x8x16xf32>
    %268 = vector.shape_cast %267 : vector<1x1x8x16xf32> to vector<1x8x16xf32>
    %269 = vector.shape_cast %266 : vector<1x8x16xf32> to vector<1x1x8x16xf32>
    tpu.vector_store %arg14[%c0_87, %c0_88, %c0_89, %c0_90], %269 {strides = array<i32>} : memref<1x4x8x16xf32, #tpu.memory_space<vmem>>, vector<1x1x8x16xf32>,
    %270 = vector.extract_strided_slice %261 {offsets = [0, 2, 0, 0], sizes = [1, 1, 8, 16], strides = [1, 1, 1, 1]} : vector<1x8x8x16xf32> to vector<1x1x8x16xf32>
    %271 = vector.shape_cast %270 : vector<1x1x8x16xf32> to vector<1x8x16xf32>
    %272 = vector.extract_strided_slice %261 {offsets = [0, 3, 0, 0], sizes = [1, 1, 8, 16], strides = [1, 1, 1, 1]} : vector<1x8x8x16xf32> to vector<1x1x8x16xf32>
    %273 = vector.shape_cast %272 : vector<1x1x8x16xf32> to vector<1x8x16xf32>
    %274 = arith.maximumf %271, %273 : vector<1x8x16xf32>
    %c0_91 = arith.constant 0 : index
    %c1_92 = arith.constant 1 : index
    %c0_93 = arith.constant 0 : index
    %c0_94 = arith.constant 0 : index
    %275 = vector.load %arg14[%c0_91, %c1_92, %c0_93, %c0_94] : memref<1x4x8x16xf32, #tpu.memory_space<vmem>>, vector<1x1x8x16xf32>
    %276 = vector.shape_cast %275 : vector<1x1x8x16xf32> to vector<1x8x16xf32>
    %277 = vector.shape_cast %274 : vector<1x8x16xf32> to vector<1x1x8x16xf32>
    tpu.vector_store %arg14[%c0_91, %c1_92, %c0_93, %c0_94], %277 {strides = array<i32>} : memref<1x4x8x16xf32, #tpu.memory_space<vmem>>, vector<1x1x8x16xf32>,
    %278 = vector.extract_strided_slice %261 {offsets = [0, 4, 0, 0], sizes = [1, 1, 8, 16], strides = [1, 1, 1, 1]} : vector<1x8x8x16xf32> to vector<1x1x8x16xf32>
    %279 = vector.shape_cast %278 : vector<1x1x8x16xf32> to vector<1x8x16xf32>
    %280 = vector.extract_strided_slice %261 {offsets = [0, 5, 0, 0], sizes = [1, 1, 8, 16], strides = [1, 1, 1, 1]} : vector<1x8x8x16xf32> to vector<1x1x8x16xf32>
    %281 = vector.shape_cast %280 : vector<1x1x8x16xf32> to vector<1x8x16xf32>
    %282 = arith.maximumf %279, %281 : vector<1x8x16xf32>
    %c0_95 = arith.constant 0 : index
    %c2_96 = arith.constant 2 : index
    %c0_97 = arith.constant 0 : index
    %c0_98 = arith.constant 0 : index
    %283 = vector.load %arg14[%c0_95, %c2_96, %c0_97, %c0_98] : memref<1x4x8x16xf32, #tpu.memory_space<vmem>>, vector<1x1x8x16xf32>
    %284 = vector.shape_cast %283 : vector<1x1x8x16xf32> to vector<1x8x16xf32>
    %285 = vector.shape_cast %282 : vector<1x8x16xf32> to vector<1x1x8x16xf32>
    tpu.vector_store %arg14[%c0_95, %c2_96, %c0_97, %c0_98], %285 {strides = array<i32>} : memref<1x4x8x16xf32, #tpu.memory_space<vmem>>, vector<1x1x8x16xf32>,
    %286 = vector.extract_strided_slice %261 {offsets = [0, 6, 0, 0], sizes = [1, 1, 8, 16], strides = [1, 1, 1, 1]} : vector<1x8x8x16xf32> to vector<1x1x8x16xf32>
    %287 = vector.shape_cast %286 : vector<1x1x8x16xf32> to vector<1x8x16xf32>
    %288 = vector.extract_strided_slice %261 {offsets = [0, 7, 0, 0], sizes = [1, 1, 8, 16], strides = [1, 1, 1, 1]} : vector<1x8x8x16xf32> to vector<1x1x8x16xf32>
    %289 = vector.shape_cast %288 : vector<1x1x8x16xf32> to vector<1x8x16xf32>
    %290 = arith.maximumf %287, %289 : vector<1x8x16xf32>
    %c0_99 = arith.constant 0 : index
    %c3_100 = arith.constant 3 : index
    %c0_101 = arith.constant 0 : index
    %c0_102 = arith.constant 0 : index
    %291 = vector.load %arg14[%c0_99, %c3_100, %c0_101, %c0_102] : memref<1x4x8x16xf32, #tpu.memory_space<vmem>>, vector<1x1x8x16xf32>
    %292 = vector.shape_cast %291 : vector<1x1x8x16xf32> to vector<1x8x16xf32>
    %293 = vector.shape_cast %290 : vector<1x8x16xf32> to vector<1x1x8x16xf32>
    tpu.vector_store %arg14[%c0_99, %c3_100, %c0_101, %c0_102], %293 {strides = array<i32>} : memref<1x4x8x16xf32, #tpu.memory_space<vmem>>, vector<1x1x8x16xf32>,
    %c0_103 = arith.constant 0 : index
    %c0_104 = arith.constant 0 : index
    %c0_105 = arith.constant 0 : index
    %c0_106 = arith.constant 0 : index
    %294 = tpu.strided_load %arg14[%c0_103, %c0_104, %c0_105, %c0_106] {strides = array<i32: 1, 1, 2, 1>} : memref<1x4x8x16xf32, #tpu.memory_space<vmem>>, vector<1x4x4x16xf32>
    %c0_107 = arith.constant 0 : index
    %c0_108 = arith.constant 0 : index
    %c1_109 = arith.constant 1 : index
    %c0_110 = arith.constant 0 : index
    %295 = tpu.strided_load %arg14[%c0_107, %c0_108, %c1_109, %c0_110] {strides = array<i32: 1, 1, 2, 1>} : memref<1x4x8x16xf32, #tpu.memory_space<vmem>>, vector<1x4x4x16xf32>
    %296 = arith.maximumf %294, %295 : vector<1x4x4x16xf32>
    %c0_111 = arith.constant 0 : index
    %c0_112 = arith.constant 0 : index
    %297 = vector.load %arg6[%c0_111, %c0_112] : memref<256x120xf32, #tpu.memory_space<vmem>>, vector<256x120xf32>
    %cst_113 = arith.constant 0.000000e+00 : f32
    %298 = vector.broadcast %cst_113 : f32 to vector<1x120xf32>
    %c0_114 = arith.constant 0 : index
    %c0_115 = arith.constant 0 : index
    %299 = vector.load %arg7[%c0_114, %c0_115] : memref<1x120xf32, #tpu.memory_space<vmem>>, vector<1x120xf32>
    %300 = arith.addf %298, %299 : vector<1x120xf32>
    %301 = vector.extract_strided_slice %296 {offsets = [0, 0, 0, 0], sizes = [1, 1, 1, 16], strides = [1, 1, 1, 1]} : vector<1x4x4x16xf32> to vector<1x1x1x16xf32>
    %302 = vector.shape_cast %301 : vector<1x1x1x16xf32> to vector<1x16xf32>
    %303 = vector.extract_strided_slice %297 {offsets = [0, 0], sizes = [16, 120], strides = [1, 1]} : vector<256x120xf32> to vector<16x120xf32>
    %cst_116 = arith.constant dense<0.000000e+00> : vector<1x120xf32>
    %304 = tpu.matmul %302, %303, %cst_116 {dimension_numbers = #tpu.dot_dimension_numbers<[1], [0], [0], [1], [0, 0, 1, 1], [], []>} : vector<1x16xf32>, vector<16x120xf32>, vector<1x120xf32> -> vector<1x120xf32>
    %305 = arith.addf %300, %304 : vector<1x120xf32>
    %306 = vector.extract_strided_slice %296 {offsets = [0, 0, 1, 0], sizes = [1, 1, 1, 16], strides = [1, 1, 1, 1]} : vector<1x4x4x16xf32> to vector<1x1x1x16xf32>
    %307 = vector.shape_cast %306 : vector<1x1x1x16xf32> to vector<1x16xf32>
    %308 = vector.extract_strided_slice %297 {offsets = [16, 0], sizes = [16, 120], strides = [1, 1]} : vector<256x120xf32> to vector<16x120xf32>
    %cst_117 = arith.constant dense<0.000000e+00> : vector<1x120xf32>
    %309 = tpu.matmul %307, %308, %cst_117 {dimension_numbers = #tpu.dot_dimension_numbers<[1], [0], [0], [1], [0, 0, 1, 1], [], []>} : vector<1x16xf32>, vector<16x120xf32>, vector<1x120xf32> -> vector<1x120xf32>
    %310 = arith.addf %305, %309 : vector<1x120xf32>
    %311 = vector.extract_strided_slice %296 {offsets = [0, 0, 2, 0], sizes = [1, 1, 1, 16], strides = [1, 1, 1, 1]} : vector<1x4x4x16xf32> to vector<1x1x1x16xf32>
    %312 = vector.shape_cast %311 : vector<1x1x1x16xf32> to vector<1x16xf32>
    %313 = vector.extract_strided_slice %297 {offsets = [32, 0], sizes = [16, 120], strides = [1, 1]} : vector<256x120xf32> to vector<16x120xf32>
    %cst_118 = arith.constant dense<0.000000e+00> : vector<1x120xf32>
    %314 = tpu.matmul %312, %313, %cst_118 {dimension_numbers = #tpu.dot_dimension_numbers<[1], [0], [0], [1], [0, 0, 1, 1], [], []>} : vector<1x16xf32>, vector<16x120xf32>, vector<1x120xf32> -> vector<1x120xf32>
    %315 = arith.addf %310, %314 : vector<1x120xf32>
    %316 = vector.extract_strided_slice %296 {offsets = [0, 0, 3, 0], sizes = [1, 1, 1, 16], strides = [1, 1, 1, 1]} : vector<1x4x4x16xf32> to vector<1x1x1x16xf32>
    %317 = vector.shape_cast %316 : vector<1x1x1x16xf32> to vector<1x16xf32>
    %318 = vector.extract_strided_slice %297 {offsets = [48, 0], sizes = [16, 120], strides = [1, 1]} : vector<256x120xf32> to vector<16x120xf32>
    %cst_119 = arith.constant dense<0.000000e+00> : vector<1x120xf32>
    %319 = tpu.matmul %317, %318, %cst_119 {dimension_numbers = #tpu.dot_dimension_numbers<[1], [0], [0], [1], [0, 0, 1, 1], [], []>} : vector<1x16xf32>, vector<16x120xf32>, vector<1x120xf32> -> vector<1x120xf32>
    %320 = arith.addf %315, %319 : vector<1x120xf32>
    %321 = vector.extract_strided_slice %296 {offsets = [0, 1, 0, 0], sizes = [1, 1, 1, 16], strides = [1, 1, 1, 1]} : vector<1x4x4x16xf32> to vector<1x1x1x16xf32>
    %322 = vector.shape_cast %321 : vector<1x1x1x16xf32> to vector<1x16xf32>
    %323 = vector.extract_strided_slice %297 {offsets = [64, 0], sizes = [16, 120], strides = [1, 1]} : vector<256x120xf32> to vector<16x120xf32>
    %cst_120 = arith.constant dense<0.000000e+00> : vector<1x120xf32>
    %324 = tpu.matmul %322, %323, %cst_120 {dimension_numbers = #tpu.dot_dimension_numbers<[1], [0], [0], [1], [0, 0, 1, 1], [], []>} : vector<1x16xf32>, vector<16x120xf32>, vector<1x120xf32> -> vector<1x120xf32>
    %325 = arith.addf %320, %324 : vector<1x120xf32>
    %326 = vector.extract_strided_slice %296 {offsets = [0, 1, 1, 0], sizes = [1, 1, 1, 16], strides = [1, 1, 1, 1]} : vector<1x4x4x16xf32> to vector<1x1x1x16xf32>
    %327 = vector.shape_cast %326 : vector<1x1x1x16xf32> to vector<1x16xf32>
    %328 = vector.extract_strided_slice %297 {offsets = [80, 0], sizes = [16, 120], strides = [1, 1]} : vector<256x120xf32> to vector<16x120xf32>
    %cst_121 = arith.constant dense<0.000000e+00> : vector<1x120xf32>
    %329 = tpu.matmul %327, %328, %cst_121 {dimension_numbers = #tpu.dot_dimension_numbers<[1], [0], [0], [1], [0, 0, 1, 1], [], []>} : vector<1x16xf32>, vector<16x120xf32>, vector<1x120xf32> -> vector<1x120xf32>
    %330 = arith.addf %325, %329 : vector<1x120xf32>
    %331 = vector.extract_strided_slice %296 {offsets = [0, 1, 2, 0], sizes = [1, 1, 1, 16], strides = [1, 1, 1, 1]} : vector<1x4x4x16xf32> to vector<1x1x1x16xf32>
    %332 = vector.shape_cast %331 : vector<1x1x1x16xf32> to vector<1x16xf32>
    %333 = vector.extract_strided_slice %297 {offsets = [96, 0], sizes = [16, 120], strides = [1, 1]} : vector<256x120xf32> to vector<16x120xf32>
    %cst_122 = arith.constant dense<0.000000e+00> : vector<1x120xf32>
    %334 = tpu.matmul %332, %333, %cst_122 {dimension_numbers = #tpu.dot_dimension_numbers<[1], [0], [0], [1], [0, 0, 1, 1], [], []>} : vector<1x16xf32>, vector<16x120xf32>, vector<1x120xf32> -> vector<1x120xf32>
    %335 = arith.addf %330, %334 : vector<1x120xf32>
    %336 = vector.extract_strided_slice %296 {offsets = [0, 1, 3, 0], sizes = [1, 1, 1, 16], strides = [1, 1, 1, 1]} : vector<1x4x4x16xf32> to vector<1x1x1x16xf32>
    %337 = vector.shape_cast %336 : vector<1x1x1x16xf32> to vector<1x16xf32>
    %338 = vector.extract_strided_slice %297 {offsets = [112, 0], sizes = [16, 120], strides = [1, 1]} : vector<256x120xf32> to vector<16x120xf32>
    %cst_123 = arith.constant dense<0.000000e+00> : vector<1x120xf32>
    %339 = tpu.matmul %337, %338, %cst_123 {dimension_numbers = #tpu.dot_dimension_numbers<[1], [0], [0], [1], [0, 0, 1, 1], [], []>} : vector<1x16xf32>, vector<16x120xf32>, vector<1x120xf32> -> vector<1x120xf32>
    %340 = arith.addf %335, %339 : vector<1x120xf32>
    %341 = vector.extract_strided_slice %296 {offsets = [0, 2, 0, 0], sizes = [1, 1, 1, 16], strides = [1, 1, 1, 1]} : vector<1x4x4x16xf32> to vector<1x1x1x16xf32>
    %342 = vector.shape_cast %341 : vector<1x1x1x16xf32> to vector<1x16xf32>
    %343 = vector.extract_strided_slice %297 {offsets = [128, 0], sizes = [16, 120], strides = [1, 1]} : vector<256x120xf32> to vector<16x120xf32>
    %cst_124 = arith.constant dense<0.000000e+00> : vector<1x120xf32>
    %344 = tpu.matmul %342, %343, %cst_124 {dimension_numbers = #tpu.dot_dimension_numbers<[1], [0], [0], [1], [0, 0, 1, 1], [], []>} : vector<1x16xf32>, vector<16x120xf32>, vector<1x120xf32> -> vector<1x120xf32>
    %345 = arith.addf %340, %344 : vector<1x120xf32>
    %346 = vector.extract_strided_slice %296 {offsets = [0, 2, 1, 0], sizes = [1, 1, 1, 16], strides = [1, 1, 1, 1]} : vector<1x4x4x16xf32> to vector<1x1x1x16xf32>
    %347 = vector.shape_cast %346 : vector<1x1x1x16xf32> to vector<1x16xf32>
    %348 = vector.extract_strided_slice %297 {offsets = [144, 0], sizes = [16, 120], strides = [1, 1]} : vector<256x120xf32> to vector<16x120xf32>
    %cst_125 = arith.constant dense<0.000000e+00> : vector<1x120xf32>
    %349 = tpu.matmul %347, %348, %cst_125 {dimension_numbers = #tpu.dot_dimension_numbers<[1], [0], [0], [1], [0, 0, 1, 1], [], []>} : vector<1x16xf32>, vector<16x120xf32>, vector<1x120xf32> -> vector<1x120xf32>
    %350 = arith.addf %345, %349 : vector<1x120xf32>
    %351 = vector.extract_strided_slice %296 {offsets = [0, 2, 2, 0], sizes = [1, 1, 1, 16], strides = [1, 1, 1, 1]} : vector<1x4x4x16xf32> to vector<1x1x1x16xf32>
    %352 = vector.shape_cast %351 : vector<1x1x1x16xf32> to vector<1x16xf32>
    %353 = vector.extract_strided_slice %297 {offsets = [160, 0], sizes = [16, 120], strides = [1, 1]} : vector<256x120xf32> to vector<16x120xf32>
    %cst_126 = arith.constant dense<0.000000e+00> : vector<1x120xf32>
    %354 = tpu.matmul %352, %353, %cst_126 {dimension_numbers = #tpu.dot_dimension_numbers<[1], [0], [0], [1], [0, 0, 1, 1], [], []>} : vector<1x16xf32>, vector<16x120xf32>, vector<1x120xf32> -> vector<1x120xf32>
    %355 = arith.addf %350, %354 : vector<1x120xf32>
    %356 = vector.extract_strided_slice %296 {offsets = [0, 2, 3, 0], sizes = [1, 1, 1, 16], strides = [1, 1, 1, 1]} : vector<1x4x4x16xf32> to vector<1x1x1x16xf32>
    %357 = vector.shape_cast %356 : vector<1x1x1x16xf32> to vector<1x16xf32>
    %358 = vector.extract_strided_slice %297 {offsets = [176, 0], sizes = [16, 120], strides = [1, 1]} : vector<256x120xf32> to vector<16x120xf32>
    %cst_127 = arith.constant dense<0.000000e+00> : vector<1x120xf32>
    %359 = tpu.matmul %357, %358, %cst_127 {dimension_numbers = #tpu.dot_dimension_numbers<[1], [0], [0], [1], [0, 0, 1, 1], [], []>} : vector<1x16xf32>, vector<16x120xf32>, vector<1x120xf32> -> vector<1x120xf32>
    %360 = arith.addf %355, %359 : vector<1x120xf32>
    %361 = vector.extract_strided_slice %296 {offsets = [0, 3, 0, 0], sizes = [1, 1, 1, 16], strides = [1, 1, 1, 1]} : vector<1x4x4x16xf32> to vector<1x1x1x16xf32>
    %362 = vector.shape_cast %361 : vector<1x1x1x16xf32> to vector<1x16xf32>
    %363 = vector.extract_strided_slice %297 {offsets = [192, 0], sizes = [16, 120], strides = [1, 1]} : vector<256x120xf32> to vector<16x120xf32>
    %cst_128 = arith.constant dense<0.000000e+00> : vector<1x120xf32>
    %364 = tpu.matmul %362, %363, %cst_128 {dimension_numbers = #tpu.dot_dimension_numbers<[1], [0], [0], [1], [0, 0, 1, 1], [], []>} : vector<1x16xf32>, vector<16x120xf32>, vector<1x120xf32> -> vector<1x120xf32>
    %365 = arith.addf %360, %364 : vector<1x120xf32>
    %366 = vector.extract_strided_slice %296 {offsets = [0, 3, 1, 0], sizes = [1, 1, 1, 16], strides = [1, 1, 1, 1]} : vector<1x4x4x16xf32> to vector<1x1x1x16xf32>
    %367 = vector.shape_cast %366 : vector<1x1x1x16xf32> to vector<1x16xf32>
    %368 = vector.extract_strided_slice %297 {offsets = [208, 0], sizes = [16, 120], strides = [1, 1]} : vector<256x120xf32> to vector<16x120xf32>
    %cst_129 = arith.constant dense<0.000000e+00> : vector<1x120xf32>
    %369 = tpu.matmul %367, %368, %cst_129 {dimension_numbers = #tpu.dot_dimension_numbers<[1], [0], [0], [1], [0, 0, 1, 1], [], []>} : vector<1x16xf32>, vector<16x120xf32>, vector<1x120xf32> -> vector<1x120xf32>
    %370 = arith.addf %365, %369 : vector<1x120xf32>
    %371 = vector.extract_strided_slice %296 {offsets = [0, 3, 2, 0], sizes = [1, 1, 1, 16], strides = [1, 1, 1, 1]} : vector<1x4x4x16xf32> to vector<1x1x1x16xf32>
    %372 = vector.shape_cast %371 : vector<1x1x1x16xf32> to vector<1x16xf32>
    %373 = vector.extract_strided_slice %297 {offsets = [224, 0], sizes = [16, 120], strides = [1, 1]} : vector<256x120xf32> to vector<16x120xf32>
    %cst_130 = arith.constant dense<0.000000e+00> : vector<1x120xf32>
    %374 = tpu.matmul %372, %373, %cst_130 {dimension_numbers = #tpu.dot_dimension_numbers<[1], [0], [0], [1], [0, 0, 1, 1], [], []>} : vector<1x16xf32>, vector<16x120xf32>, vector<1x120xf32> -> vector<1x120xf32>
    %375 = arith.addf %370, %374 : vector<1x120xf32>
    %376 = vector.extract_strided_slice %296 {offsets = [0, 3, 3, 0], sizes = [1, 1, 1, 16], strides = [1, 1, 1, 1]} : vector<1x4x4x16xf32> to vector<1x1x1x16xf32>
    %377 = vector.shape_cast %376 : vector<1x1x1x16xf32> to vector<1x16xf32>
    %378 = vector.extract_strided_slice %297 {offsets = [240, 0], sizes = [16, 120], strides = [1, 1]} : vector<256x120xf32> to vector<16x120xf32>
    %cst_131 = arith.constant dense<0.000000e+00> : vector<1x120xf32>
    %379 = tpu.matmul %377, %378, %cst_131 {dimension_numbers = #tpu.dot_dimension_numbers<[1], [0], [0], [1], [0, 0, 1, 1], [], []>} : vector<1x16xf32>, vector<16x120xf32>, vector<1x120xf32> -> vector<1x120xf32>
    %380 = arith.addf %375, %379 : vector<1x120xf32>
    %c0_132 = arith.constant 0 : index
    %c0_133 = arith.constant 0 : index
    %381 = vector.load %arg8[%c0_132, %c0_133] : memref<120x84xf32, #tpu.memory_space<vmem>>, vector<120x84xf32>
    %cst_134 = arith.constant dense<0.000000e+00> : vector<1x84xf32>
    %382 = tpu.matmul %380, %381, %cst_134 {dimension_numbers = #tpu.dot_dimension_numbers<[1], [0], [0], [1], [0, 0, 1, 1], [], []>} : vector<1x120xf32>, vector<120x84xf32>, vector<1x84xf32> -> vector<1x84xf32>
    %c0_135 = arith.constant 0 : index
    %c0_136 = arith.constant 0 : index
    %383 = vector.load %arg9[%c0_135, %c0_136] : memref<1x84xf32, #tpu.memory_space<vmem>>, vector<1x84xf32>
    %384 = arith.addf %382, %383 : vector<1x84xf32>
    %c0_137 = arith.constant 0 : index
    %c0_138 = arith.constant 0 : index
    %385 = vector.load %arg10[%c0_137, %c0_138] : memref<84x10xf32, #tpu.memory_space<vmem>>, vector<84x10xf32>
    %cst_139 = arith.constant dense<0.000000e+00> : vector<1x10xf32>
    %386 = tpu.matmul %384, %385, %cst_139 {dimension_numbers = #tpu.dot_dimension_numbers<[1], [0], [0], [1], [0, 0, 1, 1], [], []>} : vector<1x84xf32>, vector<84x10xf32>, vector<1x10xf32> -> vector<1x10xf32>
    %c0_140 = arith.constant 0 : index
    %c0_141 = arith.constant 0 : index
    %387 = vector.load %arg11[%c0_140, %c0_141] : memref<1x10xf32, #tpu.memory_space<vmem>>, vector<1x10xf32>
    %388 = arith.addf %386, %387 : vector<1x10xf32>
    %c0_142 = arith.constant 0 : index
    %c0_143 = arith.constant 0 : index
    %c0_144 = arith.constant 0 : index
    %389 = vector.load %arg12[%c0_142, %c0_143, %c0_144] : memref<1x1x10xf32, #tpu.memory_space<vmem>>, vector<1x1x10xf32>
    %390 = vector.shape_cast %389 : vector<1x1x10xf32> to vector<1x10xf32>
    %391 = vector.shape_cast %388 : vector<1x10xf32> to vector<1x1x10xf32>
    tpu.vector_store %arg12[%c0_142, %c0_143, %c0_144], %391 {strides = array<i32>} : memref<1x1x10xf32, #tpu.memory_space<vmem>>, vector<1x1x10xf32>,
    return
  }
  func.func @transform_0(%arg0: i32) -> (i32, i32, i32, i32) {
    %c0_i32 = arith.constant 0 : i32
    %c0_i32_0 = arith.constant 0 : i32
    %c0_i32_1 = arith.constant 0 : i32
    %c0_i32_2 = arith.constant 0 : i32
    return %arg0, %c0_i32, %c0_i32_0, %c0_i32_1 : i32, i32, i32, i32
  }
  func.func @transform_1(%arg0: i32) -> (i32, i32) {
    %c0_i32 = arith.constant 0 : i32
    %c0_i32_0 = arith.constant 0 : i32
    %c0_i32_1 = arith.constant 0 : i32
    return %c0_i32, %c0_i32_0 : i32, i32
  }
  func.func @transform_2(%arg0: i32) -> (i32, i32) {
    %c0_i32 = arith.constant 0 : i32
    %c0_i32_0 = arith.constant 0 : i32
    %c0_i32_1 = arith.constant 0 : i32
    return %c0_i32, %c0_i32_0 : i32, i32
  }
  func.func @transform_3(%arg0: i32) -> (i32, i32) {
    %c0_i32 = arith.constant 0 : i32
    %c0_i32_0 = arith.constant 0 : i32
    %c0_i32_1 = arith.constant 0 : i32
    return %c0_i32, %c0_i32_0 : i32, i32
  }
  func.func @transform_4(%arg0: i32) -> (i32, i32) {
    %c0_i32 = arith.constant 0 : i32
    %c0_i32_0 = arith.constant 0 : i32
    %c0_i32_1 = arith.constant 0 : i32
    return %c0_i32, %c0_i32_0 : i32, i32
  }
  func.func @transform_5(%arg0: i32) -> (i32, i32) {
    %c0_i32 = arith.constant 0 : i32
    %c0_i32_0 = arith.constant 0 : i32
    %c0_i32_1 = arith.constant 0 : i32
    return %c0_i32, %c0_i32_0 : i32, i32
  }
  func.func @transform_6(%arg0: i32) -> (i32, i32) {
    %c0_i32 = arith.constant 0 : i32
    %c0_i32_0 = arith.constant 0 : i32
    %c0_i32_1 = arith.constant 0 : i32
    return %c0_i32, %c0_i32_0 : i32, i32
  }
  func.func @transform_7(%arg0: i32) -> (i32, i32) {
    %c0_i32 = arith.constant 0 : i32
    %c0_i32_0 = arith.constant 0 : i32
    %c0_i32_1 = arith.constant 0 : i32
    return %c0_i32, %c0_i32_0 : i32, i32
  }
  func.func @transform_8(%arg0: i32) -> (i32, i32) {
    %c0_i32 = arith.constant 0 : i32
    %c0_i32_0 = arith.constant 0 : i32
    %c0_i32_1 = arith.constant 0 : i32
    return %c0_i32, %c0_i32_0 : i32, i32
  }
  func.func @transform_9(%arg0: i32) -> (i32, i32) {
    %c0_i32 = arith.constant 0 : i32
    %c0_i32_0 = arith.constant 0 : i32
    %c0_i32_1 = arith.constant 0 : i32
    return %c0_i32, %c0_i32_0 : i32, i32
  }
  func.func @transform_10(%arg0: i32) -> (i32, i32) {
    %c0_i32 = arith.constant 0 : i32
    %c0_i32_0 = arith.constant 0 : i32
    %c0_i32_1 = arith.constant 0 : i32
    return %c0_i32, %c0_i32_0 : i32, i32
  }
  func.func @transform_11(%arg0: i32) -> (i32, i32, i32) {
    %c0_i32 = arith.constant 0 : i32
    %c0_i32_0 = arith.constant 0 : i32
    %c0_i32_1 = arith.constant 0 : i32
    return %arg0, %c0_i32, %c0_i32_0 : i32, i32, i32
  }
}

</mosaic_0001>

<llo_original>
// kernel: lenet5_forward.1
$region0: #{lenet5_forward.1}
  #allocation0 [shape = 'u32[]', space=smem, size = 0x4, offset = 0x4, fixed_abs, tag = 'smem constant byte address 0x4 - core index']
  #allocation1 [shape = 'u32[144,128]{1,0:T(1,128)}', space=vmem, size = 0x12000, scoped, tag = 'internal scratch']
  #allocation2 [shape = 'f32[1,12,24,6]{3,2,1,0:T(8,128)}', space=vmem, size = 0x24000, scoped, tag = 'scratch operand']
  #allocation3 [shape = 'f32[1,4,8,16]{3,2,1,0:T(8,128)}', space=vmem, size = 0x4000, scoped, tag = 'scratch operand']
  %s0 = inlined_call_operand.vmem [shape: f32[2,24,28,5], index: 0, kind: input, shape index: {}]
  %s1 = inlined_call_operand.vmem [shape: f32[25,6], index: 1, kind: input, shape index: {}]
  %s2 = inlined_call_operand.vmem [shape: f32[1,6], index: 2, kind: input, shape index: {}]
  %s3 = inlined_call_operand.vmem [shape: f32[150,16], index: 3, kind: input, shape index: {}]
  %s4 = inlined_call_operand.vmem [shape: f32[1,16], index: 4, kind: input, shape index: {}]
  %s5 = inlined_call_operand.vmem [shape: f32[256,120], index: 5, kind: input, shape index: {}]
  %s6 = inlined_call_operand.vmem [shape: f32[1,120], index: 6, kind: input, shape index: {}]
  %s7 = inlined_call_operand.vmem [shape: f32[120,84], index: 7, kind: input, shape index: {}]
  %s8 = inlined_call_operand.vmem [shape: f32[1,84], index: 8, kind: input, shape index: {}]
  %s9 = inlined_call_operand.vmem [shape: f32[84,10], index: 9, kind: input, shape index: {}]
  %s10 = inlined_call_operand.vmem [shape: f32[1,10], index: 10, kind: input, shape index: {}]
  %s11 = inlined_call_operand.hbm [shape: f32[2,1,10], index: 11, kind: output, shape index: {}]
  %s12 = sld [smem:[#allocation0]]
  $region77: #{lenet5_forward.1} parent=0
    _
  %s14 = ssub.s32 1, %s12
  %s15 = scalar_select 0, %s14, %s12
  $region1: #{lenet5_forward.1} parent=0
    #allocation4 [shape = 'u8[1024]{0}', space=vmem, size = 0x400, scoped, tag = 'output window, operand 0']
    #allocation5 [shape = 's32[2]{0}', space=sflag, size = 0x8, scoped, tag = 'scoped memory for lenet5_forward.1']
    %16 = vsyncpa [#allocation5], 0
    %s17 = scalar_lea.sflag [#allocation5], 1
    %18 = vsyncpa %s17, 0
    loop: start=0, step=1, limit=4
    $region2: #{lenet5_forward.1} parent=1 // loop_pre_header
      _
    $region3: #{lenet5_forward.1} parent=1 // loop_header
      %s20 = sphi 0, %s24
      %p21 = scmp.ge.s32.totalorder %s20, 4
      %s30 = sphi 0, %s32
      %s33 = sphi 0, %s30
      %s34 = sphi 0, %s33
      %s50 = sphi 0, %s34
      %s54 = sphi 0, %s54
      %s56 = sphi 0, %s54
      %s57 = sphi 0, %s56
      %s71 = sphi 0, %s57
      %s75 = sphi 0, %s75
      %s77 = sphi 0, %s75
      %s78 = sphi 0, %s77
      %s92 = sphi 0, %s78
      %s96 = sphi 0, %s96
      %s98 = sphi 0, %s96
      %s99 = sphi 0, %s98
      %s113 = sphi 0, %s99
      %s117 = sphi 0, %s117
      %s119 = sphi 0, %s117
      %s120 = sphi 0, %s119
      %s134 = sphi 0, %s120
      %s138 = sphi 0, %s138
      %s140 = sphi 0, %s138
      %s141 = sphi 0, %s140
      %s155 = sphi 0, %s141
      %s159 = sphi 0, %s159
      %s161 = sphi 0, %s159
      %s162 = sphi 0, %s161
      %s176 = sphi 0, %s162
      %s180 = sphi 0, %s180
      %s182 = sphi 0, %s180
      %s183 = sphi 0, %s182
      %s197 = sphi 0, %s183
      %s201 = sphi 0, %s201
      %s203 = sphi 0, %s201
      %s204 = sphi 0, %s203
      %s218 = sphi 0, %s204
      %s222 = sphi 0, %s222
      %s224 = sphi 0, %s222
      %s225 = sphi 0, %s224
      %s239 = sphi 0, %s225
      %s243 = sphi 0, %s243
      %s245 = sphi 0, %s243
      %s246 = sphi 0, %s245
      %s260 = sphi 0, %s246
      %s266 = sphi 0, %s268
      %s269 = sphi 0, %s266
      %s270 = sphi 0, %s269
      %s286 = sphi 0, %s270
    $region4: #{lenet5_forward.1} parent=1 // loop_header_branch
      %23 = sbr.rel (%p21) target = $region8
    $region5: #{lenet5_forward.1} parent=1 // loop_body
      %s25 = ssub.s32 %s20, 1
      %s26 = ssub.s32 %s20, 2
      %s27 = sadd.s32 %s20, 1
      %s28 = ssub.s32 %s20, %s27
      %p29 = scmp.eq.s32.totalorder %s28, 0
      %s31 = sadd.s32 %s30, 1
      %s32 = scalar_select %p29, %s30, %s31
      %p35 = pneg %p29
      %p36 = scmp.eq.s32.totalorder %s20, 1
      %p37 = por %p35, %p36
      %p38 = scmp.ne.s32.totalorder %s30, %s33
      %p39 = scmp.eq.s32.totalorder %s20, 0
      %p40 = por %p38, %p39
      %p41 = scmp.ne.s32.totalorder %s30, %s33
      %p42 = scmp.eq.s32.totalorder %s25, 1
      %p43 = por %p41, %p42
      %p44 = scmp.ne.s32.totalorder %s33, %s34
      %p45 = scmp.eq.s32.totalorder %s25, 0
      %p46 = por %p44, %p45
      %p47 = scmp.ne.s32.totalorder %s33, %s34
      %p48 = scmp.eq.s32.totalorder %s26, 1
      %p49 = por %p47, %p48
      %p51 = scmp.ne.s32.totalorder %s34, %s50
      %p52 = scmp.eq.s32.totalorder %s26, 0
      %p53 = por %p51, %p52
      %s55 = sadd.s32 %s54, 1
      %p58 = scmp.eq.s32.totalorder %s20, 1
      %p59 = scmp.ne.s32.totalorder %s54, %s56
      %p60 = scmp.eq.s32.totalorder %s20, 0
      %p61 = por %p59, %p60
      %p62 = scmp.ne.s32.totalorder %s54, %s56
      %p63 = scmp.eq.s32.totalorder %s25, 1
      %p64 = por %p62, %p63
      %p65 = scmp.ne.s32.totalorder %s56, %s57
      %p66 = scmp.eq.s32.totalorder %s25, 0
      %p67 = por %p65, %p66
      %p68 = scmp.ne.s32.totalorder %s56, %s57
      %p69 = scmp.eq.s32.totalorder %s26, 1
      %p70 = por %p68, %p69
      %p72 = scmp.ne.s32.totalorder %s57, %s71
      %p73 = scmp.eq.s32.totalorder %s26, 0
      %p74 = por %p72, %p73
      %s76 = sadd.s32 %s75, 1
      %p79 = scmp.eq.s32.totalorder %s20, 1
      %p80 = scmp.ne.s32.totalorder %s75, %s77
      %p81 = scmp.eq.s32.totalorder %s20, 0
      %p82 = por %p80, %p81
      %p83 = scmp.ne.s32.totalorder %s75, %s77
      %p84 = scmp.eq.s32.totalorder %s25, 1
      %p85 = por %p83, %p84
      %p86 = scmp.ne.s32.totalorder %s77, %s78
      %p87 = scmp.eq.s32.totalorder %s25, 0
      %p88 = por %p86, %p87
      %p89 = scmp.ne.s32.totalorder %s77, %s78
      %p90 = scmp.eq.s32.totalorder %s26, 1
      %p91 = por %p89, %p90
      %p93 = scmp.ne.s32.totalorder %s78, %s92
      %p94 = scmp.eq.s32.totalorder %s26, 0
      %p95 = por %p93, %p94
      %s97 = sadd.s32 %s96, 1
      %p100 = scmp.eq.s32.totalorder %s20, 1
      %p101 = scmp.ne.s32.totalorder %s96, %s98
      %p102 = scmp.eq.s32.totalorder %s20, 0
      %p103 = por %p101, %p102
      %p104 = scmp.ne.s32.totalorder %s96, %s98
      %p105 = scmp.eq.s32.totalorder %s25, 1
      %p106 = por %p104, %p105
      %p107 = scmp.ne.s32.totalorder %s98, %s99
      %p108 = scmp.eq.s32.totalorder %s25, 0
      %p109 = por %p107, %p108
      %p110 = scmp.ne.s32.totalorder %s98, %s99
      %p111 = scmp.eq.s32.totalorder %s26, 1
      %p112 = por %p110, %p111
      %p114 = scmp.ne.s32.totalorder %s99, %s113
      %p115 = scmp.eq.s32.totalorder %s26, 0
      %p116 = por %p114, %p115
      %s118 = sadd.s32 %s117, 1
      %p121 = scmp.eq.s32.totalorder %s20, 1
      %p122 = scmp.ne.s32.totalorder %s117, %s119
      %p123 = scmp.eq.s32.totalorder %s20, 0
      %p124 = por %p122, %p123
      %p125 = scmp.ne.s32.totalorder %s117, %s119
      %p126 = scmp.eq.s32.totalorder %s25, 1
      %p127 = por %p125, %p126
      %p128 = scmp.ne.s32.totalorder %s119, %s120
      %p129 = scmp.eq.s32.totalorder %s25, 0
      %p130 = por %p128, %p129
      %p131 = scmp.ne.s32.totalorder %s119, %s120
      %p132 = scmp.eq.s32.totalorder %s26, 1
      %p133 = por %p131, %p132
      %p135 = scmp.ne.s32.totalorder %s120, %s134
      %p136 = scmp.eq.s32.totalorder %s26, 0
      %p137 = por %p135, %p136
      %s139 = sadd.s32 %s138, 1
      %p142 = scmp.eq.s32.totalorder %s20, 1
      %p143 = scmp.ne.s32.totalorder %s138, %s140
      %p144 = scmp.eq.s32.totalorder %s20, 0
      %p145 = por %p143, %p144
      %p146 = scmp.ne.s32.totalorder %s138, %s140
      %p147 = scmp.eq.s32.totalorder %s25, 1
      %p148 = por %p146, %p147
      %p149 = scmp.ne.s32.totalorder %s140, %s141
      %p150 = scmp.eq.s32.totalorder %s25, 0
      %p151 = por %p149, %p150
      %p152 = scmp.ne.s32.totalorder %s140, %s141
      %p153 = scmp.eq.s32.totalorder %s26, 1
      %p154 = por %p152, %p153
      %p156 = scmp.ne.s32.totalorder %s141, %s155
      %p157 = scmp.eq.s32.totalorder %s26, 0
      %p158 = por %p156, %p157
      %s160 = sadd.s32 %s159, 1
      %p163 = scmp.eq.s32.totalorder %s20, 1
      %p164 = scmp.ne.s32.totalorder %s159, %s161
      %p165 = scmp.eq.s32.totalorder %s20, 0
      %p166 = por %p164, %p165
      %p167 = scmp.ne.s32.totalorder %s159, %s161
      %p168 = scmp.eq.s32.totalorder %s25, 1
      %p169 = por %p167, %p168
      %p170 = scmp.ne.s32.totalorder %s161, %s162
      %p171 = scmp.eq.s32.totalorder %s25, 0
      %p172 = por %p170, %p171
      %p173 = scmp.ne.s32.totalorder %s161, %s162
      %p174 = scmp.eq.s32.totalorder %s26, 1
      %p175 = por %p173, %p174
      %p177 = scmp.ne.s32.totalorder %s162, %s176
      %p178 = scmp.eq.s32.totalorder %s26, 0
      %p179 = por %p177, %p178
      %s181 = sadd.s32 %s180, 1
      %p184 = scmp.eq.s32.totalorder %s20, 1
      %p185 = scmp.ne.s32.totalorder %s180, %s182
      %p186 = scmp.eq.s32.totalorder %s20, 0
      %p187 = por %p185, %p186
      %p188 = scmp.ne.s32.totalorder %s180, %s182
      %p189 = scmp.eq.s32.totalorder %s25, 1
      %p190 = por %p188, %p189
      %p191 = scmp.ne.s32.totalorder %s182, %s183
      %p192 = scmp.eq.s32.totalorder %s25, 0
      %p193 = por %p191, %p192
      %p194 = scmp.ne.s32.totalorder %s182, %s183
      %p195 = scmp.eq.s32.totalorder %s26, 1
      %p196 = por %p194, %p195
      %p198 = scmp.ne.s32.totalorder %s183, %s197
      %p199 = scmp.eq.s32.totalorder %s26, 0
      %p200 = por %p198, %p199
      %s202 = sadd.s32 %s201, 1
      %p205 = scmp.eq.s32.totalorder %s20, 1
      %p206 = scmp.ne.s32.totalorder %s201, %s203
      %p207 = scmp.eq.s32.totalorder %s20, 0
      %p208 = por %p206, %p207
      %p209 = scmp.ne.s32.totalorder %s201, %s203
      %p210 = scmp.eq.s32.totalorder %s25, 1
      %p211 = por %p209, %p210
      %p212 = scmp.ne.s32.totalorder %s203, %s204
      %p213 = scmp.eq.s32.totalorder %s25, 0
      %p214 = por %p212, %p213
      %p215 = scmp.ne.s32.totalorder %s203, %s204
      %p216 = scmp.eq.s32.totalorder %s26, 1
      %p217 = por %p215, %p216
      %p219 = scmp.ne.s32.totalorder %s204, %s218
      %p220 = scmp.eq.s32.totalorder %s26, 0
      %p221 = por %p219, %p220
      %s223 = sadd.s32 %s222, 1
      %p226 = scmp.eq.s32.totalorder %s20, 1
      %p227 = scmp.ne.s32.totalorder %s222, %s224
      %p228 = scmp.eq.s32.totalorder %s20, 0
      %p229 = por %p227, %p228
      %p230 = scmp.ne.s32.totalorder %s222, %s224
      %p231 = scmp.eq.s32.totalorder %s25, 1
      %p232 = por %p230, %p231
      %p233 = scmp.ne.s32.totalorder %s224, %s225
      %p234 = scmp.eq.s32.totalorder %s25, 0
      %p235 = por %p233, %p234
      %p236 = scmp.ne.s32.totalorder %s224, %s225
      %p237 = scmp.eq.s32.totalorder %s26, 1
      %p238 = por %p236, %p237
      %p240 = scmp.ne.s32.totalorder %s225, %s239
      %p241 = scmp.eq.s32.totalorder %s26, 0
      %p242 = por %p240, %p241
      %s244 = sadd.s32 %s243, 1
      %p247 = scmp.eq.s32.totalorder %s20, 1
      %p248 = scmp.ne.s32.totalorder %s243, %s245
      %p249 = scmp.eq.s32.totalorder %s20, 0
      %p250 = por %p248, %p249
      %p251 = scmp.ne.s32.totalorder %s243, %s245
      %p252 = scmp.eq.s32.totalorder %s25, 1
      %p253 = por %p251, %p252
      %p254 = scmp.ne.s32.totalorder %s245, %s246
      %p255 = scmp.eq.s32.totalorder %s25, 0
      %p256 = por %p254, %p255
      %p257 = scmp.ne.s32.totalorder %s245, %s246
      %p258 = scmp.eq.s32.totalorder %s26, 1
      %p259 = por %p257, %p258
      %p261 = scmp.ne.s32.totalorder %s246, %s260
      %p262 = scmp.eq.s32.totalorder %s26, 0
      %p263 = por %p261, %p262
      %s264 = ssub.s32 %s20, %s27
      %p265 = scmp.eq.s32.totalorder %s264, 0
      %s267 = sadd.s32 %s266, 1
      %s268 = scalar_select %p265, %s266, %s267
      %p271 = pneg %p265
      %p272 = scmp.eq.s32.totalorder %s20, 1
      %p273 = por %p271, %p272
      %p274 = scmp.ne.s32.totalorder %s266, %s269
      %p275 = scmp.eq.s32.totalorder %s20, 0
      %p276 = por %p274, %p275
      %p277 = scmp.ne.s32.totalorder %s266, %s269
      %p278 = scmp.eq.s32.totalorder %s25, 1
      %p279 = por %p277, %p278
      %p280 = scmp.ne.s32.totalorder %s269, %s270
      %p281 = scmp.eq.s32.totalorder %s25, 0
      %p282 = por %p280, %p281
      %p283 = scmp.ne.s32.totalorder %s269, %s270
      %p284 = scmp.eq.s32.totalorder %s26, 1
      %p285 = por %p283, %p284
      %p287 = scmp.ne.s32.totalorder %s270, %s286
      %p288 = scmp.eq.s32.totalorder %s26, 0
      %p289 = por %p287, %p288
      %p290 = scmp.le.s32.totalorder 1, %s20
      %p291 = scmp.lt.s32.totalorder %s20, 3
      %p292 = pnand %p290, %p291
      %p293 = pneg %p292
      // Predicated region
      $region9: #{lenet5_forward.1} parent=5 // pred_check
        _
      $region10: #{lenet5_forward.1} parent=5 // pred_check_branch
        %295 = sbr.rel (%p292) target = $region12
      $region11: #{lenet5_forward.1} parent=5 // pred_region
        %s296 = ssub.s32 %s20, 1
        // Predicated region
        $region13: #{lenet5_forward.1} parent=11 // pred_check
          %p297 = pneg %p67
        $region14: #{lenet5_forward.1} parent=11 // pred_check_branch
          %299 = sbr.rel (%p297) target = $region16
        $region15: #{lenet5_forward.1} parent=11 // pred_region
          _
        $region16: #{lenet5_forward.1} parent=11 // pred_fallthru
          _
        // Predicated region
        $region17: #{lenet5_forward.1} parent=11 // pred_check
          %p300 = pneg %p88
        $region18: #{lenet5_forward.1} parent=11 // pred_check_branch
          %302 = sbr.rel (%p300) target = $region20
        $region19: #{lenet5_forward.1} parent=11 // pred_region
          _
        $region20: #{lenet5_forward.1} parent=11 // pred_fallthru
          _
        // Predicated region
        $region21: #{lenet5_forward.1} parent=11 // pred_check
          %p303 = pneg %p109
        $region22: #{lenet5_forward.1} parent=11 // pred_check_branch
          %305 = sbr.rel (%p303) target = $region24
        $region23: #{lenet5_forward.1} parent=11 // pred_region
          _
        $region24: #{lenet5_forward.1} parent=11 // pred_fallthru
          _
        // Predicated region
        $region25: #{lenet5_forward.1} parent=11 // pred_check
          %p306 = pneg %p130
        $region26: #{lenet5_forward.1} parent=11 // pred_check_branch
          %308 = sbr.rel (%p306) target = $region28
        $region27: #{lenet5_forward.1} parent=11 // pred_region
          _
        $region28: #{lenet5_forward.1} parent=11 // pred_fallthru
          _
        // Predicated region
        $region29: #{lenet5_forward.1} parent=11 // pred_check
          %p309 = pneg %p151
        $region30: #{lenet5_forward.1} parent=11 // pred_check_branch
          %311 = sbr.rel (%p309) target = $region32
        $region31: #{lenet5_forward.1} parent=11 // pred_region
          _
        $region32: #{lenet5_forward.1} parent=11 // pred_fallthru
          _
        // Predicated region
        $region33: #{lenet5_forward.1} parent=11 // pred_check
          %p312 = pneg %p172
        $region34: #{lenet5_forward.1} parent=11 // pred_check_branch
          %314 = sbr.rel (%p312) target = $region36
        $region35: #{lenet5_forward.1} parent=11 // pred_region
          _
        $region36: #{lenet5_forward.1} parent=11 // pred_fallthru
          _
        // Predicated region
        $region37: #{lenet5_forward.1} parent=11 // pred_check
          %p315 = pneg %p193
        $region38: #{lenet5_forward.1} parent=11 // pred_check_branch
          %317 = sbr.rel (%p315) target = $region40
        $region39: #{lenet5_forward.1} parent=11 // pred_region
          _
        $region40: #{lenet5_forward.1} parent=11 // pred_fallthru
          _
        // Predicated region
        $region41: #{lenet5_forward.1} parent=11 // pred_check
          %p318 = pneg %p214
        $region42: #{lenet5_forward.1} parent=11 // pred_check_branch
          %320 = sbr.rel (%p318) target = $region44
        $region43: #{lenet5_forward.1} parent=11 // pred_region
          _
        $region44: #{lenet5_forward.1} parent=11 // pred_fallthru
          _
        // Predicated region
        $region45: #{lenet5_forward.1} parent=11 // pred_check
          %p321 = pneg %p235
        $region46: #{lenet5_forward.1} parent=11 // pred_check_branch
          %323 = sbr.rel (%p321) target = $region48
        $region47: #{lenet5_forward.1} parent=11 // pred_region
          _
        $region48: #{lenet5_forward.1} parent=11 // pred_fallthru
          _
        // Predicated region
        $region49: #{lenet5_forward.1} parent=11 // pred_check
          %p324 = pneg %p256
        $region50: #{lenet5_forward.1} parent=11 // pred_check_branch
          %326 = sbr.rel (%p324) target = $region52
        $region51: #{lenet5_forward.1} parent=11 // pred_region
          _
        $region52: #{lenet5_forward.1} parent=11 // pred_fallthru
          _
      $region12: #{lenet5_forward.1} parent=5 // pred_fallthru
        _
      %p327 = scmp.lt.s32.totalorder %s20, 2
      // Predicated region
      $region53: #{lenet5_forward.1} parent=5 // pred_check
        %p328 = pneg %p327
      $region54: #{lenet5_forward.1} parent=5 // pred_check_branch
        %330 = sbr.rel (%p328) target = $region56
      $region55: #{lenet5_forward.1} parent=5 // pred_region
        // Predicated region
        $region57: #{lenet5_forward.1} parent=55 // pred_check
          %p331 = pneg %p40
        $region58: #{lenet5_forward.1} parent=55 // pred_check_branch
          %333 = sbr.rel (%p331) target = $region60
        $region59: #{lenet5_forward.1} parent=55 // pred_region
          %p334 = scmp.lt.s32.totalorder %s20, 1
          %s335 = scalar_select %p334, %s20, 1
          %s336 = smul.addr %s335, 96
          %s337 = smul.addr %s336, 8
          %s338 = scalar_lea.vmem %s0, %s337
        $region60: #{lenet5_forward.1} parent=55 // pred_fallthru
          _
      $region56: #{lenet5_forward.1} parent=5 // pred_fallthru
        _
      %p339 = scmp.le.s32.totalorder 1, %s20
      %p340 = scmp.lt.s32.totalorder %s20, 3
      %p341 = pnand %p339, %p340
      %p342 = pneg %p341
      // Predicated region
      $region61: #{lenet5_forward.1} parent=5 // pred_check
        _
      $region62: #{lenet5_forward.1} parent=5 // pred_check_branch
        %344 = sbr.rel (%p341) target = $region64
      $region63: #{lenet5_forward.1} parent=5 // pred_region
        %s345 = ssub.s32 %s20, 1
        %p346 = scmp.lt.s32.totalorder %s25, 1
        %s347 = scalar_select %p346, %s25, 1
        %s348 = smul.addr %s347, 96
        %s349 = smul.addr %s348, 8
        %s350 = scalar_lea.vmem %s0, %s349
        %p351 = pneg %p46
        %p352 = pneg %p43
        %p353 = pneg %p67
        %p354 = pneg %p64
        %p355 = pneg %p88
        %p356 = pneg %p85
        %p357 = pneg %p109
        %p358 = pneg %p106
        %p359 = pneg %p130
        %p360 = pneg %p127
        %p361 = pneg %p151
        %p362 = pneg %p148
        %p363 = pneg %p172
        %p364 = pneg %p169
        %p365 = pneg %p193
        %p366 = pneg %p190
        %p367 = pneg %p214
        %p368 = pneg %p211
        %p369 = pneg %p235
        %p370 = pneg %p232
        %p371 = pneg %p256
        %p372 = pneg %p253
        %p373 = pneg %p282
        %p374 = pneg %p279
        %s375 = sand.u32 %s269, 1
        %s376 = scalar_lea.sflag [#allocation5], %s375
        %s377 = sand.u32 %s269, 1
        %s378 = scalar_lea.vmem [#allocation4], %s377
        %p379 = scmp.lt.s32.totalorder %s25, 1
        %s380 = scalar_select %p379, %s25, 1
        %s381 = smul.addr %s380, 96
        %s382 = smul.addr %s381, 8
        %s383 = scalar_lea.vmem %s0, %s382
        %v384 = vld [vmem:[%s383] sm:$0xff]
        %v385 = vld [vmem:[%s383 + $0x8] sm:$0xff]
        %v386 = vld [vmem:[%s383 + $0x10] sm:$0xff]
        %v387 = vld [vmem:[%s383 + $0x18] sm:$0xf]
        %v388 = vld [vmem:[%s383 + $0x20] sm:$0xff]
        %v389 = vld [vmem:[%s383 + $0x28] sm:$0xff]
        %v390 = vld [vmem:[%s383 + $0x30] sm:$0xff]
        %v391 = vld [vmem:[%s383 + $0x38] sm:$0xf]
        %v392 = vld [vmem:[%s383 + $0x40] sm:$0xff]
        %v393 = vld [vmem:[%s383 + $0x48] sm:$0xff]
        %v394 = vld [vmem:[%s383 + $0x50] sm:$0xff]
        %v395 = vld [vmem:[%s383 + $0x58] sm:$0xf]
        %v396 = vld [vmem:[%s383 + $0x60] sm:$0xff]
        %v397 = vld [vmem:[%s383 + $0x68] sm:$0xff]
        %v398 = vld [vmem:[%s383 + $0x70] sm:$0xff]
        %v399 = vld [vmem:[%s383 + $0x78] sm:$0xf]
        %v400 = vld [vmem:[%s383 + $0x80] sm:$0xff]
        %v401 = vld [vmem:[%s383 + $0x88] sm:$0xff]
        %v402 = vld [vmem:[%s383 + $0x90] sm:$0xff]
        %v403 = vld [vmem:[%s383 + $0x98] sm:$0xf]
        %v404 = vld [vmem:[%s383 + $0xa0] sm:$0xff]
        %v405 = vld [vmem:[%s383 + $0xa8] sm:$0xff]
        %v406 = vld [vmem:[%s383 + $0xb0] sm:$0xff]
        %v407 = vld [vmem:[%s383 + $0xb8] sm:$0xf]
        %v408 = vld [vmem:[%s383 + $0xc0] sm:$0xff]
        %v409 = vld [vmem:[%s383 + $0xc8] sm:$0xff]
        %v410 = vld [vmem:[%s383 + $0xd0] sm:$0xff]
        %v411 = vld [vmem:[%s383 + $0xd8] sm:$0xf]
        %v412 = vld [vmem:[%s383 + $0xe0] sm:$0xff]
        %v413 = vld [vmem:[%s383 + $0xe8] sm:$0xff]
        %v414 = vld [vmem:[%s383 + $0xf0] sm:$0xff]
        %v415 = vld [vmem:[%s383 + $0xf8] sm:$0xf]
        %v416 = vld [vmem:[%s383 + $0x100] sm:$0xff]
        %v417 = vld [vmem:[%s383 + $0x108] sm:$0xff]
        %v418 = vld [vmem:[%s383 + $0x110] sm:$0xff]
        %v419 = vld [vmem:[%s383 + $0x118] sm:$0xf]
        %v420 = vld [vmem:[%s383 + $0x120] sm:$0xff]
        %v421 = vld [vmem:[%s383 + $0x128] sm:$0xff]
        %v422 = vld [vmem:[%s383 + $0x130] sm:$0xff]
        %v423 = vld [vmem:[%s383 + $0x138] sm:$0xf]
        %v424 = vld [vmem:[%s383 + $0x140] sm:$0xff]
        %v425 = vld [vmem:[%s383 + $0x148] sm:$0xff]
        %v426 = vld [vmem:[%s383 + $0x150] sm:$0xff]
        %v427 = vld [vmem:[%s383 + $0x158] sm:$0xf]
        %v428 = vld [vmem:[%s383 + $0x160] sm:$0xff]
        %v429 = vld [vmem:[%s383 + $0x168] sm:$0xff]
        %v430 = vld [vmem:[%s383 + $0x170] sm:$0xff]
        %v431 = vld [vmem:[%s383 + $0x178] sm:$0xf]
        %v432 = vld [vmem:[%s383 + $0x180] sm:$0xff]
        %v433 = vld [vmem:[%s383 + $0x188] sm:$0xff]
        %v434 = vld [vmem:[%s383 + $0x190] sm:$0xff]
        %v435 = vld [vmem:[%s383 + $0x198] sm:$0xf]
        %v436 = vld [vmem:[%s383 + $0x1a0] sm:$0xff]
        %v437 = vld [vmem:[%s383 + $0x1a8] sm:$0xff]
        %v438 = vld [vmem:[%s383 + $0x1b0] sm:$0xff]
        %v439 = vld [vmem:[%s383 + $0x1b8] sm:$0xf]
        %v440 = vld [vmem:[%s383 + $0x1c0] sm:$0xff]
        %v441 = vld [vmem:[%s383 + $0x1c8] sm:$0xff]
        %v442 = vld [vmem:[%s383 + $0x1d0] sm:$0xff]
        %v443 = vld [vmem:[%s383 + $0x1d8] sm:$0xf]
        %v444 = vld [vmem:[%s383 + $0x1e0] sm:$0xff]
        %v445 = vld [vmem:[%s383 + $0x1e8] sm:$0xff]
        %v446 = vld [vmem:[%s383 + $0x1f0] sm:$0xff]
        %v447 = vld [vmem:[%s383 + $0x1f8] sm:$0xf]
        %v448 = vld [vmem:[%s383 + $0x200] sm:$0xff]
        %v449 = vld [vmem:[%s383 + $0x208] sm:$0xff]
        %v450 = vld [vmem:[%s383 + $0x210] sm:$0xff]
        %v451 = vld [vmem:[%s383 + $0x218] sm:$0xf]
        %v452 = vld [vmem:[%s383 + $0x220] sm:$0xff]
        %v453 = vld [vmem:[%s383 + $0x228] sm:$0xff]
        %v454 = vld [vmem:[%s383 + $0x230] sm:$0xff]
        %v455 = vld [vmem:[%s383 + $0x238] sm:$0xf]
        %v456 = vld [vmem:[%s383 + $0x240] sm:$0xff]
        %v457 = vld [vmem:[%s383 + $0x248] sm:$0xff]
        %v458 = vld [vmem:[%s383 + $0x250] sm:$0xff]
        %v459 = vld [vmem:[%s383 + $0x258] sm:$0xf]
        %v460 = vld [vmem:[%s383 + $0x260] sm:$0xff]
        %v461 = vld [vmem:[%s383 + $0x268] sm:$0xff]
        %v462 = vld [vmem:[%s383 + $0x270] sm:$0xff]
        %v463 = vld [vmem:[%s383 + $0x278] sm:$0xf]
        %v464 = vld [vmem:[%s383 + $0x280] sm:$0xff]
        %v465 = vld [vmem:[%s383 + $0x288] sm:$0xff]
        %v466 = vld [vmem:[%s383 + $0x290] sm:$0xff]
        %v467 = vld [vmem:[%s383 + $0x298] sm:$0xf]
        %v468 = vld [vmem:[%s383 + $0x2a0] sm:$0xff]
        %v469 = vld [vmem:[%s383 + $0x2a8] sm:$0xff]
        %v470 = vld [vmem:[%s383 + $0x2b0] sm:$0xff]
        %v471 = vld [vmem:[%s383 + $0x2b8] sm:$0xf]
        %v472 = vld [vmem:[%s383 + $0x2c0] sm:$0xff]
        %v473 = vld [vmem:[%s383 + $0x2c8] sm:$0xff]
        %v474 = vld [vmem:[%s383 + $0x2d0] sm:$0xff]
        %v475 = vld [vmem:[%s383 + $0x2d8] sm:$0xf]
        %v476 = vld [vmem:[%s383 + $0x2e0] sm:$0xff]
        %v477 = vld [vmem:[%s383 + $0x2e8] sm:$0xff]
        %v478 = vld [vmem:[%s383 + $0x2f0] sm:$0xff]
        %v479 = vld [vmem:[%s383 + $0x2f8] sm:$0xf]
        %v480 = vld [vmem:[%s1] sm:$0xff]
        %v481 = vld [vmem:[%s1 + $0x8] sm:$0xff]
        %v482 = vld [vmem:[%s1 + $0x10] sm:$0xff]
        %v483 = vld [vmem:[%s1 + $0x18] sm:$0x1]
        %vm580 = vcmask 1046528
        %v581 = vrot.slane %v384, 1
        %v582 = vrot.slane %v385, 1
        %v583 = vsel %vm580, %v581, %v582
        %v584 = vrot.slane %v386, 1
        %v585 = vsel %vm580, %v582, %v584
        %v586 = vrot.slane %v387, 1
        %v587 = vsel %vm580, %v584, %v586
        %v588 = vrot.slane %v388, 1
        %v589 = vrot.slane %v389, 1
        %v590 = vsel %vm580, %v588, %v589
        %v591 = vrot.slane %v390, 1
        %v592 = vsel %vm580, %v589, %v591
        %v593 = vrot.slane %v391, 1
        %v594 = vsel %vm580, %v591, %v593
        %v595 = vrot.slane %v392, 1
        %v596 = vrot.slane %v393, 1
        %v597 = vsel %vm580, %v595, %v596
        %v598 = vrot.slane %v394, 1
        %v599 = vsel %vm580, %v596, %v598
        %v600 = vrot.slane %v395, 1
        %v601 = vsel %vm580, %v598, %v600
        %v602 = vrot.slane %v396, 1
        %v603 = vrot.slane %v397, 1
        %v604 = vsel %vm580, %v602, %v603
        %v605 = vrot.slane %v398, 1
        %v606 = vsel %vm580, %v603, %v605
        %v607 = vrot.slane %v399, 1
        %v608 = vsel %vm580, %v605, %v607
        %v609 = vrot.slane %v400, 1
        %v610 = vrot.slane %v401, 1
        %v611 = vsel %vm580, %v609, %v610
        %v612 = vrot.slane %v402, 1
        %v613 = vsel %vm580, %v610, %v612
        %v614 = vrot.slane %v403, 1
        %v615 = vsel %vm580, %v612, %v614
        %v616 = vrot.slane %v404, 1
        %v617 = vrot.slane %v405, 1
        %v618 = vsel %vm580, %v616, %v617
        %v619 = vrot.slane %v406, 1
        %v620 = vsel %vm580, %v617, %v619
        %v621 = vrot.slane %v407, 1
        %v622 = vsel %vm580, %v619, %v621
        %v623 = vrot.slane %v408, 1
        %v624 = vrot.slane %v409, 1
        %v625 = vsel %vm580, %v623, %v624
        %v626 = vrot.slane %v410, 1
        %v627 = vsel %vm580, %v624, %v626
        %v628 = vrot.slane %v411, 1
        %v629 = vsel %vm580, %v626, %v628
        %v630 = vrot.slane %v412, 1
        %v631 = vrot.slane %v413, 1
        %v632 = vsel %vm580, %v630, %v631
        %v633 = vrot.slane %v414, 1
        %v634 = vsel %vm580, %v631, %v633
        %v635 = vrot.slane %v415, 1
        %v636 = vsel %vm580, %v633, %v635
        %v637 = vrot.slane %v416, 1
        %v638 = vrot.slane %v417, 1
        %v639 = vsel %vm580, %v637, %v638
        %v640 = vrot.slane %v418, 1
        %v641 = vsel %vm580, %v638, %v640
        %v642 = vrot.slane %v419, 1
        %v643 = vsel %vm580, %v640, %v642
        %v644 = vrot.slane %v420, 1
        %v645 = vrot.slane %v421, 1
        %v646 = vsel %vm580, %v644, %v645
        %v647 = vrot.slane %v422, 1
        %v648 = vsel %vm580, %v645, %v647
        %v649 = vrot.slane %v423, 1
        %v650 = vsel %vm580, %v647, %v649
        %v651 = vrot.slane %v424, 1
        %v652 = vrot.slane %v425, 1
        %v653 = vsel %vm580, %v651, %v652
        %v654 = vrot.slane %v426, 1
        %v655 = vsel %vm580, %v652, %v654
        %v656 = vrot.slane %v427, 1
        %v657 = vsel %vm580, %v654, %v656
        %v658 = vrot.slane %v428, 1
        %v659 = vrot.slane %v429, 1
        %v660 = vsel %vm580, %v658, %v659
        %v661 = vrot.slane %v430, 1
        %v662 = vsel %vm580, %v659, %v661
        %v663 = vrot.slane %v431, 1
        %v664 = vsel %vm580, %v661, %v663
        %v665 = vrot.slane %v432, 1
        %v666 = vrot.slane %v433, 1
        %v667 = vsel %vm580, %v665, %v666
        %v668 = vrot.slane %v434, 1
        %v669 = vsel %vm580, %v666, %v668
        %v670 = vrot.slane %v435, 1
        %v671 = vsel %vm580, %v668, %v670
        %v672 = vrot.slane %v436, 1
        %v673 = vrot.slane %v437, 1
        %v674 = vsel %vm580, %v672, %v673
        %v675 = vrot.slane %v438, 1
        %v676 = vsel %vm580, %v673, %v675
        %v677 = vrot.slane %v439, 1
        %v678 = vsel %vm580, %v675, %v677
        %v679 = vrot.slane %v440, 1
        %v680 = vrot.slane %v441, 1
        %v681 = vsel %vm580, %v679, %v680
        %v682 = vrot.slane %v442, 1
        %v683 = vsel %vm580, %v680, %v682
        %v684 = vrot.slane %v443, 1
        %v685 = vsel %vm580, %v682, %v684
        %v686 = vrot.slane %v444, 1
        %v687 = vrot.slane %v445, 1
        %v688 = vsel %vm580, %v686, %v687
        %v689 = vrot.slane %v446, 1
        %v690 = vsel %vm580, %v687, %v689
        %v691 = vrot.slane %v447, 1
        %v692 = vsel %vm580, %v689, %v691
        %v693 = vrot.slane %v448, 1
        %v694 = vrot.slane %v449, 1
        %v695 = vsel %vm580, %v693, %v694
        %v696 = vrot.slane %v450, 1
        %v697 = vsel %vm580, %v694, %v696
        %v698 = vrot.slane %v451, 1
        %v699 = vsel %vm580, %v696, %v698
        %v700 = vrot.slane %v452, 1
        %v701 = vrot.slane %v453, 1
        %v702 = vsel %vm580, %v700, %v701
        %v703 = vrot.slane %v454, 1
        %v704 = vsel %vm580, %v701, %v703
        %v705 = vrot.slane %v455, 1
        %v706 = vsel %vm580, %v703, %v705
        %v707 = vrot.slane %v456, 1
        %v708 = vrot.slane %v457, 1
        %v709 = vsel %vm580, %v707, %v708
        %v710 = vrot.slane %v458, 1
        %v711 = vsel %vm580, %v708, %v710
        %v712 = vrot.slane %v459, 1
        %v713 = vsel %vm580, %v710, %v712
        %v714 = vrot.slane %v460, 1
        %v715 = vrot.slane %v461, 1
        %v716 = vsel %vm580, %v714, %v715
        %v717 = vrot.slane %v462, 1
        %v718 = vsel %vm580, %v715, %v717
        %v719 = vrot.slane %v463, 1
        %v720 = vsel %vm580, %v717, %v719
        %v721 = vrot.slane %v464, 1
        %v722 = vrot.slane %v465, 1
        %v723 = vsel %vm580, %v721, %v722
        %v724 = vrot.slane %v466, 1
        %v725 = vsel %vm580, %v722, %v724
        %v726 = vrot.slane %v467, 1
        %v727 = vsel %vm580, %v724, %v726
        %v728 = vrot.slane %v468, 1
        %v729 = vrot.slane %v469, 1
        %v730 = vsel %vm580, %v728, %v729
        %v731 = vrot.slane %v470, 1
        %v732 = vsel %vm580, %v729, %v731
        %v733 = vrot.slane %v471, 1
        %v734 = vsel %vm580, %v731, %v733
        %v735 = vrot.slane %v472, 1
        %v736 = vrot.slane %v473, 1
        %v737 = vsel %vm580, %v735, %v736
        %v738 = vrot.slane %v474, 1
        %v739 = vsel %vm580, %v736, %v738
        %v740 = vrot.slane %v475, 1
        %v741 = vsel %vm580, %v738, %v740
        %v742 = vrot.slane %v476, 1
        %v743 = vrot.slane %v477, 1
        %v744 = vsel %vm580, %v742, %v743
        %v745 = vrot.slane %v478, 1
        %v746 = vsel %vm580, %v743, %v745
        %v747 = vrot.slane %v479, 1
        %v748 = vsel %vm580, %v745, %v747
        %vm751 = vcmask 1042432
        %v752 = vrot.slane %v480, 5
        %v753 = vrot.slane %v481, 5
        %v754 = vsel %vm751, %v752, %v753
        %vm755 = vcmask 39936
        %v756 = vsel %vm755, %v583, 0
        %v758 = vsel %vm755, %v585, 0
        %v760 = vsel %vm755, %v587, 0
        %v762 = vsel %vm755, %v590, 0
        %v764 = vsel %vm755, %v592, 0
        %v766 = vsel %vm755, %v594, 0
        %v768 = vsel %vm755, %v597, 0
        %v770 = vsel %vm755, %v599, 0
        %v772 = vsel %vm755, %v601, 0
        %v774 = vsel %vm755, %v604, 0
        %v776 = vsel %vm755, %v606, 0
        %v778 = vsel %vm755, %v608, 0
        %v780 = vsel %vm755, %v611, 0
        %v782 = vsel %vm755, %v613, 0
        %v784 = vsel %vm755, %v615, 0
        %v786 = vsel %vm755, %v618, 0
        %v788 = vsel %vm755, %v620, 0
        %v790 = vsel %vm755, %v622, 0
        %v792 = vsel %vm755, %v625, 0
        %v794 = vsel %vm755, %v627, 0
        %v796 = vsel %vm755, %v629, 0
        %v798 = vsel %vm755, %v632, 0
        %v800 = vsel %vm755, %v634, 0
        %v802 = vsel %vm755, %v636, 0
        %v804 = vsel %vm755, %v639, 0
        %v806 = vsel %vm755, %v641, 0
        %v808 = vsel %vm755, %v643, 0
        %v810 = vsel %vm755, %v646, 0
        %v812 = vsel %vm755, %v648, 0
        %v814 = vsel %vm755, %v650, 0
        %v816 = vsel %vm755, %v653, 0
        %v818 = vsel %vm755, %v655, 0
        %v820 = vsel %vm755, %v657, 0
        %v822 = vsel %vm755, %v660, 0
        %v824 = vsel %vm755, %v662, 0
        %v826 = vsel %vm755, %v664, 0
        %v828 = vsel %vm755, %v667, 0
        %v830 = vsel %vm755, %v669, 0
        %v832 = vsel %vm755, %v671, 0
        %v834 = vsel %vm755, %v674, 0
        %v836 = vsel %vm755, %v676, 0
        %v838 = vsel %vm755, %v678, 0
        %v840 = vsel %vm755, %v681, 0
        %v842 = vsel %vm755, %v683, 0
        %v844 = vsel %vm755, %v685, 0
        %v846 = vsel %vm755, %v688, 0
        %v848 = vsel %vm755, %v690, 0
        %v850 = vsel %vm755, %v692, 0
        %v852 = vsel %vm755, %v695, 0
        %v854 = vsel %vm755, %v697, 0
        %v856 = vsel %vm755, %v699, 0
        %v858 = vsel %vm755, %v702, 0
        %v860 = vsel %vm755, %v704, 0
        %v862 = vsel %vm755, %v706, 0
        %v864 = vsel %vm755, %v709, 0
        %v866 = vsel %vm755, %v711, 0
        %v868 = vsel %vm755, %v713, 0
        %v870 = vsel %vm755, %v716, 0
        %v872 = vsel %vm755, %v718, 0
        %v874 = vsel %vm755, %v720, 0
        %v876 = vsel %vm755, %v723, 0
        %v878 = vsel %vm755, %v725, 0
        %v880 = vsel %vm755, %v727, 0
        %v882 = vsel %vm755, %v730, 0
        %v884 = vsel %vm755, %v732, 0
        %v886 = vsel %vm755, %v734, 0
        %v888 = vsel %vm755, %v737, 0
        %v890 = vsel %vm755, %v739, 0
        %v892 = vsel %vm755, %v741, 0
        %v894 = vsel %vm755, %v744, 0
        %v896 = vsel %vm755, %v746, 0
        %v898 = vsel %vm755, %v748, 0
        %vm900 = vcmask 1044480
        %v901 = vsel %vm900, %v754, 0
        %903 = vmatprep.subr.mxu0 0.0
        %904 = vmatpush1.msra.mxu0 %v901
        %905 = vmatprep.subr.mxu0 0.0
        %906 = vmatpush1.msra.mxu0 0.0
        %907 = vmatprep.subr.mxu0 0.0
        %908 = vmatpush1.msra.mxu0 0.0
        %909 = vmatprep.subr.mxu0 0.0
        %910 = vmatpush1.msra.mxu0 0.0
        %911 = vmatprep.subr.mxu0 0.0
        %912 = vmatpush1.msra.mxu0 0.0
        %913 = vmatprep.subr.mxu0 0.0
        %914 = vmatpush1.msra.mxu0 0.0
        %915 = vmatprep.subr.mxu0 0.0
        %916 = vmatpush1.msra.mxu0 0.0
        %917 = vmatprep.subr.mxu0 0.0
        %918 = vmatpush1.msra.mxu0 0.0
        %919 = vmatprep.subr.mxu0 0.0
        %920 = vmatpush1.msra.mxu0 0.0
        %921 = vmatprep.subr.mxu0 0.0
        %922 = vmatpush1.msra.mxu0 0.0
        %923 = vmatprep.subr.mxu0 0.0
        %924 = vmatpush1.msra.mxu0 0.0
        %925 = vmatprep.subr.mxu0 0.0
        %926 = vmatpush1.msra.mxu0 0.0
        %927 = vmatprep.subr.mxu0 0.0
        %928 = vmatpush1.msra.mxu0 0.0
        %929 = vmatprep.subr.mxu0 0.0
        %930 = vmatpush1.msra.mxu0 0.0
        %931 = vmatprep.subr.mxu0 0.0
        %932 = vmatpush1.msra.mxu0 0.0
        %933 = vmatprep.subr.mxu0 0.0
        %934 = vmatpush1.msra.mxu0 0.0
        %935 = vmatprep.subr.mxu0 0.0
        %936 = vmatpush1.msra.mxu0 0.0
        %937 = vmatprep.subr.mxu0 0.0
        %938 = vmatpush1.msra.mxu0 0.0
        %939 = vmatprep.subr.mxu0 0.0
        %940 = vmatpush1.msra.mxu0 0.0
        %941 = vmatprep.subr.mxu0 0.0
        %942 = vmatpush1.msra.mxu0 0.0
        %943 = vmatprep.subr.mxu0 0.0
        %944 = vmatpush1.msra.mxu0 0.0
        %945 = vmatprep.subr.mxu0 0.0
        %946 = vmatpush1.msra.mxu0 0.0
        %947 = vmatprep.subr.mxu0 0.0
        %948 = vmatpush1.msra.mxu0 0.0
        %949 = vmatprep.subr.mxu0 0.0
        %950 = vmatpush1.msra.mxu0 0.0
        %951 = vmatprep.subr.mxu0 0.0
        %952 = vmatpush1.msra.mxu0 0.0
        %953 = vmatprep.subr.mxu0 0.0
        %954 = vmatpush1.msra.mxu0 0.0
        %955 = vmatprep.subr.mxu0 0.0
        %956 = vmatpush1.msra.mxu0 0.0
        %957 = vmatprep.subr.mxu0 0.0
        %958 = vmatpush1.msra.mxu0 0.0
        %959 = vmatprep.subr.mxu0 0.0
        %960 = vmatpush1.msra.mxu0 0.0
        %961 = vmatprep.subr.mxu0 0.0
        %962 = vmatpush1.msra.mxu0 0.0
        %963 = vmatprep.subr.mxu0 0.0
        %964 = vmatpush1.msra.mxu0 0.0
        %965 = vmatprep.subr.mxu0 0.0
        %966 = vmatpush1.msra.mxu0 0.0
        %967 = vmatprep.mubr.f32.mxu0 0.0
        %968 = vmatmul.mubr.f32.gmra.mrb[0].mxu0 %v756
        %v969 = vpop.f32.mrb[0].mxu0
        %v970 = vadd.f32 0.0, %v969
        %v971 = vpop.f32.mrb[0].mxu0
        %972 = vmatprep.mubr.f32.mxu0 0.0
        %973 = vmatmul.mubr.f32.gmra.mrb[0].mxu0 %v758
        %v974 = vpop.f32.mrb[0].mxu0
        %v975 = vadd.f32 0.0, %v974
        %v976 = vpop.f32.mrb[0].mxu0
        %977 = vmatprep.mubr.f32.mxu0 0.0
        %978 = vmatmul.mubr.f32.gmra.mrb[0].mxu0 %v760
        %v979 = vpop.f32.mrb[0].mxu0
        %v980 = vadd.f32 0.0, %v979
        %v981 = vpop.f32.mrb[0].mxu0
        %982 = vmatprep.mubr.f32.mxu0 0.0
        %983 = vmatmul.mubr.f32.gmra.mrb[0].mxu0 %v762
        %v984 = vpop.f32.mrb[0].mxu0
        %v985 = vadd.f32 0.0, %v984
        %v986 = vpop.f32.mrb[0].mxu0
        %987 = vmatprep.mubr.f32.mxu0 0.0
        %988 = vmatmul.mubr.f32.gmra.mrb[0].mxu0 %v764
        %v989 = vpop.f32.mrb[0].mxu0
        %v990 = vadd.f32 0.0, %v989
        %v991 = vpop.f32.mrb[0].mxu0
        %992 = vmatprep.mubr.f32.mxu0 0.0
        %993 = vmatmul.mubr.f32.gmra.mrb[0].mxu0 %v766
        %v994 = vpop.f32.mrb[0].mxu0
        %v995 = vadd.f32 0.0, %v994
        %v996 = vpop.f32.mrb[0].mxu0
        %997 = vmatprep.mubr.f32.mxu0 0.0
        %998 = vmatmul.mubr.f32.gmra.mrb[0].mxu0 %v768
        %v999 = vpop.f32.mrb[0].mxu0
        %v1000 = vadd.f32 0.0, %v999
        %v1001 = vpop.f32.mrb[0].mxu0
        %1002 = vmatprep.mubr.f32.mxu0 0.0
        %1003 = vmatmul.mubr.f32.gmra.mrb[0].mxu0 %v770
        %v1004 = vpop.f32.mrb[0].mxu0
        %v1005 = vadd.f32 0.0, %v1004
        %v1006 = vpop.f32.mrb[0].mxu0
        %1007 = vmatprep.mubr.f32.mxu0 0.0
        %1008 = vmatmul.mubr.f32.gmra.mrb[0].mxu0 %v772
        %v1009 = vpop.f32.mrb[0].mxu0
        %v1010 = vadd.f32 0.0, %v1009
        %v1011 = vpop.f32.mrb[0].mxu0
        %1012 = vmatprep.mubr.f32.mxu0 0.0
        %1013 = vmatmul.mubr.f32.gmra.mrb[0].mxu0 %v774
        %v1014 = vpop.f32.mrb[0].mxu0
        %v1015 = vadd.f32 0.0, %v1014
        %v1016 = vpop.f32.mrb[0].mxu0
        %1017 = vmatprep.mubr.f32.mxu0 0.0
        %1018 = vmatmul.mubr.f32.gmra.mrb[0].mxu0 %v776
        %v1019 = vpop.f32.mrb[0].mxu0
        %v1020 = vadd.f32 0.0, %v1019
        %v1021 = vpop.f32.mrb[0].mxu0
        %1022 = vmatprep.mubr.f32.mxu0 0.0
        %1023 = vmatmul.mubr.f32.gmra.mrb[0].mxu0 %v778
        %v1024 = vpop.f32.mrb[0].mxu0
        %v1025 = vadd.f32 0.0, %v1024
        %v1026 = vpop.f32.mrb[0].mxu0
        %1027 = vmatprep.mubr.f32.mxu0 0.0
        %1028 = vmatmul.mubr.f32.gmra.mrb[0].mxu0 %v780
        %v1029 = vpop.f32.mrb[0].mxu0
        %v1030 = vadd.f32 0.0, %v1029
        %v1031 = vpop.f32.mrb[0].mxu0
        %1032 = vmatprep.mubr.f32.mxu0 0.0
        %1033 = vmatmul.mubr.f32.gmra.mrb[0].mxu0 %v782
        %v1034 = vpop.f32.mrb[0].mxu0
        %v1035 = vadd.f32 0.0, %v1034
        %v1036 = vpop.f32.mrb[0].mxu0
        %1037 = vmatprep.mubr.f32.mxu0 0.0
        %1038 = vmatmul.mubr.f32.gmra.mrb[0].mxu0 %v784
        %v1039 = vpop.f32.mrb[0].mxu0
        %v1040 = vadd.f32 0.0, %v1039
        %v1041 = vpop.f32.mrb[0].mxu0
        %1042 = vmatprep.mubr.f32.mxu0 0.0
        %1043 = vmatmul.mubr.f32.gmra.mrb[0].mxu0 %v786
        %v1044 = vpop.f32.mrb[0].mxu0
        %v1045 = vadd.f32 0.0, %v1044
        %v1046 = vpop.f32.mrb[0].mxu0
        %1047 = vmatprep.mubr.f32.mxu0 0.0
        %1048 = vmatmul.mubr.f32.gmra.mrb[0].mxu0 %v788
        %v1049 = vpop.f32.mrb[0].mxu0
        %v1050 = vadd.f32 0.0, %v1049
        %v1051 = vpop.f32.mrb[0].mxu0
        %1052 = vmatprep.mubr.f32.mxu0 0.0
        %1053 = vmatmul.mubr.f32.gmra.mrb[0].mxu0 %v790
        %v1054 = vpop.f32.mrb[0].mxu0
        %v1055 = vadd.f32 0.0, %v1054
        %v1056 = vpop.f32.mrb[0].mxu0
        %1057 = vmatprep.mubr.f32.mxu0 0.0
        %1058 = vmatmul.mubr.f32.gmra.mrb[0].mxu0 %v792
        %v1059 = vpop.f32.mrb[0].mxu0
        %v1060 = vadd.f32 0.0, %v1059
        %v1061 = vpop.f32.mrb[0].mxu0
        %1062 = vmatprep.mubr.f32.mxu0 0.0
        %1063 = vmatmul.mubr.f32.gmra.mrb[0].mxu0 %v794
        %v1064 = vpop.f32.mrb[0].mxu0
        %v1065 = vadd.f32 0.0, %v1064
        %v1066 = vpop.f32.mrb[0].mxu0
        %1067 = vmatprep.mubr.f32.mxu0 0.0
        %1068 = vmatmul.mubr.f32.gmra.mrb[0].mxu0 %v796
        %v1069 = vpop.f32.mrb[0].mxu0
        %v1070 = vadd.f32 0.0, %v1069
        %v1071 = vpop.f32.mrb[0].mxu0
        %1072 = vmatprep.mubr.f32.mxu0 0.0
        %1073 = vmatmul.mubr.f32.gmra.mrb[0].mxu0 %v798
        %v1074 = vpop.f32.mrb[0].mxu0
        %v1075 = vadd.f32 0.0, %v1074
        %v1076 = vpop.f32.mrb[0].mxu0
        %1077 = vmatprep.mubr.f32.mxu0 0.0
        %1078 = vmatmul.mubr.f32.gmra.mrb[0].mxu0 %v800
        %v1079 = vpop.f32.mrb[0].mxu0
        %v1080 = vadd.f32 0.0, %v1079
        %v1081 = vpop.f32.mrb[0].mxu0
        %1082 = vmatprep.mubr.f32.mxu0 0.0
        %1083 = vmatmul.mubr.f32.gmra.mrb[0].mxu0 %v802
        %v1084 = vpop.f32.mrb[0].mxu0
        %v1085 = vadd.f32 0.0, %v1084
        %v1086 = vpop.f32.mrb[0].mxu0
        %1087 = vmatprep.mubr.f32.mxu0 0.0
        %1088 = vmatmul.mubr.f32.gmra.mrb[0].mxu0 %v804
        %v1089 = vpop.f32.mrb[0].mxu0
        %v1090 = vadd.f32 0.0, %v1089
        %v1091 = vpop.f32.mrb[0].mxu0
        %1092 = vmatprep.mubr.f32.mxu0 0.0
        %1093 = vmatmul.mubr.f32.gmra.mrb[0].mxu0 %v806
        %v1094 = vpop.f32.mrb[0].mxu0
        %v1095 = vadd.f32 0.0, %v1094
        %v1096 = vpop.f32.mrb[0].mxu0
        %1097 = vmatprep.mubr.f32.mxu0 0.0
        %1098 = vmatmul.mubr.f32.gmra.mrb[0].mxu0 %v808
        %v1099 = vpop.f32.mrb[0].mxu0
        %v1100 = vadd.f32 0.0, %v1099
        %v1101 = vpop.f32.mrb[0].mxu0
        %1102 = vmatprep.mubr.f32.mxu0 0.0
        %1103 = vmatmul.mubr.f32.gmra.mrb[0].mxu0 %v810
        %v1104 = vpop.f32.mrb[0].mxu0
        %v1105 = vadd.f32 0.0, %v1104
        %v1106 = vpop.f32.mrb[0].mxu0
        %1107 = vmatprep.mubr.f32.mxu0 0.0
        %1108 = vmatmul.mubr.f32.gmra.mrb[0].mxu0 %v812
        %v1109 = vpop.f32.mrb[0].mxu0
        %v1110 = vadd.f32 0.0, %v1109
        %v1111 = vpop.f32.mrb[0].mxu0
        %1112 = vmatprep.mubr.f32.mxu0 0.0
        %1113 = vmatmul.mubr.f32.gmra.mrb[0].mxu0 %v814
        %v1114 = vpop.f32.mrb[0].mxu0
        %v1115 = vadd.f32 0.0, %v1114
        %v1116 = vpop.f32.mrb[0].mxu0
        %1117 = vmatprep.mubr.f32.mxu0 0.0
        %1118 = vmatmul.mubr.f32.gmra.mrb[0].mxu0 %v816
        %v1119 = vpop.f32.mrb[0].mxu0
        %v1120 = vadd.f32 0.0, %v1119
        %v1121 = vpop.f32.mrb[0].mxu0
        %1122 = vmatprep.mubr.f32.mxu0 0.0
        %1123 = vmatmul.mubr.f32.gmra.mrb[0].mxu0 %v818
        %v1124 = vpop.f32.mrb[0].mxu0
        %v1125 = vadd.f32 0.0, %v1124
        %v1126 = vpop.f32.mrb[0].mxu0
        %1127 = vmatprep.mubr.f32.mxu0 0.0
        %1128 = vmatmul.mubr.f32.gmra.mrb[0].mxu0 %v820
        %v1129 = vpop.f32.mrb[0].mxu0
        %v1130 = vadd.f32 0.0, %v1129
        %v1131 = vpop.f32.mrb[0].mxu0
        %1132 = vmatprep.mubr.f32.mxu0 0.0
        %1133 = vmatmul.mubr.f32.gmra.mrb[0].mxu0 %v822
        %v1134 = vpop.f32.mrb[0].mxu0
        %v1135 = vadd.f32 0.0, %v1134
        %v1136 = vpop.f32.mrb[0].mxu0
        %1137 = vmatprep.mubr.f32.mxu0 0.0
        %1138 = vmatmul.mubr.f32.gmra.mrb[0].mxu0 %v824
        %v1139 = vpop.f32.mrb[0].mxu0
        %v1140 = vadd.f32 0.0, %v1139
        %v1141 = vpop.f32.mrb[0].mxu0
        %1142 = vmatprep.mubr.f32.mxu0 0.0
        %1143 = vmatmul.mubr.f32.gmra.mrb[0].mxu0 %v826
        %v1144 = vpop.f32.mrb[0].mxu0
        %v1145 = vadd.f32 0.0, %v1144
        %v1146 = vpop.f32.mrb[0].mxu0
        %1147 = vmatprep.mubr.f32.mxu0 0.0
        %1148 = vmatmul.mubr.f32.gmra.mrb[0].mxu0 %v828
        %v1149 = vpop.f32.mrb[0].mxu0
        %v1150 = vadd.f32 0.0, %v1149
        %v1151 = vpop.f32.mrb[0].mxu0
        %1152 = vmatprep.mubr.f32.mxu0 0.0
        %1153 = vmatmul.mubr.f32.gmra.mrb[0].mxu0 %v830
        %v1154 = vpop.f32.mrb[0].mxu0
        %v1155 = vadd.f32 0.0, %v1154
        %v1156 = vpop.f32.mrb[0].mxu0
        %1157 = vmatprep.mubr.f32.mxu0 0.0
        %1158 = vmatmul.mubr.f32.gmra.mrb[0].mxu0 %v832
        %v1159 = vpop.f32.mrb[0].mxu0
        %v1160 = vadd.f32 0.0, %v1159
        %v1161 = vpop.f32.mrb[0].mxu0
        %1162 = vmatprep.mubr.f32.mxu0 0.0
        %1163 = vmatmul.mubr.f32.gmra.mrb[0].mxu0 %v834
        %v1164 = vpop.f32.mrb[0].mxu0
        %v1165 = vadd.f32 0.0, %v1164
        %v1166 = vpop.f32.mrb[0].mxu0
        %1167 = vmatprep.mubr.f32.mxu0 0.0
        %1168 = vmatmul.mubr.f32.gmra.mrb[0].mxu0 %v836
        %v1169 = vpop.f32.mrb[0].mxu0
        %v1170 = vadd.f32 0.0, %v1169
        %v1171 = vpop.f32.mrb[0].mxu0
        %1172 = vmatprep.mubr.f32.mxu0 0.0
        %1173 = vmatmul.mubr.f32.gmra.mrb[0].mxu0 %v838
        %v1174 = vpop.f32.mrb[0].mxu0
        %v1175 = vadd.f32 0.0, %v1174
        %v1176 = vpop.f32.mrb[0].mxu0
        %1177 = vmatprep.mubr.f32.mxu0 0.0
        %1178 = vmatmul.mubr.f32.gmra.mrb[0].mxu0 %v840
        %v1179 = vpop.f32.mrb[0].mxu0
        %v1180 = vadd.f32 0.0, %v1179
        %v1181 = vpop.f32.mrb[0].mxu0
        %1182 = vmatprep.mubr.f32.mxu0 0.0
        %1183 = vmatmul.mubr.f32.gmra.mrb[0].mxu0 %v842
        %v1184 = vpop.f32.mrb[0].mxu0
        %v1185 = vadd.f32 0.0, %v1184
        %v1186 = vpop.f32.mrb[0].mxu0
        %1187 = vmatprep.mubr.f32.mxu0 0.0
        %1188 = vmatmul.mubr.f32.gmra.mrb[0].mxu0 %v844
        %v1189 = vpop.f32.mrb[0].mxu0
        %v1190 = vadd.f32 0.0, %v1189
        %v1191 = vpop.f32.mrb[0].mxu0
        %1192 = vmatprep.mubr.f32.mxu0 0.0
        %1193 = vmatmul.mubr.f32.gmra.mrb[0].mxu0 %v846
        %v1194 = vpop.f32.mrb[0].mxu0
        %v1195 = vadd.f32 0.0, %v1194
        %v1196 = vpop.f32.mrb[0].mxu0
        %1197 = vmatprep.mubr.f32.mxu0 0.0
        %1198 = vmatmul.mubr.f32.gmra.mrb[0].mxu0 %v848
        %v1199 = vpop.f32.mrb[0].mxu0
        %v1200 = vadd.f32 0.0, %v1199
        %v1201 = vpop.f32.mrb[0].mxu0
        %1202 = vmatprep.mubr.f32.mxu0 0.0
        %1203 = vmatmul.mubr.f32.gmra.mrb[0].mxu0 %v850
        %v1204 = vpop.f32.mrb[0].mxu0
        %v1205 = vadd.f32 0.0, %v1204
        %v1206 = vpop.f32.mrb[0].mxu0
        %1207 = vmatprep.mubr.f32.mxu0 0.0
        %1208 = vmatmul.mubr.f32.gmra.mrb[0].mxu0 %v852
        %v1209 = vpop.f32.mrb[0].mxu0
        %v1210 = vadd.f32 0.0, %v1209
        %v1211 = vpop.f32.mrb[0].mxu0
        %1212 = vmatprep.mubr.f32.mxu0 0.0
        %1213 = vmatmul.mubr.f32.gmra.mrb[0].mxu0 %v854
        %v1214 = vpop.f32.mrb[0].mxu0
        %v1215 = vadd.f32 0.0, %v1214
        %v1216 = vpop.f32.mrb[0].mxu0
        %1217 = vmatprep.mubr.f32.mxu0 0.0
        %1218 = vmatmul.mubr.f32.gmra.mrb[0].mxu0 %v856
        %v1219 = vpop.f32.mrb[0].mxu0
        %v1220 = vadd.f32 0.0, %v1219
        %v1221 = vpop.f32.mrb[0].mxu0
        %1222 = vmatprep.mubr.f32.mxu0 0.0
        %1223 = vmatmul.mubr.f32.gmra.mrb[0].mxu0 %v858
        %v1224 = vpop.f32.mrb[0].mxu0
        %v1225 = vadd.f32 0.0, %v1224
        %v1226 = vpop.f32.mrb[0].mxu0
        %1227 = vmatprep.mubr.f32.mxu0 0.0
        %1228 = vmatmul.mubr.f32.gmra.mrb[0].mxu0 %v860
        %v1229 = vpop.f32.mrb[0].mxu0
        %v1230 = vadd.f32 0.0, %v1229
        %v1231 = vpop.f32.mrb[0].mxu0
        %1232 = vmatprep.mubr.f32.mxu0 0.0
        %1233 = vmatmul.mubr.f32.gmra.mrb[0].mxu0 %v862
        %v1234 = vpop.f32.mrb[0].mxu0
        %v1235 = vadd.f32 0.0, %v1234
        %v1236 = vpop.f32.mrb[0].mxu0
        %1237 = vmatprep.mubr.f32.mxu0 0.0
        %1238 = vmatmul.mubr.f32.gmra.mrb[0].mxu0 %v864
        %v1239 = vpop.f32.mrb[0].mxu0
        %v1240 = vadd.f32 0.0, %v1239
        %v1241 = vpop.f32.mrb[0].mxu0
        %1242 = vmatprep.mubr.f32.mxu0 0.0
        %1243 = vmatmul.mubr.f32.gmra.mrb[0].mxu0 %v866
        %v1244 = vpop.f32.mrb[0].mxu0
        %v1245 = vadd.f32 0.0, %v1244
        %v1246 = vpop.f32.mrb[0].mxu0
        %1247 = vmatprep.mubr.f32.mxu0 0.0
        %1248 = vmatmul.mubr.f32.gmra.mrb[0].mxu0 %v868
        %v1249 = vpop.f32.mrb[0].mxu0
        %v1250 = vadd.f32 0.0, %v1249
        %v1251 = vpop.f32.mrb[0].mxu0
        %1252 = vmatprep.mubr.f32.mxu0 0.0
        %1253 = vmatmul.mubr.f32.gmra.mrb[0].mxu0 %v870
        %v1254 = vpop.f32.mrb[0].mxu0
        %v1255 = vadd.f32 0.0, %v1254
        %v1256 = vpop.f32.mrb[0].mxu0
        %1257 = vmatprep.mubr.f32.mxu0 0.0
        %1258 = vmatmul.mubr.f32.gmra.mrb[0].mxu0 %v872
        %v1259 = vpop.f32.mrb[0].mxu0
        %v1260 = vadd.f32 0.0, %v1259
        %v1261 = vpop.f32.mrb[0].mxu0
        %1262 = vmatprep.mubr.f32.mxu0 0.0
        %1263 = vmatmul.mubr.f32.gmra.mrb[0].mxu0 %v874
        %v1264 = vpop.f32.mrb[0].mxu0
        %v1265 = vadd.f32 0.0, %v1264
        %v1266 = vpop.f32.mrb[0].mxu0
        %1267 = vmatprep.mubr.f32.mxu0 0.0
        %1268 = vmatmul.mubr.f32.gmra.mrb[0].mxu0 %v876
        %v1269 = vpop.f32.mrb[0].mxu0
        %v1270 = vadd.f32 0.0, %v1269
        %v1271 = vpop.f32.mrb[0].mxu0
        %1272 = vmatprep.mubr.f32.mxu0 0.0
        %1273 = vmatmul.mubr.f32.gmra.mrb[0].mxu0 %v878
        %v1274 = vpop.f32.mrb[0].mxu0
        %v1275 = vadd.f32 0.0, %v1274
        %v1276 = vpop.f32.mrb[0].mxu0
        %1277 = vmatprep.mubr.f32.mxu0 0.0
        %1278 = vmatmul.mubr.f32.gmra.mrb[0].mxu0 %v880
        %v1279 = vpop.f32.mrb[0].mxu0
        %v1280 = vadd.f32 0.0, %v1279
        %v1281 = vpop.f32.mrb[0].mxu0
        %1282 = vmatprep.mubr.f32.mxu0 0.0
        %1283 = vmatmul.mubr.f32.gmra.mrb[0].mxu0 %v882
        %v1284 = vpop.f32.mrb[0].mxu0
        %v1285 = vadd.f32 0.0, %v1284
        %v1286 = vpop.f32.mrb[0].mxu0
        %1287 = vmatprep.mubr.f32.mxu0 0.0
        %1288 = vmatmul.mubr.f32.gmra.mrb[0].mxu0 %v884
        %v1289 = vpop.f32.mrb[0].mxu0
        %v1290 = vadd.f32 0.0, %v1289
        %v1291 = vpop.f32.mrb[0].mxu0
        %1292 = vmatprep.mubr.f32.mxu0 0.0
        %1293 = vmatmul.mubr.f32.gmra.mrb[0].mxu0 %v886
        %v1294 = vpop.f32.mrb[0].mxu0
        %v1295 = vadd.f32 0.0, %v1294
        %v1296 = vpop.f32.mrb[0].mxu0
        %1297 = vmatprep.mubr.f32.mxu0 0.0
        %1298 = vmatmul.mubr.f32.gmra.mrb[0].mxu0 %v888
        %v1299 = vpop.f32.mrb[0].mxu0
        %v1300 = vadd.f32 0.0, %v1299
        %v1301 = vpop.f32.mrb[0].mxu0
        %1302 = vmatprep.mubr.f32.mxu0 0.0
        %1303 = vmatmul.mubr.f32.gmra.mrb[0].mxu0 %v890
        %v1304 = vpop.f32.mrb[0].mxu0
        %v1305 = vadd.f32 0.0, %v1304
        %v1306 = vpop.f32.mrb[0].mxu0
        %1307 = vmatprep.mubr.f32.mxu0 0.0
        %1308 = vmatmul.mubr.f32.gmra.mrb[0].mxu0 %v892
        %v1309 = vpop.f32.mrb[0].mxu0
        %v1310 = vadd.f32 0.0, %v1309
        %v1311 = vpop.f32.mrb[0].mxu0
        %1312 = vmatprep.mubr.f32.mxu0 0.0
        %1313 = vmatmul.mubr.f32.gmra.mrb[0].mxu0 %v894
        %v1314 = vpop.f32.mrb[0].mxu0
        %v1315 = vadd.f32 0.0, %v1314
        %v1316 = vpop.f32.mrb[0].mxu0
        %1317 = vmatprep.mubr.f32.mxu0 0.0
        %1318 = vmatmul.mubr.f32.gmra.mrb[0].mxu0 %v896
        %v1319 = vpop.f32.mrb[0].mxu0
        %v1320 = vadd.f32 0.0, %v1319
        %v1321 = vpop.f32.mrb[0].mxu0
        %1322 = vmatprep.mubr.f32.mxu0 0.0
        %1323 = vmatmul.mubr.f32.gmra.mrb[0].mxu0 %v898
        %v1324 = vpop.f32.mrb[0].mxu0
        %v1325 = vadd.f32 0.0, %v1324
        %v1326 = vpop.f32.mrb[0].mxu0
        %1327 = vdwg.mxu0
        %v1328 = vsel %vm755, %v384, 0
        %v1330 = vsel %vm755, %v385, 0
        %v1332 = vsel %vm755, %v386, 0
        %v1334 = vsel %vm755, %v388, 0
        %v1336 = vsel %vm755, %v389, 0
        %v1338 = vsel %vm755, %v390, 0
        %v1340 = vsel %vm755, %v392, 0
        %v1342 = vsel %vm755, %v393, 0
        %v1344 = vsel %vm755, %v394, 0
        %v1346 = vsel %vm755, %v396, 0
        %v1348 = vsel %vm755, %v397, 0
        %v1350 = vsel %vm755, %v398, 0
        %v1352 = vsel %vm755, %v400, 0
        %v1354 = vsel %vm755, %v401, 0
        %v1356 = vsel %vm755, %v402, 0
        %v1358 = vsel %vm755, %v404, 0
        %v1360 = vsel %vm755, %v405, 0
        %v1362 = vsel %vm755, %v406, 0
        %v1364 = vsel %vm755, %v408, 0
        %v1366 = vsel %vm755, %v409, 0
        %v1368 = vsel %vm755, %v410, 0
        %v1370 = vsel %vm755, %v412, 0
        %v1372 = vsel %vm755, %v413, 0
        %v1374 = vsel %vm755, %v414, 0
        %v1376 = vsel %vm755, %v416, 0
        %v1378 = vsel %vm755, %v417, 0
        %v1380 = vsel %vm755, %v418, 0
        %v1382 = vsel %vm755, %v420, 0
        %v1384 = vsel %vm755, %v421, 0
        %v1386 = vsel %vm755, %v422, 0
        %v1388 = vsel %vm755, %v424, 0
        %v1390 = vsel %vm755, %v425, 0
        %v1392 = vsel %vm755, %v426, 0
        %v1394 = vsel %vm755, %v428, 0
        %v1396 = vsel %vm755, %v429, 0
        %v1398 = vsel %vm755, %v430, 0
        %v1400 = vsel %vm755, %v432, 0
        %v1402 = vsel %vm755, %v433, 0
        %v1404 = vsel %vm755, %v434, 0
        %v1406 = vsel %vm755, %v436, 0
        %v1408 = vsel %vm755, %v437, 0
        %v1410 = vsel %vm755, %v438, 0
        %v1412 = vsel %vm755, %v440, 0
        %v1414 = vsel %vm755, %v441, 0
        %v1416 = vsel %vm755, %v442, 0
        %v1418 = vsel %vm755, %v444, 0
        %v1420 = vsel %vm755, %v445, 0
        %v1422 = vsel %vm755, %v446, 0
        %v1424 = vsel %vm755, %v448, 0
        %v1426 = vsel %vm755, %v449, 0
        %v1428 = vsel %vm755, %v450, 0
        %v1430 = vsel %vm755, %v452, 0
        %v1432 = vsel %vm755, %v453, 0
        %v1434 = vsel %vm755, %v454, 0
        %v1436 = vsel %vm755, %v456, 0
        %v1438 = vsel %vm755, %v457, 0
        %v1440 = vsel %vm755, %v458, 0
        %v1442 = vsel %vm755, %v460, 0
        %v1444 = vsel %vm755, %v461, 0
        %v1446 = vsel %vm755, %v462, 0
        %v1448 = vsel %vm755, %v464, 0
        %v1450 = vsel %vm755, %v465, 0
        %v1452 = vsel %vm755, %v466, 0
        %v1454 = vsel %vm755, %v468, 0
        %v1456 = vsel %vm755, %v469, 0
        %v1458 = vsel %vm755, %v470, 0
        %v1460 = vsel %vm755, %v472, 0
        %v1462 = vsel %vm755, %v473, 0
        %v1464 = vsel %vm755, %v474, 0
        %v1466 = vsel %vm755, %v476, 0
        %v1468 = vsel %vm755, %v477, 0
        %v1470 = vsel %vm755, %v478, 0
        %v1472 = vsel %vm900, %v480, 0
        %1474 = vmatprep.subr.mxu0 0.0
        %1475 = vmatpush1.msra.mxu0 %v1472
        %1476 = vmatprep.subr.mxu0 0.0
        %1477 = vmatpush1.msra.mxu0 0.0
        %1478 = vmatprep.subr.mxu0 0.0
        %1479 = vmatpush1.msra.mxu0 0.0
        %1480 = vmatprep.subr.mxu0 0.0
        %1481 = vmatpush1.msra.mxu0 0.0
        %1482 = vmatprep.subr.mxu0 0.0
        %1483 = vmatpush1.msra.mxu0 0.0
        %1484 = vmatprep.subr.mxu0 0.0
        %1485 = vmatpush1.msra.mxu0 0.0
        %1486 = vmatprep.subr.mxu0 0.0
        %1487 = vmatpush1.msra.mxu0 0.0
        %1488 = vmatprep.subr.mxu0 0.0
        %1489 = vmatpush1.msra.mxu0 0.0
        %1490 = vmatprep.subr.mxu0 0.0
        %1491 = vmatpush1.msra.mxu0 0.0
        %1492 = vmatprep.subr.mxu0 0.0
        %1493 = vmatpush1.msra.mxu0 0.0
        %1494 = vmatprep.subr.mxu0 0.0
        %1495 = vmatpush1.msra.mxu0 0.0
        %1496 = vmatprep.subr.mxu0 0.0
        %1497 = vmatpush1.msra.mxu0 0.0
        %1498 = vmatprep.subr.mxu0 0.0
        %1499 = vmatpush1.msra.mxu0 0.0
        %1500 = vmatprep.subr.mxu0 0.0
        %1501 = vmatpush1.msra.mxu0 0.0
        %1502 = vmatprep.subr.mxu0 0.0
        %1503 = vmatpush1.msra.mxu0 0.0
        %1504 = vmatprep.subr.mxu0 0.0
        %1505 = vmatpush1.msra.mxu0 0.0
        %1506 = vmatprep.subr.mxu0 0.0
        %1507 = vmatpush1.msra.mxu0 0.0
        %1508 = vmatprep.subr.mxu0 0.0
        %1509 = vmatpush1.msra.mxu0 0.0
        %1510 = vmatprep.subr.mxu0 0.0
        %1511 = vmatpush1.msra.mxu0 0.0
        %1512 = vmatprep.subr.mxu0 0.0
        %1513 = vmatpush1.msra.mxu0 0.0
        %1514 = vmatprep.subr.mxu0 0.0
        %1515 = vmatpush1.msra.mxu0 0.0
        %1516 = vmatprep.subr.mxu0 0.0
        %1517 = vmatpush1.msra.mxu0 0.0
        %1518 = vmatprep.subr.mxu0 0.0
        %1519 = vmatpush1.msra.mxu0 0.0
        %1520 = vmatprep.subr.mxu0 0.0
        %1521 = vmatpush1.msra.mxu0 0.0
        %1522 = vmatprep.subr.mxu0 0.0
        %1523 = vmatpush1.msra.mxu0 0.0
        %1524 = vmatprep.subr.mxu0 0.0
        %1525 = vmatpush1.msra.mxu0 0.0
        %1526 = vmatprep.subr.mxu0 0.0
        %1527 = vmatpush1.msra.mxu0 0.0
        %1528 = vmatprep.subr.mxu0 0.0
        %1529 = vmatpush1.msra.mxu0 0.0
        %1530 = vmatprep.subr.mxu0 0.0
        %1531 = vmatpush1.msra.mxu0 0.0
        %1532 = vmatprep.subr.mxu0 0.0
        %1533 = vmatpush1.msra.mxu0 0.0
        %1534 = vmatprep.subr.mxu0 0.0
        %1535 = vmatpush1.msra.mxu0 0.0
        %1536 = vmatprep.subr.mxu0 0.0
        %1537 = vmatpush1.msra.mxu0 0.0
        %1538 = vmatprep.mubr.f32.mxu0 0.0
        %1539 = vmatmul.mubr.f32.gmra.mrb[0].mxu0 %v1328
        %v1540 = vpop.f32.mrb[0].mxu0
        %v1541 = vadd.f32 %v970, %v1540
        %v1542 = vpop.f32.mrb[0].mxu0
        %1543 = vmatprep.mubr.f32.mxu0 0.0
        %1544 = vmatmul.mubr.f32.gmra.mrb[0].mxu0 %v1330
        %v1545 = vpop.f32.mrb[0].mxu0
        %v1546 = vadd.f32 %v975, %v1545
        %v1547 = vpop.f32.mrb[0].mxu0
        %1548 = vmatprep.mubr.f32.mxu0 0.0
        %1549 = vmatmul.mubr.f32.gmra.mrb[0].mxu0 %v1332
        %v1550 = vpop.f32.mrb[0].mxu0
        %v1551 = vadd.f32 %v980, %v1550
        %v1552 = vpop.f32.mrb[0].mxu0
        %1553 = vmatprep.mubr.f32.mxu0 0.0
        %1554 = vmatmul.mubr.f32.gmra.mrb[0].mxu0 %v1334
        %v1555 = vpop.f32.mrb[0].mxu0
        %v1556 = vadd.f32 %v985, %v1555
        %v1557 = vpop.f32.mrb[0].mxu0
        %1558 = vmatprep.mubr.f32.mxu0 0.0
        %1559 = vmatmul.mubr.f32.gmra.mrb[0].mxu0 %v1336
        %v1560 = vpop.f32.mrb[0].mxu0
        %v1561 = vadd.f32 %v990, %v1560
        %v1562 = vpop.f32.mrb[0].mxu0
        %1563 = vmatprep.mubr.f32.mxu0 0.0
        %1564 = vmatmul.mubr.f32.gmra.mrb[0].mxu0 %v1338
        %v1565 = vpop.f32.mrb[0].mxu0
        %v1566 = vadd.f32 %v995, %v1565
        %v1567 = vpop.f32.mrb[0].mxu0
        %1568 = vmatprep.mubr.f32.mxu0 0.0
        %1569 = vmatmul.mubr.f32.gmra.mrb[0].mxu0 %v1340
        %v1570 = vpop.f32.mrb[0].mxu0
        %v1571 = vadd.f32 %v1000, %v1570
        %v1572 = vpop.f32.mrb[0].mxu0
        %1573 = vmatprep.mubr.f32.mxu0 0.0
        %1574 = vmatmul.mubr.f32.gmra.mrb[0].mxu0 %v1342
        %v1575 = vpop.f32.mrb[0].mxu0
        %v1576 = vadd.f32 %v1005, %v1575
        %v1577 = vpop.f32.mrb[0].mxu0
        %1578 = vmatprep.mubr.f32.mxu0 0.0
        %1579 = vmatmul.mubr.f32.gmra.mrb[0].mxu0 %v1344
        %v1580 = vpop.f32.mrb[0].mxu0
        %v1581 = vadd.f32 %v1010, %v1580
        %v1582 = vpop.f32.mrb[0].mxu0
        %1583 = vmatprep.mubr.f32.mxu0 0.0
        %1584 = vmatmul.mubr.f32.gmra.mrb[0].mxu0 %v1346
        %v1585 = vpop.f32.mrb[0].mxu0
        %v1586 = vadd.f32 %v1015, %v1585
        %v1587 = vpop.f32.mrb[0].mxu0
        %1588 = vmatprep.mubr.f32.mxu0 0.0
        %1589 = vmatmul.mubr.f32.gmra.mrb[0].mxu0 %v1348
        %v1590 = vpop.f32.mrb[0].mxu0
        %v1591 = vadd.f32 %v1020, %v1590
        %v1592 = vpop.f32.mrb[0].mxu0
        %1593 = vmatprep.mubr.f32.mxu0 0.0
        %1594 = vmatmul.mubr.f32.gmra.mrb[0].mxu0 %v1350
        %v1595 = vpop.f32.mrb[0].mxu0
        %v1596 = vadd.f32 %v1025, %v1595
        %v1597 = vpop.f32.mrb[0].mxu0
        %1598 = vmatprep.mubr.f32.mxu0 0.0
        %1599 = vmatmul.mubr.f32.gmra.mrb[0].mxu0 %v1352
        %v1600 = vpop.f32.mrb[0].mxu0
        %v1601 = vadd.f32 %v1030, %v1600
        %v1602 = vpop.f32.mrb[0].mxu0
        %1603 = vmatprep.mubr.f32.mxu0 0.0
        %1604 = vmatmul.mubr.f32.gmra.mrb[0].mxu0 %v1354
        %v1605 = vpop.f32.mrb[0].mxu0
        %v1606 = vadd.f32 %v1035, %v1605
        %v1607 = vpop.f32.mrb[0].mxu0
        %1608 = vmatprep.mubr.f32.mxu0 0.0
        %1609 = vmatmul.mubr.f32.gmra.mrb[0].mxu0 %v1356
        %v1610 = vpop.f32.mrb[0].mxu0
        %v1611 = vadd.f32 %v1040, %v1610
        %v1612 = vpop.f32.mrb[0].mxu0
        %1613 = vmatprep.mubr.f32.mxu0 0.0
        %1614 = vmatmul.mubr.f32.gmra.mrb[0].mxu0 %v1358
        %v1615 = vpop.f32.mrb[0].mxu0
        %v1616 = vadd.f32 %v1045, %v1615
        %v1617 = vpop.f32.mrb[0].mxu0
        %1618 = vmatprep.mubr.f32.mxu0 0.0
        %1619 = vmatmul.mubr.f32.gmra.mrb[0].mxu0 %v1360
        %v1620 = vpop.f32.mrb[0].mxu0
        %v1621 = vadd.f32 %v1050, %v1620
        %v1622 = vpop.f32.mrb[0].mxu0
        %1623 = vmatprep.mubr.f32.mxu0 0.0
        %1624 = vmatmul.mubr.f32.gmra.mrb[0].mxu0 %v1362
        %v1625 = vpop.f32.mrb[0].mxu0
        %v1626 = vadd.f32 %v1055, %v1625
        %v1627 = vpop.f32.mrb[0].mxu0
        %1628 = vmatprep.mubr.f32.mxu0 0.0
        %1629 = vmatmul.mubr.f32.gmra.mrb[0].mxu0 %v1364
        %v1630 = vpop.f32.mrb[0].mxu0
        %v1631 = vadd.f32 %v1060, %v1630
        %v1632 = vpop.f32.mrb[0].mxu0
        %1633 = vmatprep.mubr.f32.mxu0 0.0
        %1634 = vmatmul.mubr.f32.gmra.mrb[0].mxu0 %v1366
        %v1635 = vpop.f32.mrb[0].mxu0
        %v1636 = vadd.f32 %v1065, %v1635
        %v1637 = vpop.f32.mrb[0].mxu0
        %1638 = vmatprep.mubr.f32.mxu0 0.0
        %1639 = vmatmul.mubr.f32.gmra.mrb[0].mxu0 %v1368
        %v1640 = vpop.f32.mrb[0].mxu0
        %v1641 = vadd.f32 %v1070, %v1640
        %v1642 = vpop.f32.mrb[0].mxu0
        %1643 = vmatprep.mubr.f32.mxu0 0.0
        %1644 = vmatmul.mubr.f32.gmra.mrb[0].mxu0 %v1370
        %v1645 = vpop.f32.mrb[0].mxu0
        %v1646 = vadd.f32 %v1075, %v1645
        %v1647 = vpop.f32.mrb[0].mxu0
        %1648 = vmatprep.mubr.f32.mxu0 0.0
        %1649 = vmatmul.mubr.f32.gmra.mrb[0].mxu0 %v1372
        %v1650 = vpop.f32.mrb[0].mxu0
        %v1651 = vadd.f32 %v1080, %v1650
        %v1652 = vpop.f32.mrb[0].mxu0
        %1653 = vmatprep.mubr.f32.mxu0 0.0
        %1654 = vmatmul.mubr.f32.gmra.mrb[0].mxu0 %v1374
        %v1655 = vpop.f32.mrb[0].mxu0
        %v1656 = vadd.f32 %v1085, %v1655
        %v1657 = vpop.f32.mrb[0].mxu0
        %1658 = vmatprep.mubr.f32.mxu0 0.0
        %1659 = vmatmul.mubr.f32.gmra.mrb[0].mxu0 %v1376
        %v1660 = vpop.f32.mrb[0].mxu0
        %v1661 = vadd.f32 %v1090, %v1660
        %v1662 = vpop.f32.mrb[0].mxu0
        %1663 = vmatprep.mubr.f32.mxu0 0.0
        %1664 = vmatmul.mubr.f32.gmra.mrb[0].mxu0 %v1378
        %v1665 = vpop.f32.mrb[0].mxu0
        %v1666 = vadd.f32 %v1095, %v1665
        %v1667 = vpop.f32.mrb[0].mxu0
        %1668 = vmatprep.mubr.f32.mxu0 0.0
        %1669 = vmatmul.mubr.f32.gmra.mrb[0].mxu0 %v1380
        %v1670 = vpop.f32.mrb[0].mxu0
        %v1671 = vadd.f32 %v1100, %v1670
        %v1672 = vpop.f32.mrb[0].mxu0
        %1673 = vmatprep.mubr.f32.mxu0 0.0
        %1674 = vmatmul.mubr.f32.gmra.mrb[0].mxu0 %v1382
        %v1675 = vpop.f32.mrb[0].mxu0
        %v1676 = vadd.f32 %v1105, %v1675
        %v1677 = vpop.f32.mrb[0].mxu0
        %1678 = vmatprep.mubr.f32.mxu0 0.0
        %1679 = vmatmul.mubr.f32.gmra.mrb[0].mxu0 %v1384
        %v1680 = vpop.f32.mrb[0].mxu0
        %v1681 = vadd.f32 %v1110, %v1680
        %v1682 = vpop.f32.mrb[0].mxu0
        %1683 = vmatprep.mubr.f32.mxu0 0.0
        %1684 = vmatmul.mubr.f32.gmra.mrb[0].mxu0 %v1386
        %v1685 = vpop.f32.mrb[0].mxu0
        %v1686 = vadd.f32 %v1115, %v1685
        %v1687 = vpop.f32.mrb[0].mxu0
        %1688 = vmatprep.mubr.f32.mxu0 0.0
        %1689 = vmatmul.mubr.f32.gmra.mrb[0].mxu0 %v1388
        %v1690 = vpop.f32.mrb[0].mxu0
        %v1691 = vadd.f32 %v1120, %v1690
        %v1692 = vpop.f32.mrb[0].mxu0
        %1693 = vmatprep.mubr.f32.mxu0 0.0
        %1694 = vmatmul.mubr.f32.gmra.mrb[0].mxu0 %v1390
        %v1695 = vpop.f32.mrb[0].mxu0
        %v1696 = vadd.f32 %v1125, %v1695
        %v1697 = vpop.f32.mrb[0].mxu0
        %1698 = vmatprep.mubr.f32.mxu0 0.0
        %1699 = vmatmul.mubr.f32.gmra.mrb[0].mxu0 %v1392
        %v1700 = vpop.f32.mrb[0].mxu0
        %v1701 = vadd.f32 %v1130, %v1700
        %v1702 = vpop.f32.mrb[0].mxu0
        %1703 = vmatprep.mubr.f32.mxu0 0.0
        %1704 = vmatmul.mubr.f32.gmra.mrb[0].mxu0 %v1394
        %v1705 = vpop.f32.mrb[0].mxu0
        %v1706 = vadd.f32 %v1135, %v1705
        %v1707 = vpop.f32.mrb[0].mxu0
        %1708 = vmatprep.mubr.f32.mxu0 0.0
        %1709 = vmatmul.mubr.f32.gmra.mrb[0].mxu0 %v1396
        %v1710 = vpop.f32.mrb[0].mxu0
        %v1711 = vadd.f32 %v1140, %v1710
        %v1712 = vpop.f32.mrb[0].mxu0
        %1713 = vmatprep.mubr.f32.mxu0 0.0
        %1714 = vmatmul.mubr.f32.gmra.mrb[0].mxu0 %v1398
        %v1715 = vpop.f32.mrb[0].mxu0
        %v1716 = vadd.f32 %v1145, %v1715
        %v1717 = vpop.f32.mrb[0].mxu0
        %1718 = vmatprep.mubr.f32.mxu0 0.0
        %1719 = vmatmul.mubr.f32.gmra.mrb[0].mxu0 %v1400
        %v1720 = vpop.f32.mrb[0].mxu0
        %v1721 = vadd.f32 %v1150, %v1720
        %v1722 = vpop.f32.mrb[0].mxu0
        %1723 = vmatprep.mubr.f32.mxu0 0.0
        %1724 = vmatmul.mubr.f32.gmra.mrb[0].mxu0 %v1402
        %v1725 = vpop.f32.mrb[0].mxu0
        %v1726 = vadd.f32 %v1155, %v1725
        %v1727 = vpop.f32.mrb[0].mxu0
        %1728 = vmatprep.mubr.f32.mxu0 0.0
        %1729 = vmatmul.mubr.f32.gmra.mrb[0].mxu0 %v1404
        %v1730 = vpop.f32.mrb[0].mxu0
        %v1731 = vadd.f32 %v1160, %v1730
        %v1732 = vpop.f32.mrb[0].mxu0
        %1733 = vmatprep.mubr.f32.mxu0 0.0
        %1734 = vmatmul.mubr.f32.gmra.mrb[0].mxu0 %v1406
        %v1735 = vpop.f32.mrb[0].mxu0
        %v1736 = vadd.f32 %v1165, %v1735
        %v1737 = vpop.f32.mrb[0].mxu0
        %1738 = vmatprep.mubr.f32.mxu0 0.0
        %1739 = vmatmul.mubr.f32.gmra.mrb[0].mxu0 %v1408
        %v1740 = vpop.f32.mrb[0].mxu0
        %v1741 = vadd.f32 %v1170, %v1740
        %v1742 = vpop.f32.mrb[0].mxu0
        %1743 = vmatprep.mubr.f32.mxu0 0.0
        %1744 = vmatmul.mubr.f32.gmra.mrb[0].mxu0 %v1410
        %v1745 = vpop.f32.mrb[0].mxu0
        %v1746 = vadd.f32 %v1175, %v1745
        %v1747 = vpop.f32.mrb[0].mxu0
        %1748 = vmatprep.mubr.f32.mxu0 0.0
        %1749 = vmatmul.mubr.f32.gmra.mrb[0].mxu0 %v1412
        %v1750 = vpop.f32.mrb[0].mxu0
        %v1751 = vadd.f32 %v1180, %v1750
        %v1752 = vpop.f32.mrb[0].mxu0
        %1753 = vmatprep.mubr.f32.mxu0 0.0
        %1754 = vmatmul.mubr.f32.gmra.mrb[0].mxu0 %v1414
        %v1755 = vpop.f32.mrb[0].mxu0
        %v1756 = vadd.f32 %v1185, %v1755
        %v1757 = vpop.f32.mrb[0].mxu0
        %1758 = vmatprep.mubr.f32.mxu0 0.0
        %1759 = vmatmul.mubr.f32.gmra.mrb[0].mxu0 %v1416
        %v1760 = vpop.f32.mrb[0].mxu0
        %v1761 = vadd.f32 %v1190, %v1760
        %v1762 = vpop.f32.mrb[0].mxu0
        %1763 = vmatprep.mubr.f32.mxu0 0.0
        %1764 = vmatmul.mubr.f32.gmra.mrb[0].mxu0 %v1418
        %v1765 = vpop.f32.mrb[0].mxu0
        %v1766 = vadd.f32 %v1195, %v1765
        %v1767 = vpop.f32.mrb[0].mxu0
        %1768 = vmatprep.mubr.f32.mxu0 0.0
        %1769 = vmatmul.mubr.f32.gmra.mrb[0].mxu0 %v1420
        %v1770 = vpop.f32.mrb[0].mxu0
        %v1771 = vadd.f32 %v1200, %v1770
        %v1772 = vpop.f32.mrb[0].mxu0
        %1773 = vmatprep.mubr.f32.mxu0 0.0
        %1774 = vmatmul.mubr.f32.gmra.mrb[0].mxu0 %v1422
        %v1775 = vpop.f32.mrb[0].mxu0
        %v1776 = vadd.f32 %v1205, %v1775
        %v1777 = vpop.f32.mrb[0].mxu0
        %1778 = vmatprep.mubr.f32.mxu0 0.0
        %1779 = vmatmul.mubr.f32.gmra.mrb[0].mxu0 %v1424
        %v1780 = vpop.f32.mrb[0].mxu0
        %v1781 = vadd.f32 %v1210, %v1780
        %v1782 = vpop.f32.mrb[0].mxu0
        %1783 = vmatprep.mubr.f32.mxu0 0.0
        %1784 = vmatmul.mubr.f32.gmra.mrb[0].mxu0 %v1426
        %v1785 = vpop.f32.mrb[0].mxu0
        %v1786 = vadd.f32 %v1215, %v1785
        %v1787 = vpop.f32.mrb[0].mxu0
        %1788 = vmatprep.mubr.f32.mxu0 0.0
        %1789 = vmatmul.mubr.f32.gmra.mrb[0].mxu0 %v1428
        %v1790 = vpop.f32.mrb[0].mxu0
        %v1791 = vadd.f32 %v1220, %v1790
        %v1792 = vpop.f32.mrb[0].mxu0
        %1793 = vmatprep.mubr.f32.mxu0 0.0
        %1794 = vmatmul.mubr.f32.gmra.mrb[0].mxu0 %v1430
        %v1795 = vpop.f32.mrb[0].mxu0
        %v1796 = vadd.f32 %v1225, %v1795
        %v1797 = vpop.f32.mrb[0].mxu0
        %1798 = vmatprep.mubr.f32.mxu0 0.0
        %1799 = vmatmul.mubr.f32.gmra.mrb[0].mxu0 %v1432
        %v1800 = vpop.f32.mrb[0].mxu0
        %v1801 = vadd.f32 %v1230, %v1800
        %v1802 = vpop.f32.mrb[0].mxu0
        %1803 = vmatprep.mubr.f32.mxu0 0.0
        %1804 = vmatmul.mubr.f32.gmra.mrb[0].mxu0 %v1434
        %v1805 = vpop.f32.mrb[0].mxu0
        %v1806 = vadd.f32 %v1235, %v1805
        %v1807 = vpop.f32.mrb[0].mxu0
        %1808 = vmatprep.mubr.f32.mxu0 0.0
        %1809 = vmatmul.mubr.f32.gmra.mrb[0].mxu0 %v1436
        %v1810 = vpop.f32.mrb[0].mxu0
        %v1811 = vadd.f32 %v1240, %v1810
        %v1812 = vpop.f32.mrb[0].mxu0
        %1813 = vmatprep.mubr.f32.mxu0 0.0
        %1814 = vmatmul.mubr.f32.gmra.mrb[0].mxu0 %v1438
        %v1815 = vpop.f32.mrb[0].mxu0
        %v1816 = vadd.f32 %v1245, %v1815
        %v1817 = vpop.f32.mrb[0].mxu0
        %1818 = vmatprep.mubr.f32.mxu0 0.0
        %1819 = vmatmul.mubr.f32.gmra.mrb[0].mxu0 %v1440
        %v1820 = vpop.f32.mrb[0].mxu0
        %v1821 = vadd.f32 %v1250, %v1820
        %v1822 = vpop.f32.mrb[0].mxu0
        %1823 = vmatprep.mubr.f32.mxu0 0.0
        %1824 = vmatmul.mubr.f32.gmra.mrb[0].mxu0 %v1442
        %v1825 = vpop.f32.mrb[0].mxu0
        %v1826 = vadd.f32 %v1255, %v1825
        %v1827 = vpop.f32.mrb[0].mxu0
        %1828 = vmatprep.mubr.f32.mxu0 0.0
        %1829 = vmatmul.mubr.f32.gmra.mrb[0].mxu0 %v1444
        %v1830 = vpop.f32.mrb[0].mxu0
        %v1831 = vadd.f32 %v1260, %v1830
        %v1832 = vpop.f32.mrb[0].mxu0
        %1833 = vmatprep.mubr.f32.mxu0 0.0
        %1834 = vmatmul.mubr.f32.gmra.mrb[0].mxu0 %v1446
        %v1835 = vpop.f32.mrb[0].mxu0
        %v1836 = vadd.f32 %v1265, %v1835
        %v1837 = vpop.f32.mrb[0].mxu0
        %1838 = vmatprep.mubr.f32.mxu0 0.0
        %1839 = vmatmul.mubr.f32.gmra.mrb[0].mxu0 %v1448
        %v1840 = vpop.f32.mrb[0].mxu0
        %v1841 = vadd.f32 %v1270, %v1840
        %v1842 = vpop.f32.mrb[0].mxu0
        %1843 = vmatprep.mubr.f32.mxu0 0.0
        %1844 = vmatmul.mubr.f32.gmra.mrb[0].mxu0 %v1450
        %v1845 = vpop.f32.mrb[0].mxu0
        %v1846 = vadd.f32 %v1275, %v1845
        %v1847 = vpop.f32.mrb[0].mxu0
        %1848 = vmatprep.mubr.f32.mxu0 0.0
        %1849 = vmatmul.mubr.f32.gmra.mrb[0].mxu0 %v1452
        %v1850 = vpop.f32.mrb[0].mxu0
        %v1851 = vadd.f32 %v1280, %v1850
        %v1852 = vpop.f32.mrb[0].mxu0
        %1853 = vmatprep.mubr.f32.mxu0 0.0
        %1854 = vmatmul.mubr.f32.gmra.mrb[0].mxu0 %v1454
        %v1855 = vpop.f32.mrb[0].mxu0
        %v1856 = vadd.f32 %v1285, %v1855
        %v1857 = vpop.f32.mrb[0].mxu0
        %1858 = vmatprep.mubr.f32.mxu0 0.0
        %1859 = vmatmul.mubr.f32.gmra.mrb[0].mxu0 %v1456
        %v1860 = vpop.f32.mrb[0].mxu0
        %v1861 = vadd.f32 %v1290, %v1860
        %v1862 = vpop.f32.mrb[0].mxu0
        %1863 = vmatprep.mubr.f32.mxu0 0.0
        %1864 = vmatmul.mubr.f32.gmra.mrb[0].mxu0 %v1458
        %v1865 = vpop.f32.mrb[0].mxu0
        %v1866 = vadd.f32 %v1295, %v1865
        %v1867 = vpop.f32.mrb[0].mxu0
        %1868 = vmatprep.mubr.f32.mxu0 0.0
        %1869 = vmatmul.mubr.f32.gmra.mrb[0].mxu0 %v1460
        %v1870 = vpop.f32.mrb[0].mxu0
        %v1871 = vadd.f32 %v1300, %v1870
        %v1872 = vpop.f32.mrb[0].mxu0
        %1873 = vmatprep.mubr.f32.mxu0 0.0
        %1874 = vmatmul.mubr.f32.gmra.mrb[0].mxu0 %v1462
        %v1875 = vpop.f32.mrb[0].mxu0
        %v1876 = vadd.f32 %v1305, %v1875
        %v1877 = vpop.f32.mrb[0].mxu0
        %1878 = vmatprep.mubr.f32.mxu0 0.0
        %1879 = vmatmul.mubr.f32.gmra.mrb[0].mxu0 %v1464
        %v1880 = vpop.f32.mrb[0].mxu0
        %v1881 = vadd.f32 %v1310, %v1880
        %v1882 = vpop.f32.mrb[0].mxu0
        %1883 = vmatprep.mubr.f32.mxu0 0.0
        %1884 = vmatmul.mubr.f32.gmra.mrb[0].mxu0 %v1466
        %v1885 = vpop.f32.mrb[0].mxu0
        %v1886 = vadd.f32 %v1315, %v1885
        %v1887 = vpop.f32.mrb[0].mxu0
        %1888 = vmatprep.mubr.f32.mxu0 0.0
        %1889 = vmatmul.mubr.f32.gmra.mrb[0].mxu0 %v1468
        %v1890 = vpop.f32.mrb[0].mxu0
        %v1891 = vadd.f32 %v1320, %v1890
        %v1892 = vpop.f32.mrb[0].mxu0
        %1893 = vmatprep.mubr.f32.mxu0 0.0
        %1894 = vmatmul.mubr.f32.gmra.mrb[0].mxu0 %v1470
        %v1895 = vpop.f32.mrb[0].mxu0
        %v1896 = vadd.f32 %v1325, %v1895
        %v1897 = vpop.f32.mrb[0].mxu0
        %1898 = vdwg.mxu0
        %vm1899 = vcmask 1045504
        %v1900 = vrot.slane %v384, 2
        %v1901 = vrot.slane %v385, 2
        %v1902 = vsel %vm1899, %v1900, %v1901
        %v1903 = vrot.slane %v386, 2
        %v1904 = vsel %vm1899, %v1901, %v1903
        %v1905 = vrot.slane %v387, 2
        %v1906 = vsel %vm1899, %v1903, %v1905
        %v1907 = vrot.slane %v388, 2
        %v1908 = vrot.slane %v389, 2
        %v1909 = vsel %vm1899, %v1907, %v1908
        %v1910 = vrot.slane %v390, 2
        %v1911 = vsel %vm1899, %v1908, %v1910
        %v1912 = vrot.slane %v391, 2
        %v1913 = vsel %vm1899, %v1910, %v1912
        %v1914 = vrot.slane %v392, 2
        %v1915 = vrot.slane %v393, 2
        %v1916 = vsel %vm1899, %v1914, %v1915
        %v1917 = vrot.slane %v394, 2
        %v1918 = vsel %vm1899, %v1915, %v1917
        %v1919 = vrot.slane %v395, 2
        %v1920 = vsel %vm1899, %v1917, %v1919
        %v1921 = vrot.slane %v396, 2
        %v1922 = vrot.slane %v397, 2
        %v1923 = vsel %vm1899, %v1921, %v1922
        %v1924 = vrot.slane %v398, 2
        %v1925 = vsel %vm1899, %v1922, %v1924
        %v1926 = vrot.slane %v399, 2
        %v1927 = vsel %vm1899, %v1924, %v1926
        %v1928 = vrot.slane %v400, 2
        %v1929 = vrot.slane %v401, 2
        %v1930 = vsel %vm1899, %v1928, %v1929
        %v1931 = vrot.slane %v402, 2
        %v1932 = vsel %vm1899, %v1929, %v1931
        %v1933 = vrot.slane %v403, 2
        %v1934 = vsel %vm1899, %v1931, %v1933
        %v1935 = vrot.slane %v404, 2
        %v1936 = vrot.slane %v405, 2
        %v1937 = vsel %vm1899, %v1935, %v1936
        %v1938 = vrot.slane %v406, 2
        %v1939 = vsel %vm1899, %v1936, %v1938
        %v1940 = vrot.slane %v407, 2
        %v1941 = vsel %vm1899, %v1938, %v1940
        %v1942 = vrot.slane %v408, 2
        %v1943 = vrot.slane %v409, 2
        %v1944 = vsel %vm1899, %v1942, %v1943
        %v1945 = vrot.slane %v410, 2
        %v1946 = vsel %vm1899, %v1943, %v1945
        %v1947 = vrot.slane %v411, 2
        %v1948 = vsel %vm1899, %v1945, %v1947
        %v1949 = vrot.slane %v412, 2
        %v1950 = vrot.slane %v413, 2
        %v1951 = vsel %vm1899, %v1949, %v1950
        %v1952 = vrot.slane %v414, 2
        %v1953 = vsel %vm1899, %v1950, %v1952
        %v1954 = vrot.slane %v415, 2
        %v1955 = vsel %vm1899, %v1952, %v1954
        %v1956 = vrot.slane %v416, 2
        %v1957 = vrot.slane %v417, 2
        %v1958 = vsel %vm1899, %v1956, %v1957
        %v1959 = vrot.slane %v418, 2
        %v1960 = vsel %vm1899, %v1957, %v1959
        %v1961 = vrot.slane %v419, 2
        %v1962 = vsel %vm1899, %v1959, %v1961
        %v1963 = vrot.slane %v420, 2
        %v1964 = vrot.slane %v421, 2
        %v1965 = vsel %vm1899, %v1963, %v1964
        %v1966 = vrot.slane %v422, 2
        %v1967 = vsel %vm1899, %v1964, %v1966
        %v1968 = vrot.slane %v423, 2
        %v1969 = vsel %vm1899, %v1966, %v1968
        %v1970 = vrot.slane %v424, 2
        %v1971 = vrot.slane %v425, 2
        %v1972 = vsel %vm1899, %v1970, %v1971
        %v1973 = vrot.slane %v426, 2
        %v1974 = vsel %vm1899, %v1971, %v1973
        %v1975 = vrot.slane %v427, 2
        %v1976 = vsel %vm1899, %v1973, %v1975
        %v1977 = vrot.slane %v428, 2
        %v1978 = vrot.slane %v429, 2
        %v1979 = vsel %vm1899, %v1977, %v1978
        %v1980 = vrot.slane %v430, 2
        %v1981 = vsel %vm1899, %v1978, %v1980
        %v1982 = vrot.slane %v431, 2
        %v1983 = vsel %vm1899, %v1980, %v1982
        %v1984 = vrot.slane %v432, 2
        %v1985 = vrot.slane %v433, 2
        %v1986 = vsel %vm1899, %v1984, %v1985
        %v1987 = vrot.slane %v434, 2
        %v1988 = vsel %vm1899, %v1985, %v1987
        %v1989 = vrot.slane %v435, 2
        %v1990 = vsel %vm1899, %v1987, %v1989
        %v1991 = vrot.slane %v436, 2
        %v1992 = vrot.slane %v437, 2
        %v1993 = vsel %vm1899, %v1991, %v1992
        %v1994 = vrot.slane %v438, 2
        %v1995 = vsel %vm1899, %v1992, %v1994
        %v1996 = vrot.slane %v439, 2
        %v1997 = vsel %vm1899, %v1994, %v1996
        %v1998 = vrot.slane %v440, 2
        %v1999 = vrot.slane %v441, 2
        %v2000 = vsel %vm1899, %v1998, %v1999
        %v2001 = vrot.slane %v442, 2
        %v2002 = vsel %vm1899, %v1999, %v2001
        %v2003 = vrot.slane %v443, 2
        %v2004 = vsel %vm1899, %v2001, %v2003
        %v2005 = vrot.slane %v444, 2
        %v2006 = vrot.slane %v445, 2
        %v2007 = vsel %vm1899, %v2005, %v2006
        %v2008 = vrot.slane %v446, 2
        %v2009 = vsel %vm1899, %v2006, %v2008
        %v2010 = vrot.slane %v447, 2
        %v2011 = vsel %vm1899, %v2008, %v2010
        %v2012 = vrot.slane %v448, 2
        %v2013 = vrot.slane %v449, 2
        %v2014 = vsel %vm1899, %v2012, %v2013
        %v2015 = vrot.slane %v450, 2
        %v2016 = vsel %vm1899, %v2013, %v2015
        %v2017 = vrot.slane %v451, 2
        %v2018 = vsel %vm1899, %v2015, %v2017
        %v2019 = vrot.slane %v452, 2
        %v2020 = vrot.slane %v453, 2
        %v2021 = vsel %vm1899, %v2019, %v2020
        %v2022 = vrot.slane %v454, 2
        %v2023 = vsel %vm1899, %v2020, %v2022
        %v2024 = vrot.slane %v455, 2
        %v2025 = vsel %vm1899, %v2022, %v2024
        %v2026 = vrot.slane %v456, 2
        %v2027 = vrot.slane %v457, 2
        %v2028 = vsel %vm1899, %v2026, %v2027
        %v2029 = vrot.slane %v458, 2
        %v2030 = vsel %vm1899, %v2027, %v2029
        %v2031 = vrot.slane %v459, 2
        %v2032 = vsel %vm1899, %v2029, %v2031
        %v2033 = vrot.slane %v460, 2
        %v2034 = vrot.slane %v461, 2
        %v2035 = vsel %vm1899, %v2033, %v2034
        %v2036 = vrot.slane %v462, 2
        %v2037 = vsel %vm1899, %v2034, %v2036
        %v2038 = vrot.slane %v463, 2
        %v2039 = vsel %vm1899, %v2036, %v2038
        %v2040 = vrot.slane %v464, 2
        %v2041 = vrot.slane %v465, 2
        %v2042 = vsel %vm1899, %v2040, %v2041
        %v2043 = vrot.slane %v466, 2
        %v2044 = vsel %vm1899, %v2041, %v2043
        %v2045 = vrot.slane %v467, 2
        %v2046 = vsel %vm1899, %v2043, %v2045
        %v2047 = vrot.slane %v468, 2
        %v2048 = vrot.slane %v469, 2
        %v2049 = vsel %vm1899, %v2047, %v2048
        %v2050 = vrot.slane %v470, 2
        %v2051 = vsel %vm1899, %v2048, %v2050
        %v2052 = vrot.slane %v471, 2
        %v2053 = vsel %vm1899, %v2050, %v2052
        %v2054 = vrot.slane %v472, 2
        %v2055 = vrot.slane %v473, 2
        %v2056 = vsel %vm1899, %v2054, %v2055
        %v2057 = vrot.slane %v474, 2
        %v2058 = vsel %vm1899, %v2055, %v2057
        %v2059 = vrot.slane %v475, 2
        %v2060 = vsel %vm1899, %v2057, %v2059
        %v2061 = vrot.slane %v476, 2
        %v2062 = vrot.slane %v477, 2
        %v2063 = vsel %vm1899, %v2061, %v2062
        %v2064 = vrot.slane %v478, 2
        %v2065 = vsel %vm1899, %v2062, %v2064
        %v2066 = vrot.slane %v479, 2
        %v2067 = vsel %vm1899, %v2064, %v2066
        %v2068 = vrot.slane %v481, 2
        %v2069 = vsel %vm755, %v1902, 0
        %v2071 = vsel %vm755, %v1904, 0
        %v2073 = vsel %vm755, %v1906, 0
        %v2075 = vsel %vm755, %v1909, 0
        %v2077 = vsel %vm755, %v1911, 0
        %v2079 = vsel %vm755, %v1913, 0
        %v2081 = vsel %vm755, %v1916, 0
        %v2083 = vsel %vm755, %v1918, 0
        %v2085 = vsel %vm755, %v1920, 0
        %v2087 = vsel %vm755, %v1923, 0
        %v2089 = vsel %vm755, %v1925, 0
        %v2091 = vsel %vm755, %v1927, 0
        %v2093 = vsel %vm755, %v1930, 0
        %v2095 = vsel %vm755, %v1932, 0
        %v2097 = vsel %vm755, %v1934, 0
        %v2099 = vsel %vm755, %v1937, 0
        %v2101 = vsel %vm755, %v1939, 0
        %v2103 = vsel %vm755, %v1941, 0
        %v2105 = vsel %vm755, %v1944, 0
        %v2107 = vsel %vm755, %v1946, 0
        %v2109 = vsel %vm755, %v1948, 0
        %v2111 = vsel %vm755, %v1951, 0
        %v2113 = vsel %vm755, %v1953, 0
        %v2115 = vsel %vm755, %v1955, 0
        %v2117 = vsel %vm755, %v1958, 0
        %v2119 = vsel %vm755, %v1960, 0
        %v2121 = vsel %vm755, %v1962, 0
        %v2123 = vsel %vm755, %v1965, 0
        %v2125 = vsel %vm755, %v1967, 0
        %v2127 = vsel %vm755, %v1969, 0
        %v2129 = vsel %vm755, %v1972, 0
        %v2131 = vsel %vm755, %v1974, 0
        %v2133 = vsel %vm755, %v1976, 0
        %v2135 = vsel %vm755, %v1979, 0
        %v2137 = vsel %vm755, %v1981, 0
        %v2139 = vsel %vm755, %v1983, 0
        %v2141 = vsel %vm755, %v1986, 0
        %v2143 = vsel %vm755, %v1988, 0
        %v2145 = vsel %vm755, %v1990, 0
        %v2147 = vsel %vm755, %v1993, 0
        %v2149 = vsel %vm755, %v1995, 0
        %v2151 = vsel %vm755, %v1997, 0
        %v2153 = vsel %vm755, %v2000, 0
        %v2155 = vsel %vm755, %v2002, 0
        %v2157 = vsel %vm755, %v2004, 0
        %v2159 = vsel %vm755, %v2007, 0
        %v2161 = vsel %vm755, %v2009, 0
        %v2163 = vsel %vm755, %v2011, 0
        %v2165 = vsel %vm755, %v2014, 0
        %v2167 = vsel %vm755, %v2016, 0
        %v2169 = vsel %vm755, %v2018, 0
        %v2171 = vsel %vm755, %v2021, 0
        %v2173 = vsel %vm755, %v2023, 0
        %v2175 = vsel %vm755, %v2025, 0
        %v2177 = vsel %vm755, %v2028, 0
        %v2179 = vsel %vm755, %v2030, 0
        %v2181 = vsel %vm755, %v2032, 0
        %v2183 = vsel %vm755, %v2035, 0
        %v2185 = vsel %vm755, %v2037, 0
        %v2187 = vsel %vm755, %v2039, 0
        %v2189 = vsel %vm755, %v2042, 0
        %v2191 = vsel %vm755, %v2044, 0
        %v2193 = vsel %vm755, %v2046, 0
        %v2195 = vsel %vm755, %v2049, 0
        %v2197 = vsel %vm755, %v2051, 0
        %v2199 = vsel %vm755, %v2053, 0
        %v2201 = vsel %vm755, %v2056, 0
        %v2203 = vsel %vm755, %v2058, 0
        %v2205 = vsel %vm755, %v2060, 0
        %v2207 = vsel %vm755, %v2063, 0
        %v2209 = vsel %vm755, %v2065, 0
        %v2211 = vsel %vm755, %v2067, 0
        %v2213 = vsel %vm900, %v2068, 0
        %2215 = vmatprep.subr.mxu0 0.0
        %2216 = vmatpush1.msra.mxu0 %v2213
        %2217 = vmatprep.subr.mxu0 0.0
        %2218 = vmatpush1.msra.mxu0 0.0
        %2219 = vmatprep.subr.mxu0 0.0
        %2220 = vmatpush1.msra.mxu0 0.0
        %2221 = vmatprep.subr.mxu0 0.0
        %2222 = vmatpush1.msra.mxu0 0.0
        %2223 = vmatprep.subr.mxu0 0.0
        %2224 = vmatpush1.msra.mxu0 0.0
        %2225 = vmatprep.subr.mxu0 0.0
        %2226 = vmatpush1.msra.mxu0 0.0
        %2227 = vmatprep.subr.mxu0 0.0
        %2228 = vmatpush1.msra.mxu0 0.0
        %2229 = vmatprep.subr.mxu0 0.0
        %2230 = vmatpush1.msra.mxu0 0.0
        %2231 = vmatprep.subr.mxu0 0.0
        %2232 = vmatpush1.msra.mxu0 0.0
        %2233 = vmatprep.subr.mxu0 0.0
        %2234 = vmatpush1.msra.mxu0 0.0
        %2235 = vmatprep.subr.mxu0 0.0
        %2236 = vmatpush1.msra.mxu0 0.0
        %2237 = vmatprep.subr.mxu0 0.0
        %2238 = vmatpush1.msra.mxu0 0.0
        %2239 = vmatprep.subr.mxu0 0.0
        %2240 = vmatpush1.msra.mxu0 0.0
        %2241 = vmatprep.subr.mxu0 0.0
        %2242 = vmatpush1.msra.mxu0 0.0
        %2243 = vmatprep.subr.mxu0 0.0
        %2244 = vmatpush1.msra.mxu0 0.0
        %2245 = vmatprep.subr.mxu0 0.0
        %2246 = vmatpush1.msra.mxu0 0.0
        %2247 = vmatprep.subr.mxu0 0.0
        %2248 = vmatpush1.msra.mxu0 0.0
        %2249 = vmatprep.subr.mxu0 0.0
        %2250 = vmatpush1.msra.mxu0 0.0
        %2251 = vmatprep.subr.mxu0 0.0
        %2252 = vmatpush1.msra.mxu0 0.0
        %2253 = vmatprep.subr.mxu0 0.0
        %2254 = vmatpush1.msra.mxu0 0.0
        %2255 = vmatprep.subr.mxu0 0.0
        %2256 = vmatpush1.msra.mxu0 0.0
        %2257 = vmatprep.subr.mxu0 0.0
        %2258 = vmatpush1.msra.mxu0 0.0
        %2259 = vmatprep.subr.mxu0 0.0
        %2260 = vmatpush1.msra.mxu0 0.0
        %2261 = vmatprep.subr.mxu0 0.0
        %2262 = vmatpush1.msra.mxu0 0.0
        %2263 = vmatprep.subr.mxu0 0.0
        %2264 = vmatpush1.msra.mxu0 0.0
        %2265 = vmatprep.subr.mxu0 0.0
        %2266 = vmatpush1.msra.mxu0 0.0
        %2267 = vmatprep.subr.mxu0 0.0
        %2268 = vmatpush1.msra.mxu0 0.0
        %2269 = vmatprep.subr.mxu0 0.0
        %2270 = vmatpush1.msra.mxu0 0.0
        %2271 = vmatprep.subr.mxu0 0.0
        %2272 = vmatpush1.msra.mxu0 0.0
        %2273 = vmatprep.subr.mxu0 0.0
        %2274 = vmatpush1.msra.mxu0 0.0
        %2275 = vmatprep.subr.mxu0 0.0
        %2276 = vmatpush1.msra.mxu0 0.0
        %2277 = vmatprep.subr.mxu0 0.0
        %2278 = vmatpush1.msra.mxu0 0.0
        %2279 = vmatprep.mubr.f32.mxu0 0.0
        %2280 = vmatmul.mubr.f32.gmra.mrb[0].mxu0 %v2069
        %v2281 = vpop.f32.mrb[0].mxu0
        %v2282 = vadd.f32 0.0, %v2281
        %v2283 = vpop.f32.mrb[0].mxu0
        %2284 = vmatprep.mubr.f32.mxu0 0.0
        %2285 = vmatmul.mubr.f32.gmra.mrb[0].mxu0 %v2071
        %v2286 = vpop.f32.mrb[0].mxu0
        %v2287 = vadd.f32 0.0, %v2286
        %v2288 = vpop.f32.mrb[0].mxu0
        %2289 = vmatprep.mubr.f32.mxu0 0.0
        %2290 = vmatmul.mubr.f32.gmra.mrb[0].mxu0 %v2073
        %v2291 = vpop.f32.mrb[0].mxu0
        %v2292 = vadd.f32 0.0, %v2291
        %v2293 = vpop.f32.mrb[0].mxu0
        %2294 = vmatprep.mubr.f32.mxu0 0.0
        %2295 = vmatmul.mubr.f32.gmra.mrb[0].mxu0 %v2075
        %v2296 = vpop.f32.mrb[0].mxu0
        %v2297 = vadd.f32 0.0, %v2296
        %v2298 = vpop.f32.mrb[0].mxu0
        %2299 = vmatprep.mubr.f32.mxu0 0.0
        %2300 = vmatmul.mubr.f32.gmra.mrb[0].mxu0 %v2077
        %v2301 = vpop.f32.mrb[0].mxu0
        %v2302 = vadd.f32 0.0, %v2301
        %v2303 = vpop.f32.mrb[0].mxu0
        %2304 = vmatprep.mubr.f32.mxu0 0.0
        %2305 = vmatmul.mubr.f32.gmra.mrb[0].mxu0 %v2079
        %v2306 = vpop.f32.mrb[0].mxu0
        %v2307 = vadd.f32 0.0, %v2306
        %v2308 = vpop.f32.mrb[0].mxu0
        %2309 = vmatprep.mubr.f32.mxu0 0.0
        %2310 = vmatmul.mubr.f32.gmra.mrb[0].mxu0 %v2081
        %v2311 = vpop.f32.mrb[0].mxu0
        %v2312 = vadd.f32 0.0, %v2311
        %v2313 = vpop.f32.mrb[0].mxu0
        %2314 = vmatprep.mubr.f32.mxu0 0.0
        %2315 = vmatmul.mubr.f32.gmra.mrb[0].mxu0 %v2083
        %v2316 = vpop.f32.mrb[0].mxu0
        %v2317 = vadd.f32 0.0, %v2316
        %v2318 = vpop.f32.mrb[0].mxu0
        %2319 = vmatprep.mubr.f32.mxu0 0.0
        %2320 = vmatmul.mubr.f32.gmra.mrb[0].mxu0 %v2085
        %v2321 = vpop.f32.mrb[0].mxu0
        %v2322 = vadd.f32 0.0, %v2321
        %v2323 = vpop.f32.mrb[0].mxu0
        %2324 = vmatprep.mubr.f32.mxu0 0.0
        %2325 = vmatmul.mubr.f32.gmra.mrb[0].mxu0 %v2087
        %v2326 = vpop.f32.mrb[0].mxu0
        %v2327 = vadd.f32 0.0, %v2326
        %v2328 = vpop.f32.mrb[0].mxu0
        %2329 = vmatprep.mubr.f32.mxu0 0.0
        %2330 = vmatmul.mubr.f32.gmra.mrb[0].mxu0 %v2089
        %v2331 = vpop.f32.mrb[0].mxu0
        %v2332 = vadd.f32 0.0, %v2331
        %v2333 = vpop.f32.mrb[0].mxu0
        %2334 = vmatprep.mubr.f32.mxu0 0.0
        %2335 = vmatmul.mubr.f32.gmra.mrb[0].mxu0 %v2091
        %v2336 = vpop.f32.mrb[0].mxu0
        %v2337 = vadd.f32 0.0, %v2336
        %v2338 = vpop.f32.mrb[0].mxu0
        %2339 = vmatprep.mubr.f32.mxu0 0.0
        %2340 = vmatmul.mubr.f32.gmra.mrb[0].mxu0 %v2093
        %v2341 = vpop.f32.mrb[0].mxu0
        %v2342 = vadd.f32 0.0, %v2341
        %v2343 = vpop.f32.mrb[0].mxu0
        %2344 = vmatprep.mubr.f32.mxu0 0.0
        %2345 = vmatmul.mubr.f32.gmra.mrb[0].mxu0 %v2095
        %v2346 = vpop.f32.mrb[0].mxu0
        %v2347 = vadd.f32 0.0, %v2346
        %v2348 = vpop.f32.mrb[0].mxu0
        %2349 = vmatprep.mubr.f32.mxu0 0.0
        %2350 = vmatmul.mubr.f32.gmra.mrb[0].mxu0 %v2097
        %v2351 = vpop.f32.mrb[0].mxu0
        %v2352 = vadd.f32 0.0, %v2351
        %v2353 = vpop.f32.mrb[0].mxu0
        %2354 = vmatprep.mubr.f32.mxu0 0.0
        %2355 = vmatmul.mubr.f32.gmra.mrb[0].mxu0 %v2099
        %v2356 = vpop.f32.mrb[0].mxu0
        %v2357 = vadd.f32 0.0, %v2356
        %v2358 = vpop.f32.mrb[0].mxu0
        %2359 = vmatprep.mubr.f32.mxu0 0.0
        %2360 = vmatmul.mubr.f32.gmra.mrb[0].mxu0 %v2101
        %v2361 = vpop.f32.mrb[0].mxu0
        %v2362 = vadd.f32 0.0, %v2361
        %v2363 = vpop.f32.mrb[0].mxu0
        %2364 = vmatprep.mubr.f32.mxu0 0.0
        %2365 = vmatmul.mubr.f32.gmra.mrb[0].mxu0 %v2103
        %v2366 = vpop.f32.mrb[0].mxu0
        %v2367 = vadd.f32 0.0, %v2366
        %v2368 = vpop.f32.mrb[0].mxu0
        %2369 = vmatprep.mubr.f32.mxu0 0.0
        %2370 = vmatmul.mubr.f32.gmra.mrb[0].mxu0 %v2105
        %v2371 = vpop.f32.mrb[0].mxu0
        %v2372 = vadd.f32 0.0, %v2371
        %v2373 = vpop.f32.mrb[0].mxu0
        %2374 = vmatprep.mubr.f32.mxu0 0.0
        %2375 = vmatmul.mubr.f32.gmra.mrb[0].mxu0 %v2107
        %v2376 = vpop.f32.mrb[0].mxu0
        %v2377 = vadd.f32 0.0, %v2376
        %v2378 = vpop.f32.mrb[0].mxu0
        %2379 = vmatprep.mubr.f32.mxu0 0.0
        %2380 = vmatmul.mubr.f32.gmra.mrb[0].mxu0 %v2109
        %v2381 = vpop.f32.mrb[0].mxu0
        %v2382 = vadd.f32 0.0, %v2381
        %v2383 = vpop.f32.mrb[0].mxu0
        %2384 = vmatprep.mubr.f32.mxu0 0.0
        %2385 = vmatmul.mubr.f32.gmra.mrb[0].mxu0 %v2111
        %v2386 = vpop.f32.mrb[0].mxu0
        %v2387 = vadd.f32 0.0, %v2386
        %v2388 = vpop.f32.mrb[0].mxu0
        %2389 = vmatprep.mubr.f32.mxu0 0.0
        %2390 = vmatmul.mubr.f32.gmra.mrb[0].mxu0 %v2113
        %v2391 = vpop.f32.mrb[0].mxu0
        %v2392 = vadd.f32 0.0, %v2391
        %v2393 = vpop.f32.mrb[0].mxu0
        %2394 = vmatprep.mubr.f32.mxu0 0.0
        %2395 = vmatmul.mubr.f32.gmra.mrb[0].mxu0 %v2115
        %v2396 = vpop.f32.mrb[0].mxu0
        %v2397 = vadd.f32 0.0, %v2396
        %v2398 = vpop.f32.mrb[0].mxu0
        %2399 = vmatprep.mubr.f32.mxu0 0.0
        %2400 = vmatmul.mubr.f32.gmra.mrb[0].mxu0 %v2117
        %v2401 = vpop.f32.mrb[0].mxu0
        %v2402 = vadd.f32 0.0, %v2401
        %v2403 = vpop.f32.mrb[0].mxu0
        %2404 = vmatprep.mubr.f32.mxu0 0.0
        %2405 = vmatmul.mubr.f32.gmra.mrb[0].mxu0 %v2119
        %v2406 = vpop.f32.mrb[0].mxu0
        %v2407 = vadd.f32 0.0, %v2406
        %v2408 = vpop.f32.mrb[0].mxu0
        %2409 = vmatprep.mubr.f32.mxu0 0.0
        %2410 = vmatmul.mubr.f32.gmra.mrb[0].mxu0 %v2121
        %v2411 = vpop.f32.mrb[0].mxu0
        %v2412 = vadd.f32 0.0, %v2411
        %v2413 = vpop.f32.mrb[0].mxu0
        %2414 = vmatprep.mubr.f32.mxu0 0.0
        %2415 = vmatmul.mubr.f32.gmra.mrb[0].mxu0 %v2123
        %v2416 = vpop.f32.mrb[0].mxu0
        %v2417 = vadd.f32 0.0, %v2416
        %v2418 = vpop.f32.mrb[0].mxu0
        %2419 = vmatprep.mubr.f32.mxu0 0.0
        %2420 = vmatmul.mubr.f32.gmra.mrb[0].mxu0 %v2125
        %v2421 = vpop.f32.mrb[0].mxu0
        %v2422 = vadd.f32 0.0, %v2421
        %v2423 = vpop.f32.mrb[0].mxu0
        %2424 = vmatprep.mubr.f32.mxu0 0.0
        %2425 = vmatmul.mubr.f32.gmra.mrb[0].mxu0 %v2127
        %v2426 = vpop.f32.mrb[0].mxu0
        %v2427 = vadd.f32 0.0, %v2426
        %v2428 = vpop.f32.mrb[0].mxu0
        %2429 = vmatprep.mubr.f32.mxu0 0.0
        %2430 = vmatmul.mubr.f32.gmra.mrb[0].mxu0 %v2129
        %v2431 = vpop.f32.mrb[0].mxu0
        %v2432 = vadd.f32 0.0, %v2431
        %v2433 = vpop.f32.mrb[0].mxu0
        %2434 = vmatprep.mubr.f32.mxu0 0.0
        %2435 = vmatmul.mubr.f32.gmra.mrb[0].mxu0 %v2131
        %v2436 = vpop.f32.mrb[0].mxu0
        %v2437 = vadd.f32 0.0, %v2436
        %v2438 = vpop.f32.mrb[0].mxu0
        %2439 = vmatprep.mubr.f32.mxu0 0.0
        %2440 = vmatmul.mubr.f32.gmra.mrb[0].mxu0 %v2133
        %v2441 = vpop.f32.mrb[0].mxu0
        %v2442 = vadd.f32 0.0, %v2441
        %v2443 = vpop.f32.mrb[0].mxu0
        %2444 = vmatprep.mubr.f32.mxu0 0.0
        %2445 = vmatmul.mubr.f32.gmra.mrb[0].mxu0 %v2135
        %v2446 = vpop.f32.mrb[0].mxu0
        %v2447 = vadd.f32 0.0, %v2446
        %v2448 = vpop.f32.mrb[0].mxu0
        %2449 = vmatprep.mubr.f32.mxu0 0.0
        %2450 = vmatmul.mubr.f32.gmra.mrb[0].mxu0 %v2137
        %v2451 = vpop.f32.mrb[0].mxu0
        %v2452 = vadd.f32 0.0, %v2451
        %v2453 = vpop.f32.mrb[0].mxu0
        %2454 = vmatprep.mubr.f32.mxu0 0.0
        %2455 = vmatmul.mubr.f32.gmra.mrb[0].mxu0 %v2139
        %v2456 = vpop.f32.mrb[0].mxu0
        %v2457 = vadd.f32 0.0, %v2456
        %v2458 = vpop.f32.mrb[0].mxu0
        %2459 = vmatprep.mubr.f32.mxu0 0.0
        %2460 = vmatmul.mubr.f32.gmra.mrb[0].mxu0 %v2141
        %v2461 = vpop.f32.mrb[0].mxu0
        %v2462 = vadd.f32 0.0, %v2461
        %v2463 = vpop.f32.mrb[0].mxu0
        %2464 = vmatprep.mubr.f32.mxu0 0.0
        %2465 = vmatmul.mubr.f32.gmra.mrb[0].mxu0 %v2143
        %v2466 = vpop.f32.mrb[0].mxu0
        %v2467 = vadd.f32 0.0, %v2466
        %v2468 = vpop.f32.mrb[0].mxu0
        %2469 = vmatprep.mubr.f32.mxu0 0.0
        %2470 = vmatmul.mubr.f32.gmra.mrb[0].mxu0 %v2145
        %v2471 = vpop.f32.mrb[0].mxu0
        %v2472 = vadd.f32 0.0, %v2471
        %v2473 = vpop.f32.mrb[0].mxu0
        %2474 = vmatprep.mubr.f32.mxu0 0.0
        %2475 = vmatmul.mubr.f32.gmra.mrb[0].mxu0 %v2147
        %v2476 = vpop.f32.mrb[0].mxu0
        %v2477 = vadd.f32 0.0, %v2476
        %v2478 = vpop.f32.mrb[0].mxu0
        %2479 = vmatprep.mubr.f32.mxu0 0.0
        %2480 = vmatmul.mubr.f32.gmra.mrb[0].mxu0 %v2149
        %v2481 = vpop.f32.mrb[0].mxu0
        %v2482 = vadd.f32 0.0, %v2481
        %v2483 = vpop.f32.mrb[0].mxu0
        %2484 = vmatprep.mubr.f32.mxu0 0.0
        %2485 = vmatmul.mubr.f32.gmra.mrb[0].mxu0 %v2151
        %v2486 = vpop.f32.mrb[0].mxu0
        %v2487 = vadd.f32 0.0, %v2486
        %v2488 = vpop.f32.mrb[0].mxu0
        %2489 = vmatprep.mubr.f32.mxu0 0.0
        %2490 = vmatmul.mubr.f32.gmra.mrb[0].mxu0 %v2153
        %v2491 = vpop.f32.mrb[0].mxu0
        %v2492 = vadd.f32 0.0, %v2491
        %v2493 = vpop.f32.mrb[0].mxu0
        %2494 = vmatprep.mubr.f32.mxu0 0.0
        %2495 = vmatmul.mubr.f32.gmra.mrb[0].mxu0 %v2155
        %v2496 = vpop.f32.mrb[0].mxu0
        %v2497 = vadd.f32 0.0, %v2496
        %v2498 = vpop.f32.mrb[0].mxu0
        %2499 = vmatprep.mubr.f32.mxu0 0.0
        %2500 = vmatmul.mubr.f32.gmra.mrb[0].mxu0 %v2157
        %v2501 = vpop.f32.mrb[0].mxu0
        %v2502 = vadd.f32 0.0, %v2501
        %v2503 = vpop.f32.mrb[0].mxu0
        %2504 = vmatprep.mubr.f32.mxu0 0.0
        %2505 = vmatmul.mubr.f32.gmra.mrb[0].mxu0 %v2159
        %v2506 = vpop.f32.mrb[0].mxu0
        %v2507 = vadd.f32 0.0, %v2506
        %v2508 = vpop.f32.mrb[0].mxu0
        %2509 = vmatprep.mubr.f32.mxu0 0.0
        %2510 = vmatmul.mubr.f32.gmra.mrb[0].mxu0 %v2161
        %v2511 = vpop.f32.mrb[0].mxu0
        %v2512 = vadd.f32 0.0, %v2511
        %v2513 = vpop.f32.mrb[0].mxu0
        %2514 = vmatprep.mubr.f32.mxu0 0.0
        %2515 = vmatmul.mubr.f32.gmra.mrb[0].mxu0 %v2163
        %v2516 = vpop.f32.mrb[0].mxu0
        %v2517 = vadd.f32 0.0, %v2516
        %v2518 = vpop.f32.mrb[0].mxu0
        %2519 = vmatprep.mubr.f32.mxu0 0.0
        %2520 = vmatmul.mubr.f32.gmra.mrb[0].mxu0 %v2165
        %v2521 = vpop.f32.mrb[0].mxu0
        %v2522 = vadd.f32 0.0, %v2521
        %v2523 = vpop.f32.mrb[0].mxu0
        %2524 = vmatprep.mubr.f32.mxu0 0.0
        %2525 = vmatmul.mubr.f32.gmra.mrb[0].mxu0 %v2167
        %v2526 = vpop.f32.mrb[0].mxu0
        %v2527 = vadd.f32 0.0, %v2526
        %v2528 = vpop.f32.mrb[0].mxu0
        %2529 = vmatprep.mubr.f32.mxu0 0.0
        %2530 = vmatmul.mubr.f32.gmra.mrb[0].mxu0 %v2169
        %v2531 = vpop.f32.mrb[0].mxu0
        %v2532 = vadd.f32 0.0, %v2531
        %v2533 = vpop.f32.mrb[0].mxu0
        %2534 = vmatprep.mubr.f32.mxu0 0.0
        %2535 = vmatmul.mubr.f32.gmra.mrb[0].mxu0 %v2171
        %v2536 = vpop.f32.mrb[0].mxu0
        %v2537 = vadd.f32 0.0, %v2536
        %v2538 = vpop.f32.mrb[0].mxu0
        %2539 = vmatprep.mubr.f32.mxu0 0.0
        %2540 = vmatmul.mubr.f32.gmra.mrb[0].mxu0 %v2173
        %v2541 = vpop.f32.mrb[0].mxu0
        %v2542 = vadd.f32 0.0, %v2541
        %v2543 = vpop.f32.mrb[0].mxu0
        %2544 = vmatprep.mubr.f32.mxu0 0.0
        %2545 = vmatmul.mubr.f32.gmra.mrb[0].mxu0 %v2175
        %v2546 = vpop.f32.mrb[0].mxu0
        %v2547 = vadd.f32 0.0, %v2546
        %v2548 = vpop.f32.mrb[0].mxu0
        %2549 = vmatprep.mubr.f32.mxu0 0.0
        %2550 = vmatmul.mubr.f32.gmra.mrb[0].mxu0 %v2177
        %v2551 = vpop.f32.mrb[0].mxu0
        %v2552 = vadd.f32 0.0, %v2551
        %v2553 = vpop.f32.mrb[0].mxu0
        %2554 = vmatprep.mubr.f32.mxu0 0.0
        %2555 = vmatmul.mubr.f32.gmra.mrb[0].mxu0 %v2179
        %v2556 = vpop.f32.mrb[0].mxu0
        %v2557 = vadd.f32 0.0, %v2556
        %v2558 = vpop.f32.mrb[0].mxu0
        %2559 = vmatprep.mubr.f32.mxu0 0.0
        %2560 = vmatmul.mubr.f32.gmra.mrb[0].mxu0 %v2181
        %v2561 = vpop.f32.mrb[0].mxu0
        %v2562 = vadd.f32 0.0, %v2561
        %v2563 = vpop.f32.mrb[0].mxu0
        %2564 = vmatprep.mubr.f32.mxu0 0.0
        %2565 = vmatmul.mubr.f32.gmra.mrb[0].mxu0 %v2183
        %v2566 = vpop.f32.mrb[0].mxu0
        %v2567 = vadd.f32 0.0, %v2566
        %v2568 = vpop.f32.mrb[0].mxu0
        %2569 = vmatprep.mubr.f32.mxu0 0.0
        %2570 = vmatmul.mubr.f32.gmra.mrb[0].mxu0 %v2185
        %v2571 = vpop.f32.mrb[0].mxu0
        %v2572 = vadd.f32 0.0, %v2571
        %v2573 = vpop.f32.mrb[0].mxu0
        %2574 = vmatprep.mubr.f32.mxu0 0.0
        %2575 = vmatmul.mubr.f32.gmra.mrb[0].mxu0 %v2187
        %v2576 = vpop.f32.mrb[0].mxu0
        %v2577 = vadd.f32 0.0, %v2576
        %v2578 = vpop.f32.mrb[0].mxu0
        %2579 = vmatprep.mubr.f32.mxu0 0.0
        %2580 = vmatmul.mubr.f32.gmra.mrb[0].mxu0 %v2189
        %v2581 = vpop.f32.mrb[0].mxu0
        %v2582 = vadd.f32 0.0, %v2581
        %v2583 = vpop.f32.mrb[0].mxu0
        %2584 = vmatprep.mubr.f32.mxu0 0.0
        %2585 = vmatmul.mubr.f32.gmra.mrb[0].mxu0 %v2191
        %v2586 = vpop.f32.mrb[0].mxu0
        %v2587 = vadd.f32 0.0, %v2586
        %v2588 = vpop.f32.mrb[0].mxu0
        %2589 = vmatprep.mubr.f32.mxu0 0.0
        %2590 = vmatmul.mubr.f32.gmra.mrb[0].mxu0 %v2193
        %v2591 = vpop.f32.mrb[0].mxu0
        %v2592 = vadd.f32 0.0, %v2591
        %v2593 = vpop.f32.mrb[0].mxu0
        %2594 = vmatprep.mubr.f32.mxu0 0.0
        %2595 = vmatmul.mubr.f32.gmra.mrb[0].mxu0 %v2195
        %v2596 = vpop.f32.mrb[0].mxu0
        %v2597 = vadd.f32 0.0, %v2596
        %v2598 = vpop.f32.mrb[0].mxu0
        %2599 = vmatprep.mubr.f32.mxu0 0.0
        %2600 = vmatmul.mubr.f32.gmra.mrb[0].mxu0 %v2197
        %v2601 = vpop.f32.mrb[0].mxu0
        %v2602 = vadd.f32 0.0, %v2601
        %v2603 = vpop.f32.mrb[0].mxu0
        %2604 = vmatprep.mubr.f32.mxu0 0.0
        %2605 = vmatmul.mubr.f32.gmra.mrb[0].mxu0 %v2199
        %v2606 = vpop.f32.mrb[0].mxu0
        %v2607 = vadd.f32 0.0, %v2606
        %v2608 = vpop.f32.mrb[0].mxu0
        %2609 = vmatprep.mubr.f32.mxu0 0.0
        %2610 = vmatmul.mubr.f32.gmra.mrb[0].mxu0 %v2201
        %v2611 = vpop.f32.mrb[0].mxu0
        %v2612 = vadd.f32 0.0, %v2611
        %v2613 = vpop.f32.mrb[0].mxu0
        %2614 = vmatprep.mubr.f32.mxu0 0.0
        %2615 = vmatmul.mubr.f32.gmra.mrb[0].mxu0 %v2203
        %v2616 = vpop.f32.mrb[0].mxu0
        %v2617 = vadd.f32 0.0, %v2616
        %v2618 = vpop.f32.mrb[0].mxu0
        %2619 = vmatprep.mubr.f32.mxu0 0.0
        %2620 = vmatmul.mubr.f32.gmra.mrb[0].mxu0 %v2205
        %v2621 = vpop.f32.mrb[0].mxu0
        %v2622 = vadd.f32 0.0, %v2621
        %v2623 = vpop.f32.mrb[0].mxu0
        %2624 = vmatprep.mubr.f32.mxu0 0.0
        %2625 = vmatmul.mubr.f32.gmra.mrb[0].mxu0 %v2207
        %v2626 = vpop.f32.mrb[0].mxu0
        %v2627 = vadd.f32 0.0, %v2626
        %v2628 = vpop.f32.mrb[0].mxu0
        %2629 = vmatprep.mubr.f32.mxu0 0.0
        %2630 = vmatmul.mubr.f32.gmra.mrb[0].mxu0 %v2209
        %v2631 = vpop.f32.mrb[0].mxu0
        %v2632 = vadd.f32 0.0, %v2631
        %v2633 = vpop.f32.mrb[0].mxu0
        %2634 = vmatprep.mubr.f32.mxu0 0.0
        %2635 = vmatmul.mubr.f32.gmra.mrb[0].mxu0 %v2211
        %v2636 = vpop.f32.mrb[0].mxu0
        %v2637 = vadd.f32 0.0, %v2636
        %v2638 = vpop.f32.mrb[0].mxu0
        %2639 = vdwg.mxu0
        %v2640 = vadd.f32 %v1541, %v2282
        %v2641 = vadd.f32 %v1546, %v2287
        %v2642 = vadd.f32 %v1551, %v2292
        %v2643 = vadd.f32 %v1556, %v2297
        %v2644 = vadd.f32 %v1561, %v2302
        %v2645 = vadd.f32 %v1566, %v2307
        %v2646 = vadd.f32 %v1571, %v2312
        %v2647 = vadd.f32 %v1576, %v2317
        %v2648 = vadd.f32 %v1581, %v2322
        %v2649 = vadd.f32 %v1586, %v2327
        %v2650 = vadd.f32 %v1591, %v2332
        %v2651 = vadd.f32 %v1596, %v2337
        %v2652 = vadd.f32 %v1601, %v2342
        %v2653 = vadd.f32 %v1606, %v2347
        %v2654 = vadd.f32 %v1611, %v2352
        %v2655 = vadd.f32 %v1616, %v2357
        %v2656 = vadd.f32 %v1621, %v2362
        %v2657 = vadd.f32 %v1626, %v2367
        %v2658 = vadd.f32 %v1631, %v2372
        %v2659 = vadd.f32 %v1636, %v2377
        %v2660 = vadd.f32 %v1641, %v2382
        %v2661 = vadd.f32 %v1646, %v2387
        %v2662 = vadd.f32 %v1651, %v2392
        %v2663 = vadd.f32 %v1656, %v2397
        %v2664 = vadd.f32 %v1661, %v2402
        %v2665 = vadd.f32 %v1666, %v2407
        %v2666 = vadd.f32 %v1671, %v2412
        %v2667 = vadd.f32 %v1676, %v2417
        %v2668 = vadd.f32 %v1681, %v2422
        %v2669 = vadd.f32 %v1686, %v2427
        %v2670 = vadd.f32 %v1691, %v2432
        %v2671 = vadd.f32 %v1696, %v2437
        %v2672 = vadd.f32 %v1701, %v2442
        %v2673 = vadd.f32 %v1706, %v2447
        %v2674 = vadd.f32 %v1711, %v2452
        %v2675 = vadd.f32 %v1716, %v2457
        %v2676 = vadd.f32 %v1721, %v2462
        %v2677 = vadd.f32 %v1726, %v2467
        %v2678 = vadd.f32 %v1731, %v2472
        %v2679 = vadd.f32 %v1736, %v2477
        %v2680 = vadd.f32 %v1741, %v2482
        %v2681 = vadd.f32 %v1746, %v2487
        %v2682 = vadd.f32 %v1751, %v2492
        %v2683 = vadd.f32 %v1756, %v2497
        %v2684 = vadd.f32 %v1761, %v2502
        %v2685 = vadd.f32 %v1766, %v2507
        %v2686 = vadd.f32 %v1771, %v2512
        %v2687 = vadd.f32 %v1776, %v2517
        %v2688 = vadd.f32 %v1781, %v2522
        %v2689 = vadd.f32 %v1786, %v2527
        %v2690 = vadd.f32 %v1791, %v2532
        %v2691 = vadd.f32 %v1796, %v2537
        %v2692 = vadd.f32 %v1801, %v2542
        %v2693 = vadd.f32 %v1806, %v2547
        %v2694 = vadd.f32 %v1811, %v2552
        %v2695 = vadd.f32 %v1816, %v2557
        %v2696 = vadd.f32 %v1821, %v2562
        %v2697 = vadd.f32 %v1826, %v2567
        %v2698 = vadd.f32 %v1831, %v2572
        %v2699 = vadd.f32 %v1836, %v2577
        %v2700 = vadd.f32 %v1841, %v2582
        %v2701 = vadd.f32 %v1846, %v2587
        %v2702 = vadd.f32 %v1851, %v2592
        %v2703 = vadd.f32 %v1856, %v2597
        %v2704 = vadd.f32 %v1861, %v2602
        %v2705 = vadd.f32 %v1866, %v2607
        %v2706 = vadd.f32 %v1871, %v2612
        %v2707 = vadd.f32 %v1876, %v2617
        %v2708 = vadd.f32 %v1881, %v2622
        %v2709 = vadd.f32 %v1886, %v2627
        %v2710 = vadd.f32 %v1891, %v2632
        %v2711 = vadd.f32 %v1896, %v2637
        %v2712 = vrot.slane %v384, 3
        %v2713 = vrot.slane %v385, 3
        %v2714 = vsel %vm900, %v2712, %v2713
        %v2715 = vrot.slane %v386, 3
        %v2716 = vsel %vm900, %v2713, %v2715
        %v2717 = vrot.slane %v387, 3
        %v2718 = vsel %vm900, %v2715, %v2717
        %v2719 = vrot.slane %v388, 3
        %v2720 = vrot.slane %v389, 3
        %v2721 = vsel %vm900, %v2719, %v2720
        %v2722 = vrot.slane %v390, 3
        %v2723 = vsel %vm900, %v2720, %v2722
        %v2724 = vrot.slane %v391, 3
        %v2725 = vsel %vm900, %v2722, %v2724
        %v2726 = vrot.slane %v392, 3
        %v2727 = vrot.slane %v393, 3
        %v2728 = vsel %vm900, %v2726, %v2727
        %v2729 = vrot.slane %v394, 3
        %v2730 = vsel %vm900, %v2727, %v2729
        %v2731 = vrot.slane %v395, 3
        %v2732 = vsel %vm900, %v2729, %v2731
        %v2733 = vrot.slane %v396, 3
        %v2734 = vrot.slane %v397, 3
        %v2735 = vsel %vm900, %v2733, %v2734
        %v2736 = vrot.slane %v398, 3
        %v2737 = vsel %vm900, %v2734, %v2736
        %v2738 = vrot.slane %v399, 3
        %v2739 = vsel %vm900, %v2736, %v2738
        %v2740 = vrot.slane %v400, 3
        %v2741 = vrot.slane %v401, 3
        %v2742 = vsel %vm900, %v2740, %v2741
        %v2743 = vrot.slane %v402, 3
        %v2744 = vsel %vm900, %v2741, %v2743
        %v2745 = vrot.slane %v403, 3
        %v2746 = vsel %vm900, %v2743, %v2745
        %v2747 = vrot.slane %v404, 3
        %v2748 = vrot.slane %v405, 3
        %v2749 = vsel %vm900, %v2747, %v2748
        %v2750 = vrot.slane %v406, 3
        %v2751 = vsel %vm900, %v2748, %v2750
        %v2752 = vrot.slane %v407, 3
        %v2753 = vsel %vm900, %v2750, %v2752
        %v2754 = vrot.slane %v408, 3
        %v2755 = vrot.slane %v409, 3
        %v2756 = vsel %vm900, %v2754, %v2755
        %v2757 = vrot.slane %v410, 3
        %v2758 = vsel %vm900, %v2755, %v2757
        %v2759 = vrot.slane %v411, 3
        %v2760 = vsel %vm900, %v2757, %v2759
        %v2761 = vrot.slane %v412, 3
        %v2762 = vrot.slane %v413, 3
        %v2763 = vsel %vm900, %v2761, %v2762
        %v2764 = vrot.slane %v414, 3
        %v2765 = vsel %vm900, %v2762, %v2764
        %v2766 = vrot.slane %v415, 3
        %v2767 = vsel %vm900, %v2764, %v2766
        %v2768 = vrot.slane %v416, 3
        %v2769 = vrot.slane %v417, 3
        %v2770 = vsel %vm900, %v2768, %v2769
        %v2771 = vrot.slane %v418, 3
        %v2772 = vsel %vm900, %v2769, %v2771
        %v2773 = vrot.slane %v419, 3
        %v2774 = vsel %vm900, %v2771, %v2773
        %v2775 = vrot.slane %v420, 3
        %v2776 = vrot.slane %v421, 3
        %v2777 = vsel %vm900, %v2775, %v2776
        %v2778 = vrot.slane %v422, 3
        %v2779 = vsel %vm900, %v2776, %v2778
        %v2780 = vrot.slane %v423, 3
        %v2781 = vsel %vm900, %v2778, %v2780
        %v2782 = vrot.slane %v424, 3
        %v2783 = vrot.slane %v425, 3
        %v2784 = vsel %vm900, %v2782, %v2783
        %v2785 = vrot.slane %v426, 3
        %v2786 = vsel %vm900, %v2783, %v2785
        %v2787 = vrot.slane %v427, 3
        %v2788 = vsel %vm900, %v2785, %v2787
        %v2789 = vrot.slane %v428, 3
        %v2790 = vrot.slane %v429, 3
        %v2791 = vsel %vm900, %v2789, %v2790
        %v2792 = vrot.slane %v430, 3
        %v2793 = vsel %vm900, %v2790, %v2792
        %v2794 = vrot.slane %v431, 3
        %v2795 = vsel %vm900, %v2792, %v2794
        %v2796 = vrot.slane %v432, 3
        %v2797 = vrot.slane %v433, 3
        %v2798 = vsel %vm900, %v2796, %v2797
        %v2799 = vrot.slane %v434, 3
        %v2800 = vsel %vm900, %v2797, %v2799
        %v2801 = vrot.slane %v435, 3
        %v2802 = vsel %vm900, %v2799, %v2801
        %v2803 = vrot.slane %v436, 3
        %v2804 = vrot.slane %v437, 3
        %v2805 = vsel %vm900, %v2803, %v2804
        %v2806 = vrot.slane %v438, 3
        %v2807 = vsel %vm900, %v2804, %v2806
        %v2808 = vrot.slane %v439, 3
        %v2809 = vsel %vm900, %v2806, %v2808
        %v2810 = vrot.slane %v440, 3
        %v2811 = vrot.slane %v441, 3
        %v2812 = vsel %vm900, %v2810, %v2811
        %v2813 = vrot.slane %v442, 3
        %v2814 = vsel %vm900, %v2811, %v2813
        %v2815 = vrot.slane %v443, 3
        %v2816 = vsel %vm900, %v2813, %v2815
        %v2817 = vrot.slane %v444, 3
        %v2818 = vrot.slane %v445, 3
        %v2819 = vsel %vm900, %v2817, %v2818
        %v2820 = vrot.slane %v446, 3
        %v2821 = vsel %vm900, %v2818, %v2820
        %v2822 = vrot.slane %v447, 3
        %v2823 = vsel %vm900, %v2820, %v2822
        %v2824 = vrot.slane %v448, 3
        %v2825 = vrot.slane %v449, 3
        %v2826 = vsel %vm900, %v2824, %v2825
        %v2827 = vrot.slane %v450, 3
        %v2828 = vsel %vm900, %v2825, %v2827
        %v2829 = vrot.slane %v451, 3
        %v2830 = vsel %vm900, %v2827, %v2829
        %v2831 = vrot.slane %v452, 3
        %v2832 = vrot.slane %v453, 3
        %v2833 = vsel %vm900, %v2831, %v2832
        %v2834 = vrot.slane %v454, 3
        %v2835 = vsel %vm900, %v2832, %v2834
        %v2836 = vrot.slane %v455, 3
        %v2837 = vsel %vm900, %v2834, %v2836
        %v2838 = vrot.slane %v456, 3
        %v2839 = vrot.slane %v457, 3
        %v2840 = vsel %vm900, %v2838, %v2839
        %v2841 = vrot.slane %v458, 3
        %v2842 = vsel %vm900, %v2839, %v2841
        %v2843 = vrot.slane %v459, 3
        %v2844 = vsel %vm900, %v2841, %v2843
        %v2845 = vrot.slane %v460, 3
        %v2846 = vrot.slane %v461, 3
        %v2847 = vsel %vm900, %v2845, %v2846
        %v2848 = vrot.slane %v462, 3
        %v2849 = vsel %vm900, %v2846, %v2848
        %v2850 = vrot.slane %v463, 3
        %v2851 = vsel %vm900, %v2848, %v2850
        %v2852 = vrot.slane %v464, 3
        %v2853 = vrot.slane %v465, 3
        %v2854 = vsel %vm900, %v2852, %v2853
        %v2855 = vrot.slane %v466, 3
        %v2856 = vsel %vm900, %v2853, %v2855
        %v2857 = vrot.slane %v467, 3
        %v2858 = vsel %vm900, %v2855, %v2857
        %v2859 = vrot.slane %v468, 3
        %v2860 = vrot.slane %v469, 3
        %v2861 = vsel %vm900, %v2859, %v2860
        %v2862 = vrot.slane %v470, 3
        %v2863 = vsel %vm900, %v2860, %v2862
        %v2864 = vrot.slane %v471, 3
        %v2865 = vsel %vm900, %v2862, %v2864
        %v2866 = vrot.slane %v472, 3
        %v2867 = vrot.slane %v473, 3
        %v2868 = vsel %vm900, %v2866, %v2867
        %v2869 = vrot.slane %v474, 3
        %v2870 = vsel %vm900, %v2867, %v2869
        %v2871 = vrot.slane %v475, 3
        %v2872 = vsel %vm900, %v2869, %v2871
        %v2873 = vrot.slane %v476, 3
        %v2874 = vrot.slane %v477, 3
        %v2875 = vsel %vm900, %v2873, %v2874
        %v2876 = vrot.slane %v478, 3
        %v2877 = vsel %vm900, %v2874, %v2876
        %v2878 = vrot.slane %v479, 3
        %v2879 = vsel %vm900, %v2876, %v2878
        %vm2881 = vcmask 1040384
        %v2882 = vrot.slane %v481, 7
        %v2883 = vrot.slane %v482, 7
        %v2884 = vsel %vm2881, %v2882, %v2883
        %v2885 = vsel %vm755, %v2714, 0
        %v2887 = vsel %vm755, %v2716, 0
        %v2889 = vsel %vm755, %v2718, 0
        %v2891 = vsel %vm755, %v2721, 0
        %v2893 = vsel %vm755, %v2723, 0
        %v2895 = vsel %vm755, %v2725, 0
        %v2897 = vsel %vm755, %v2728, 0
        %v2899 = vsel %vm755, %v2730, 0
        %v2901 = vsel %vm755, %v2732, 0
        %v2903 = vsel %vm755, %v2735, 0
        %v2905 = vsel %vm755, %v2737, 0
        %v2907 = vsel %vm755, %v2739, 0
        %v2909 = vsel %vm755, %v2742, 0
        %v2911 = vsel %vm755, %v2744, 0
        %v2913 = vsel %vm755, %v2746, 0
        %v2915 = vsel %vm755, %v2749, 0
        %v2917 = vsel %vm755, %v2751, 0
        %v2919 = vsel %vm755, %v2753, 0
        %v2921 = vsel %vm755, %v2756, 0
        %v2923 = vsel %vm755, %v2758, 0
        %v2925 = vsel %vm755, %v2760, 0
        %v2927 = vsel %vm755, %v2763, 0
        %v2929 = vsel %vm755, %v2765, 0
        %v2931 = vsel %vm755, %v2767, 0
        %v2933 = vsel %vm755, %v2770, 0
        %v2935 = vsel %vm755, %v2772, 0
        %v2937 = vsel %vm755, %v2774, 0
        %v2939 = vsel %vm755, %v2777, 0
        %v2941 = vsel %vm755, %v2779, 0
        %v2943 = vsel %vm755, %v2781, 0
        %v2945 = vsel %vm755, %v2784, 0
        %v2947 = vsel %vm755, %v2786, 0
        %v2949 = vsel %vm755, %v2788, 0
        %v2951 = vsel %vm755, %v2791, 0
        %v2953 = vsel %vm755, %v2793, 0
        %v2955 = vsel %vm755, %v2795, 0
        %v2957 = vsel %vm755, %v2798, 0
        %v2959 = vsel %vm755, %v2800, 0
        %v2961 = vsel %vm755, %v2802, 0
        %v2963 = vsel %vm755, %v2805, 0
        %v2965 = vsel %vm755, %v2807, 0
        %v2967 = vsel %vm755, %v2809, 0
        %v2969 = vsel %vm755, %v2812, 0
        %v2971 = vsel %vm755, %v2814, 0
        %v2973 = vsel %vm755, %v2816, 0
        %v2975 = vsel %vm755, %v2819, 0
        %v2977 = vsel %vm755, %v2821, 0
        %v2979 = vsel %vm755, %v2823, 0
        %v2981 = vsel %vm755, %v2826, 0
        %v2983 = vsel %vm755, %v2828, 0
        %v2985 = vsel %vm755, %v2830, 0
        %v2987 = vsel %vm755, %v2833, 0
        %v2989 = vsel %vm755, %v2835, 0
        %v2991 = vsel %vm755, %v2837, 0
        %v2993 = vsel %vm755, %v2840, 0
        %v2995 = vsel %vm755, %v2842, 0
        %v2997 = vsel %vm755, %v2844, 0
        %v2999 = vsel %vm755, %v2847, 0
        %v3001 = vsel %vm755, %v2849, 0
        %v3003 = vsel %vm755, %v2851, 0
        %v3005 = vsel %vm755, %v2854, 0
        %v3007 = vsel %vm755, %v2856, 0
        %v3009 = vsel %vm755, %v2858, 0
        %v3011 = vsel %vm755, %v2861, 0
        %v3013 = vsel %vm755, %v2863, 0
        %v3015 = vsel %vm755, %v2865, 0
        %v3017 = vsel %vm755, %v2868, 0
        %v3019 = vsel %vm755, %v2870, 0
        %v3021 = vsel %vm755, %v2872, 0
        %v3023 = vsel %vm755, %v2875, 0
        %v3025 = vsel %vm755, %v2877, 0
        %v3027 = vsel %vm755, %v2879, 0
        %v3029 = vsel %vm900, %v2884, 0
        %3031 = vmatprep.subr.mxu0 0.0
        %3032 = vmatpush1.msra.mxu0 %v3029
        %3033 = vmatprep.subr.mxu0 0.0
        %3034 = vmatpush1.msra.mxu0 0.0
        %3035 = vmatprep.subr.mxu0 0.0
        %3036 = vmatpush1.msra.mxu0 0.0
        %3037 = vmatprep.subr.mxu0 0.0
        %3038 = vmatpush1.msra.mxu0 0.0
        %3039 = vmatprep.subr.mxu0 0.0
        %3040 = vmatpush1.msra.mxu0 0.0
        %3041 = vmatprep.subr.mxu0 0.0
        %3042 = vmatpush1.msra.mxu0 0.0
        %3043 = vmatprep.subr.mxu0 0.0
        %3044 = vmatpush1.msra.mxu0 0.0
        %3045 = vmatprep.subr.mxu0 0.0
        %3046 = vmatpush1.msra.mxu0 0.0
        %3047 = vmatprep.subr.mxu0 0.0
        %3048 = vmatpush1.msra.mxu0 0.0
        %3049 = vmatprep.subr.mxu0 0.0
        %3050 = vmatpush1.msra.mxu0 0.0
        %3051 = vmatprep.subr.mxu0 0.0
        %3052 = vmatpush1.msra.mxu0 0.0
        %3053 = vmatprep.subr.mxu0 0.0
        %3054 = vmatpush1.msra.mxu0 0.0
        %3055 = vmatprep.subr.mxu0 0.0
        %3056 = vmatpush1.msra.mxu0 0.0
        %3057 = vmatprep.subr.mxu0 0.0
        %3058 = vmatpush1.msra.mxu0 0.0
        %3059 = vmatprep.subr.mxu0 0.0
        %3060 = vmatpush1.msra.mxu0 0.0
        %3061 = vmatprep.subr.mxu0 0.0
        %3062 = vmatpush1.msra.mxu0 0.0
        %3063 = vmatprep.subr.mxu0 0.0
        %3064 = vmatpush1.msra.mxu0 0.0
        %3065 = vmatprep.subr.mxu0 0.0
        %3066 = vmatpush1.msra.mxu0 0.0
        %3067 = vmatprep.subr.mxu0 0.0
        %3068 = vmatpush1.msra.mxu0 0.0
        %3069 = vmatprep.subr.mxu0 0.0
        %3070 = vmatpush1.msra.mxu0 0.0
        %3071 = vmatprep.subr.mxu0 0.0
        %3072 = vmatpush1.msra.mxu0 0.0
        %3073 = vmatprep.subr.mxu0 0.0
        %3074 = vmatpush1.msra.mxu0 0.0
        %3075 = vmatprep.subr.mxu0 0.0
        %3076 = vmatpush1.msra.mxu0 0.0
        %3077 = vmatprep.subr.mxu0 0.0
        %3078 = vmatpush1.msra.mxu0 0.0
        %3079 = vmatprep.subr.mxu0 0.0
        %3080 = vmatpush1.msra.mxu0 0.0
        %3081 = vmatprep.subr.mxu0 0.0
        %3082 = vmatpush1.msra.mxu0 0.0
        %3083 = vmatprep.subr.mxu0 0.0
        %3084 = vmatpush1.msra.mxu0 0.0
        %3085 = vmatprep.subr.mxu0 0.0
        %3086 = vmatpush1.msra.mxu0 0.0
        %3087 = vmatprep.subr.mxu0 0.0
        %3088 = vmatpush1.msra.mxu0 0.0
        %3089 = vmatprep.subr.mxu0 0.0
        %3090 = vmatpush1.msra.mxu0 0.0
        %3091 = vmatprep.subr.mxu0 0.0
        %3092 = vmatpush1.msra.mxu0 0.0
        %3093 = vmatprep.subr.mxu0 0.0
        %3094 = vmatpush1.msra.mxu0 0.0
        %3095 = vmatprep.mubr.f32.mxu0 0.0
        %3096 = vmatmul.mubr.f32.gmra.mrb[0].mxu0 %v2885
        %v3097 = vpop.f32.mrb[0].mxu0
        %v3098 = vadd.f32 0.0, %v3097
        %v3099 = vpop.f32.mrb[0].mxu0
        %3100 = vmatprep.mubr.f32.mxu0 0.0
        %3101 = vmatmul.mubr.f32.gmra.mrb[0].mxu0 %v2887
        %v3102 = vpop.f32.mrb[0].mxu0
        %v3103 = vadd.f32 0.0, %v3102
        %v3104 = vpop.f32.mrb[0].mxu0
        %3105 = vmatprep.mubr.f32.mxu0 0.0
        %3106 = vmatmul.mubr.f32.gmra.mrb[0].mxu0 %v2889
        %v3107 = vpop.f32.mrb[0].mxu0
        %v3108 = vadd.f32 0.0, %v3107
        %v3109 = vpop.f32.mrb[0].mxu0
        %3110 = vmatprep.mubr.f32.mxu0 0.0
        %3111 = vmatmul.mubr.f32.gmra.mrb[0].mxu0 %v2891
        %v3112 = vpop.f32.mrb[0].mxu0
        %v3113 = vadd.f32 0.0, %v3112
        %v3114 = vpop.f32.mrb[0].mxu0
        %3115 = vmatprep.mubr.f32.mxu0 0.0
        %3116 = vmatmul.mubr.f32.gmra.mrb[0].mxu0 %v2893
        %v3117 = vpop.f32.mrb[0].mxu0
        %v3118 = vadd.f32 0.0, %v3117
        %v3119 = vpop.f32.mrb[0].mxu0
        %3120 = vmatprep.mubr.f32.mxu0 0.0
        %3121 = vmatmul.mubr.f32.gmra.mrb[0].mxu0 %v2895
        %v3122 = vpop.f32.mrb[0].mxu0
        %v3123 = vadd.f32 0.0, %v3122
        %v3124 = vpop.f32.mrb[0].mxu0
        %3125 = vmatprep.mubr.f32.mxu0 0.0
        %3126 = vmatmul.mubr.f32.gmra.mrb[0].mxu0 %v2897
        %v3127 = vpop.f32.mrb[0].mxu0
        %v3128 = vadd.f32 0.0, %v3127
        %v3129 = vpop.f32.mrb[0].mxu0
        %3130 = vmatprep.mubr.f32.mxu0 0.0
        %3131 = vmatmul.mubr.f32.gmra.mrb[0].mxu0 %v2899
        %v3132 = vpop.f32.mrb[0].mxu0
        %v3133 = vadd.f32 0.0, %v3132
        %v3134 = vpop.f32.mrb[0].mxu0
        %3135 = vmatprep.mubr.f32.mxu0 0.0
        %3136 = vmatmul.mubr.f32.gmra.mrb[0].mxu0 %v2901
        %v3137 = vpop.f32.mrb[0].mxu0
        %v3138 = vadd.f32 0.0, %v3137
        %v3139 = vpop.f32.mrb[0].mxu0
        %3140 = vmatprep.mubr.f32.mxu0 0.0
        %3141 = vmatmul.mubr.f32.gmra.mrb[0].mxu0 %v2903
        %v3142 = vpop.f32.mrb[0].mxu0
        %v3143 = vadd.f32 0.0, %v3142
        %v3144 = vpop.f32.mrb[0].mxu0
        %3145 = vmatprep.mubr.f32.mxu0 0.0
        %3146 = vmatmul.mubr.f32.gmra.mrb[0].mxu0 %v2905
        %v3147 = vpop.f32.mrb[0].mxu0
        %v3148 = vadd.f32 0.0, %v3147
        %v3149 = vpop.f32.mrb[0].mxu0
        %3150 = vmatprep.mubr.f32.mxu0 0.0
        %3151 = vmatmul.mubr.f32.gmra.mrb[0].mxu0 %v2907
        %v3152 = vpop.f32.mrb[0].mxu0
        %v3153 = vadd.f32 0.0, %v3152
        %v3154 = vpop.f32.mrb[0].mxu0
        %3155 = vmatprep.mubr.f32.mxu0 0.0
        %3156 = vmatmul.mubr.f32.gmra.mrb[0].mxu0 %v2909
        %v3157 = vpop.f32.mrb[0].mxu0
        %v3158 = vadd.f32 0.0, %v3157
        %v3159 = vpop.f32.mrb[0].mxu0
        %3160 = vmatprep.mubr.f32.mxu0 0.0
        %3161 = vmatmul.mubr.f32.gmra.mrb[0].mxu0 %v2911
        %v3162 = vpop.f32.mrb[0].mxu0
        %v3163 = vadd.f32 0.0, %v3162
        %v3164 = vpop.f32.mrb[0].mxu0
        %3165 = vmatprep.mubr.f32.mxu0 0.0
        %3166 = vmatmul.mubr.f32.gmra.mrb[0].mxu0 %v2913
        %v3167 = vpop.f32.mrb[0].mxu0
        %v3168 = vadd.f32 0.0, %v3167
        %v3169 = vpop.f32.mrb[0].mxu0
        %3170 = vmatprep.mubr.f32.mxu0 0.0
        %3171 = vmatmul.mubr.f32.gmra.mrb[0].mxu0 %v2915
        %v3172 = vpop.f32.mrb[0].mxu0
        %v3173 = vadd.f32 0.0, %v3172
        %v3174 = vpop.f32.mrb[0].mxu0
        %3175 = vmatprep.mubr.f32.mxu0 0.0
        %3176 = vmatmul.mubr.f32.gmra.mrb[0].mxu0 %v2917
        %v3177 = vpop.f32.mrb[0].mxu0
        %v3178 = vadd.f32 0.0, %v3177
        %v3179 = vpop.f32.mrb[0].mxu0
        %3180 = vmatprep.mubr.f32.mxu0 0.0
        %3181 = vmatmul.mubr.f32.gmra.mrb[0].mxu0 %v2919
        %v3182 = vpop.f32.mrb[0].mxu0
        %v3183 = vadd.f32 0.0, %v3182
        %v3184 = vpop.f32.mrb[0].mxu0
        %3185 = vmatprep.mubr.f32.mxu0 0.0
        %3186 = vmatmul.mubr.f32.gmra.mrb[0].mxu0 %v2921
        %v3187 = vpop.f32.mrb[0].mxu0
        %v3188 = vadd.f32 0.0, %v3187
        %v3189 = vpop.f32.mrb[0].mxu0
        %3190 = vmatprep.mubr.f32.mxu0 0.0
        %3191 = vmatmul.mubr.f32.gmra.mrb[0].mxu0 %v2923
        %v3192 = vpop.f32.mrb[0].mxu0
        %v3193 = vadd.f32 0.0, %v3192
        %v3194 = vpop.f32.mrb[0].mxu0
        %3195 = vmatprep.mubr.f32.mxu0 0.0
        %3196 = vmatmul.mubr.f32.gmra.mrb[0].mxu0 %v2925
        %v3197 = vpop.f32.mrb[0].mxu0
        %v3198 = vadd.f32 0.0, %v3197
        %v3199 = vpop.f32.mrb[0].mxu0
        %3200 = vmatprep.mubr.f32.mxu0 0.0
        %3201 = vmatmul.mubr.f32.gmra.mrb[0].mxu0 %v2927
        %v3202 = vpop.f32.mrb[0].mxu0
        %v3203 = vadd.f32 0.0, %v3202
        %v3204 = vpop.f32.mrb[0].mxu0
        %3205 = vmatprep.mubr.f32.mxu0 0.0
        %3206 = vmatmul.mubr.f32.gmra.mrb[0].mxu0 %v2929
        %v3207 = vpop.f32.mrb[0].mxu0
        %v3208 = vadd.f32 0.0, %v3207
        %v3209 = vpop.f32.mrb[0].mxu0
        %3210 = vmatprep.mubr.f32.mxu0 0.0
        %3211 = vmatmul.mubr.f32.gmra.mrb[0].mxu0 %v2931
        %v3212 = vpop.f32.mrb[0].mxu0
        %v3213 = vadd.f32 0.0, %v3212
        %v3214 = vpop.f32.mrb[0].mxu0
        %3215 = vmatprep.mubr.f32.mxu0 0.0
        %3216 = vmatmul.mubr.f32.gmra.mrb[0].mxu0 %v2933
        %v3217 = vpop.f32.mrb[0].mxu0
        %v3218 = vadd.f32 0.0, %v3217
        %v3219 = vpop.f32.mrb[0].mxu0
        %3220 = vmatprep.mubr.f32.mxu0 0.0
        %3221 = vmatmul.mubr.f32.gmra.mrb[0].mxu0 %v2935
        %v3222 = vpop.f32.mrb[0].mxu0
        %v3223 = vadd.f32 0.0, %v3222
        %v3224 = vpop.f32.mrb[0].mxu0
        %3225 = vmatprep.mubr.f32.mxu0 0.0
        %3226 = vmatmul.mubr.f32.gmra.mrb[0].mxu0 %v2937
        %v3227 = vpop.f32.mrb[0].mxu0
        %v3228 = vadd.f32 0.0, %v3227
        %v3229 = vpop.f32.mrb[0].mxu0
        %3230 = vmatprep.mubr.f32.mxu0 0.0
        %3231 = vmatmul.mubr.f32.gmra.mrb[0].mxu0 %v2939
        %v3232 = vpop.f32.mrb[0].mxu0
        %v3233 = vadd.f32 0.0, %v3232
        %v3234 = vpop.f32.mrb[0].mxu0
        %3235 = vmatprep.mubr.f32.mxu0 0.0
        %3236 = vmatmul.mubr.f32.gmra.mrb[0].mxu0 %v2941
        %v3237 = vpop.f32.mrb[0].mxu0
        %v3238 = vadd.f32 0.0, %v3237
        %v3239 = vpop.f32.mrb[0].mxu0
        %3240 = vmatprep.mubr.f32.mxu0 0.0
        %3241 = vmatmul.mubr.f32.gmra.mrb[0].mxu0 %v2943
        %v3242 = vpop.f32.mrb[0].mxu0
        %v3243 = vadd.f32 0.0, %v3242
        %v3244 = vpop.f32.mrb[0].mxu0
        %3245 = vmatprep.mubr.f32.mxu0 0.0
        %3246 = vmatmul.mubr.f32.gmra.mrb[0].mxu0 %v2945
        %v3247 = vpop.f32.mrb[0].mxu0
        %v3248 = vadd.f32 0.0, %v3247
        %v3249 = vpop.f32.mrb[0].mxu0
        %3250 = vmatprep.mubr.f32.mxu0 0.0
        %3251 = vmatmul.mubr.f32.gmra.mrb[0].mxu0 %v2947
        %v3252 = vpop.f32.mrb[0].mxu0
        %v3253 = vadd.f32 0.0, %v3252
        %v3254 = vpop.f32.mrb[0].mxu0
        %3255 = vmatprep.mubr.f32.mxu0 0.0
        %3256 = vmatmul.mubr.f32.gmra.mrb[0].mxu0 %v2949
        %v3257 = vpop.f32.mrb[0].mxu0
        %v3258 = vadd.f32 0.0, %v3257
        %v3259 = vpop.f32.mrb[0].mxu0
        %3260 = vmatprep.mubr.f32.mxu0 0.0
        %3261 = vmatmul.mubr.f32.gmra.mrb[0].mxu0 %v2951
        %v3262 = vpop.f32.mrb[0].mxu0
        %v3263 = vadd.f32 0.0, %v3262
        %v3264 = vpop.f32.mrb[0].mxu0
        %3265 = vmatprep.mubr.f32.mxu0 0.0
        %3266 = vmatmul.mubr.f32.gmra.mrb[0].mxu0 %v2953
        %v3267 = vpop.f32.mrb[0].mxu0
        %v3268 = vadd.f32 0.0, %v3267
        %v3269 = vpop.f32.mrb[0].mxu0
        %3270 = vmatprep.mubr.f32.mxu0 0.0
        %3271 = vmatmul.mubr.f32.gmra.mrb[0].mxu0 %v2955
        %v3272 = vpop.f32.mrb[0].mxu0
        %v3273 = vadd.f32 0.0, %v3272
        %v3274 = vpop.f32.mrb[0].mxu0
        %3275 = vmatprep.mubr.f32.mxu0 0.0
        %3276 = vmatmul.mubr.f32.gmra.mrb[0].mxu0 %v2957
        %v3277 = vpop.f32.mrb[0].mxu0
        %v3278 = vadd.f32 0.0, %v3277
        %v3279 = vpop.f32.mrb[0].mxu0
        %3280 = vmatprep.mubr.f32.mxu0 0.0
        %3281 = vmatmul.mubr.f32.gmra.mrb[0].mxu0 %v2959
        %v3282 = vpop.f32.mrb[0].mxu0
        %v3283 = vadd.f32 0.0, %v3282
        %v3284 = vpop.f32.mrb[0].mxu0
        %3285 = vmatprep.mubr.f32.mxu0 0.0
        %3286 = vmatmul.mubr.f32.gmra.mrb[0].mxu0 %v2961
        %v3287 = vpop.f32.mrb[0].mxu0
        %v3288 = vadd.f32 0.0, %v3287
        %v3289 = vpop.f32.mrb[0].mxu0
        %3290 = vmatprep.mubr.f32.mxu0 0.0
        %3291 = vmatmul.mubr.f32.gmra.mrb[0].mxu0 %v2963
        %v3292 = vpop.f32.mrb[0].mxu0
        %v3293 = vadd.f32 0.0, %v3292
        %v3294 = vpop.f32.mrb[0].mxu0
        %3295 = vmatprep.mubr.f32.mxu0 0.0
        %3296 = vmatmul.mubr.f32.gmra.mrb[0].mxu0 %v2965
        %v3297 = vpop.f32.mrb[0].mxu0
        %v3298 = vadd.f32 0.0, %v3297
        %v3299 = vpop.f32.mrb[0].mxu0
        %3300 = vmatprep.mubr.f32.mxu0 0.0
        %3301 = vmatmul.mubr.f32.gmra.mrb[0].mxu0 %v2967
        %v3302 = vpop.f32.mrb[0].mxu0
        %v3303 = vadd.f32 0.0, %v3302
        %v3304 = vpop.f32.mrb[0].mxu0
        %3305 = vmatprep.mubr.f32.mxu0 0.0
        %3306 = vmatmul.mubr.f32.gmra.mrb[0].mxu0 %v2969
        %v3307 = vpop.f32.mrb[0].mxu0
        %v3308 = vadd.f32 0.0, %v3307
        %v3309 = vpop.f32.mrb[0].mxu0
        %3310 = vmatprep.mubr.f32.mxu0 0.0
        %3311 = vmatmul.mubr.f32.gmra.mrb[0].mxu0 %v2971
        %v3312 = vpop.f32.mrb[0].mxu0
        %v3313 = vadd.f32 0.0, %v3312
        %v3314 = vpop.f32.mrb[0].mxu0
        %3315 = vmatprep.mubr.f32.mxu0 0.0
        %3316 = vmatmul.mubr.f32.gmra.mrb[0].mxu0 %v2973
        %v3317 = vpop.f32.mrb[0].mxu0
        %v3318 = vadd.f32 0.0, %v3317
        %v3319 = vpop.f32.mrb[0].mxu0
        %3320 = vmatprep.mubr.f32.mxu0 0.0
        %3321 = vmatmul.mubr.f32.gmra.mrb[0].mxu0 %v2975
        %v3322 = vpop.f32.mrb[0].mxu0
        %v3323 = vadd.f32 0.0, %v3322
        %v3324 = vpop.f32.mrb[0].mxu0
        %3325 = vmatprep.mubr.f32.mxu0 0.0
        %3326 = vmatmul.mubr.f32.gmra.mrb[0].mxu0 %v2977
        %v3327 = vpop.f32.mrb[0].mxu0
        %v3328 = vadd.f32 0.0, %v3327
        %v3329 = vpop.f32.mrb[0].mxu0
        %3330 = vmatprep.mubr.f32.mxu0 0.0
        %3331 = vmatmul.mubr.f32.gmra.mrb[0].mxu0 %v2979
        %v3332 = vpop.f32.mrb[0].mxu0
        %v3333 = vadd.f32 0.0, %v3332
        %v3334 = vpop.f32.mrb[0].mxu0
        %3335 = vmatprep.mubr.f32.mxu0 0.0
        %3336 = vmatmul.mubr.f32.gmra.mrb[0].mxu0 %v2981
        %v3337 = vpop.f32.mrb[0].mxu0
        %v3338 = vadd.f32 0.0, %v3337
        %v3339 = vpop.f32.mrb[0].mxu0
        %3340 = vmatprep.mubr.f32.mxu0 0.0
        %3341 = vmatmul.mubr.f32.gmra.mrb[0].mxu0 %v2983
        %v3342 = vpop.f32.mrb[0].mxu0
        %v3343 = vadd.f32 0.0, %v3342
        %v3344 = vpop.f32.mrb[0].mxu0
        %3345 = vmatprep.mubr.f32.mxu0 0.0
        %3346 = vmatmul.mubr.f32.gmra.mrb[0].mxu0 %v2985
        %v3347 = vpop.f32.mrb[0].mxu0
        %v3348 = vadd.f32 0.0, %v3347
        %v3349 = vpop.f32.mrb[0].mxu0
        %3350 = vmatprep.mubr.f32.mxu0 0.0
        %3351 = vmatmul.mubr.f32.gmra.mrb[0].mxu0 %v2987
        %v3352 = vpop.f32.mrb[0].mxu0
        %v3353 = vadd.f32 0.0, %v3352
        %v3354 = vpop.f32.mrb[0].mxu0
        %3355 = vmatprep.mubr.f32.mxu0 0.0
        %3356 = vmatmul.mubr.f32.gmra.mrb[0].mxu0 %v2989
        %v3357 = vpop.f32.mrb[0].mxu0
        %v3358 = vadd.f32 0.0, %v3357
        %v3359 = vpop.f32.mrb[0].mxu0
        %3360 = vmatprep.mubr.f32.mxu0 0.0
        %3361 = vmatmul.mubr.f32.gmra.mrb[0].mxu0 %v2991
        %v3362 = vpop.f32.mrb[0].mxu0
        %v3363 = vadd.f32 0.0, %v3362
        %v3364 = vpop.f32.mrb[0].mxu0
        %3365 = vmatprep.mubr.f32.mxu0 0.0
        %3366 = vmatmul.mubr.f32.gmra.mrb[0].mxu0 %v2993
        %v3367 = vpop.f32.mrb[0].mxu0
        %v3368 = vadd.f32 0.0, %v3367
        %v3369 = vpop.f32.mrb[0].mxu0
        %3370 = vmatprep.mubr.f32.mxu0 0.0
        %3371 = vmatmul.mubr.f32.gmra.mrb[0].mxu0 %v2995
        %v3372 = vpop.f32.mrb[0].mxu0
        %v3373 = vadd.f32 0.0, %v3372
        %v3374 = vpop.f32.mrb[0].mxu0
        %3375 = vmatprep.mubr.f32.mxu0 0.0
        %3376 = vmatmul.mubr.f32.gmra.mrb[0].mxu0 %v2997
        %v3377 = vpop.f32.mrb[0].mxu0
        %v3378 = vadd.f32 0.0, %v3377
        %v3379 = vpop.f32.mrb[0].mxu0
        %3380 = vmatprep.mubr.f32.mxu0 0.0
        %3381 = vmatmul.mubr.f32.gmra.mrb[0].mxu0 %v2999
        %v3382 = vpop.f32.mrb[0].mxu0
        %v3383 = vadd.f32 0.0, %v3382
        %v3384 = vpop.f32.mrb[0].mxu0
        %3385 = vmatprep.mubr.f32.mxu0 0.0
        %3386 = vmatmul.mubr.f32.gmra.mrb[0].mxu0 %v3001
        %v3387 = vpop.f32.mrb[0].mxu0
        %v3388 = vadd.f32 0.0, %v3387
        %v3389 = vpop.f32.mrb[0].mxu0
        %3390 = vmatprep.mubr.f32.mxu0 0.0
        %3391 = vmatmul.mubr.f32.gmra.mrb[0].mxu0 %v3003
        %v3392 = vpop.f32.mrb[0].mxu0
        %v3393 = vadd.f32 0.0, %v3392
        %v3394 = vpop.f32.mrb[0].mxu0
        %3395 = vmatprep.mubr.f32.mxu0 0.0
        %3396 = vmatmul.mubr.f32.gmra.mrb[0].mxu0 %v3005
        %v3397 = vpop.f32.mrb[0].mxu0
        %v3398 = vadd.f32 0.0, %v3397
        %v3399 = vpop.f32.mrb[0].mxu0
        %3400 = vmatprep.mubr.f32.mxu0 0.0
        %3401 = vmatmul.mubr.f32.gmra.mrb[0].mxu0 %v3007
        %v3402 = vpop.f32.mrb[0].mxu0
        %v3403 = vadd.f32 0.0, %v3402
        %v3404 = vpop.f32.mrb[0].mxu0
        %3405 = vmatprep.mubr.f32.mxu0 0.0
        %3406 = vmatmul.mubr.f32.gmra.mrb[0].mxu0 %v3009
        %v3407 = vpop.f32.mrb[0].mxu0
        %v3408 = vadd.f32 0.0, %v3407
        %v3409 = vpop.f32.mrb[0].mxu0
        %3410 = vmatprep.mubr.f32.mxu0 0.0
        %3411 = vmatmul.mubr.f32.gmra.mrb[0].mxu0 %v3011
        %v3412 = vpop.f32.mrb[0].mxu0
        %v3413 = vadd.f32 0.0, %v3412
        %v3414 = vpop.f32.mrb[0].mxu0
        %3415 = vmatprep.mubr.f32.mxu0 0.0
        %3416 = vmatmul.mubr.f32.gmra.mrb[0].mxu0 %v3013
        %v3417 = vpop.f32.mrb[0].mxu0
        %v3418 = vadd.f32 0.0, %v3417
        %v3419 = vpop.f32.mrb[0].mxu0
        %3420 = vmatprep.mubr.f32.mxu0 0.0
        %3421 = vmatmul.mubr.f32.gmra.mrb[0].mxu0 %v3015
        %v3422 = vpop.f32.mrb[0].mxu0
        %v3423 = vadd.f32 0.0, %v3422
        %v3424 = vpop.f32.mrb[0].mxu0
        %3425 = vmatprep.mubr.f32.mxu0 0.0
        %3426 = vmatmul.mubr.f32.gmra.mrb[0].mxu0 %v3017
        %v3427 = vpop.f32.mrb[0].mxu0
        %v3428 = vadd.f32 0.0, %v3427
        %v3429 = vpop.f32.mrb[0].mxu0
        %3430 = vmatprep.mubr.f32.mxu0 0.0
        %3431 = vmatmul.mubr.f32.gmra.mrb[0].mxu0 %v3019
        %v3432 = vpop.f32.mrb[0].mxu0
        %v3433 = vadd.f32 0.0, %v3432
        %v3434 = vpop.f32.mrb[0].mxu0
        %3435 = vmatprep.mubr.f32.mxu0 0.0
        %3436 = vmatmul.mubr.f32.gmra.mrb[0].mxu0 %v3021
        %v3437 = vpop.f32.mrb[0].mxu0
        %v3438 = vadd.f32 0.0, %v3437
        %v3439 = vpop.f32.mrb[0].mxu0
        %3440 = vmatprep.mubr.f32.mxu0 0.0
        %3441 = vmatmul.mubr.f32.gmra.mrb[0].mxu0 %v3023
        %v3442 = vpop.f32.mrb[0].mxu0
        %v3443 = vadd.f32 0.0, %v3442
        %v3444 = vpop.f32.mrb[0].mxu0
        %3445 = vmatprep.mubr.f32.mxu0 0.0
        %3446 = vmatmul.mubr.f32.gmra.mrb[0].mxu0 %v3025
        %v3447 = vpop.f32.mrb[0].mxu0
        %v3448 = vadd.f32 0.0, %v3447
        %v3449 = vpop.f32.mrb[0].mxu0
        %3450 = vmatprep.mubr.f32.mxu0 0.0
        %3451 = vmatmul.mubr.f32.gmra.mrb[0].mxu0 %v3027
        %v3452 = vpop.f32.mrb[0].mxu0
        %v3453 = vadd.f32 0.0, %v3452
        %v3454 = vpop.f32.mrb[0].mxu0
        %3455 = vdwg.mxu0
        %v3456 = vadd.f32 %v2640, %v3098
        %v3457 = vadd.f32 %v2641, %v3103
        %v3458 = vadd.f32 %v2642, %v3108
        %v3459 = vadd.f32 %v2643, %v3113
        %v3460 = vadd.f32 %v2644, %v3118
        %v3461 = vadd.f32 %v2645, %v3123
        %v3462 = vadd.f32 %v2646, %v3128
        %v3463 = vadd.f32 %v2647, %v3133
        %v3464 = vadd.f32 %v2648, %v3138
        %v3465 = vadd.f32 %v2649, %v3143
        %v3466 = vadd.f32 %v2650, %v3148
        %v3467 = vadd.f32 %v2651, %v3153
        %v3468 = vadd.f32 %v2652, %v3158
        %v3469 = vadd.f32 %v2653, %v3163
        %v3470 = vadd.f32 %v2654, %v3168
        %v3471 = vadd.f32 %v2655, %v3173
        %v3472 = vadd.f32 %v2656, %v3178
        %v3473 = vadd.f32 %v2657, %v3183
        %v3474 = vadd.f32 %v2658, %v3188
        %v3475 = vadd.f32 %v2659, %v3193
        %v3476 = vadd.f32 %v2660, %v3198
        %v3477 = vadd.f32 %v2661, %v3203
        %v3478 = vadd.f32 %v2662, %v3208
        %v3479 = vadd.f32 %v2663, %v3213
        %v3480 = vadd.f32 %v2664, %v3218
        %v3481 = vadd.f32 %v2665, %v3223
        %v3482 = vadd.f32 %v2666, %v3228
        %v3483 = vadd.f32 %v2667, %v3233
        %v3484 = vadd.f32 %v2668, %v3238
        %v3485 = vadd.f32 %v2669, %v3243
        %v3486 = vadd.f32 %v2670, %v3248
        %v3487 = vadd.f32 %v2671, %v3253
        %v3488 = vadd.f32 %v2672, %v3258
        %v3489 = vadd.f32 %v2673, %v3263
        %v3490 = vadd.f32 %v2674, %v3268
        %v3491 = vadd.f32 %v2675, %v3273
        %v3492 = vadd.f32 %v2676, %v3278
        %v3493 = vadd.f32 %v2677, %v3283
        %v3494 = vadd.f32 %v2678, %v3288
        %v3495 = vadd.f32 %v2679, %v3293
        %v3496 = vadd.f32 %v2680, %v3298
        %v3497 = vadd.f32 %v2681, %v3303
        %v3498 = vadd.f32 %v2682, %v3308
        %v3499 = vadd.f32 %v2683, %v3313
        %v3500 = vadd.f32 %v2684, %v3318
        %v3501 = vadd.f32 %v2685, %v3323
        %v3502 = vadd.f32 %v2686, %v3328
        %v3503 = vadd.f32 %v2687, %v3333
        %v3504 = vadd.f32 %v2688, %v3338
        %v3505 = vadd.f32 %v2689, %v3343
        %v3506 = vadd.f32 %v2690, %v3348
        %v3507 = vadd.f32 %v2691, %v3353
        %v3508 = vadd.f32 %v2692, %v3358
        %v3509 = vadd.f32 %v2693, %v3363
        %v3510 = vadd.f32 %v2694, %v3368
        %v3511 = vadd.f32 %v2695, %v3373
        %v3512 = vadd.f32 %v2696, %v3378
        %v3513 = vadd.f32 %v2697, %v3383
        %v3514 = vadd.f32 %v2698, %v3388
        %v3515 = vadd.f32 %v2699, %v3393
        %v3516 = vadd.f32 %v2700, %v3398
        %v3517 = vadd.f32 %v2701, %v3403
        %v3518 = vadd.f32 %v2702, %v3408
        %v3519 = vadd.f32 %v2703, %v3413
        %v3520 = vadd.f32 %v2704, %v3418
        %v3521 = vadd.f32 %v2705, %v3423
        %v3522 = vadd.f32 %v2706, %v3428
        %v3523 = vadd.f32 %v2707, %v3433
        %v3524 = vadd.f32 %v2708, %v3438
        %v3525 = vadd.f32 %v2709, %v3443
        %v3526 = vadd.f32 %v2710, %v3448
        %v3527 = vadd.f32 %v2711, %v3453
        %vm3528 = vcmask 1043456
        %v3529 = vrot.slane %v384, 4
        %v3530 = vrot.slane %v385, 4
        %v3531 = vsel %vm3528, %v3529, %v3530
        %v3532 = vrot.slane %v386, 4
        %v3533 = vsel %vm3528, %v3530, %v3532
        %v3534 = vrot.slane %v387, 4
        %v3535 = vsel %vm3528, %v3532, %v3534
        %v3536 = vrot.slane %v388, 4
        %v3537 = vrot.slane %v389, 4
        %v3538 = vsel %vm3528, %v3536, %v3537
        %v3539 = vrot.slane %v390, 4
        %v3540 = vsel %vm3528, %v3537, %v3539
        %v3541 = vrot.slane %v391, 4
        %v3542 = vsel %vm3528, %v3539, %v3541
        %v3543 = vrot.slane %v392, 4
        %v3544 = vrot.slane %v393, 4
        %v3545 = vsel %vm3528, %v3543, %v3544
        %v3546 = vrot.slane %v394, 4
        %v3547 = vsel %vm3528, %v3544, %v3546
        %v3548 = vrot.slane %v395, 4
        %v3549 = vsel %vm3528, %v3546, %v3548
        %v3550 = vrot.slane %v396, 4
        %v3551 = vrot.slane %v397, 4
        %v3552 = vsel %vm3528, %v3550, %v3551
        %v3553 = vrot.slane %v398, 4
        %v3554 = vsel %vm3528, %v3551, %v3553
        %v3555 = vrot.slane %v399, 4
        %v3556 = vsel %vm3528, %v3553, %v3555
        %v3557 = vrot.slane %v400, 4
        %v3558 = vrot.slane %v401, 4
        %v3559 = vsel %vm3528, %v3557, %v3558
        %v3560 = vrot.slane %v402, 4
        %v3561 = vsel %vm3528, %v3558, %v3560
        %v3562 = vrot.slane %v403, 4
        %v3563 = vsel %vm3528, %v3560, %v3562
        %v3564 = vrot.slane %v404, 4
        %v3565 = vrot.slane %v405, 4
        %v3566 = vsel %vm3528, %v3564, %v3565
        %v3567 = vrot.slane %v406, 4
        %v3568 = vsel %vm3528, %v3565, %v3567
        %v3569 = vrot.slane %v407, 4
        %v3570 = vsel %vm3528, %v3567, %v3569
        %v3571 = vrot.slane %v408, 4
        %v3572 = vrot.slane %v409, 4
        %v3573 = vsel %vm3528, %v3571, %v3572
        %v3574 = vrot.slane %v410, 4
        %v3575 = vsel %vm3528, %v3572, %v3574
        %v3576 = vrot.slane %v411, 4
        %v3577 = vsel %vm3528, %v3574, %v3576
        %v3578 = vrot.slane %v412, 4
        %v3579 = vrot.slane %v413, 4
        %v3580 = vsel %vm3528, %v3578, %v3579
        %v3581 = vrot.slane %v414, 4
        %v3582 = vsel %vm3528, %v3579, %v3581
        %v3583 = vrot.slane %v415, 4
        %v3584 = vsel %vm3528, %v3581, %v3583
        %v3585 = vrot.slane %v416, 4
        %v3586 = vrot.slane %v417, 4
        %v3587 = vsel %vm3528, %v3585, %v3586
        %v3588 = vrot.slane %v418, 4
        %v3589 = vsel %vm3528, %v3586, %v3588
        %v3590 = vrot.slane %v419, 4
        %v3591 = vsel %vm3528, %v3588, %v3590
        %v3592 = vrot.slane %v420, 4
        %v3593 = vrot.slane %v421, 4
        %v3594 = vsel %vm3528, %v3592, %v3593
        %v3595 = vrot.slane %v422, 4
        %v3596 = vsel %vm3528, %v3593, %v3595
        %v3597 = vrot.slane %v423, 4
        %v3598 = vsel %vm3528, %v3595, %v3597
        %v3599 = vrot.slane %v424, 4
        %v3600 = vrot.slane %v425, 4
        %v3601 = vsel %vm3528, %v3599, %v3600
        %v3602 = vrot.slane %v426, 4
        %v3603 = vsel %vm3528, %v3600, %v3602
        %v3604 = vrot.slane %v427, 4
        %v3605 = vsel %vm3528, %v3602, %v3604
        %v3606 = vrot.slane %v428, 4
        %v3607 = vrot.slane %v429, 4
        %v3608 = vsel %vm3528, %v3606, %v3607
        %v3609 = vrot.slane %v430, 4
        %v3610 = vsel %vm3528, %v3607, %v3609
        %v3611 = vrot.slane %v431, 4
        %v3612 = vsel %vm3528, %v3609, %v3611
        %v3613 = vrot.slane %v432, 4
        %v3614 = vrot.slane %v433, 4
        %v3615 = vsel %vm3528, %v3613, %v3614
        %v3616 = vrot.slane %v434, 4
        %v3617 = vsel %vm3528, %v3614, %v3616
        %v3618 = vrot.slane %v435, 4
        %v3619 = vsel %vm3528, %v3616, %v3618
        %v3620 = vrot.slane %v436, 4
        %v3621 = vrot.slane %v437, 4
        %v3622 = vsel %vm3528, %v3620, %v3621
        %v3623 = vrot.slane %v438, 4
        %v3624 = vsel %vm3528, %v3621, %v3623
        %v3625 = vrot.slane %v439, 4
        %v3626 = vsel %vm3528, %v3623, %v3625
        %v3627 = vrot.slane %v440, 4
        %v3628 = vrot.slane %v441, 4
        %v3629 = vsel %vm3528, %v3627, %v3628
        %v3630 = vrot.slane %v442, 4
        %v3631 = vsel %vm3528, %v3628, %v3630
        %v3632 = vrot.slane %v443, 4
        %v3633 = vsel %vm3528, %v3630, %v3632
        %v3634 = vrot.slane %v444, 4
        %v3635 = vrot.slane %v445, 4
        %v3636 = vsel %vm3528, %v3634, %v3635
        %v3637 = vrot.slane %v446, 4
        %v3638 = vsel %vm3528, %v3635, %v3637
        %v3639 = vrot.slane %v447, 4
        %v3640 = vsel %vm3528, %v3637, %v3639
        %v3641 = vrot.slane %v448, 4
        %v3642 = vrot.slane %v449, 4
        %v3643 = vsel %vm3528, %v3641, %v3642
        %v3644 = vrot.slane %v450, 4
        %v3645 = vsel %vm3528, %v3642, %v3644
        %v3646 = vrot.slane %v451, 4
        %v3647 = vsel %vm3528, %v3644, %v3646
        %v3648 = vrot.slane %v452, 4
        %v3649 = vrot.slane %v453, 4
        %v3650 = vsel %vm3528, %v3648, %v3649
        %v3651 = vrot.slane %v454, 4
        %v3652 = vsel %vm3528, %v3649, %v3651
        %v3653 = vrot.slane %v455, 4
        %v3654 = vsel %vm3528, %v3651, %v3653
        %v3655 = vrot.slane %v456, 4
        %v3656 = vrot.slane %v457, 4
        %v3657 = vsel %vm3528, %v3655, %v3656
        %v3658 = vrot.slane %v458, 4
        %v3659 = vsel %vm3528, %v3656, %v3658
        %v3660 = vrot.slane %v459, 4
        %v3661 = vsel %vm3528, %v3658, %v3660
        %v3662 = vrot.slane %v460, 4
        %v3663 = vrot.slane %v461, 4
        %v3664 = vsel %vm3528, %v3662, %v3663
        %v3665 = vrot.slane %v462, 4
        %v3666 = vsel %vm3528, %v3663, %v3665
        %v3667 = vrot.slane %v463, 4
        %v3668 = vsel %vm3528, %v3665, %v3667
        %v3669 = vrot.slane %v464, 4
        %v3670 = vrot.slane %v465, 4
        %v3671 = vsel %vm3528, %v3669, %v3670
        %v3672 = vrot.slane %v466, 4
        %v3673 = vsel %vm3528, %v3670, %v3672
        %v3674 = vrot.slane %v467, 4
        %v3675 = vsel %vm3528, %v3672, %v3674
        %v3676 = vrot.slane %v468, 4
        %v3677 = vrot.slane %v469, 4
        %v3678 = vsel %vm3528, %v3676, %v3677
        %v3679 = vrot.slane %v470, 4
        %v3680 = vsel %vm3528, %v3677, %v3679
        %v3681 = vrot.slane %v471, 4
        %v3682 = vsel %vm3528, %v3679, %v3681
        %v3683 = vrot.slane %v472, 4
        %v3684 = vrot.slane %v473, 4
        %v3685 = vsel %vm3528, %v3683, %v3684
        %v3686 = vrot.slane %v474, 4
        %v3687 = vsel %vm3528, %v3684, %v3686
        %v3688 = vrot.slane %v475, 4
        %v3689 = vsel %vm3528, %v3686, %v3688
        %v3690 = vrot.slane %v476, 4
        %v3691 = vrot.slane %v477, 4
        %v3692 = vsel %vm3528, %v3690, %v3691
        %v3693 = vrot.slane %v478, 4
        %v3694 = vsel %vm3528, %v3691, %v3693
        %v3695 = vrot.slane %v479, 4
        %v3696 = vsel %vm3528, %v3693, %v3695
        %v3698 = vrot.slane %v482, 4
        %v3699 = vrot.slane %v483, 4
        %v3700 = vsel %vm3528, %v3698, %v3699
        %v3701 = vsel %vm755, %v3531, 0
        %v3703 = vsel %vm755, %v3533, 0
        %v3705 = vsel %vm755, %v3535, 0
        %v3707 = vsel %vm755, %v3538, 0
        %v3709 = vsel %vm755, %v3540, 0
        %v3711 = vsel %vm755, %v3542, 0
        %v3713 = vsel %vm755, %v3545, 0
        %v3715 = vsel %vm755, %v3547, 0
        %v3717 = vsel %vm755, %v3549, 0
        %v3719 = vsel %vm755, %v3552, 0
        %v3721 = vsel %vm755, %v3554, 0
        %v3723 = vsel %vm755, %v3556, 0
        %v3725 = vsel %vm755, %v3559, 0
        %v3727 = vsel %vm755, %v3561, 0
        %v3729 = vsel %vm755, %v3563, 0
        %v3731 = vsel %vm755, %v3566, 0
        %v3733 = vsel %vm755, %v3568, 0
        %v3735 = vsel %vm755, %v3570, 0
        %v3737 = vsel %vm755, %v3573, 0
        %v3739 = vsel %vm755, %v3575, 0
        %v3741 = vsel %vm755, %v3577, 0
        %v3743 = vsel %vm755, %v3580, 0
        %v3745 = vsel %vm755, %v3582, 0
        %v3747 = vsel %vm755, %v3584, 0
        %v3749 = vsel %vm755, %v3587, 0
        %v3751 = vsel %vm755, %v3589, 0
        %v3753 = vsel %vm755, %v3591, 0
        %v3755 = vsel %vm755, %v3594, 0
        %v3757 = vsel %vm755, %v3596, 0
        %v3759 = vsel %vm755, %v3598, 0
        %v3761 = vsel %vm755, %v3601, 0
        %v3763 = vsel %vm755, %v3603, 0
        %v3765 = vsel %vm755, %v3605, 0
        %v3767 = vsel %vm755, %v3608, 0
        %v3769 = vsel %vm755, %v3610, 0
        %v3771 = vsel %vm755, %v3612, 0
        %v3773 = vsel %vm755, %v3615, 0
        %v3775 = vsel %vm755, %v3617, 0
        %v3777 = vsel %vm755, %v3619, 0
        %v3779 = vsel %vm755, %v3622, 0
        %v3781 = vsel %vm755, %v3624, 0
        %v3783 = vsel %vm755, %v3626, 0
        %v3785 = vsel %vm755, %v3629, 0
        %v3787 = vsel %vm755, %v3631, 0
        %v3789 = vsel %vm755, %v3633, 0
        %v3791 = vsel %vm755, %v3636, 0
        %v3793 = vsel %vm755, %v3638, 0
        %v3795 = vsel %vm755, %v3640, 0
        %v3797 = vsel %vm755, %v3643, 0
        %v3799 = vsel %vm755, %v3645, 0
        %v3801 = vsel %vm755, %v3647, 0
        %v3803 = vsel %vm755, %v3650, 0
        %v3805 = vsel %vm755, %v3652, 0
        %v3807 = vsel %vm755, %v3654, 0
        %v3809 = vsel %vm755, %v3657, 0
        %v3811 = vsel %vm755, %v3659, 0
        %v3813 = vsel %vm755, %v3661, 0
        %v3815 = vsel %vm755, %v3664, 0
        %v3817 = vsel %vm755, %v3666, 0
        %v3819 = vsel %vm755, %v3668, 0
        %v3821 = vsel %vm755, %v3671, 0
        %v3823 = vsel %vm755, %v3673, 0
        %v3825 = vsel %vm755, %v3675, 0
        %v3827 = vsel %vm755, %v3678, 0
        %v3829 = vsel %vm755, %v3680, 0
        %v3831 = vsel %vm755, %v3682, 0
        %v3833 = vsel %vm755, %v3685, 0
        %v3835 = vsel %vm755, %v3687, 0
        %v3837 = vsel %vm755, %v3689, 0
        %v3839 = vsel %vm755, %v3692, 0
        %v3841 = vsel %vm755, %v3694, 0
        %v3843 = vsel %vm755, %v3696, 0
        %v3845 = vsel %vm900, %v3700, 0
        %3847 = vmatprep.subr.mxu0 0.0
        %3848 = vmatpush1.msra.mxu0 %v3845
        %3849 = vmatprep.subr.mxu0 0.0
        %3850 = vmatpush1.msra.mxu0 0.0
        %3851 = vmatprep.subr.mxu0 0.0
        %3852 = vmatpush1.msra.mxu0 0.0
        %3853 = vmatprep.subr.mxu0 0.0
        %3854 = vmatpush1.msra.mxu0 0.0
        %3855 = vmatprep.subr.mxu0 0.0
        %3856 = vmatpush1.msra.mxu0 0.0
        %3857 = vmatprep.subr.mxu0 0.0
        %3858 = vmatpush1.msra.mxu0 0.0
        %3859 = vmatprep.subr.mxu0 0.0
        %3860 = vmatpush1.msra.mxu0 0.0
        %3861 = vmatprep.subr.mxu0 0.0
        %3862 = vmatpush1.msra.mxu0 0.0
        %3863 = vmatprep.subr.mxu0 0.0
        %3864 = vmatpush1.msra.mxu0 0.0
        %3865 = vmatprep.subr.mxu0 0.0
        %3866 = vmatpush1.msra.mxu0 0.0
        %3867 = vmatprep.subr.mxu0 0.0
        %3868 = vmatpush1.msra.mxu0 0.0
        %3869 = vmatprep.subr.mxu0 0.0
        %3870 = vmatpush1.msra.mxu0 0.0
        %3871 = vmatprep.subr.mxu0 0.0
        %3872 = vmatpush1.msra.mxu0 0.0
        %3873 = vmatprep.subr.mxu0 0.0
        %3874 = vmatpush1.msra.mxu0 0.0
        %3875 = vmatprep.subr.mxu0 0.0
        %3876 = vmatpush1.msra.mxu0 0.0
        %3877 = vmatprep.subr.mxu0 0.0
        %3878 = vmatpush1.msra.mxu0 0.0
        %3879 = vmatprep.subr.mxu0 0.0
        %3880 = vmatpush1.msra.mxu0 0.0
        %3881 = vmatprep.subr.mxu0 0.0
        %3882 = vmatpush1.msra.mxu0 0.0
        %3883 = vmatprep.subr.mxu0 0.0
        %3884 = vmatpush1.msra.mxu0 0.0
        %3885 = vmatprep.subr.mxu0 0.0
        %3886 = vmatpush1.msra.mxu0 0.0
        %3887 = vmatprep.subr.mxu0 0.0
        %3888 = vmatpush1.msra.mxu0 0.0
        %3889 = vmatprep.subr.mxu0 0.0
        %3890 = vmatpush1.msra.mxu0 0.0
        %3891 = vmatprep.subr.mxu0 0.0
        %3892 = vmatpush1.msra.mxu0 0.0
        %3893 = vmatprep.subr.mxu0 0.0
        %3894 = vmatpush1.msra.mxu0 0.0
        %3895 = vmatprep.subr.mxu0 0.0
        %3896 = vmatpush1.msra.mxu0 0.0
        %3897 = vmatprep.subr.mxu0 0.0
        %3898 = vmatpush1.msra.mxu0 0.0
        %3899 = vmatprep.subr.mxu0 0.0
        %3900 = vmatpush1.msra.mxu0 0.0
        %3901 = vmatprep.subr.mxu0 0.0
        %3902 = vmatpush1.msra.mxu0 0.0
        %3903 = vmatprep.subr.mxu0 0.0
        %3904 = vmatpush1.msra.mxu0 0.0
        %3905 = vmatprep.subr.mxu0 0.0
        %3906 = vmatpush1.msra.mxu0 0.0
        %3907 = vmatprep.subr.mxu0 0.0
        %3908 = vmatpush1.msra.mxu0 0.0
        %3909 = vmatprep.subr.mxu0 0.0
        %3910 = vmatpush1.msra.mxu0 0.0
        %3911 = vmatprep.mubr.f32.mxu0 0.0
        %3912 = vmatmul.mubr.f32.gmra.mrb[0].mxu0 %v3701
        %v3913 = vpop.f32.mrb[0].mxu0
        %v3914 = vadd.f32 0.0, %v3913
        %v3915 = vpop.f32.mrb[0].mxu0
        %3916 = vmatprep.mubr.f32.mxu0 0.0
        %3917 = vmatmul.mubr.f32.gmra.mrb[0].mxu0 %v3703
        %v3918 = vpop.f32.mrb[0].mxu0
        %v3919 = vadd.f32 0.0, %v3918
        %v3920 = vpop.f32.mrb[0].mxu0
        %3921 = vmatprep.mubr.f32.mxu0 0.0
        %3922 = vmatmul.mubr.f32.gmra.mrb[0].mxu0 %v3705
        %v3923 = vpop.f32.mrb[0].mxu0
        %v3924 = vadd.f32 0.0, %v3923
        %v3925 = vpop.f32.mrb[0].mxu0
        %3926 = vmatprep.mubr.f32.mxu0 0.0
        %3927 = vmatmul.mubr.f32.gmra.mrb[0].mxu0 %v3707
        %v3928 = vpop.f32.mrb[0].mxu0
        %v3929 = vadd.f32 0.0, %v3928
        %v3930 = vpop.f32.mrb[0].mxu0
        %3931 = vmatprep.mubr.f32.mxu0 0.0
        %3932 = vmatmul.mubr.f32.gmra.mrb[0].mxu0 %v3709
        %v3933 = vpop.f32.mrb[0].mxu0
        %v3934 = vadd.f32 0.0, %v3933
        %v3935 = vpop.f32.mrb[0].mxu0
        %3936 = vmatprep.mubr.f32.mxu0 0.0
        %3937 = vmatmul.mubr.f32.gmra.mrb[0].mxu0 %v3711
        %v3938 = vpop.f32.mrb[0].mxu0
        %v3939 = vadd.f32 0.0, %v3938
        %v3940 = vpop.f32.mrb[0].mxu0
        %3941 = vmatprep.mubr.f32.mxu0 0.0
        %3942 = vmatmul.mubr.f32.gmra.mrb[0].mxu0 %v3713
        %v3943 = vpop.f32.mrb[0].mxu0
        %v3944 = vadd.f32 0.0, %v3943
        %v3945 = vpop.f32.mrb[0].mxu0
        %3946 = vmatprep.mubr.f32.mxu0 0.0
        %3947 = vmatmul.mubr.f32.gmra.mrb[0].mxu0 %v3715
        %v3948 = vpop.f32.mrb[0].mxu0
        %v3949 = vadd.f32 0.0, %v3948
        %v3950 = vpop.f32.mrb[0].mxu0
        %3951 = vmatprep.mubr.f32.mxu0 0.0
        %3952 = vmatmul.mubr.f32.gmra.mrb[0].mxu0 %v3717
        %v3953 = vpop.f32.mrb[0].mxu0
        %v3954 = vadd.f32 0.0, %v3953
        %v3955 = vpop.f32.mrb[0].mxu0
        %3956 = vmatprep.mubr.f32.mxu0 0.0
        %3957 = vmatmul.mubr.f32.gmra.mrb[0].mxu0 %v3719
        %v3958 = vpop.f32.mrb[0].mxu0
        %v3959 = vadd.f32 0.0, %v3958
        %v3960 = vpop.f32.mrb[0].mxu0
        %3961 = vmatprep.mubr.f32.mxu0 0.0
        %3962 = vmatmul.mubr.f32.gmra.mrb[0].mxu0 %v3721
        %v3963 = vpop.f32.mrb[0].mxu0
        %v3964 = vadd.f32 0.0, %v3963
        %v3965 = vpop.f32.mrb[0].mxu0
        %3966 = vmatprep.mubr.f32.mxu0 0.0
        %3967 = vmatmul.mubr.f32.gmra.mrb[0].mxu0 %v3723
        %v3968 = vpop.f32.mrb[0].mxu0
        %v3969 = vadd.f32 0.0, %v3968
        %v3970 = vpop.f32.mrb[0].mxu0
        %3971 = vmatprep.mubr.f32.mxu0 0.0
        %3972 = vmatmul.mubr.f32.gmra.mrb[0].mxu0 %v3725
        %v3973 = vpop.f32.mrb[0].mxu0
        %v3974 = vadd.f32 0.0, %v3973
        %v3975 = vpop.f32.mrb[0].mxu0
        %3976 = vmatprep.mubr.f32.mxu0 0.0
        %3977 = vmatmul.mubr.f32.gmra.mrb[0].mxu0 %v3727
        %v3978 = vpop.f32.mrb[0].mxu0
        %v3979 = vadd.f32 0.0, %v3978
        %v3980 = vpop.f32.mrb[0].mxu0
        %3981 = vmatprep.mubr.f32.mxu0 0.0
        %3982 = vmatmul.mubr.f32.gmra.mrb[0].mxu0 %v3729
        %v3983 = vpop.f32.mrb[0].mxu0
        %v3984 = vadd.f32 0.0, %v3983
        %v3985 = vpop.f32.mrb[0].mxu0
        %3986 = vmatprep.mubr.f32.mxu0 0.0
        %3987 = vmatmul.mubr.f32.gmra.mrb[0].mxu0 %v3731
        %v3988 = vpop.f32.mrb[0].mxu0
        %v3989 = vadd.f32 0.0, %v3988
        %v3990 = vpop.f32.mrb[0].mxu0
        %3991 = vmatprep.mubr.f32.mxu0 0.0
        %3992 = vmatmul.mubr.f32.gmra.mrb[0].mxu0 %v3733
        %v3993 = vpop.f32.mrb[0].mxu0
        %v3994 = vadd.f32 0.0, %v3993
        %v3995 = vpop.f32.mrb[0].mxu0
        %3996 = vmatprep.mubr.f32.mxu0 0.0
        %3997 = vmatmul.mubr.f32.gmra.mrb[0].mxu0 %v3735
        %v3998 = vpop.f32.mrb[0].mxu0
        %v3999 = vadd.f32 0.0, %v3998
        %v4000 = vpop.f32.mrb[0].mxu0
        %4001 = vmatprep.mubr.f32.mxu0 0.0
        %4002 = vmatmul.mubr.f32.gmra.mrb[0].mxu0 %v3737
        %v4003 = vpop.f32.mrb[0].mxu0
        %v4004 = vadd.f32 0.0, %v4003
        %v4005 = vpop.f32.mrb[0].mxu0
        %4006 = vmatprep.mubr.f32.mxu0 0.0
        %4007 = vmatmul.mubr.f32.gmra.mrb[0].mxu0 %v3739
        %v4008 = vpop.f32.mrb[0].mxu0
        %v4009 = vadd.f32 0.0, %v4008
        %v4010 = vpop.f32.mrb[0].mxu0
        %4011 = vmatprep.mubr.f32.mxu0 0.0
        %4012 = vmatmul.mubr.f32.gmra.mrb[0].mxu0 %v3741
        %v4013 = vpop.f32.mrb[0].mxu0
        %v4014 = vadd.f32 0.0, %v4013
        %v4015 = vpop.f32.mrb[0].mxu0
        %4016 = vmatprep.mubr.f32.mxu0 0.0
        %4017 = vmatmul.mubr.f32.gmra.mrb[0].mxu0 %v3743
        %v4018 = vpop.f32.mrb[0].mxu0
        %v4019 = vadd.f32 0.0, %v4018
        %v4020 = vpop.f32.mrb[0].mxu0
        %4021 = vmatprep.mubr.f32.mxu0 0.0
        %4022 = vmatmul.mubr.f32.gmra.mrb[0].mxu0 %v3745
        %v4023 = vpop.f32.mrb[0].mxu0
        %v4024 = vadd.f32 0.0, %v4023
        %v4025 = vpop.f32.mrb[0].mxu0
        %4026 = vmatprep.mubr.f32.mxu0 0.0
        %4027 = vmatmul.mubr.f32.gmra.mrb[0].mxu0 %v3747
        %v4028 = vpop.f32.mrb[0].mxu0
        %v4029 = vadd.f32 0.0, %v4028
        %v4030 = vpop.f32.mrb[0].mxu0
        %4031 = vmatprep.mubr.f32.mxu0 0.0
        %4032 = vmatmul.mubr.f32.gmra.mrb[0].mxu0 %v3749
        %v4033 = vpop.f32.mrb[0].mxu0
        %v4034 = vadd.f32 0.0, %v4033
        %v4035 = vpop.f32.mrb[0].mxu0
        %4036 = vmatprep.mubr.f32.mxu0 0.0
        %4037 = vmatmul.mubr.f32.gmra.mrb[0].mxu0 %v3751
        %v4038 = vpop.f32.mrb[0].mxu0
        %v4039 = vadd.f32 0.0, %v4038
        %v4040 = vpop.f32.mrb[0].mxu0
        %4041 = vmatprep.mubr.f32.mxu0 0.0
        %4042 = vmatmul.mubr.f32.gmra.mrb[0].mxu0 %v3753
        %v4043 = vpop.f32.mrb[0].mxu0
        %v4044 = vadd.f32 0.0, %v4043
        %v4045 = vpop.f32.mrb[0].mxu0
        %4046 = vmatprep.mubr.f32.mxu0 0.0
        %4047 = vmatmul.mubr.f32.gmra.mrb[0].mxu0 %v3755
        %v4048 = vpop.f32.mrb[0].mxu0
        %v4049 = vadd.f32 0.0, %v4048
        %v4050 = vpop.f32.mrb[0].mxu0
        %4051 = vmatprep.mubr.f32.mxu0 0.0
        %4052 = vmatmul.mubr.f32.gmra.mrb[0].mxu0 %v3757
        %v4053 = vpop.f32.mrb[0].mxu0
        %v4054 = vadd.f32 0.0, %v4053
        %v4055 = vpop.f32.mrb[0].mxu0
        %4056 = vmatprep.mubr.f32.mxu0 0.0
        %4057 = vmatmul.mubr.f32.gmra.mrb[0].mxu0 %v3759
        %v4058 = vpop.f32.mrb[0].mxu0
        %v4059 = vadd.f32 0.0, %v4058
        %v4060 = vpop.f32.mrb[0].mxu0
        %4061 = vmatprep.mubr.f32.mxu0 0.0
        %4062 = vmatmul.mubr.f32.gmra.mrb[0].mxu0 %v3761
        %v4063 = vpop.f32.mrb[0].mxu0
        %v4064 = vadd.f32 0.0, %v4063
        %v4065 = vpop.f32.mrb[0].mxu0
        %4066 = vmatprep.mubr.f32.mxu0 0.0
        %4067 = vmatmul.mubr.f32.gmra.mrb[0].mxu0 %v3763
        %v4068 = vpop.f32.mrb[0].mxu0
        %v4069 = vadd.f32 0.0, %v4068
        %v4070 = vpop.f32.mrb[0].mxu0
        %4071 = vmatprep.mubr.f32.mxu0 0.0
        %4072 = vmatmul.mubr.f32.gmra.mrb[0].mxu0 %v3765
        %v4073 = vpop.f32.mrb[0].mxu0
        %v4074 = vadd.f32 0.0, %v4073
        %v4075 = vpop.f32.mrb[0].mxu0
        %4076 = vmatprep.mubr.f32.mxu0 0.0
        %4077 = vmatmul.mubr.f32.gmra.mrb[0].mxu0 %v3767
        %v4078 = vpop.f32.mrb[0].mxu0
        %v4079 = vadd.f32 0.0, %v4078
        %v4080 = vpop.f32.mrb[0].mxu0
        %4081 = vmatprep.mubr.f32.mxu0 0.0
        %4082 = vmatmul.mubr.f32.gmra.mrb[0].mxu0 %v3769
        %v4083 = vpop.f32.mrb[0].mxu0
        %v4084 = vadd.f32 0.0, %v4083
        %v4085 = vpop.f32.mrb[0].mxu0
        %4086 = vmatprep.mubr.f32.mxu0 0.0
        %4087 = vmatmul.mubr.f32.gmra.mrb[0].mxu0 %v3771
        %v4088 = vpop.f32.mrb[0].mxu0
        %v4089 = vadd.f32 0.0, %v4088
        %v4090 = vpop.f32.mrb[0].mxu0
        %4091 = vmatprep.mubr.f32.mxu0 0.0
        %4092 = vmatmul.mubr.f32.gmra.mrb[0].mxu0 %v3773
        %v4093 = vpop.f32.mrb[0].mxu0
        %v4094 = vadd.f32 0.0, %v4093
        %v4095 = vpop.f32.mrb[0].mxu0
        %4096 = vmatprep.mubr.f32.mxu0 0.0
        %4097 = vmatmul.mubr.f32.gmra.mrb[0].mxu0 %v3775
        %v4098 = vpop.f32.mrb[0].mxu0
        %v4099 = vadd.f32 0.0, %v4098
        %v4100 = vpop.f32.mrb[0].mxu0
        %4101 = vmatprep.mubr.f32.mxu0 0.0
        %4102 = vmatmul.mubr.f32.gmra.mrb[0].mxu0 %v3777
        %v4103 = vpop.f32.mrb[0].mxu0
        %v4104 = vadd.f32 0.0, %v4103
        %v4105 = vpop.f32.mrb[0].mxu0
        %4106 = vmatprep.mubr.f32.mxu0 0.0
        %4107 = vmatmul.mubr.f32.gmra.mrb[0].mxu0 %v3779
        %v4108 = vpop.f32.mrb[0].mxu0
        %v4109 = vadd.f32 0.0, %v4108
        %v4110 = vpop.f32.mrb[0].mxu0
        %4111 = vmatprep.mubr.f32.mxu0 0.0
        %4112 = vmatmul.mubr.f32.gmra.mrb[0].mxu0 %v3781
        %v4113 = vpop.f32.mrb[0].mxu0
        %v4114 = vadd.f32 0.0, %v4113
        %v4115 = vpop.f32.mrb[0].mxu0
        %4116 = vmatprep.mubr.f32.mxu0 0.0
        %4117 = vmatmul.mubr.f32.gmra.mrb[0].mxu0 %v3783
        %v4118 = vpop.f32.mrb[0].mxu0
        %v4119 = vadd.f32 0.0, %v4118
        %v4120 = vpop.f32.mrb[0].mxu0
        %4121 = vmatprep.mubr.f32.mxu0 0.0
        %4122 = vmatmul.mubr.f32.gmra.mrb[0].mxu0 %v3785
        %v4123 = vpop.f32.mrb[0].mxu0
        %v4124 = vadd.f32 0.0, %v4123
        %v4125 = vpop.f32.mrb[0].mxu0
        %4126 = vmatprep.mubr.f32.mxu0 0.0
        %4127 = vmatmul.mubr.f32.gmra.mrb[0].mxu0 %v3787
        %v4128 = vpop.f32.mrb[0].mxu0
        %v4129 = vadd.f32 0.0, %v4128
        %v4130 = vpop.f32.mrb[0].mxu0
        %4131 = vmatprep.mubr.f32.mxu0 0.0
        %4132 = vmatmul.mubr.f32.gmra.mrb[0].mxu0 %v3789
        %v4133 = vpop.f32.mrb[0].mxu0
        %v4134 = vadd.f32 0.0, %v4133
        %v4135 = vpop.f32.mrb[0].mxu0
        %4136 = vmatprep.mubr.f32.mxu0 0.0
        %4137 = vmatmul.mubr.f32.gmra.mrb[0].mxu0 %v3791
        %v4138 = vpop.f32.mrb[0].mxu0
        %v4139 = vadd.f32 0.0, %v4138
        %v4140 = vpop.f32.mrb[0].mxu0
        %4141 = vmatprep.mubr.f32.mxu0 0.0
        %4142 = vmatmul.mubr.f32.gmra.mrb[0].mxu0 %v3793
        %v4143 = vpop.f32.mrb[0].mxu0
        %v4144 = vadd.f32 0.0, %v4143
        %v4145 = vpop.f32.mrb[0].mxu0
        %4146 = vmatprep.mubr.f32.mxu0 0.0
        %4147 = vmatmul.mubr.f32.gmra.mrb[0].mxu0 %v3795
        %v4148 = vpop.f32.mrb[0].mxu0
        %v4149 = vadd.f32 0.0, %v4148
        %v4150 = vpop.f32.mrb[0].mxu0
        %4151 = vmatprep.mubr.f32.mxu0 0.0
        %4152 = vmatmul.mubr.f32.gmra.mrb[0].mxu0 %v3797
        %v4153 = vpop.f32.mrb[0].mxu0
        %v4154 = vadd.f32 0.0, %v4153
        %v4155 = vpop.f32.mrb[0].mxu0
        %4156 = vmatprep.mubr.f32.mxu0 0.0
        %4157 = vmatmul.mubr.f32.gmra.mrb[0].mxu0 %v3799
        %v4158 = vpop.f32.mrb[0].mxu0
        %v4159 = vadd.f32 0.0, %v4158
        %v4160 = vpop.f32.mrb[0].mxu0
        %4161 = vmatprep.mubr.f32.mxu0 0.0
        %4162 = vmatmul.mubr.f32.gmra.mrb[0].mxu0 %v3801
        %v4163 = vpop.f32.mrb[0].mxu0
        %v4164 = vadd.f32 0.0, %v4163
        %v4165 = vpop.f32.mrb[0].mxu0
        %4166 = vmatprep.mubr.f32.mxu0 0.0
        %4167 = vmatmul.mubr.f32.gmra.mrb[0].mxu0 %v3803
        %v4168 = vpop.f32.mrb[0].mxu0
        %v4169 = vadd.f32 0.0, %v4168
        %v4170 = vpop.f32.mrb[0].mxu0
        %4171 = vmatprep.mubr.f32.mxu0 0.0
        %4172 = vmatmul.mubr.f32.gmra.mrb[0].mxu0 %v3805
        %v4173 = vpop.f32.mrb[0].mxu0
        %v4174 = vadd.f32 0.0, %v4173
        %v4175 = vpop.f32.mrb[0].mxu0
        %4176 = vmatprep.mubr.f32.mxu0 0.0
        %4177 = vmatmul.mubr.f32.gmra.mrb[0].mxu0 %v3807
        %v4178 = vpop.f32.mrb[0].mxu0
        %v4179 = vadd.f32 0.0, %v4178
        %v4180 = vpop.f32.mrb[0].mxu0
        %4181 = vmatprep.mubr.f32.mxu0 0.0
        %4182 = vmatmul.mubr.f32.gmra.mrb[0].mxu0 %v3809
        %v4183 = vpop.f32.mrb[0].mxu0
        %v4184 = vadd.f32 0.0, %v4183
        %v4185 = vpop.f32.mrb[0].mxu0
        %4186 = vmatprep.mubr.f32.mxu0 0.0
        %4187 = vmatmul.mubr.f32.gmra.mrb[0].mxu0 %v3811
        %v4188 = vpop.f32.mrb[0].mxu0
        %v4189 = vadd.f32 0.0, %v4188
        %v4190 = vpop.f32.mrb[0].mxu0
        %4191 = vmatprep.mubr.f32.mxu0 0.0
        %4192 = vmatmul.mubr.f32.gmra.mrb[0].mxu0 %v3813
        %v4193 = vpop.f32.mrb[0].mxu0
        %v4194 = vadd.f32 0.0, %v4193
        %v4195 = vpop.f32.mrb[0].mxu0
        %4196 = vmatprep.mubr.f32.mxu0 0.0
        %4197 = vmatmul.mubr.f32.gmra.mrb[0].mxu0 %v3815
        %v4198 = vpop.f32.mrb[0].mxu0
        %v4199 = vadd.f32 0.0, %v4198
        %v4200 = vpop.f32.mrb[0].mxu0
        %4201 = vmatprep.mubr.f32.mxu0 0.0
        %4202 = vmatmul.mubr.f32.gmra.mrb[0].mxu0 %v3817
        %v4203 = vpop.f32.mrb[0].mxu0
        %v4204 = vadd.f32 0.0, %v4203
        %v4205 = vpop.f32.mrb[0].mxu0
        %4206 = vmatprep.mubr.f32.mxu0 0.0
        %4207 = vmatmul.mubr.f32.gmra.mrb[0].mxu0 %v3819
        %v4208 = vpop.f32.mrb[0].mxu0
        %v4209 = vadd.f32 0.0, %v4208
        %v4210 = vpop.f32.mrb[0].mxu0
        %4211 = vmatprep.mubr.f32.mxu0 0.0
        %4212 = vmatmul.mubr.f32.gmra.mrb[0].mxu0 %v3821
        %v4213 = vpop.f32.mrb[0].mxu0
        %v4214 = vadd.f32 0.0, %v4213
        %v4215 = vpop.f32.mrb[0].mxu0
        %4216 = vmatprep.mubr.f32.mxu0 0.0
        %4217 = vmatmul.mubr.f32.gmra.mrb[0].mxu0 %v3823
        %v4218 = vpop.f32.mrb[0].mxu0
        %v4219 = vadd.f32 0.0, %v4218
        %v4220 = vpop.f32.mrb[0].mxu0
        %4221 = vmatprep.mubr.f32.mxu0 0.0
        %4222 = vmatmul.mubr.f32.gmra.mrb[0].mxu0 %v3825
        %v4223 = vpop.f32.mrb[0].mxu0
        %v4224 = vadd.f32 0.0, %v4223
        %v4225 = vpop.f32.mrb[0].mxu0
        %4226 = vmatprep.mubr.f32.mxu0 0.0
        %4227 = vmatmul.mubr.f32.gmra.mrb[0].mxu0 %v3827
        %v4228 = vpop.f32.mrb[0].mxu0
        %v4229 = vadd.f32 0.0, %v4228
        %v4230 = vpop.f32.mrb[0].mxu0
        %4231 = vmatprep.mubr.f32.mxu0 0.0
        %4232 = vmatmul.mubr.f32.gmra.mrb[0].mxu0 %v3829
        %v4233 = vpop.f32.mrb[0].mxu0
        %v4234 = vadd.f32 0.0, %v4233
        %v4235 = vpop.f32.mrb[0].mxu0
        %4236 = vmatprep.mubr.f32.mxu0 0.0
        %4237 = vmatmul.mubr.f32.gmra.mrb[0].mxu0 %v3831
        %v4238 = vpop.f32.mrb[0].mxu0
        %v4239 = vadd.f32 0.0, %v4238
        %v4240 = vpop.f32.mrb[0].mxu0
        %4241 = vmatprep.mubr.f32.mxu0 0.0
        %4242 = vmatmul.mubr.f32.gmra.mrb[0].mxu0 %v3833
        %v4243 = vpop.f32.mrb[0].mxu0
        %v4244 = vadd.f32 0.0, %v4243
        %v4245 = vpop.f32.mrb[0].mxu0
        %4246 = vmatprep.mubr.f32.mxu0 0.0
        %4247 = vmatmul.mubr.f32.gmra.mrb[0].mxu0 %v3835
        %v4248 = vpop.f32.mrb[0].mxu0
        %v4249 = vadd.f32 0.0, %v4248
        %v4250 = vpop.f32.mrb[0].mxu0
        %4251 = vmatprep.mubr.f32.mxu0 0.0
        %4252 = vmatmul.mubr.f32.gmra.mrb[0].mxu0 %v3837
        %v4253 = vpop.f32.mrb[0].mxu0
        %v4254 = vadd.f32 0.0, %v4253
        %v4255 = vpop.f32.mrb[0].mxu0
        %4256 = vmatprep.mubr.f32.mxu0 0.0
        %4257 = vmatmul.mubr.f32.gmra.mrb[0].mxu0 %v3839
        %v4258 = vpop.f32.mrb[0].mxu0
        %v4259 = vadd.f32 0.0, %v4258
        %v4260 = vpop.f32.mrb[0].mxu0
        %4261 = vmatprep.mubr.f32.mxu0 0.0
        %4262 = vmatmul.mubr.f32.gmra.mrb[0].mxu0 %v3841
        %v4263 = vpop.f32.mrb[0].mxu0
        %v4264 = vadd.f32 0.0, %v4263
        %v4265 = vpop.f32.mrb[0].mxu0
        %4266 = vmatprep.mubr.f32.mxu0 0.0
        %4267 = vmatmul.mubr.f32.gmra.mrb[0].mxu0 %v3843
        %v4268 = vpop.f32.mrb[0].mxu0
        %v4269 = vadd.f32 0.0, %v4268
        %v4270 = vpop.f32.mrb[0].mxu0
        %4271 = vdwg.mxu0
        %v4272 = vadd.f32 %v3456, %v3914
        %v4273 = vadd.f32 %v3457, %v3919
        %v4274 = vadd.f32 %v3458, %v3924
        %v4275 = vadd.f32 %v3459, %v3929
        %v4276 = vadd.f32 %v3460, %v3934
        %v4277 = vadd.f32 %v3461, %v3939
        %v4278 = vadd.f32 %v3462, %v3944
        %v4279 = vadd.f32 %v3463, %v3949
        %v4280 = vadd.f32 %v3464, %v3954
        %v4281 = vadd.f32 %v3465, %v3959
        %v4282 = vadd.f32 %v3466, %v3964
        %v4283 = vadd.f32 %v3467, %v3969
        %v4284 = vadd.f32 %v3468, %v3974
        %v4285 = vadd.f32 %v3469, %v3979
        %v4286 = vadd.f32 %v3470, %v3984
        %v4287 = vadd.f32 %v3471, %v3989
        %v4288 = vadd.f32 %v3472, %v3994
        %v4289 = vadd.f32 %v3473, %v3999
        %v4290 = vadd.f32 %v3474, %v4004
        %v4291 = vadd.f32 %v3475, %v4009
        %v4292 = vadd.f32 %v3476, %v4014
        %v4293 = vadd.f32 %v3477, %v4019
        %v4294 = vadd.f32 %v3478, %v4024
        %v4295 = vadd.f32 %v3479, %v4029
        %v4296 = vadd.f32 %v3480, %v4034
        %v4297 = vadd.f32 %v3481, %v4039
        %v4298 = vadd.f32 %v3482, %v4044
        %v4299 = vadd.f32 %v3483, %v4049
        %v4300 = vadd.f32 %v3484, %v4054
        %v4301 = vadd.f32 %v3485, %v4059
        %v4302 = vadd.f32 %v3486, %v4064
        %v4303 = vadd.f32 %v3487, %v4069
        %v4304 = vadd.f32 %v3488, %v4074
        %v4305 = vadd.f32 %v3489, %v4079
        %v4306 = vadd.f32 %v3490, %v4084
        %v4307 = vadd.f32 %v3491, %v4089
        %v4308 = vadd.f32 %v3492, %v4094
        %v4309 = vadd.f32 %v3493, %v4099
        %v4310 = vadd.f32 %v3494, %v4104
        %v4311 = vadd.f32 %v3495, %v4109
        %v4312 = vadd.f32 %v3496, %v4114
        %v4313 = vadd.f32 %v3497, %v4119
        %v4314 = vadd.f32 %v3498, %v4124
        %v4315 = vadd.f32 %v3499, %v4129
        %v4316 = vadd.f32 %v3500, %v4134
        %v4317 = vadd.f32 %v3501, %v4139
        %v4318 = vadd.f32 %v3502, %v4144
        %v4319 = vadd.f32 %v3503, %v4149
        %v4320 = vadd.f32 %v3504, %v4154
        %v4321 = vadd.f32 %v3505, %v4159
        %v4322 = vadd.f32 %v3506, %v4164
        %v4323 = vadd.f32 %v3507, %v4169
        %v4324 = vadd.f32 %v3508, %v4174
        %v4325 = vadd.f32 %v3509, %v4179
        %v4326 = vadd.f32 %v3510, %v4184
        %v4327 = vadd.f32 %v3511, %v4189
        %v4328 = vadd.f32 %v3512, %v4194
        %v4329 = vadd.f32 %v3513, %v4199
        %v4330 = vadd.f32 %v3514, %v4204
        %v4331 = vadd.f32 %v3515, %v4209
        %v4332 = vadd.f32 %v3516, %v4214
        %v4333 = vadd.f32 %v3517, %v4219
        %v4334 = vadd.f32 %v3518, %v4224
        %v4335 = vadd.f32 %v3519, %v4229
        %v4336 = vadd.f32 %v3520, %v4234
        %v4337 = vadd.f32 %v3521, %v4239
        %v4338 = vadd.f32 %v3522, %v4244
        %v4339 = vadd.f32 %v3523, %v4249
        %v4340 = vadd.f32 %v3524, %v4254
        %v4341 = vadd.f32 %v3525, %v4259
        %v4342 = vadd.f32 %v3526, %v4264
        %v4343 = vadd.f32 %v3527, %v4269
        %v4344 = vld [vmem:[%s2] sm:$0x1]
        %v4346 = vlaneseq
        %v4347 = vshrl.u32 %v4346, 7
        %v4348 = vsub.s32 0, %v4347
        %v4349 = vrot.slane %v4344, %v4348
        %v4351 = vadd.f32 %v4272, %v4349
        %v4352 = vadd.f32 %v4273, %v4349
        %v4353 = vadd.f32 %v4274, %v4349
        %v4354 = vadd.f32 %v4275, %v4349
        %v4355 = vadd.f32 %v4276, %v4349
        %v4356 = vadd.f32 %v4277, %v4349
        %v4357 = vadd.f32 %v4278, %v4349
        %v4358 = vadd.f32 %v4279, %v4349
        %v4359 = vadd.f32 %v4280, %v4349
        %v4360 = vadd.f32 %v4281, %v4349
        %v4361 = vadd.f32 %v4282, %v4349
        %v4362 = vadd.f32 %v4283, %v4349
        %v4363 = vadd.f32 %v4284, %v4349
        %v4364 = vadd.f32 %v4285, %v4349
        %v4365 = vadd.f32 %v4286, %v4349
        %v4366 = vadd.f32 %v4287, %v4349
        %v4367 = vadd.f32 %v4288, %v4349
        %v4368 = vadd.f32 %v4289, %v4349
        %v4369 = vadd.f32 %v4290, %v4349
        %v4370 = vadd.f32 %v4291, %v4349
        %v4371 = vadd.f32 %v4292, %v4349
        %v4372 = vadd.f32 %v4293, %v4349
        %v4373 = vadd.f32 %v4294, %v4349
        %v4374 = vadd.f32 %v4295, %v4349
        %v4375 = vadd.f32 %v4296, %v4349
        %v4376 = vadd.f32 %v4297, %v4349
        %v4377 = vadd.f32 %v4298, %v4349
        %v4378 = vadd.f32 %v4299, %v4349
        %v4379 = vadd.f32 %v4300, %v4349
        %v4380 = vadd.f32 %v4301, %v4349
        %v4381 = vadd.f32 %v4302, %v4349
        %v4382 = vadd.f32 %v4303, %v4349
        %v4383 = vadd.f32 %v4304, %v4349
        %v4384 = vadd.f32 %v4305, %v4349
        %v4385 = vadd.f32 %v4306, %v4349
        %v4386 = vadd.f32 %v4307, %v4349
        %v4387 = vadd.f32 %v4308, %v4349
        %v4388 = vadd.f32 %v4309, %v4349
        %v4389 = vadd.f32 %v4310, %v4349
        %v4390 = vadd.f32 %v4311, %v4349
        %v4391 = vadd.f32 %v4312, %v4349
        %v4392 = vadd.f32 %v4313, %v4349
        %v4393 = vadd.f32 %v4314, %v4349
        %v4394 = vadd.f32 %v4315, %v4349
        %v4395 = vadd.f32 %v4316, %v4349
        %v4396 = vadd.f32 %v4317, %v4349
        %v4397 = vadd.f32 %v4318, %v4349
        %v4398 = vadd.f32 %v4319, %v4349
        %v4399 = vadd.f32 %v4320, %v4349
        %v4400 = vadd.f32 %v4321, %v4349
        %v4401 = vadd.f32 %v4322, %v4349
        %v4402 = vadd.f32 %v4323, %v4349
        %v4403 = vadd.f32 %v4324, %v4349
        %v4404 = vadd.f32 %v4325, %v4349
        %v4405 = vadd.f32 %v4326, %v4349
        %v4406 = vadd.f32 %v4327, %v4349
        %v4407 = vadd.f32 %v4328, %v4349
        %v4408 = vadd.f32 %v4329, %v4349
        %v4409 = vadd.f32 %v4330, %v4349
        %v4410 = vadd.f32 %v4331, %v4349
        %v4411 = vadd.f32 %v4332, %v4349
        %v4412 = vadd.f32 %v4333, %v4349
        %v4413 = vadd.f32 %v4334, %v4349
        %v4414 = vadd.f32 %v4335, %v4349
        %v4415 = vadd.f32 %v4336, %v4349
        %v4416 = vadd.f32 %v4337, %v4349
        %v4417 = vadd.f32 %v4338, %v4349
        %v4418 = vadd.f32 %v4339, %v4349
        %v4419 = vadd.f32 %v4340, %v4349
        %v4420 = vadd.f32 %v4341, %v4349
        %v4421 = vadd.f32 %v4342, %v4349
        %v4422 = vadd.f32 %v4343, %v4349
        %v4423 = vmax.f32 %v4351, %v4354
        %v4424 = vmax.f32 %v4352, %v4355
        %v4425 = vmax.f32 %v4353, %v4356
        %vm4426 = vcmask 48128
        %4427 = vst.msk [vmem:[#allocation2] sm:$0xff] %vm4426, %v4423
        %4428 = vst.msk [vmem:[#allocation2 + $0x8] sm:$0xff] %vm4426, %v4424
        %4429 = vst.msk [vmem:[#allocation2 + $0x10] sm:$0xff] %vm4426, %v4425
        %v4430 = vmax.f32 %v4357, %v4360
        %v4431 = vmax.f32 %v4358, %v4361
        %v4432 = vmax.f32 %v4359, %v4362
        %s4433 = scalar_lea.vmem [#allocation2], 24
        %4434 = vst.msk [vmem:[%s4433] sm:$0xff] %vm4426, %v4430
        %4435 = vst.msk [vmem:[%s4433 + $0x8] sm:$0xff] %vm4426, %v4431
        %4436 = vst.msk [vmem:[%s4433 + $0x10] sm:$0xff] %vm4426, %v4432
        %v4437 = vmax.f32 %v4363, %v4366
        %v4438 = vmax.f32 %v4364, %v4367
        %v4439 = vmax.f32 %v4365, %v4368
        %s4440 = scalar_lea.vmem [#allocation2], 48
        %4441 = vst.msk [vmem:[%s4440] sm:$0xff] %vm4426, %v4437
        %4442 = vst.msk [vmem:[%s4440 + $0x8] sm:$0xff] %vm4426, %v4438
        %4443 = vst.msk [vmem:[%s4440 + $0x10] sm:$0xff] %vm4426, %v4439
        %v4444 = vmax.f32 %v4369, %v4372
        %v4445 = vmax.f32 %v4370, %v4373
        %v4446 = vmax.f32 %v4371, %v4374
        %s4447 = scalar_lea.vmem [#allocation2], 72
        %4448 = vst.msk [vmem:[%s4447] sm:$0xff] %vm4426, %v4444
        %4449 = vst.msk [vmem:[%s4447 + $0x8] sm:$0xff] %vm4426, %v4445
        %4450 = vst.msk [vmem:[%s4447 + $0x10] sm:$0xff] %vm4426, %v4446
        %v4451 = vmax.f32 %v4375, %v4378
        %v4452 = vmax.f32 %v4376, %v4379
        %v4453 = vmax.f32 %v4377, %v4380
        %s4454 = scalar_lea.vmem [#allocation2], 96
        %4455 = vst.msk [vmem:[%s4454] sm:$0xff] %vm4426, %v4451
        %4456 = vst.msk [vmem:[%s4454 + $0x8] sm:$0xff] %vm4426, %v4452
        %4457 = vst.msk [vmem:[%s4454 + $0x10] sm:$0xff] %vm4426, %v4453
        %v4458 = vmax.f32 %v4381, %v4384
        %v4459 = vmax.f32 %v4382, %v4385
        %v4460 = vmax.f32 %v4383, %v4386
        %s4461 = scalar_lea.vmem [#allocation2], 120
        %4462 = vst.msk [vmem:[%s4461] sm:$0xff] %vm4426, %v4458
        %4463 = vst.msk [vmem:[%s4461 + $0x8] sm:$0xff] %vm4426, %v4459
        %4464 = vst.msk [vmem:[%s4461 + $0x10] sm:$0xff] %vm4426, %v4460
        %v4465 = vmax.f32 %v4387, %v4390
        %v4466 = vmax.f32 %v4388, %v4391
        %v4467 = vmax.f32 %v4389, %v4392
        %s4468 = scalar_lea.vmem [#allocation2], 144
        %4469 = vst.msk [vmem:[%s4468] sm:$0xff] %vm4426, %v4465
        %4470 = vst.msk [vmem:[%s4468 + $0x8] sm:$0xff] %vm4426, %v4466
        %4471 = vst.msk [vmem:[%s4468 + $0x10] sm:$0xff] %vm4426, %v4467
        %v4472 = vmax.f32 %v4393, %v4396
        %v4473 = vmax.f32 %v4394, %v4397
        %v4474 = vmax.f32 %v4395, %v4398
        %s4475 = scalar_lea.vmem [#allocation2], 168
        %4476 = vst.msk [vmem:[%s4475] sm:$0xff] %vm4426, %v4472
        %4477 = vst.msk [vmem:[%s4475 + $0x8] sm:$0xff] %vm4426, %v4473
        %4478 = vst.msk [vmem:[%s4475 + $0x10] sm:$0xff] %vm4426, %v4474
        %v4479 = vmax.f32 %v4399, %v4402
        %v4480 = vmax.f32 %v4400, %v4403
        %v4481 = vmax.f32 %v4401, %v4404
        %s4482 = scalar_lea.vmem [#allocation2], 192
        %4483 = vst.msk [vmem:[%s4482] sm:$0xff] %vm4426, %v4479
        %4484 = vst.msk [vmem:[%s4482 + $0x8] sm:$0xff] %vm4426, %v4480
        %4485 = vst.msk [vmem:[%s4482 + $0x10] sm:$0xff] %vm4426, %v4481
        %v4486 = vmax.f32 %v4405, %v4408
        %v4487 = vmax.f32 %v4406, %v4409
        %v4488 = vmax.f32 %v4407, %v4410
        %s4489 = scalar_lea.vmem [#allocation2], 216
        %4490 = vst.msk [vmem:[%s4489] sm:$0xff] %vm4426, %v4486
        %4491 = vst.msk [vmem:[%s4489 + $0x8] sm:$0xff] %vm4426, %v4487
        %4492 = vst.msk [vmem:[%s4489 + $0x10] sm:$0xff] %vm4426, %v4488
        %v4493 = vmax.f32 %v4411, %v4414
        %v4494 = vmax.f32 %v4412, %v4415
        %v4495 = vmax.f32 %v4413, %v4416
        %s4496 = scalar_lea.vmem [#allocation2], 240
        %4497 = vst.msk [vmem:[%s4496] sm:$0xff] %vm4426, %v4493
        %4498 = vst.msk [vmem:[%s4496 + $0x8] sm:$0xff] %vm4426, %v4494
        %4499 = vst.msk [vmem:[%s4496 + $0x10] sm:$0xff] %vm4426, %v4495
        %v4500 = vmax.f32 %v4417, %v4420
        %v4501 = vmax.f32 %v4418, %v4421
        %v4502 = vmax.f32 %v4419, %v4422
        %s4503 = scalar_lea.vmem [#allocation2], 264
        %4504 = vst.msk [vmem:[%s4503] sm:$0xff] %vm4426, %v4500
        %4505 = vst.msk [vmem:[%s4503 + $0x8] sm:$0xff] %vm4426, %v4501
        %4506 = vst.msk [vmem:[%s4503 + $0x10] sm:$0xff] %vm4426, %v4502
        %v4507 = vld [vmem:[#allocation2] ss:$2 sm:$0xff]
        %s4508 = scalar_lea.vmem [#allocation2], 16
        %v4509 = vld [vmem:[%s4508] ss:$2 sm:$0xf]
        %s4510 = scalar_lea.vmem [#allocation2], 24
        %v4511 = vld [vmem:[%s4510] ss:$2 sm:$0xff]
        %s4512 = scalar_lea.vmem [#allocation2], 40
        %v4513 = vld [vmem:[%s4512] ss:$2 sm:$0xf]
        %s4514 = scalar_lea.vmem [#allocation2], 48
        %v4515 = vld [vmem:[%s4514] ss:$2 sm:$0xff]
        %s4516 = scalar_lea.vmem [#allocation2], 64
        %v4517 = vld [vmem:[%s4516] ss:$2 sm:$0xf]
        %s4518 = scalar_lea.vmem [#allocation2], 72
        %v4519 = vld [vmem:[%s4518] ss:$2 sm:$0xff]
        %s4520 = scalar_lea.vmem [#allocation2], 88
        %v4521 = vld [vmem:[%s4520] ss:$2 sm:$0xf]
        %s4522 = scalar_lea.vmem [#allocation2], 96
        %v4523 = vld [vmem:[%s4522] ss:$2 sm:$0xff]
        %s4524 = scalar_lea.vmem [#allocation2], 112
        %v4525 = vld [vmem:[%s4524] ss:$2 sm:$0xf]
        %s4526 = scalar_lea.vmem [#allocation2], 120
        %v4527 = vld [vmem:[%s4526] ss:$2 sm:$0xff]
        %s4528 = scalar_lea.vmem [#allocation2], 136
        %v4529 = vld [vmem:[%s4528] ss:$2 sm:$0xf]
        %s4530 = scalar_lea.vmem [#allocation2], 144
        %v4531 = vld [vmem:[%s4530] ss:$2 sm:$0xff]
        %s4532 = scalar_lea.vmem [#allocation2], 160
        %v4533 = vld [vmem:[%s4532] ss:$2 sm:$0xf]
        %s4534 = scalar_lea.vmem [#allocation2], 168
        %v4535 = vld [vmem:[%s4534] ss:$2 sm:$0xff]
        %s4536 = scalar_lea.vmem [#allocation2], 184
        %v4537 = vld [vmem:[%s4536] ss:$2 sm:$0xf]
        %s4538 = scalar_lea.vmem [#allocation2], 192
        %v4539 = vld [vmem:[%s4538] ss:$2 sm:$0xff]
        %s4540 = scalar_lea.vmem [#allocation2], 208
        %v4541 = vld [vmem:[%s4540] ss:$2 sm:$0xf]
        %s4542 = scalar_lea.vmem [#allocation2], 216
        %v4543 = vld [vmem:[%s4542] ss:$2 sm:$0xff]
        %s4544 = scalar_lea.vmem [#allocation2], 232
        %v4545 = vld [vmem:[%s4544] ss:$2 sm:$0xf]
        %s4546 = scalar_lea.vmem [#allocation2], 240
        %v4547 = vld [vmem:[%s4546] ss:$2 sm:$0xff]
        %s4548 = scalar_lea.vmem [#allocation2], 256
        %v4549 = vld [vmem:[%s4548] ss:$2 sm:$0xf]
        %s4550 = scalar_lea.vmem [#allocation2], 264
        %v4551 = vld [vmem:[%s4550] ss:$2 sm:$0xff]
        %s4552 = scalar_lea.vmem [#allocation2], 280
        %v4553 = vld [vmem:[%s4552] ss:$2 sm:$0xf]
        %s4554 = scalar_lea.vmem [#allocation2], 1
        %v4555 = vld [vmem:[%s4554] ss:$2 sm:$0xff]
        %s4556 = scalar_lea.vmem [#allocation2], 17
        %v4557 = vld [vmem:[%s4556] ss:$2 sm:$0xf]
        %s4558 = scalar_lea.vmem [#allocation2], 25
        %v4559 = vld [vmem:[%s4558] ss:$2 sm:$0xff]
        %s4560 = scalar_lea.vmem [#allocation2], 41
        %v4561 = vld [vmem:[%s4560] ss:$2 sm:$0xf]
        %s4562 = scalar_lea.vmem [#allocation2], 49
        %v4563 = vld [vmem:[%s4562] ss:$2 sm:$0xff]
        %s4564 = scalar_lea.vmem [#allocation2], 65
        %v4565 = vld [vmem:[%s4564] ss:$2 sm:$0xf]
        %s4566 = scalar_lea.vmem [#allocation2], 73
        %v4567 = vld [vmem:[%s4566] ss:$2 sm:$0xff]
        %s4568 = scalar_lea.vmem [#allocation2], 89
        %v4569 = vld [vmem:[%s4568] ss:$2 sm:$0xf]
        %s4570 = scalar_lea.vmem [#allocation2], 97
        %v4571 = vld [vmem:[%s4570] ss:$2 sm:$0xff]
        %s4572 = scalar_lea.vmem [#allocation2], 113
        %v4573 = vld [vmem:[%s4572] ss:$2 sm:$0xf]
        %s4574 = scalar_lea.vmem [#allocation2], 121
        %v4575 = vld [vmem:[%s4574] ss:$2 sm:$0xff]
        %s4576 = scalar_lea.vmem [#allocation2], 137
        %v4577 = vld [vmem:[%s4576] ss:$2 sm:$0xf]
        %s4578 = scalar_lea.vmem [#allocation2], 145
        %v4579 = vld [vmem:[%s4578] ss:$2 sm:$0xff]
        %s4580 = scalar_lea.vmem [#allocation2], 161
        %v4581 = vld [vmem:[%s4580] ss:$2 sm:$0xf]
        %s4582 = scalar_lea.vmem [#allocation2], 169
        %v4583 = vld [vmem:[%s4582] ss:$2 sm:$0xff]
        %s4584 = scalar_lea.vmem [#allocation2], 185
        %v4585 = vld [vmem:[%s4584] ss:$2 sm:$0xf]
        %s4586 = scalar_lea.vmem [#allocation2], 193
        %v4587 = vld [vmem:[%s4586] ss:$2 sm:$0xff]
        %s4588 = scalar_lea.vmem [#allocation2], 209
        %v4589 = vld [vmem:[%s4588] ss:$2 sm:$0xf]
        %s4590 = scalar_lea.vmem [#allocation2], 217
        %v4591 = vld [vmem:[%s4590] ss:$2 sm:$0xff]
        %s4592 = scalar_lea.vmem [#allocation2], 233
        %v4593 = vld [vmem:[%s4592] ss:$2 sm:$0xf]
        %s4594 = scalar_lea.vmem [#allocation2], 241
        %v4595 = vld [vmem:[%s4594] ss:$2 sm:$0xff]
        %s4596 = scalar_lea.vmem [#allocation2], 257
        %v4597 = vld [vmem:[%s4596] ss:$2 sm:$0xf]
        %s4598 = scalar_lea.vmem [#allocation2], 265
        %v4599 = vld [vmem:[%s4598] ss:$2 sm:$0xff]
        %s4600 = scalar_lea.vmem [#allocation2], 281
        %v4601 = vld [vmem:[%s4600] ss:$2 sm:$0xf]
        %v4602 = vmax.f32 %v4507, %v4555
        %v4603 = vmax.f32 %v4509, %v4557
        %v4604 = vmax.f32 %v4511, %v4559
        %v4605 = vmax.f32 %v4513, %v4561
        %v4606 = vmax.f32 %v4515, %v4563
        %v4607 = vmax.f32 %v4517, %v4565
        %v4608 = vmax.f32 %v4519, %v4567
        %v4609 = vmax.f32 %v4521, %v4569
        %v4610 = vmax.f32 %v4523, %v4571
        %v4611 = vmax.f32 %v4525, %v4573
        %v4612 = vmax.f32 %v4527, %v4575
        %v4613 = vmax.f32 %v4529, %v4577
        %v4614 = vmax.f32 %v4531, %v4579
        %v4615 = vmax.f32 %v4533, %v4581
        %v4616 = vmax.f32 %v4535, %v4583
        %v4617 = vmax.f32 %v4537, %v4585
        %v4618 = vmax.f32 %v4539, %v4587
        %v4619 = vmax.f32 %v4541, %v4589
        %v4620 = vmax.f32 %v4543, %v4591
        %v4621 = vmax.f32 %v4545, %v4593
        %v4622 = vmax.f32 %v4547, %v4595
        %v4623 = vmax.f32 %v4549, %v4597
        %v4624 = vmax.f32 %v4551, %v4599
        %v4625 = vmax.f32 %v4553, %v4601
        %v4626 = vld [vmem:[%s3] sm:$0xff]
        %v4627 = vld [vmem:[%s3 + $0x8] sm:$0xff]
        %v4628 = vld [vmem:[%s3 + $0x10] sm:$0xff]
        %v4629 = vld [vmem:[%s3 + $0x18] sm:$0xff]
        %v4630 = vld [vmem:[%s3 + $0x20] sm:$0xff]
        %v4631 = vld [vmem:[%s3 + $0x28] sm:$0xff]
        %v4632 = vld [vmem:[%s3 + $0x30] sm:$0xff]
        %v4633 = vld [vmem:[%s3 + $0x38] sm:$0xff]
        %v4634 = vld [vmem:[%s3 + $0x40] sm:$0xff]
        %v4635 = vld [vmem:[%s3 + $0x48] sm:$0xff]
        %v4636 = vld [vmem:[%s3 + $0x50] sm:$0xff]
        %v4637 = vld [vmem:[%s3 + $0x58] sm:$0xff]
        %v4638 = vld [vmem:[%s3 + $0x60] sm:$0xff]
        %v4639 = vld [vmem:[%s3 + $0x68] sm:$0xff]
        %v4640 = vld [vmem:[%s3 + $0x70] sm:$0xff]
        %v4641 = vld [vmem:[%s3 + $0x78] sm:$0xff]
        %v4642 = vld [vmem:[%s3 + $0x80] sm:$0xff]
        %v4643 = vld [vmem:[%s3 + $0x88] sm:$0xff]
        %v4644 = vld [vmem:[%s3 + $0x90] sm:$0x3f]
        %v4661 = vrot.slane %v4602, 1
        %v4662 = vrot.slane %v4603, 1
        %v4663 = vsel %vm580, %v4661, %v4662
        %v4664 = vrot.slane %v4604, 1
        %v4665 = vrot.slane %v4605, 1
        %v4666 = vsel %vm580, %v4664, %v4665
        %v4667 = vrot.slane %v4606, 1
        %v4668 = vrot.slane %v4607, 1
        %v4669 = vsel %vm580, %v4667, %v4668
        %v4670 = vrot.slane %v4608, 1
        %v4671 = vrot.slane %v4609, 1
        %v4672 = vsel %vm580, %v4670, %v4671
        %v4673 = vrot.slane %v4610, 1
        %v4674 = vrot.slane %v4611, 1
        %v4675 = vsel %vm580, %v4673, %v4674
        %v4676 = vrot.slane %v4612, 1
        %v4677 = vrot.slane %v4613, 1
        %v4678 = vsel %vm580, %v4676, %v4677
        %v4679 = vrot.slane %v4614, 1
        %v4680 = vrot.slane %v4615, 1
        %v4681 = vsel %vm580, %v4679, %v4680
        %v4682 = vrot.slane %v4616, 1
        %v4683 = vrot.slane %v4617, 1
        %v4684 = vsel %vm580, %v4682, %v4683
        %vm4687 = vcmask 1041408
        %v4688 = vrot.slane %v4626, 6
        %v4689 = vrot.slane %v4627, 6
        %v4690 = vsel %vm4687, %v4688, %v4689
        %v4691 = vsel %vm4426, %v4663, 0
        %v4693 = vsel %vm4426, %v4666, 0
        %v4695 = vsel %vm4426, %v4669, 0
        %v4697 = vsel %vm4426, %v4672, 0
        %v4699 = vsel %vm4426, %v4675, 0
        %v4701 = vsel %vm4426, %v4678, 0
        %v4703 = vsel %vm4426, %v4681, 0
        %v4705 = vsel %vm4426, %v4684, 0
        %v4707 = vsel %vm1899, %v4690, 0
        %4709 = vmatprep.subr.mxu0 0.0
        %4710 = vmatpush1.msra.mxu0 %v4707
        %4711 = vmatprep.subr.mxu0 0.0
        %4712 = vmatpush1.msra.mxu0 0.0
        %4713 = vmatprep.subr.mxu0 0.0
        %4714 = vmatpush1.msra.mxu0 0.0
        %4715 = vmatprep.subr.mxu0 0.0
        %4716 = vmatpush1.msra.mxu0 0.0
        %4717 = vmatprep.subr.mxu0 0.0
        %4718 = vmatpush1.msra.mxu0 0.0
        %4719 = vmatprep.subr.mxu0 0.0
        %4720 = vmatpush1.msra.mxu0 0.0
        %4721 = vmatprep.subr.mxu0 0.0
        %4722 = vmatpush1.msra.mxu0 0.0
        %4723 = vmatprep.subr.mxu0 0.0
        %4724 = vmatpush1.msra.mxu0 0.0
        %4725 = vmatprep.subr.mxu0 0.0
        %4726 = vmatpush1.msra.mxu0 0.0
        %4727 = vmatprep.subr.mxu0 0.0
        %4728 = vmatpush1.msra.mxu0 0.0
        %4729 = vmatprep.subr.mxu0 0.0
        %4730 = vmatpush1.msra.mxu0 0.0
        %4731 = vmatprep.subr.mxu0 0.0
        %4732 = vmatpush1.msra.mxu0 0.0
        %4733 = vmatprep.subr.mxu0 0.0
        %4734 = vmatpush1.msra.mxu0 0.0
        %4735 = vmatprep.subr.mxu0 0.0
        %4736 = vmatpush1.msra.mxu0 0.0
        %4737 = vmatprep.subr.mxu0 0.0
        %4738 = vmatpush1.msra.mxu0 0.0
        %4739 = vmatprep.subr.mxu0 0.0
        %4740 = vmatpush1.msra.mxu0 0.0
        %4741 = vmatprep.subr.mxu0 0.0
        %4742 = vmatpush1.msra.mxu0 0.0
        %4743 = vmatprep.subr.mxu0 0.0
        %4744 = vmatpush1.msra.mxu0 0.0
        %4745 = vmatprep.subr.mxu0 0.0
        %4746 = vmatpush1.msra.mxu0 0.0
        %4747 = vmatprep.subr.mxu0 0.0
        %4748 = vmatpush1.msra.mxu0 0.0
        %4749 = vmatprep.subr.mxu0 0.0
        %4750 = vmatpush1.msra.mxu0 0.0
        %4751 = vmatprep.subr.mxu0 0.0
        %4752 = vmatpush1.msra.mxu0 0.0
        %4753 = vmatprep.subr.mxu0 0.0
        %4754 = vmatpush1.msra.mxu0 0.0
        %4755 = vmatprep.subr.mxu0 0.0
        %4756 = vmatpush1.msra.mxu0 0.0
        %4757 = vmatprep.subr.mxu0 0.0
        %4758 = vmatpush1.msra.mxu0 0.0
        %4759 = vmatprep.subr.mxu0 0.0
        %4760 = vmatpush1.msra.mxu0 0.0
        %4761 = vmatprep.subr.mxu0 0.0
        %4762 = vmatpush1.msra.mxu0 0.0
        %4763 = vmatprep.subr.mxu0 0.0
        %4764 = vmatpush1.msra.mxu0 0.0
        %4765 = vmatprep.subr.mxu0 0.0
        %4766 = vmatpush1.msra.mxu0 0.0
        %4767 = vmatprep.subr.mxu0 0.0
        %4768 = vmatpush1.msra.mxu0 0.0
        %4769 = vmatprep.subr.mxu0 0.0
        %4770 = vmatpush1.msra.mxu0 0.0
        %4771 = vmatprep.subr.mxu0 0.0
        %4772 = vmatpush1.msra.mxu0 0.0
        %4773 = vmatprep.mubr.f32.mxu0 0.0
        %4774 = vmatmul.mubr.f32.gmra.mrb[0].mxu0 %v4691
        %v4775 = vpop.f32.mrb[0].mxu0
        %v4776 = vadd.f32 0.0, %v4775
        %v4777 = vpop.f32.mrb[0].mxu0
        %4778 = vmatprep.mubr.f32.mxu0 0.0
        %4779 = vmatmul.mubr.f32.gmra.mrb[0].mxu0 %v4693
        %v4780 = vpop.f32.mrb[0].mxu0
        %v4781 = vadd.f32 0.0, %v4780
        %v4782 = vpop.f32.mrb[0].mxu0
        %4783 = vmatprep.mubr.f32.mxu0 0.0
        %4784 = vmatmul.mubr.f32.gmra.mrb[0].mxu0 %v4695
        %v4785 = vpop.f32.mrb[0].mxu0
        %v4786 = vadd.f32 0.0, %v4785
        %v4787 = vpop.f32.mrb[0].mxu0
        %4788 = vmatprep.mubr.f32.mxu0 0.0
        %4789 = vmatmul.mubr.f32.gmra.mrb[0].mxu0 %v4697
        %v4790 = vpop.f32.mrb[0].mxu0
        %v4791 = vadd.f32 0.0, %v4790
        %v4792 = vpop.f32.mrb[0].mxu0
        %4793 = vmatprep.mubr.f32.mxu0 0.0
        %4794 = vmatmul.mubr.f32.gmra.mrb[0].mxu0 %v4699
        %v4795 = vpop.f32.mrb[0].mxu0
        %v4796 = vadd.f32 0.0, %v4795
        %v4797 = vpop.f32.mrb[0].mxu0
        %4798 = vmatprep.mubr.f32.mxu0 0.0
        %4799 = vmatmul.mubr.f32.gmra.mrb[0].mxu0 %v4701
        %v4800 = vpop.f32.mrb[0].mxu0
        %v4801 = vadd.f32 0.0, %v4800
        %v4802 = vpop.f32.mrb[0].mxu0
        %4803 = vmatprep.mubr.f32.mxu0 0.0
        %4804 = vmatmul.mubr.f32.gmra.mrb[0].mxu0 %v4703
        %v4805 = vpop.f32.mrb[0].mxu0
        %v4806 = vadd.f32 0.0, %v4805
        %v4807 = vpop.f32.mrb[0].mxu0
        %4808 = vmatprep.mubr.f32.mxu0 0.0
        %4809 = vmatmul.mubr.f32.gmra.mrb[0].mxu0 %v4705
        %v4810 = vpop.f32.mrb[0].mxu0
        %v4811 = vadd.f32 0.0, %v4810
        %v4812 = vpop.f32.mrb[0].mxu0
        %4813 = vdwg.mxu0
        %v4814 = vsel %vm4426, %v4602, 0
        %v4816 = vsel %vm4426, %v4604, 0
        %v4818 = vsel %vm4426, %v4606, 0
        %v4820 = vsel %vm4426, %v4608, 0
        %v4822 = vsel %vm4426, %v4610, 0
        %v4824 = vsel %vm4426, %v4612, 0
        %v4826 = vsel %vm4426, %v4614, 0
        %v4828 = vsel %vm4426, %v4616, 0
        %v4830 = vsel %vm1899, %v4626, 0
        %4832 = vmatprep.subr.mxu0 0.0
        %4833 = vmatpush1.msra.mxu0 %v4830
        %4834 = vmatprep.subr.mxu0 0.0
        %4835 = vmatpush1.msra.mxu0 0.0
        %4836 = vmatprep.subr.mxu0 0.0
        %4837 = vmatpush1.msra.mxu0 0.0
        %4838 = vmatprep.subr.mxu0 0.0
        %4839 = vmatpush1.msra.mxu0 0.0
        %4840 = vmatprep.subr.mxu0 0.0
        %4841 = vmatpush1.msra.mxu0 0.0
        %4842 = vmatprep.subr.mxu0 0.0
        %4843 = vmatpush1.msra.mxu0 0.0
        %4844 = vmatprep.subr.mxu0 0.0
        %4845 = vmatpush1.msra.mxu0 0.0
        %4846 = vmatprep.subr.mxu0 0.0
        %4847 = vmatpush1.msra.mxu0 0.0
        %4848 = vmatprep.subr.mxu0 0.0
        %4849 = vmatpush1.msra.mxu0 0.0
        %4850 = vmatprep.subr.mxu0 0.0
        %4851 = vmatpush1.msra.mxu0 0.0
        %4852 = vmatprep.subr.mxu0 0.0
        %4853 = vmatpush1.msra.mxu0 0.0
        %4854 = vmatprep.subr.mxu0 0.0
        %4855 = vmatpush1.msra.mxu0 0.0
        %4856 = vmatprep.subr.mxu0 0.0
        %4857 = vmatpush1.msra.mxu0 0.0
        %4858 = vmatprep.subr.mxu0 0.0
        %4859 = vmatpush1.msra.mxu0 0.0
        %4860 = vmatprep.subr.mxu0 0.0
        %4861 = vmatpush1.msra.mxu0 0.0
        %4862 = vmatprep.subr.mxu0 0.0
        %4863 = vmatpush1.msra.mxu0 0.0
        %4864 = vmatprep.subr.mxu0 0.0
        %4865 = vmatpush1.msra.mxu0 0.0
        %4866 = vmatprep.subr.mxu0 0.0
        %4867 = vmatpush1.msra.mxu0 0.0
        %4868 = vmatprep.subr.mxu0 0.0
        %4869 = vmatpush1.msra.mxu0 0.0
        %4870 = vmatprep.subr.mxu0 0.0
        %4871 = vmatpush1.msra.mxu0 0.0
        %4872 = vmatprep.subr.mxu0 0.0
        %4873 = vmatpush1.msra.mxu0 0.0
        %4874 = vmatprep.subr.mxu0 0.0
        %4875 = vmatpush1.msra.mxu0 0.0
        %4876 = vmatprep.subr.mxu0 0.0
        %4877 = vmatpush1.msra.mxu0 0.0
        %4878 = vmatprep.subr.mxu0 0.0
        %4879 = vmatpush1.msra.mxu0 0.0
        %4880 = vmatprep.subr.mxu0 0.0
        %4881 = vmatpush1.msra.mxu0 0.0
        %4882 = vmatprep.subr.mxu0 0.0
        %4883 = vmatpush1.msra.mxu0 0.0
        %4884 = vmatprep.subr.mxu0 0.0
        %4885 = vmatpush1.msra.mxu0 0.0
        %4886 = vmatprep.subr.mxu0 0.0
        %4887 = vmatpush1.msra.mxu0 0.0
        %4888 = vmatprep.subr.mxu0 0.0
        %4889 = vmatpush1.msra.mxu0 0.0
        %4890 = vmatprep.subr.mxu0 0.0
        %4891 = vmatpush1.msra.mxu0 0.0
        %4892 = vmatprep.subr.mxu0 0.0
        %4893 = vmatpush1.msra.mxu0 0.0
        %4894 = vmatprep.subr.mxu0 0.0
        %4895 = vmatpush1.msra.mxu0 0.0
        %4896 = vmatprep.mubr.f32.mxu0 0.0
        %4897 = vmatmul.mubr.f32.gmra.mrb[0].mxu0 %v4814
        %v4898 = vpop.f32.mrb[0].mxu0
        %v4899 = vadd.f32 %v4776, %v4898
        %v4900 = vpop.f32.mrb[0].mxu0
        %4901 = vmatprep.mubr.f32.mxu0 0.0
        %4902 = vmatmul.mubr.f32.gmra.mrb[0].mxu0 %v4816
        %v4903 = vpop.f32.mrb[0].mxu0
        %v4904 = vadd.f32 %v4781, %v4903
        %v4905 = vpop.f32.mrb[0].mxu0
        %4906 = vmatprep.mubr.f32.mxu0 0.0
        %4907 = vmatmul.mubr.f32.gmra.mrb[0].mxu0 %v4818
        %v4908 = vpop.f32.mrb[0].mxu0
        %v4909 = vadd.f32 %v4786, %v4908
        %v4910 = vpop.f32.mrb[0].mxu0
        %4911 = vmatprep.mubr.f32.mxu0 0.0
        %4912 = vmatmul.mubr.f32.gmra.mrb[0].mxu0 %v4820
        %v4913 = vpop.f32.mrb[0].mxu0
        %v4914 = vadd.f32 %v4791, %v4913
        %v4915 = vpop.f32.mrb[0].mxu0
        %4916 = vmatprep.mubr.f32.mxu0 0.0
        %4917 = vmatmul.mubr.f32.gmra.mrb[0].mxu0 %v4822
        %v4918 = vpop.f32.mrb[0].mxu0
        %v4919 = vadd.f32 %v4796, %v4918
        %v4920 = vpop.f32.mrb[0].mxu0
        %4921 = vmatprep.mubr.f32.mxu0 0.0
        %4922 = vmatmul.mubr.f32.gmra.mrb[0].mxu0 %v4824
        %v4923 = vpop.f32.mrb[0].mxu0
        %v4924 = vadd.f32 %v4801, %v4923
        %v4925 = vpop.f32.mrb[0].mxu0
        %4926 = vmatprep.mubr.f32.mxu0 0.0
        %4927 = vmatmul.mubr.f32.gmra.mrb[0].mxu0 %v4826
        %v4928 = vpop.f32.mrb[0].mxu0
        %v4929 = vadd.f32 %v4806, %v4928
        %v4930 = vpop.f32.mrb[0].mxu0
        %4931 = vmatprep.mubr.f32.mxu0 0.0
        %4932 = vmatmul.mubr.f32.gmra.mrb[0].mxu0 %v4828
        %v4933 = vpop.f32.mrb[0].mxu0
        %v4934 = vadd.f32 %v4811, %v4933
        %v4935 = vpop.f32.mrb[0].mxu0
        %4936 = vdwg.mxu0
        %v4937 = vrot.slane %v4602, 2
        %v4938 = vrot.slane %v4603, 2
        %v4939 = vsel %vm1899, %v4937, %v4938
        %v4940 = vrot.slane %v4604, 2
        %v4941 = vrot.slane %v4605, 2
        %v4942 = vsel %vm1899, %v4940, %v4941
        %v4943 = vrot.slane %v4606, 2
        %v4944 = vrot.slane %v4607, 2
        %v4945 = vsel %vm1899, %v4943, %v4944
        %v4946 = vrot.slane %v4608, 2
        %v4947 = vrot.slane %v4609, 2
        %v4948 = vsel %vm1899, %v4946, %v4947
        %v4949 = vrot.slane %v4610, 2
        %v4950 = vrot.slane %v4611, 2
        %v4951 = vsel %vm1899, %v4949, %v4950
        %v4952 = vrot.slane %v4612, 2
        %v4953 = vrot.slane %v4613, 2
        %v4954 = vsel %vm1899, %v4952, %v4953
        %v4955 = vrot.slane %v4614, 2
        %v4956 = vrot.slane %v4615, 2
        %v4957 = vsel %vm1899, %v4955, %v4956
        %v4958 = vrot.slane %v4616, 2
        %v4959 = vrot.slane %v4617, 2
        %v4960 = vsel %vm1899, %v4958, %v4959
        %v4962 = vrot.slane %v4627, 4
        %v4963 = vrot.slane %v4628, 4
        %v4964 = vsel %vm3528, %v4962, %v4963
        %v4965 = vsel %vm4426, %v4939, 0
        %v4967 = vsel %vm4426, %v4942, 0
        %v4969 = vsel %vm4426, %v4945, 0
        %v4971 = vsel %vm4426, %v4948, 0
        %v4973 = vsel %vm4426, %v4951, 0
        %v4975 = vsel %vm4426, %v4954, 0
        %v4977 = vsel %vm4426, %v4957, 0
        %v4979 = vsel %vm4426, %v4960, 0
        %v4981 = vsel %vm1899, %v4964, 0
        %4983 = vmatprep.subr.mxu0 0.0
        %4984 = vmatpush1.msra.mxu0 %v4981
        %4985 = vmatprep.subr.mxu0 0.0
        %4986 = vmatpush1.msra.mxu0 0.0
        %4987 = vmatprep.subr.mxu0 0.0
        %4988 = vmatpush1.msra.mxu0 0.0
        %4989 = vmatprep.subr.mxu0 0.0
        %4990 = vmatpush1.msra.mxu0 0.0
        %4991 = vmatprep.subr.mxu0 0.0
        %4992 = vmatpush1.msra.mxu0 0.0
        %4993 = vmatprep.subr.mxu0 0.0
        %4994 = vmatpush1.msra.mxu0 0.0
        %4995 = vmatprep.subr.mxu0 0.0
        %4996 = vmatpush1.msra.mxu0 0.0
        %4997 = vmatprep.subr.mxu0 0.0
        %4998 = vmatpush1.msra.mxu0 0.0
        %4999 = vmatprep.subr.mxu0 0.0
        %5000 = vmatpush1.msra.mxu0 0.0
        %5001 = vmatprep.subr.mxu0 0.0
        %5002 = vmatpush1.msra.mxu0 0.0
        %5003 = vmatprep.subr.mxu0 0.0
        %5004 = vmatpush1.msra.mxu0 0.0
        %5005 = vmatprep.subr.mxu0 0.0
        %5006 = vmatpush1.msra.mxu0 0.0
        %5007 = vmatprep.subr.mxu0 0.0
        %5008 = vmatpush1.msra.mxu0 0.0
        %5009 = vmatprep.subr.mxu0 0.0
        %5010 = vmatpush1.msra.mxu0 0.0
        %5011 = vmatprep.subr.mxu0 0.0
        %5012 = vmatpush1.msra.mxu0 0.0
        %5013 = vmatprep.subr.mxu0 0.0
        %5014 = vmatpush1.msra.mxu0 0.0
        %5015 = vmatprep.subr.mxu0 0.0
        %5016 = vmatpush1.msra.mxu0 0.0
        %5017 = vmatprep.subr.mxu0 0.0
        %5018 = vmatpush1.msra.mxu0 0.0
        %5019 = vmatprep.subr.mxu0 0.0
        %5020 = vmatpush1.msra.mxu0 0.0
        %5021 = vmatprep.subr.mxu0 0.0
        %5022 = vmatpush1.msra.mxu0 0.0
        %5023 = vmatprep.subr.mxu0 0.0
        %5024 = vmatpush1.msra.mxu0 0.0
        %5025 = vmatprep.subr.mxu0 0.0
        %5026 = vmatpush1.msra.mxu0 0.0
        %5027 = vmatprep.subr.mxu0 0.0
        %5028 = vmatpush1.msra.mxu0 0.0
        %5029 = vmatprep.subr.mxu0 0.0
        %5030 = vmatpush1.msra.mxu0 0.0
        %5031 = vmatprep.subr.mxu0 0.0
        %5032 = vmatpush1.msra.mxu0 0.0
        %5033 = vmatprep.subr.mxu0 0.0
        %5034 = vmatpush1.msra.mxu0 0.0
        %5035 = vmatprep.subr.mxu0 0.0
        %5036 = vmatpush1.msra.mxu0 0.0
        %5037 = vmatprep.subr.mxu0 0.0
        %5038 = vmatpush1.msra.mxu0 0.0
        %5039 = vmatprep.subr.mxu0 0.0
        %5040 = vmatpush1.msra.mxu0 0.0
        %5041 = vmatprep.subr.mxu0 0.0
        %5042 = vmatpush1.msra.mxu0 0.0
        %5043 = vmatprep.subr.mxu0 0.0
        %5044 = vmatpush1.msra.mxu0 0.0
        %5045 = vmatprep.subr.mxu0 0.0
        %5046 = vmatpush1.msra.mxu0 0.0
        %5047 = vmatprep.mubr.f32.mxu0 0.0
        %5048 = vmatmul.mubr.f32.gmra.mrb[0].mxu0 %v4965
        %v5049 = vpop.f32.mrb[0].mxu0
        %v5050 = vadd.f32 0.0, %v5049
        %v5051 = vpop.f32.mrb[0].mxu0
        %5052 = vmatprep.mubr.f32.mxu0 0.0
        %5053 = vmatmul.mubr.f32.gmra.mrb[0].mxu0 %v4967
        %v5054 = vpop.f32.mrb[0].mxu0
        %v5055 = vadd.f32 0.0, %v5054
        %v5056 = vpop.f32.mrb[0].mxu0
        %5057 = vmatprep.mubr.f32.mxu0 0.0
        %5058 = vmatmul.mubr.f32.gmra.mrb[0].mxu0 %v4969
        %v5059 = vpop.f32.mrb[0].mxu0
        %v5060 = vadd.f32 0.0, %v5059
        %v5061 = vpop.f32.mrb[0].mxu0
        %5062 = vmatprep.mubr.f32.mxu0 0.0
        %5063 = vmatmul.mubr.f32.gmra.mrb[0].mxu0 %v4971
        %v5064 = vpop.f32.mrb[0].mxu0
        %v5065 = vadd.f32 0.0, %v5064
        %v5066 = vpop.f32.mrb[0].mxu0
        %5067 = vmatprep.mubr.f32.mxu0 0.0
        %5068 = vmatmul.mubr.f32.gmra.mrb[0].mxu0 %v4973
        %v5069 = vpop.f32.mrb[0].mxu0
        %v5070 = vadd.f32 0.0, %v5069
        %v5071 = vpop.f32.mrb[0].mxu0
        %5072 = vmatprep.mubr.f32.mxu0 0.0
        %5073 = vmatmul.mubr.f32.gmra.mrb[0].mxu0 %v4975
        %v5074 = vpop.f32.mrb[0].mxu0
        %v5075 = vadd.f32 0.0, %v5074
        %v5076 = vpop.f32.mrb[0].mxu0
        %5077 = vmatprep.mubr.f32.mxu0 0.0
        %5078 = vmatmul.mubr.f32.gmra.mrb[0].mxu0 %v4977
        %v5079 = vpop.f32.mrb[0].mxu0
        %v5080 = vadd.f32 0.0, %v5079
        %v5081 = vpop.f32.mrb[0].mxu0
        %5082 = vmatprep.mubr.f32.mxu0 0.0
        %5083 = vmatmul.mubr.f32.gmra.mrb[0].mxu0 %v4979
        %v5084 = vpop.f32.mrb[0].mxu0
        %v5085 = vadd.f32 0.0, %v5084
        %v5086 = vpop.f32.mrb[0].mxu0
        %5087 = vdwg.mxu0
        %v5088 = vadd.f32 %v4899, %v5050
        %v5089 = vadd.f32 %v4904, %v5055
        %v5090 = vadd.f32 %v4909, %v5060
        %v5091 = vadd.f32 %v4914, %v5065
        %v5092 = vadd.f32 %v4919, %v5070
        %v5093 = vadd.f32 %v4924, %v5075
        %v5094 = vadd.f32 %v4929, %v5080
        %v5095 = vadd.f32 %v4934, %v5085
        %v5096 = vrot.slane %v4602, 3
        %v5097 = vrot.slane %v4603, 3
        %v5098 = vsel %vm900, %v5096, %v5097
        %v5099 = vrot.slane %v4604, 3
        %v5100 = vrot.slane %v4605, 3
        %v5101 = vsel %vm900, %v5099, %v5100
        %v5102 = vrot.slane %v4606, 3
        %v5103 = vrot.slane %v4607, 3
        %v5104 = vsel %vm900, %v5102, %v5103
        %v5105 = vrot.slane %v4608, 3
        %v5106 = vrot.slane %v4609, 3
        %v5107 = vsel %vm900, %v5105, %v5106
        %v5108 = vrot.slane %v4610, 3
        %v5109 = vrot.slane %v4611, 3
        %v5110 = vsel %vm900, %v5108, %v5109
        %v5111 = vrot.slane %v4612, 3
        %v5112 = vrot.slane %v4613, 3
        %v5113 = vsel %vm900, %v5111, %v5112
        %v5114 = vrot.slane %v4614, 3
        %v5115 = vrot.slane %v4615, 3
        %v5116 = vsel %vm900, %v5114, %v5115
        %v5117 = vrot.slane %v4616, 3
        %v5118 = vrot.slane %v4617, 3
        %v5119 = vsel %vm900, %v5117, %v5118
        %v5120 = vrot.slane %v4628, 2
        %v5121 = vsel %vm4426, %v5098, 0
        %v5123 = vsel %vm4426, %v5101, 0
        %v5125 = vsel %vm4426, %v5104, 0
        %v5127 = vsel %vm4426, %v5107, 0
        %v5129 = vsel %vm4426, %v5110, 0
        %v5131 = vsel %vm4426, %v5113, 0
        %v5133 = vsel %vm4426, %v5116, 0
        %v5135 = vsel %vm4426, %v5119, 0
        %v5137 = vsel %vm1899, %v5120, 0
        %5139 = vmatprep.subr.mxu0 0.0
        %5140 = vmatpush1.msra.mxu0 %v5137
        %5141 = vmatprep.subr.mxu0 0.0
        %5142 = vmatpush1.msra.mxu0 0.0
        %5143 = vmatprep.subr.mxu0 0.0
        %5144 = vmatpush1.msra.mxu0 0.0
        %5145 = vmatprep.subr.mxu0 0.0
        %5146 = vmatpush1.msra.mxu0 0.0
        %5147 = vmatprep.subr.mxu0 0.0
        %5148 = vmatpush1.msra.mxu0 0.0
        %5149 = vmatprep.subr.mxu0 0.0
        %5150 = vmatpush1.msra.mxu0 0.0
        %5151 = vmatprep.subr.mxu0 0.0
        %5152 = vmatpush1.msra.mxu0 0.0
        %5153 = vmatprep.subr.mxu0 0.0
        %5154 = vmatpush1.msra.mxu0 0.0
        %5155 = vmatprep.subr.mxu0 0.0
        %5156 = vmatpush1.msra.mxu0 0.0
        %5157 = vmatprep.subr.mxu0 0.0
        %5158 = vmatpush1.msra.mxu0 0.0
        %5159 = vmatprep.subr.mxu0 0.0
        %5160 = vmatpush1.msra.mxu0 0.0
        %5161 = vmatprep.subr.mxu0 0.0
        %5162 = vmatpush1.msra.mxu0 0.0
        %5163 = vmatprep.subr.mxu0 0.0
        %5164 = vmatpush1.msra.mxu0 0.0
        %5165 = vmatprep.subr.mxu0 0.0
        %5166 = vmatpush1.msra.mxu0 0.0
        %5167 = vmatprep.subr.mxu0 0.0
        %5168 = vmatpush1.msra.mxu0 0.0
        %5169 = vmatprep.subr.mxu0 0.0
        %5170 = vmatpush1.msra.mxu0 0.0
        %5171 = vmatprep.subr.mxu0 0.0
        %5172 = vmatpush1.msra.mxu0 0.0
        %5173 = vmatprep.subr.mxu0 0.0
        %5174 = vmatpush1.msra.mxu0 0.0
        %5175 = vmatprep.subr.mxu0 0.0
        %5176 = vmatpush1.msra.mxu0 0.0
        %5177 = vmatprep.subr.mxu0 0.0
        %5178 = vmatpush1.msra.mxu0 0.0
        %5179 = vmatprep.subr.mxu0 0.0
        %5180 = vmatpush1.msra.mxu0 0.0
        %5181 = vmatprep.subr.mxu0 0.0
        %5182 = vmatpush1.msra.mxu0 0.0
        %5183 = vmatprep.subr.mxu0 0.0
        %5184 = vmatpush1.msra.mxu0 0.0
        %5185 = vmatprep.subr.mxu0 0.0
        %5186 = vmatpush1.msra.mxu0 0.0
        %5187 = vmatprep.subr.mxu0 0.0
        %5188 = vmatpush1.msra.mxu0 0.0
        %5189 = vmatprep.subr.mxu0 0.0
        %5190 = vmatpush1.msra.mxu0 0.0
        %5191 = vmatprep.subr.mxu0 0.0
        %5192 = vmatpush1.msra.mxu0 0.0
        %5193 = vmatprep.subr.mxu0 0.0
        %5194 = vmatpush1.msra.mxu0 0.0
        %5195 = vmatprep.subr.mxu0 0.0
        %5196 = vmatpush1.msra.mxu0 0.0
        %5197 = vmatprep.subr.mxu0 0.0
        %5198 = vmatpush1.msra.mxu0 0.0
        %5199 = vmatprep.subr.mxu0 0.0
        %5200 = vmatpush1.msra.mxu0 0.0
        %5201 = vmatprep.subr.mxu0 0.0
        %5202 = vmatpush1.msra.mxu0 0.0
        %5203 = vmatprep.mubr.f32.mxu0 0.0
        %5204 = vmatmul.mubr.f32.gmra.mrb[0].mxu0 %v5121
        %v5205 = vpop.f32.mrb[0].mxu0
        %v5206 = vadd.f32 0.0, %v5205
        %v5207 = vpop.f32.mrb[0].mxu0
        %5208 = vmatprep.mubr.f32.mxu0 0.0
        %5209 = vmatmul.mubr.f32.gmra.mrb[0].mxu0 %v5123
        %v5210 = vpop.f32.mrb[0].mxu0
        %v5211 = vadd.f32 0.0, %v5210
        %v5212 = vpop.f32.mrb[0].mxu0
        %5213 = vmatprep.mubr.f32.mxu0 0.0
        %5214 = vmatmul.mubr.f32.gmra.mrb[0].mxu0 %v5125
        %v5215 = vpop.f32.mrb[0].mxu0
        %v5216 = vadd.f32 0.0, %v5215
        %v5217 = vpop.f32.mrb[0].mxu0
        %5218 = vmatprep.mubr.f32.mxu0 0.0
        %5219 = vmatmul.mubr.f32.gmra.mrb[0].mxu0 %v5127
        %v5220 = vpop.f32.mrb[0].mxu0
        %v5221 = vadd.f32 0.0, %v5220
        %v5222 = vpop.f32.mrb[0].mxu0
        %5223 = vmatprep.mubr.f32.mxu0 0.0
        %5224 = vmatmul.mubr.f32.gmra.mrb[0].mxu0 %v5129
        %v5225 = vpop.f32.mrb[0].mxu0
        %v5226 = vadd.f32 0.0, %v5225
        %v5227 = vpop.f32.mrb[0].mxu0
        %5228 = vmatprep.mubr.f32.mxu0 0.0
        %5229 = vmatmul.mubr.f32.gmra.mrb[0].mxu0 %v5131
        %v5230 = vpop.f32.mrb[0].mxu0
        %v5231 = vadd.f32 0.0, %v5230
        %v5232 = vpop.f32.mrb[0].mxu0
        %5233 = vmatprep.mubr.f32.mxu0 0.0
        %5234 = vmatmul.mubr.f32.gmra.mrb[0].mxu0 %v5133
        %v5235 = vpop.f32.mrb[0].mxu0
        %v5236 = vadd.f32 0.0, %v5235
        %v5237 = vpop.f32.mrb[0].mxu0
        %5238 = vmatprep.mubr.f32.mxu0 0.0
        %5239 = vmatmul.mubr.f32.gmra.mrb[0].mxu0 %v5135
        %v5240 = vpop.f32.mrb[0].mxu0
        %v5241 = vadd.f32 0.0, %v5240
        %v5242 = vpop.f32.mrb[0].mxu0
        %5243 = vdwg.mxu0
        %v5244 = vadd.f32 %v5088, %v5206
        %v5245 = vadd.f32 %v5089, %v5211
        %v5246 = vadd.f32 %v5090, %v5216
        %v5247 = vadd.f32 %v5091, %v5221
        %v5248 = vadd.f32 %v5092, %v5226
        %v5249 = vadd.f32 %v5093, %v5231
        %v5250 = vadd.f32 %v5094, %v5236
        %v5251 = vadd.f32 %v5095, %v5241
        %v5252 = vrot.slane %v4602, 4
        %v5253 = vrot.slane %v4603, 4
        %v5254 = vsel %vm3528, %v5252, %v5253
        %v5255 = vrot.slane %v4604, 4
        %v5256 = vrot.slane %v4605, 4
        %v5257 = vsel %vm3528, %v5255, %v5256
        %v5258 = vrot.slane %v4606, 4
        %v5259 = vrot.slane %v4607, 4
        %v5260 = vsel %vm3528, %v5258, %v5259
        %v5261 = vrot.slane %v4608, 4
        %v5262 = vrot.slane %v4609, 4
        %v5263 = vsel %vm3528, %v5261, %v5262
        %v5264 = vrot.slane %v4610, 4
        %v5265 = vrot.slane %v4611, 4
        %v5266 = vsel %vm3528, %v5264, %v5265
        %v5267 = vrot.slane %v4612, 4
        %v5268 = vrot.slane %v4613, 4
        %v5269 = vsel %vm3528, %v5267, %v5268
        %v5270 = vrot.slane %v4614, 4
        %v5271 = vrot.slane %v4615, 4
        %v5272 = vsel %vm3528, %v5270, %v5271
        %v5273 = vrot.slane %v4616, 4
        %v5274 = vrot.slane %v4617, 4
        %v5275 = vsel %vm3528, %v5273, %v5274
        %v5276 = vsel %vm4426, %v5254, 0
        %v5278 = vsel %vm4426, %v5257, 0
        %v5280 = vsel %vm4426, %v5260, 0
        %v5282 = vsel %vm4426, %v5263, 0
        %v5284 = vsel %vm4426, %v5266, 0
        %v5286 = vsel %vm4426, %v5269, 0
        %v5288 = vsel %vm4426, %v5272, 0
        %v5290 = vsel %vm4426, %v5275, 0
        %v5293 = vsel %vm1899, %v4629, 0
        %5295 = vmatprep.subr.mxu0 0.0
        %5296 = vmatpush1.msra.mxu0 %v5293
        %5297 = vmatprep.subr.mxu0 0.0
        %5298 = vmatpush1.msra.mxu0 0.0
        %5299 = vmatprep.subr.mxu0 0.0
        %5300 = vmatpush1.msra.mxu0 0.0
        %5301 = vmatprep.subr.mxu0 0.0
        %5302 = vmatpush1.msra.mxu0 0.0
        %5303 = vmatprep.subr.mxu0 0.0
        %5304 = vmatpush1.msra.mxu0 0.0
        %5305 = vmatprep.subr.mxu0 0.0
        %5306 = vmatpush1.msra.mxu0 0.0
        %5307 = vmatprep.subr.mxu0 0.0
        %5308 = vmatpush1.msra.mxu0 0.0
        %5309 = vmatprep.subr.mxu0 0.0
        %5310 = vmatpush1.msra.mxu0 0.0
        %5311 = vmatprep.subr.mxu0 0.0
        %5312 = vmatpush1.msra.mxu0 0.0
        %5313 = vmatprep.subr.mxu0 0.0
        %5314 = vmatpush1.msra.mxu0 0.0
        %5315 = vmatprep.subr.mxu0 0.0
        %5316 = vmatpush1.msra.mxu0 0.0
        %5317 = vmatprep.subr.mxu0 0.0
        %5318 = vmatpush1.msra.mxu0 0.0
        %5319 = vmatprep.subr.mxu0 0.0
        %5320 = vmatpush1.msra.mxu0 0.0
        %5321 = vmatprep.subr.mxu0 0.0
        %5322 = vmatpush1.msra.mxu0 0.0
        %5323 = vmatprep.subr.mxu0 0.0
        %5324 = vmatpush1.msra.mxu0 0.0
        %5325 = vmatprep.subr.mxu0 0.0
        %5326 = vmatpush1.msra.mxu0 0.0
        %5327 = vmatprep.subr.mxu0 0.0
        %5328 = vmatpush1.msra.mxu0 0.0
        %5329 = vmatprep.subr.mxu0 0.0
        %5330 = vmatpush1.msra.mxu0 0.0
        %5331 = vmatprep.subr.mxu0 0.0
        %5332 = vmatpush1.msra.mxu0 0.0
        %5333 = vmatprep.subr.mxu0 0.0
        %5334 = vmatpush1.msra.mxu0 0.0
        %5335 = vmatprep.subr.mxu0 0.0
        %5336 = vmatpush1.msra.mxu0 0.0
        %5337 = vmatprep.subr.mxu0 0.0
        %5338 = vmatpush1.msra.mxu0 0.0
        %5339 = vmatprep.subr.mxu0 0.0
        %5340 = vmatpush1.msra.mxu0 0.0
        %5341 = vmatprep.subr.mxu0 0.0
        %5342 = vmatpush1.msra.mxu0 0.0
        %5343 = vmatprep.subr.mxu0 0.0
        %5344 = vmatpush1.msra.mxu0 0.0
        %5345 = vmatprep.subr.mxu0 0.0
        %5346 = vmatpush1.msra.mxu0 0.0
        %5347 = vmatprep.subr.mxu0 0.0
        %5348 = vmatpush1.msra.mxu0 0.0
        %5349 = vmatprep.subr.mxu0 0.0
        %5350 = vmatpush1.msra.mxu0 0.0
        %5351 = vmatprep.subr.mxu0 0.0
        %5352 = vmatpush1.msra.mxu0 0.0
        %5353 = vmatprep.subr.mxu0 0.0
        %5354 = vmatpush1.msra.mxu0 0.0
        %5355 = vmatprep.subr.mxu0 0.0
        %5356 = vmatpush1.msra.mxu0 0.0
        %5357 = vmatprep.subr.mxu0 0.0
        %5358 = vmatpush1.msra.mxu0 0.0
        %5359 = vmatprep.mubr.f32.mxu0 0.0
        %5360 = vmatmul.mubr.f32.gmra.mrb[0].mxu0 %v5276
        %v5361 = vpop.f32.mrb[0].mxu0
        %v5362 = vadd.f32 0.0, %v5361
        %v5363 = vpop.f32.mrb[0].mxu0
        %5364 = vmatprep.mubr.f32.mxu0 0.0
        %5365 = vmatmul.mubr.f32.gmra.mrb[0].mxu0 %v5278
        %v5366 = vpop.f32.mrb[0].mxu0
        %v5367 = vadd.f32 0.0, %v5366
        %v5368 = vpop.f32.mrb[0].mxu0
        %5369 = vmatprep.mubr.f32.mxu0 0.0
        %5370 = vmatmul.mubr.f32.gmra.mrb[0].mxu0 %v5280
        %v5371 = vpop.f32.mrb[0].mxu0
        %v5372 = vadd.f32 0.0, %v5371
        %v5373 = vpop.f32.mrb[0].mxu0
        %5374 = vmatprep.mubr.f32.mxu0 0.0
        %5375 = vmatmul.mubr.f32.gmra.mrb[0].mxu0 %v5282
        %v5376 = vpop.f32.mrb[0].mxu0
        %v5377 = vadd.f32 0.0, %v5376
        %v5378 = vpop.f32.mrb[0].mxu0
        %5379 = vmatprep.mubr.f32.mxu0 0.0
        %5380 = vmatmul.mubr.f32.gmra.mrb[0].mxu0 %v5284
        %v5381 = vpop.f32.mrb[0].mxu0
        %v5382 = vadd.f32 0.0, %v5381
        %v5383 = vpop.f32.mrb[0].mxu0
        %5384 = vmatprep.mubr.f32.mxu0 0.0
        %5385 = vmatmul.mubr.f32.gmra.mrb[0].mxu0 %v5286
        %v5386 = vpop.f32.mrb[0].mxu0
        %v5387 = vadd.f32 0.0, %v5386
        %v5388 = vpop.f32.mrb[0].mxu0
        %5389 = vmatprep.mubr.f32.mxu0 0.0
        %5390 = vmatmul.mubr.f32.gmra.mrb[0].mxu0 %v5288
        %v5391 = vpop.f32.mrb[0].mxu0
        %v5392 = vadd.f32 0.0, %v5391
        %v5393 = vpop.f32.mrb[0].mxu0
        %5394 = vmatprep.mubr.f32.mxu0 0.0
        %5395 = vmatmul.mubr.f32.gmra.mrb[0].mxu0 %v5290
        %v5396 = vpop.f32.mrb[0].mxu0
        %v5397 = vadd.f32 0.0, %v5396
        %v5398 = vpop.f32.mrb[0].mxu0
        %5399 = vdwg.mxu0
        %v5400 = vadd.f32 %v5244, %v5362
        %v5401 = vadd.f32 %v5245, %v5367
        %v5402 = vadd.f32 %v5246, %v5372
        %v5403 = vadd.f32 %v5247, %v5377
        %v5404 = vadd.f32 %v5248, %v5382
        %v5405 = vadd.f32 %v5249, %v5387
        %v5406 = vadd.f32 %v5250, %v5392
        %v5407 = vadd.f32 %v5251, %v5397
        %v5409 = vrot.slane %v4629, 6
        %v5410 = vrot.slane %v4630, 6
        %v5411 = vsel %vm4687, %v5409, %v5410
        %v5413 = vsel %vm4426, %v4618, 0
        %v5415 = vsel %vm1899, %v5411, 0
        %5417 = vmatprep.subr.mxu0 0.0
        %5418 = vmatpush1.msra.mxu0 %v5415
        %5419 = vmatprep.subr.mxu0 0.0
        %5420 = vmatpush1.msra.mxu0 0.0
        %5421 = vmatprep.subr.mxu0 0.0
        %5422 = vmatpush1.msra.mxu0 0.0
        %5423 = vmatprep.subr.mxu0 0.0
        %5424 = vmatpush1.msra.mxu0 0.0
        %5425 = vmatprep.subr.mxu0 0.0
        %5426 = vmatpush1.msra.mxu0 0.0
        %5427 = vmatprep.subr.mxu0 0.0
        %5428 = vmatpush1.msra.mxu0 0.0
        %5429 = vmatprep.subr.mxu0 0.0
        %5430 = vmatpush1.msra.mxu0 0.0
        %5431 = vmatprep.subr.mxu0 0.0
        %5432 = vmatpush1.msra.mxu0 0.0
        %5433 = vmatprep.subr.mxu0 0.0
        %5434 = vmatpush1.msra.mxu0 0.0
        %5435 = vmatprep.subr.mxu0 0.0
        %5436 = vmatpush1.msra.mxu0 0.0
        %5437 = vmatprep.subr.mxu0 0.0
        %5438 = vmatpush1.msra.mxu0 0.0
        %5439 = vmatprep.subr.mxu0 0.0
        %5440 = vmatpush1.msra.mxu0 0.0
        %5441 = vmatprep.subr.mxu0 0.0
        %5442 = vmatpush1.msra.mxu0 0.0
        %5443 = vmatprep.subr.mxu0 0.0
        %5444 = vmatpush1.msra.mxu0 0.0
        %5445 = vmatprep.subr.mxu0 0.0
        %5446 = vmatpush1.msra.mxu0 0.0
        %5447 = vmatprep.subr.mxu0 0.0
        %5448 = vmatpush1.msra.mxu0 0.0
        %5449 = vmatprep.subr.mxu0 0.0
        %5450 = vmatpush1.msra.mxu0 0.0
        %5451 = vmatprep.subr.mxu0 0.0
        %5452 = vmatpush1.msra.mxu0 0.0
        %5453 = vmatprep.subr.mxu0 0.0
        %5454 = vmatpush1.msra.mxu0 0.0
        %5455 = vmatprep.subr.mxu0 0.0
        %5456 = vmatpush1.msra.mxu0 0.0
        %5457 = vmatprep.subr.mxu0 0.0
        %5458 = vmatpush1.msra.mxu0 0.0
        %5459 = vmatprep.subr.mxu0 0.0
        %5460 = vmatpush1.msra.mxu0 0.0
        %5461 = vmatprep.subr.mxu0 0.0
        %5462 = vmatpush1.msra.mxu0 0.0
        %5463 = vmatprep.subr.mxu0 0.0
        %5464 = vmatpush1.msra.mxu0 0.0
        %5465 = vmatprep.subr.mxu0 0.0
        %5466 = vmatpush1.msra.mxu0 0.0
        %5467 = vmatprep.subr.mxu0 0.0
        %5468 = vmatpush1.msra.mxu0 0.0
        %5469 = vmatprep.subr.mxu0 0.0
        %5470 = vmatpush1.msra.mxu0 0.0
        %5471 = vmatprep.subr.mxu0 0.0
        %5472 = vmatpush1.msra.mxu0 0.0
        %5473 = vmatprep.subr.mxu0 0.0
        %5474 = vmatpush1.msra.mxu0 0.0
        %5475 = vmatprep.subr.mxu0 0.0
        %5476 = vmatpush1.msra.mxu0 0.0
        %5477 = vmatprep.subr.mxu0 0.0
        %5478 = vmatpush1.msra.mxu0 0.0
        %5479 = vmatprep.subr.mxu0 0.0
        %5480 = vmatpush1.msra.mxu0 0.0
        %5481 = vmatprep.mubr.f32.mxu0 0.0
        %5482 = vmatmul.mubr.f32.gmra.mrb[0].mxu0 %v4816
        %v5483 = vpop.f32.mrb[0].mxu0
        %v5484 = vadd.f32 0.0, %v5483
        %v5485 = vpop.f32.mrb[0].mxu0
        %5486 = vmatprep.mubr.f32.mxu0 0.0
        %5487 = vmatmul.mubr.f32.gmra.mrb[0].mxu0 %v4818
        %v5488 = vpop.f32.mrb[0].mxu0
        %v5489 = vadd.f32 0.0, %v5488
        %v5490 = vpop.f32.mrb[0].mxu0
        %5491 = vmatprep.mubr.f32.mxu0 0.0
        %5492 = vmatmul.mubr.f32.gmra.mrb[0].mxu0 %v4820
        %v5493 = vpop.f32.mrb[0].mxu0
        %v5494 = vadd.f32 0.0, %v5493
        %v5495 = vpop.f32.mrb[0].mxu0
        %5496 = vmatprep.mubr.f32.mxu0 0.0
        %5497 = vmatmul.mubr.f32.gmra.mrb[0].mxu0 %v4822
        %v5498 = vpop.f32.mrb[0].mxu0
        %v5499 = vadd.f32 0.0, %v5498
        %v5500 = vpop.f32.mrb[0].mxu0
        %5501 = vmatprep.mubr.f32.mxu0 0.0
        %5502 = vmatmul.mubr.f32.gmra.mrb[0].mxu0 %v4824
        %v5503 = vpop.f32.mrb[0].mxu0
        %v5504 = vadd.f32 0.0, %v5503
        %v5505 = vpop.f32.mrb[0].mxu0
        %5506 = vmatprep.mubr.f32.mxu0 0.0
        %5507 = vmatmul.mubr.f32.gmra.mrb[0].mxu0 %v4826
        %v5508 = vpop.f32.mrb[0].mxu0
        %v5509 = vadd.f32 0.0, %v5508
        %v5510 = vpop.f32.mrb[0].mxu0
        %5511 = vmatprep.mubr.f32.mxu0 0.0
        %5512 = vmatmul.mubr.f32.gmra.mrb[0].mxu0 %v4828
        %v5513 = vpop.f32.mrb[0].mxu0
        %v5514 = vadd.f32 0.0, %v5513
        %v5515 = vpop.f32.mrb[0].mxu0
        %5516 = vmatprep.mubr.f32.mxu0 0.0
        %5517 = vmatmul.mubr.f32.gmra.mrb[0].mxu0 %v5413
        %v5518 = vpop.f32.mrb[0].mxu0
        %v5519 = vadd.f32 0.0, %v5518
        %v5520 = vpop.f32.mrb[0].mxu0
        %5521 = vdwg.mxu0
        %v5522 = vadd.f32 %v5400, %v5484
        %v5523 = vadd.f32 %v5401, %v5489
        %v5524 = vadd.f32 %v5402, %v5494
        %v5525 = vadd.f32 %v5403, %v5499
        %v5526 = vadd.f32 %v5404, %v5504
        %v5527 = vadd.f32 %v5405, %v5509
        %v5528 = vadd.f32 %v5406, %v5514
        %v5529 = vadd.f32 %v5407, %v5519
        %v5531 = vrot.slane %v4618, 1
        %v5532 = vrot.slane %v4619, 1
        %v5533 = vsel %vm580, %v5531, %v5532
        %v5535 = vrot.slane %v4630, 4
        %v5536 = vrot.slane %v4631, 4
        %v5537 = vsel %vm3528, %v5535, %v5536
        %v5538 = vsel %vm4426, %v5533, 0
        %v5540 = vsel %vm1899, %v5537, 0
        %5542 = vmatprep.subr.mxu0 0.0
        %5543 = vmatpush1.msra.mxu0 %v5540
        %5544 = vmatprep.subr.mxu0 0.0
        %5545 = vmatpush1.msra.mxu0 0.0
        %5546 = vmatprep.subr.mxu0 0.0
        %5547 = vmatpush1.msra.mxu0 0.0
        %5548 = vmatprep.subr.mxu0 0.0
        %5549 = vmatpush1.msra.mxu0 0.0
        %5550 = vmatprep.subr.mxu0 0.0
        %5551 = vmatpush1.msra.mxu0 0.0
        %5552 = vmatprep.subr.mxu0 0.0
        %5553 = vmatpush1.msra.mxu0 0.0
        %5554 = vmatprep.subr.mxu0 0.0
        %5555 = vmatpush1.msra.mxu0 0.0
        %5556 = vmatprep.subr.mxu0 0.0
        %5557 = vmatpush1.msra.mxu0 0.0
        %5558 = vmatprep.subr.mxu0 0.0
        %5559 = vmatpush1.msra.mxu0 0.0
        %5560 = vmatprep.subr.mxu0 0.0
        %5561 = vmatpush1.msra.mxu0 0.0
        %5562 = vmatprep.subr.mxu0 0.0
        %5563 = vmatpush1.msra.mxu0 0.0
        %5564 = vmatprep.subr.mxu0 0.0
        %5565 = vmatpush1.msra.mxu0 0.0
        %5566 = vmatprep.subr.mxu0 0.0
        %5567 = vmatpush1.msra.mxu0 0.0
        %5568 = vmatprep.subr.mxu0 0.0
        %5569 = vmatpush1.msra.mxu0 0.0
        %5570 = vmatprep.subr.mxu0 0.0
        %5571 = vmatpush1.msra.mxu0 0.0
        %5572 = vmatprep.subr.mxu0 0.0
        %5573 = vmatpush1.msra.mxu0 0.0
        %5574 = vmatprep.subr.mxu0 0.0
        %5575 = vmatpush1.msra.mxu0 0.0
        %5576 = vmatprep.subr.mxu0 0.0
        %5577 = vmatpush1.msra.mxu0 0.0
        %5578 = vmatprep.subr.mxu0 0.0
        %5579 = vmatpush1.msra.mxu0 0.0
        %5580 = vmatprep.subr.mxu0 0.0
        %5581 = vmatpush1.msra.mxu0 0.0
        %5582 = vmatprep.subr.mxu0 0.0
        %5583 = vmatpush1.msra.mxu0 0.0
        %5584 = vmatprep.subr.mxu0 0.0
        %5585 = vmatpush1.msra.mxu0 0.0
        %5586 = vmatprep.subr.mxu0 0.0
        %5587 = vmatpush1.msra.mxu0 0.0
        %5588 = vmatprep.subr.mxu0 0.0
        %5589 = vmatpush1.msra.mxu0 0.0
        %5590 = vmatprep.subr.mxu0 0.0
        %5591 = vmatpush1.msra.mxu0 0.0
        %5592 = vmatprep.subr.mxu0 0.0
        %5593 = vmatpush1.msra.mxu0 0.0
        %5594 = vmatprep.subr.mxu0 0.0
        %5595 = vmatpush1.msra.mxu0 0.0
        %5596 = vmatprep.subr.mxu0 0.0
        %5597 = vmatpush1.msra.mxu0 0.0
        %5598 = vmatprep.subr.mxu0 0.0
        %5599 = vmatpush1.msra.mxu0 0.0
        %5600 = vmatprep.subr.mxu0 0.0
        %5601 = vmatpush1.msra.mxu0 0.0
        %5602 = vmatprep.subr.mxu0 0.0
        %5603 = vmatpush1.msra.mxu0 0.0
        %5604 = vmatprep.subr.mxu0 0.0
        %5605 = vmatpush1.msra.mxu0 0.0
        %5606 = vmatprep.mubr.f32.mxu0 0.0
        %5607 = vmatmul.mubr.f32.gmra.mrb[0].mxu0 %v4693
        %v5608 = vpop.f32.mrb[0].mxu0
        %v5609 = vadd.f32 0.0, %v5608
        %v5610 = vpop.f32.mrb[0].mxu0
        %5611 = vmatprep.mubr.f32.mxu0 0.0
        %5612 = vmatmul.mubr.f32.gmra.mrb[0].mxu0 %v4695
        %v5613 = vpop.f32.mrb[0].mxu0
        %v5614 = vadd.f32 0.0, %v5613
        %v5615 = vpop.f32.mrb[0].mxu0
        %5616 = vmatprep.mubr.f32.mxu0 0.0
        %5617 = vmatmul.mubr.f32.gmra.mrb[0].mxu0 %v4697
        %v5618 = vpop.f32.mrb[0].mxu0
        %v5619 = vadd.f32 0.0, %v5618
        %v5620 = vpop.f32.mrb[0].mxu0
        %5621 = vmatprep.mubr.f32.mxu0 0.0
        %5622 = vmatmul.mubr.f32.gmra.mrb[0].mxu0 %v4699
        %v5623 = vpop.f32.mrb[0].mxu0
        %v5624 = vadd.f32 0.0, %v5623
        %v5625 = vpop.f32.mrb[0].mxu0
        %5626 = vmatprep.mubr.f32.mxu0 0.0
        %5627 = vmatmul.mubr.f32.gmra.mrb[0].mxu0 %v4701
        %v5628 = vpop.f32.mrb[0].mxu0
        %v5629 = vadd.f32 0.0, %v5628
        %v5630 = vpop.f32.mrb[0].mxu0
        %5631 = vmatprep.mubr.f32.mxu0 0.0
        %5632 = vmatmul.mubr.f32.gmra.mrb[0].mxu0 %v4703
        %v5633 = vpop.f32.mrb[0].mxu0
        %v5634 = vadd.f32 0.0, %v5633
        %v5635 = vpop.f32.mrb[0].mxu0
        %5636 = vmatprep.mubr.f32.mxu0 0.0
        %5637 = vmatmul.mubr.f32.gmra.mrb[0].mxu0 %v4705
        %v5638 = vpop.f32.mrb[0].mxu0
        %v5639 = vadd.f32 0.0, %v5638
        %v5640 = vpop.f32.mrb[0].mxu0
        %5641 = vmatprep.mubr.f32.mxu0 0.0
        %5642 = vmatmul.mubr.f32.gmra.mrb[0].mxu0 %v5538
        %v5643 = vpop.f32.mrb[0].mxu0
        %v5644 = vadd.f32 0.0, %v5643
        %v5645 = vpop.f32.mrb[0].mxu0
        %5646 = vdwg.mxu0
        %v5647 = vadd.f32 %v5522, %v5609
        %v5648 = vadd.f32 %v5523, %v5614
        %v5649 = vadd.f32 %v5524, %v5619
        %v5650 = vadd.f32 %v5525, %v5624
        %v5651 = vadd.f32 %v5526, %v5629
        %v5652 = vadd.f32 %v5527, %v5634
        %v5653 = vadd.f32 %v5528, %v5639
        %v5654 = vadd.f32 %v5529, %v5644
        %v5655 = vrot.slane %v4618, 2
        %v5656 = vrot.slane %v4619, 2
        %v5657 = vsel %vm1899, %v5655, %v5656
        %v5658 = vrot.slane %v4631, 2
        %v5659 = vsel %vm4426, %v5657, 0
        %v5661 = vsel %vm1899, %v5658, 0
        %5663 = vmatprep.subr.mxu0 0.0
        %5664 = vmatpush1.msra.mxu0 %v5661
        %5665 = vmatprep.subr.mxu0 0.0
        %5666 = vmatpush1.msra.mxu0 0.0
        %5667 = vmatprep.subr.mxu0 0.0
        %5668 = vmatpush1.msra.mxu0 0.0
        %5669 = vmatprep.subr.mxu0 0.0
        %5670 = vmatpush1.msra.mxu0 0.0
        %5671 = vmatprep.subr.mxu0 0.0
        %5672 = vmatpush1.msra.mxu0 0.0
        %5673 = vmatprep.subr.mxu0 0.0
        %5674 = vmatpush1.msra.mxu0 0.0
        %5675 = vmatprep.subr.mxu0 0.0
        %5676 = vmatpush1.msra.mxu0 0.0
        %5677 = vmatprep.subr.mxu0 0.0
        %5678 = vmatpush1.msra.mxu0 0.0
        %5679 = vmatprep.subr.mxu0 0.0
        %5680 = vmatpush1.msra.mxu0 0.0
        %5681 = vmatprep.subr.mxu0 0.0
        %5682 = vmatpush1.msra.mxu0 0.0
        %5683 = vmatprep.subr.mxu0 0.0
        %5684 = vmatpush1.msra.mxu0 0.0
        %5685 = vmatprep.subr.mxu0 0.0
        %5686 = vmatpush1.msra.mxu0 0.0
        %5687 = vmatprep.subr.mxu0 0.0
        %5688 = vmatpush1.msra.mxu0 0.0
        %5689 = vmatprep.subr.mxu0 0.0
        %5690 = vmatpush1.msra.mxu0 0.0
        %5691 = vmatprep.subr.mxu0 0.0
        %5692 = vmatpush1.msra.mxu0 0.0
        %5693 = vmatprep.subr.mxu0 0.0
        %5694 = vmatpush1.msra.mxu0 0.0
        %5695 = vmatprep.subr.mxu0 0.0
        %5696 = vmatpush1.msra.mxu0 0.0
        %5697 = vmatprep.subr.mxu0 0.0
        %5698 = vmatpush1.msra.mxu0 0.0
        %5699 = vmatprep.subr.mxu0 0.0
        %5700 = vmatpush1.msra.mxu0 0.0
        %5701 = vmatprep.subr.mxu0 0.0
        %5702 = vmatpush1.msra.mxu0 0.0
        %5703 = vmatprep.subr.mxu0 0.0
        %5704 = vmatpush1.msra.mxu0 0.0
        %5705 = vmatprep.subr.mxu0 0.0
        %5706 = vmatpush1.msra.mxu0 0.0
        %5707 = vmatprep.subr.mxu0 0.0
        %5708 = vmatpush1.msra.mxu0 0.0
        %5709 = vmatprep.subr.mxu0 0.0
        %5710 = vmatpush1.msra.mxu0 0.0
        %5711 = vmatprep.subr.mxu0 0.0
        %5712 = vmatpush1.msra.mxu0 0.0
        %5713 = vmatprep.subr.mxu0 0.0
        %5714 = vmatpush1.msra.mxu0 0.0
        %5715 = vmatprep.subr.mxu0 0.0
        %5716 = vmatpush1.msra.mxu0 0.0
        %5717 = vmatprep.subr.mxu0 0.0
        %5718 = vmatpush1.msra.mxu0 0.0
        %5719 = vmatprep.subr.mxu0 0.0
        %5720 = vmatpush1.msra.mxu0 0.0
        %5721 = vmatprep.subr.mxu0 0.0
        %5722 = vmatpush1.msra.mxu0 0.0
        %5723 = vmatprep.subr.mxu0 0.0
        %5724 = vmatpush1.msra.mxu0 0.0
        %5725 = vmatprep.subr.mxu0 0.0
        %5726 = vmatpush1.msra.mxu0 0.0
        %5727 = vmatprep.mubr.f32.mxu0 0.0
        %5728 = vmatmul.mubr.f32.gmra.mrb[0].mxu0 %v4967
        %v5729 = vpop.f32.mrb[0].mxu0
        %v5730 = vadd.f32 0.0, %v5729
        %v5731 = vpop.f32.mrb[0].mxu0
        %5732 = vmatprep.mubr.f32.mxu0 0.0
        %5733 = vmatmul.mubr.f32.gmra.mrb[0].mxu0 %v4969
        %v5734 = vpop.f32.mrb[0].mxu0
        %v5735 = vadd.f32 0.0, %v5734
        %v5736 = vpop.f32.mrb[0].mxu0
        %5737 = vmatprep.mubr.f32.mxu0 0.0
        %5738 = vmatmul.mubr.f32.gmra.mrb[0].mxu0 %v4971
        %v5739 = vpop.f32.mrb[0].mxu0
        %v5740 = vadd.f32 0.0, %v5739
        %v5741 = vpop.f32.mrb[0].mxu0
        %5742 = vmatprep.mubr.f32.mxu0 0.0
        %5743 = vmatmul.mubr.f32.gmra.mrb[0].mxu0 %v4973
        %v5744 = vpop.f32.mrb[0].mxu0
        %v5745 = vadd.f32 0.0, %v5744
        %v5746 = vpop.f32.mrb[0].mxu0
        %5747 = vmatprep.mubr.f32.mxu0 0.0
        %5748 = vmatmul.mubr.f32.gmra.mrb[0].mxu0 %v4975
        %v5749 = vpop.f32.mrb[0].mxu0
        %v5750 = vadd.f32 0.0, %v5749
        %v5751 = vpop.f32.mrb[0].mxu0
        %5752 = vmatprep.mubr.f32.mxu0 0.0
        %5753 = vmatmul.mubr.f32.gmra.mrb[0].mxu0 %v4977
        %v5754 = vpop.f32.mrb[0].mxu0
        %v5755 = vadd.f32 0.0, %v5754
        %v5756 = vpop.f32.mrb[0].mxu0
        %5757 = vmatprep.mubr.f32.mxu0 0.0
        %5758 = vmatmul.mubr.f32.gmra.mrb[0].mxu0 %v4979
        %v5759 = vpop.f32.mrb[0].mxu0
        %v5760 = vadd.f32 0.0, %v5759
        %v5761 = vpop.f32.mrb[0].mxu0
        %5762 = vmatprep.mubr.f32.mxu0 0.0
        %5763 = vmatmul.mubr.f32.gmra.mrb[0].mxu0 %v5659
        %v5764 = vpop.f32.mrb[0].mxu0
        %v5765 = vadd.f32 0.0, %v5764
        %v5766 = vpop.f32.mrb[0].mxu0
        %5767 = vdwg.mxu0
        %v5768 = vadd.f32 %v5647, %v5730
        %v5769 = vadd.f32 %v5648, %v5735
        %v5770 = vadd.f32 %v5649, %v5740
        %v5771 = vadd.f32 %v5650, %v5745
        %v5772 = vadd.f32 %v5651, %v5750
        %v5773 = vadd.f32 %v5652, %v5755
        %v5774 = vadd.f32 %v5653, %v5760
        %v5775 = vadd.f32 %v5654, %v5765
        %v5776 = vrot.slane %v4618, 3
        %v5777 = vrot.slane %v4619, 3
        %v5778 = vsel %vm900, %v5776, %v5777
        %v5779 = vsel %vm4426, %v5778, 0
        %v5782 = vsel %vm1899, %v4632, 0
        %5784 = vmatprep.subr.mxu0 0.0
        %5785 = vmatpush1.msra.mxu0 %v5782
        %5786 = vmatprep.subr.mxu0 0.0
        %5787 = vmatpush1.msra.mxu0 0.0
        %5788 = vmatprep.subr.mxu0 0.0
        %5789 = vmatpush1.msra.mxu0 0.0
        %5790 = vmatprep.subr.mxu0 0.0
        %5791 = vmatpush1.msra.mxu0 0.0
        %5792 = vmatprep.subr.mxu0 0.0
        %5793 = vmatpush1.msra.mxu0 0.0
        %5794 = vmatprep.subr.mxu0 0.0
        %5795 = vmatpush1.msra.mxu0 0.0
        %5796 = vmatprep.subr.mxu0 0.0
        %5797 = vmatpush1.msra.mxu0 0.0
        %5798 = vmatprep.subr.mxu0 0.0
        %5799 = vmatpush1.msra.mxu0 0.0
        %5800 = vmatprep.subr.mxu0 0.0
        %5801 = vmatpush1.msra.mxu0 0.0
        %5802 = vmatprep.subr.mxu0 0.0
        %5803 = vmatpush1.msra.mxu0 0.0
        %5804 = vmatprep.subr.mxu0 0.0
        %5805 = vmatpush1.msra.mxu0 0.0
        %5806 = vmatprep.subr.mxu0 0.0
        %5807 = vmatpush1.msra.mxu0 0.0
        %5808 = vmatprep.subr.mxu0 0.0
        %5809 = vmatpush1.msra.mxu0 0.0
        %5810 = vmatprep.subr.mxu0 0.0
        %5811 = vmatpush1.msra.mxu0 0.0
        %5812 = vmatprep.subr.mxu0 0.0
        %5813 = vmatpush1.msra.mxu0 0.0
        %5814 = vmatprep.subr.mxu0 0.0
        %5815 = vmatpush1.msra.mxu0 0.0
        %5816 = vmatprep.subr.mxu0 0.0
        %5817 = vmatpush1.msra.mxu0 0.0
        %5818 = vmatprep.subr.mxu0 0.0
        %5819 = vmatpush1.msra.mxu0 0.0
        %5820 = vmatprep.subr.mxu0 0.0
        %5821 = vmatpush1.msra.mxu0 0.0
        %5822 = vmatprep.subr.mxu0 0.0
        %5823 = vmatpush1.msra.mxu0 0.0
        %5824 = vmatprep.subr.mxu0 0.0
        %5825 = vmatpush1.msra.mxu0 0.0
        %5826 = vmatprep.subr.mxu0 0.0
        %5827 = vmatpush1.msra.mxu0 0.0
        %5828 = vmatprep.subr.mxu0 0.0
        %5829 = vmatpush1.msra.mxu0 0.0
        %5830 = vmatprep.subr.mxu0 0.0
        %5831 = vmatpush1.msra.mxu0 0.0
        %5832 = vmatprep.subr.mxu0 0.0
        %5833 = vmatpush1.msra.mxu0 0.0
        %5834 = vmatprep.subr.mxu0 0.0
        %5835 = vmatpush1.msra.mxu0 0.0
        %5836 = vmatprep.subr.mxu0 0.0
        %5837 = vmatpush1.msra.mxu0 0.0
        %5838 = vmatprep.subr.mxu0 0.0
        %5839 = vmatpush1.msra.mxu0 0.0
        %5840 = vmatprep.subr.mxu0 0.0
        %5841 = vmatpush1.msra.mxu0 0.0
        %5842 = vmatprep.subr.mxu0 0.0
        %5843 = vmatpush1.msra.mxu0 0.0
        %5844 = vmatprep.subr.mxu0 0.0
        %5845 = vmatpush1.msra.mxu0 0.0
        %5846 = vmatprep.subr.mxu0 0.0
        %5847 = vmatpush1.msra.mxu0 0.0
        %5848 = vmatprep.mubr.f32.mxu0 0.0
        %5849 = vmatmul.mubr.f32.gmra.mrb[0].mxu0 %v5123
        %v5850 = vpop.f32.mrb[0].mxu0
        %v5851 = vadd.f32 0.0, %v5850
        %v5852 = vpop.f32.mrb[0].mxu0
        %5853 = vmatprep.mubr.f32.mxu0 0.0
        %5854 = vmatmul.mubr.f32.gmra.mrb[0].mxu0 %v5125
        %v5855 = vpop.f32.mrb[0].mxu0
        %v5856 = vadd.f32 0.0, %v5855
        %v5857 = vpop.f32.mrb[0].mxu0
        %5858 = vmatprep.mubr.f32.mxu0 0.0
        %5859 = vmatmul.mubr.f32.gmra.mrb[0].mxu0 %v5127
        %v5860 = vpop.f32.mrb[0].mxu0
        %v5861 = vadd.f32 0.0, %v5860
        %v5862 = vpop.f32.mrb[0].mxu0
        %5863 = vmatprep.mubr.f32.mxu0 0.0
        %5864 = vmatmul.mubr.f32.gmra.mrb[0].mxu0 %v5129
        %v5865 = vpop.f32.mrb[0].mxu0
        %v5866 = vadd.f32 0.0, %v5865
        %v5867 = vpop.f32.mrb[0].mxu0
        %5868 = vmatprep.mubr.f32.mxu0 0.0
        %5869 = vmatmul.mubr.f32.gmra.mrb[0].mxu0 %v5131
        %v5870 = vpop.f32.mrb[0].mxu0
        %v5871 = vadd.f32 0.0, %v5870
        %v5872 = vpop.f32.mrb[0].mxu0
        %5873 = vmatprep.mubr.f32.mxu0 0.0
        %5874 = vmatmul.mubr.f32.gmra.mrb[0].mxu0 %v5133
        %v5875 = vpop.f32.mrb[0].mxu0
        %v5876 = vadd.f32 0.0, %v5875
        %v5877 = vpop.f32.mrb[0].mxu0
        %5878 = vmatprep.mubr.f32.mxu0 0.0
        %5879 = vmatmul.mubr.f32.gmra.mrb[0].mxu0 %v5135
        %v5880 = vpop.f32.mrb[0].mxu0
        %v5881 = vadd.f32 0.0, %v5880
        %v5882 = vpop.f32.mrb[0].mxu0
        %5883 = vmatprep.mubr.f32.mxu0 0.0
        %5884 = vmatmul.mubr.f32.gmra.mrb[0].mxu0 %v5779
        %v5885 = vpop.f32.mrb[0].mxu0
        %v5886 = vadd.f32 0.0, %v5885
        %v5887 = vpop.f32.mrb[0].mxu0
        %5888 = vdwg.mxu0
        %v5889 = vadd.f32 %v5768, %v5851
        %v5890 = vadd.f32 %v5769, %v5856
        %v5891 = vadd.f32 %v5770, %v5861
        %v5892 = vadd.f32 %v5771, %v5866
        %v5893 = vadd.f32 %v5772, %v5871
        %v5894 = vadd.f32 %v5773, %v5876
        %v5895 = vadd.f32 %v5774, %v5881
        %v5896 = vadd.f32 %v5775, %v5886
        %v5897 = vrot.slane %v4618, 4
        %v5898 = vrot.slane %v4619, 4
        %v5899 = vsel %vm3528, %v5897, %v5898
        %v5901 = vrot.slane %v4632, 6
        %v5902 = vrot.slane %v4633, 6
        %v5903 = vsel %vm4687, %v5901, %v5902
        %v5904 = vsel %vm4426, %v5899, 0
        %v5906 = vsel %vm1899, %v5903, 0
        %5908 = vmatprep.subr.mxu0 0.0
        %5909 = vmatpush1.msra.mxu0 %v5906
        %5910 = vmatprep.subr.mxu0 0.0
        %5911 = vmatpush1.msra.mxu0 0.0
        %5912 = vmatprep.subr.mxu0 0.0
        %5913 = vmatpush1.msra.mxu0 0.0
        %5914 = vmatprep.subr.mxu0 0.0
        %5915 = vmatpush1.msra.mxu0 0.0
        %5916 = vmatprep.subr.mxu0 0.0
        %5917 = vmatpush1.msra.mxu0 0.0
        %5918 = vmatprep.subr.mxu0 0.0
        %5919 = vmatpush1.msra.mxu0 0.0
        %5920 = vmatprep.subr.mxu0 0.0
        %5921 = vmatpush1.msra.mxu0 0.0
        %5922 = vmatprep.subr.mxu0 0.0
        %5923 = vmatpush1.msra.mxu0 0.0
        %5924 = vmatprep.subr.mxu0 0.0
        %5925 = vmatpush1.msra.mxu0 0.0
        %5926 = vmatprep.subr.mxu0 0.0
        %5927 = vmatpush1.msra.mxu0 0.0
        %5928 = vmatprep.subr.mxu0 0.0
        %5929 = vmatpush1.msra.mxu0 0.0
        %5930 = vmatprep.subr.mxu0 0.0
        %5931 = vmatpush1.msra.mxu0 0.0
        %5932 = vmatprep.subr.mxu0 0.0
        %5933 = vmatpush1.msra.mxu0 0.0
        %5934 = vmatprep.subr.mxu0 0.0
        %5935 = vmatpush1.msra.mxu0 0.0
        %5936 = vmatprep.subr.mxu0 0.0
        %5937 = vmatpush1.msra.mxu0 0.0
        %5938 = vmatprep.subr.mxu0 0.0
        %5939 = vmatpush1.msra.mxu0 0.0
        %5940 = vmatprep.subr.mxu0 0.0
        %5941 = vmatpush1.msra.mxu0 0.0
        %5942 = vmatprep.subr.mxu0 0.0
        %5943 = vmatpush1.msra.mxu0 0.0
        %5944 = vmatprep.subr.mxu0 0.0
        %5945 = vmatpush1.msra.mxu0 0.0
        %5946 = vmatprep.subr.mxu0 0.0
        %5947 = vmatpush1.msra.mxu0 0.0
        %5948 = vmatprep.subr.mxu0 0.0
        %5949 = vmatpush1.msra.mxu0 0.0
        %5950 = vmatprep.subr.mxu0 0.0
        %5951 = vmatpush1.msra.mxu0 0.0
        %5952 = vmatprep.subr.mxu0 0.0
        %5953 = vmatpush1.msra.mxu0 0.0
        %5954 = vmatprep.subr.mxu0 0.0
        %5955 = vmatpush1.msra.mxu0 0.0
        %5956 = vmatprep.subr.mxu0 0.0
        %5957 = vmatpush1.msra.mxu0 0.0
        %5958 = vmatprep.subr.mxu0 0.0
        %5959 = vmatpush1.msra.mxu0 0.0
        %5960 = vmatprep.subr.mxu0 0.0
        %5961 = vmatpush1.msra.mxu0 0.0
        %5962 = vmatprep.subr.mxu0 0.0
        %5963 = vmatpush1.msra.mxu0 0.0
        %5964 = vmatprep.subr.mxu0 0.0
        %5965 = vmatpush1.msra.mxu0 0.0
        %5966 = vmatprep.subr.mxu0 0.0
        %5967 = vmatpush1.msra.mxu0 0.0
        %5968 = vmatprep.subr.mxu0 0.0
        %5969 = vmatpush1.msra.mxu0 0.0
        %5970 = vmatprep.subr.mxu0 0.0
        %5971 = vmatpush1.msra.mxu0 0.0
        %5972 = vmatprep.mubr.f32.mxu0 0.0
        %5973 = vmatmul.mubr.f32.gmra.mrb[0].mxu0 %v5278
        %v5974 = vpop.f32.mrb[0].mxu0
        %v5975 = vadd.f32 0.0, %v5974
        %v5976 = vpop.f32.mrb[0].mxu0
        %5977 = vmatprep.mubr.f32.mxu0 0.0
        %5978 = vmatmul.mubr.f32.gmra.mrb[0].mxu0 %v5280
        %v5979 = vpop.f32.mrb[0].mxu0
        %v5980 = vadd.f32 0.0, %v5979
        %v5981 = vpop.f32.mrb[0].mxu0
        %5982 = vmatprep.mubr.f32.mxu0 0.0
        %5983 = vmatmul.mubr.f32.gmra.mrb[0].mxu0 %v5282
        %v5984 = vpop.f32.mrb[0].mxu0
        %v5985 = vadd.f32 0.0, %v5984
        %v5986 = vpop.f32.mrb[0].mxu0
        %5987 = vmatprep.mubr.f32.mxu0 0.0
        %5988 = vmatmul.mubr.f32.gmra.mrb[0].mxu0 %v5284
        %v5989 = vpop.f32.mrb[0].mxu0
        %v5990 = vadd.f32 0.0, %v5989
        %v5991 = vpop.f32.mrb[0].mxu0
        %5992 = vmatprep.mubr.f32.mxu0 0.0
        %5993 = vmatmul.mubr.f32.gmra.mrb[0].mxu0 %v5286
        %v5994 = vpop.f32.mrb[0].mxu0
        %v5995 = vadd.f32 0.0, %v5994
        %v5996 = vpop.f32.mrb[0].mxu0
        %5997 = vmatprep.mubr.f32.mxu0 0.0
        %5998 = vmatmul.mubr.f32.gmra.mrb[0].mxu0 %v5288
        %v5999 = vpop.f32.mrb[0].mxu0
        %v6000 = vadd.f32 0.0, %v5999
        %v6001 = vpop.f32.mrb[0].mxu0
        %6002 = vmatprep.mubr.f32.mxu0 0.0
        %6003 = vmatmul.mubr.f32.gmra.mrb[0].mxu0 %v5290
        %v6004 = vpop.f32.mrb[0].mxu0
        %v6005 = vadd.f32 0.0, %v6004
        %v6006 = vpop.f32.mrb[0].mxu0
        %6007 = vmatprep.mubr.f32.mxu0 0.0
        %6008 = vmatmul.mubr.f32.gmra.mrb[0].mxu0 %v5904
        %v6009 = vpop.f32.mrb[0].mxu0
        %v6010 = vadd.f32 0.0, %v6009
        %v6011 = vpop.f32.mrb[0].mxu0
        %6012 = vdwg.mxu0
        %v6013 = vadd.f32 %v5889, %v5975
        %v6014 = vadd.f32 %v5890, %v5980
        %v6015 = vadd.f32 %v5891, %v5985
        %v6016 = vadd.f32 %v5892, %v5990
        %v6017 = vadd.f32 %v5893, %v5995
        %v6018 = vadd.f32 %v5894, %v6000
        %v6019 = vadd.f32 %v5895, %v6005
        %v6020 = vadd.f32 %v5896, %v6010
        %v6022 = vrot.slane %v4633, 4
        %v6023 = vrot.slane %v4634, 4
        %v6024 = vsel %vm3528, %v6022, %v6023
        %v6026 = vsel %vm4426, %v4620, 0
        %v6028 = vsel %vm1899, %v6024, 0
        %6030 = vmatprep.subr.mxu0 0.0
        %6031 = vmatpush1.msra.mxu0 %v6028
        %6032 = vmatprep.subr.mxu0 0.0
        %6033 = vmatpush1.msra.mxu0 0.0
        %6034 = vmatprep.subr.mxu0 0.0
        %6035 = vmatpush1.msra.mxu0 0.0
        %6036 = vmatprep.subr.mxu0 0.0
        %6037 = vmatpush1.msra.mxu0 0.0
        %6038 = vmatprep.subr.mxu0 0.0
        %6039 = vmatpush1.msra.mxu0 0.0
        %6040 = vmatprep.subr.mxu0 0.0
        %6041 = vmatpush1.msra.mxu0 0.0
        %6042 = vmatprep.subr.mxu0 0.0
        %6043 = vmatpush1.msra.mxu0 0.0
        %6044 = vmatprep.subr.mxu0 0.0
        %6045 = vmatpush1.msra.mxu0 0.0
        %6046 = vmatprep.subr.mxu0 0.0
        %6047 = vmatpush1.msra.mxu0 0.0
        %6048 = vmatprep.subr.mxu0 0.0
        %6049 = vmatpush1.msra.mxu0 0.0
        %6050 = vmatprep.subr.mxu0 0.0
        %6051 = vmatpush1.msra.mxu0 0.0
        %6052 = vmatprep.subr.mxu0 0.0
        %6053 = vmatpush1.msra.mxu0 0.0
        %6054 = vmatprep.subr.mxu0 0.0
        %6055 = vmatpush1.msra.mxu0 0.0
        %6056 = vmatprep.subr.mxu0 0.0
        %6057 = vmatpush1.msra.mxu0 0.0
        %6058 = vmatprep.subr.mxu0 0.0
        %6059 = vmatpush1.msra.mxu0 0.0
        %6060 = vmatprep.subr.mxu0 0.0
        %6061 = vmatpush1.msra.mxu0 0.0
        %6062 = vmatprep.subr.mxu0 0.0
        %6063 = vmatpush1.msra.mxu0 0.0
        %6064 = vmatprep.subr.mxu0 0.0
        %6065 = vmatpush1.msra.mxu0 0.0
        %6066 = vmatprep.subr.mxu0 0.0
        %6067 = vmatpush1.msra.mxu0 0.0
        %6068 = vmatprep.subr.mxu0 0.0
        %6069 = vmatpush1.msra.mxu0 0.0
        %6070 = vmatprep.subr.mxu0 0.0
        %6071 = vmatpush1.msra.mxu0 0.0
        %6072 = vmatprep.subr.mxu0 0.0
        %6073 = vmatpush1.msra.mxu0 0.0
        %6074 = vmatprep.subr.mxu0 0.0
        %6075 = vmatpush1.msra.mxu0 0.0
        %6076 = vmatprep.subr.mxu0 0.0
        %6077 = vmatpush1.msra.mxu0 0.0
        %6078 = vmatprep.subr.mxu0 0.0
        %6079 = vmatpush1.msra.mxu0 0.0
        %6080 = vmatprep.subr.mxu0 0.0
        %6081 = vmatpush1.msra.mxu0 0.0
        %6082 = vmatprep.subr.mxu0 0.0
        %6083 = vmatpush1.msra.mxu0 0.0
        %6084 = vmatprep.subr.mxu0 0.0
        %6085 = vmatpush1.msra.mxu0 0.0
        %6086 = vmatprep.subr.mxu0 0.0
        %6087 = vmatpush1.msra.mxu0 0.0
        %6088 = vmatprep.subr.mxu0 0.0
        %6089 = vmatpush1.msra.mxu0 0.0
        %6090 = vmatprep.subr.mxu0 0.0
        %6091 = vmatpush1.msra.mxu0 0.0
        %6092 = vmatprep.subr.mxu0 0.0
        %6093 = vmatpush1.msra.mxu0 0.0
        %6094 = vmatprep.mubr.f32.mxu0 0.0
        %6095 = vmatmul.mubr.f32.gmra.mrb[0].mxu0 %v4818
        %v6096 = vpop.f32.mrb[0].mxu0
        %v6097 = vadd.f32 0.0, %v6096
        %v6098 = vpop.f32.mrb[0].mxu0
        %6099 = vmatprep.mubr.f32.mxu0 0.0
        %6100 = vmatmul.mubr.f32.gmra.mrb[0].mxu0 %v4820
        %v6101 = vpop.f32.mrb[0].mxu0
        %v6102 = vadd.f32 0.0, %v6101
        %v6103 = vpop.f32.mrb[0].mxu0
        %6104 = vmatprep.mubr.f32.mxu0 0.0
        %6105 = vmatmul.mubr.f32.gmra.mrb[0].mxu0 %v4822
        %v6106 = vpop.f32.mrb[0].mxu0
        %v6107 = vadd.f32 0.0, %v6106
        %v6108 = vpop.f32.mrb[0].mxu0
        %6109 = vmatprep.mubr.f32.mxu0 0.0
        %6110 = vmatmul.mubr.f32.gmra.mrb[0].mxu0 %v4824
        %v6111 = vpop.f32.mrb[0].mxu0
        %v6112 = vadd.f32 0.0, %v6111
        %v6113 = vpop.f32.mrb[0].mxu0
        %6114 = vmatprep.mubr.f32.mxu0 0.0
        %6115 = vmatmul.mubr.f32.gmra.mrb[0].mxu0 %v4826
        %v6116 = vpop.f32.mrb[0].mxu0
        %v6117 = vadd.f32 0.0, %v6116
        %v6118 = vpop.f32.mrb[0].mxu0
        %6119 = vmatprep.mubr.f32.mxu0 0.0
        %6120 = vmatmul.mubr.f32.gmra.mrb[0].mxu0 %v4828
        %v6121 = vpop.f32.mrb[0].mxu0
        %v6122 = vadd.f32 0.0, %v6121
        %v6123 = vpop.f32.mrb[0].mxu0
        %6124 = vmatprep.mubr.f32.mxu0 0.0
        %6125 = vmatmul.mubr.f32.gmra.mrb[0].mxu0 %v5413
        %v6126 = vpop.f32.mrb[0].mxu0
        %v6127 = vadd.f32 0.0, %v6126
        %v6128 = vpop.f32.mrb[0].mxu0
        %6129 = vmatprep.mubr.f32.mxu0 0.0
        %6130 = vmatmul.mubr.f32.gmra.mrb[0].mxu0 %v6026
        %v6131 = vpop.f32.mrb[0].mxu0
        %v6132 = vadd.f32 0.0, %v6131
        %v6133 = vpop.f32.mrb[0].mxu0
        %6134 = vdwg.mxu0
        %v6135 = vadd.f32 %v6013, %v6097
        %v6136 = vadd.f32 %v6014, %v6102
        %v6137 = vadd.f32 %v6015, %v6107
        %v6138 = vadd.f32 %v6016, %v6112
        %v6139 = vadd.f32 %v6017, %v6117
        %v6140 = vadd.f32 %v6018, %v6122
        %v6141 = vadd.f32 %v6019, %v6127
        %v6142 = vadd.f32 %v6020, %v6132
        %v6144 = vrot.slane %v4620, 1
        %v6145 = vrot.slane %v4621, 1
        %v6146 = vsel %vm580, %v6144, %v6145
        %v6147 = vrot.slane %v4634, 2
        %v6148 = vsel %vm4426, %v6146, 0
        %v6150 = vsel %vm1899, %v6147, 0
        %6152 = vmatprep.subr.mxu0 0.0
        %6153 = vmatpush1.msra.mxu0 %v6150
        %6154 = vmatprep.subr.mxu0 0.0
        %6155 = vmatpush1.msra.mxu0 0.0
        %6156 = vmatprep.subr.mxu0 0.0
        %6157 = vmatpush1.msra.mxu0 0.0
        %6158 = vmatprep.subr.mxu0 0.0
        %6159 = vmatpush1.msra.mxu0 0.0
        %6160 = vmatprep.subr.mxu0 0.0
        %6161 = vmatpush1.msra.mxu0 0.0
        %6162 = vmatprep.subr.mxu0 0.0
        %6163 = vmatpush1.msra.mxu0 0.0
        %6164 = vmatprep.subr.mxu0 0.0
        %6165 = vmatpush1.msra.mxu0 0.0
        %6166 = vmatprep.subr.mxu0 0.0
        %6167 = vmatpush1.msra.mxu0 0.0
        %6168 = vmatprep.subr.mxu0 0.0
        %6169 = vmatpush1.msra.mxu0 0.0
        %6170 = vmatprep.subr.mxu0 0.0
        %6171 = vmatpush1.msra.mxu0 0.0
        %6172 = vmatprep.subr.mxu0 0.0
        %6173 = vmatpush1.msra.mxu0 0.0
        %6174 = vmatprep.subr.mxu0 0.0
        %6175 = vmatpush1.msra.mxu0 0.0
        %6176 = vmatprep.subr.mxu0 0.0
        %6177 = vmatpush1.msra.mxu0 0.0
        %6178 = vmatprep.subr.mxu0 0.0
        %6179 = vmatpush1.msra.mxu0 0.0
        %6180 = vmatprep.subr.mxu0 0.0
        %6181 = vmatpush1.msra.mxu0 0.0
        %6182 = vmatprep.subr.mxu0 0.0
        %6183 = vmatpush1.msra.mxu0 0.0
        %6184 = vmatprep.subr.mxu0 0.0
        %6185 = vmatpush1.msra.mxu0 0.0
        %6186 = vmatprep.subr.mxu0 0.0
        %6187 = vmatpush1.msra.mxu0 0.0
        %6188 = vmatprep.subr.mxu0 0.0
        %6189 = vmatpush1.msra.mxu0 0.0
        %6190 = vmatprep.subr.mxu0 0.0
        %6191 = vmatpush1.msra.mxu0 0.0
        %6192 = vmatprep.subr.mxu0 0.0
        %6193 = vmatpush1.msra.mxu0 0.0
        %6194 = vmatprep.subr.mxu0 0.0
        %6195 = vmatpush1.msra.mxu0 0.0
        %6196 = vmatprep.subr.mxu0 0.0
        %6197 = vmatpush1.msra.mxu0 0.0
        %6198 = vmatprep.subr.mxu0 0.0
        %6199 = vmatpush1.msra.mxu0 0.0
        %6200 = vmatprep.subr.mxu0 0.0
        %6201 = vmatpush1.msra.mxu0 0.0
        %6202 = vmatprep.subr.mxu0 0.0
        %6203 = vmatpush1.msra.mxu0 0.0
        %6204 = vmatprep.subr.mxu0 0.0
        %6205 = vmatpush1.msra.mxu0 0.0
        %6206 = vmatprep.subr.mxu0 0.0
        %6207 = vmatpush1.msra.mxu0 0.0
        %6208 = vmatprep.subr.mxu0 0.0
        %6209 = vmatpush1.msra.mxu0 0.0
        %6210 = vmatprep.subr.mxu0 0.0
        %6211 = vmatpush1.msra.mxu0 0.0
        %6212 = vmatprep.subr.mxu0 0.0
        %6213 = vmatpush1.msra.mxu0 0.0
        %6214 = vmatprep.subr.mxu0 0.0
        %6215 = vmatpush1.msra.mxu0 0.0
        %6216 = vmatprep.mubr.f32.mxu0 0.0
        %6217 = vmatmul.mubr.f32.gmra.mrb[0].mxu0 %v4695
        %v6218 = vpop.f32.mrb[0].mxu0
        %v6219 = vadd.f32 0.0, %v6218
        %v6220 = vpop.f32.mrb[0].mxu0
        %6221 = vmatprep.mubr.f32.mxu0 0.0
        %6222 = vmatmul.mubr.f32.gmra.mrb[0].mxu0 %v4697
        %v6223 = vpop.f32.mrb[0].mxu0
        %v6224 = vadd.f32 0.0, %v6223
        %v6225 = vpop.f32.mrb[0].mxu0
        %6226 = vmatprep.mubr.f32.mxu0 0.0
        %6227 = vmatmul.mubr.f32.gmra.mrb[0].mxu0 %v4699
        %v6228 = vpop.f32.mrb[0].mxu0
        %v6229 = vadd.f32 0.0, %v6228
        %v6230 = vpop.f32.mrb[0].mxu0
        %6231 = vmatprep.mubr.f32.mxu0 0.0
        %6232 = vmatmul.mubr.f32.gmra.mrb[0].mxu0 %v4701
        %v6233 = vpop.f32.mrb[0].mxu0
        %v6234 = vadd.f32 0.0, %v6233
        %v6235 = vpop.f32.mrb[0].mxu0
        %6236 = vmatprep.mubr.f32.mxu0 0.0
        %6237 = vmatmul.mubr.f32.gmra.mrb[0].mxu0 %v4703
        %v6238 = vpop.f32.mrb[0].mxu0
        %v6239 = vadd.f32 0.0, %v6238
        %v6240 = vpop.f32.mrb[0].mxu0
        %6241 = vmatprep.mubr.f32.mxu0 0.0
        %6242 = vmatmul.mubr.f32.gmra.mrb[0].mxu0 %v4705
        %v6243 = vpop.f32.mrb[0].mxu0
        %v6244 = vadd.f32 0.0, %v6243
        %v6245 = vpop.f32.mrb[0].mxu0
        %6246 = vmatprep.mubr.f32.mxu0 0.0
        %6247 = vmatmul.mubr.f32.gmra.mrb[0].mxu0 %v5538
        %v6248 = vpop.f32.mrb[0].mxu0
        %v6249 = vadd.f32 0.0, %v6248
        %v6250 = vpop.f32.mrb[0].mxu0
        %6251 = vmatprep.mubr.f32.mxu0 0.0
        %6252 = vmatmul.mubr.f32.gmra.mrb[0].mxu0 %v6148
        %v6253 = vpop.f32.mrb[0].mxu0
        %v6254 = vadd.f32 0.0, %v6253
        %v6255 = vpop.f32.mrb[0].mxu0
        %6256 = vdwg.mxu0
        %v6257 = vadd.f32 %v6135, %v6219
        %v6258 = vadd.f32 %v6136, %v6224
        %v6259 = vadd.f32 %v6137, %v6229
        %v6260 = vadd.f32 %v6138, %v6234
        %v6261 = vadd.f32 %v6139, %v6239
        %v6262 = vadd.f32 %v6140, %v6244
        %v6263 = vadd.f32 %v6141, %v6249
        %v6264 = vadd.f32 %v6142, %v6254
        %v6265 = vrot.slane %v4620, 2
        %v6266 = vrot.slane %v4621, 2
        %v6267 = vsel %vm1899, %v6265, %v6266
        %v6268 = vsel %vm4426, %v6267, 0
        %v6271 = vsel %vm1899, %v4635, 0
        %6273 = vmatprep.subr.mxu0 0.0
        %6274 = vmatpush1.msra.mxu0 %v6271
        %6275 = vmatprep.subr.mxu0 0.0
        %6276 = vmatpush1.msra.mxu0 0.0
        %6277 = vmatprep.subr.mxu0 0.0
        %6278 = vmatpush1.msra.mxu0 0.0
        %6279 = vmatprep.subr.mxu0 0.0
        %6280 = vmatpush1.msra.mxu0 0.0
        %6281 = vmatprep.subr.mxu0 0.0
        %6282 = vmatpush1.msra.mxu0 0.0
        %6283 = vmatprep.subr.mxu0 0.0
        %6284 = vmatpush1.msra.mxu0 0.0
        %6285 = vmatprep.subr.mxu0 0.0
        %6286 = vmatpush1.msra.mxu0 0.0
        %6287 = vmatprep.subr.mxu0 0.0
        %6288 = vmatpush1.msra.mxu0 0.0
        %6289 = vmatprep.subr.mxu0 0.0
        %6290 = vmatpush1.msra.mxu0 0.0
        %6291 = vmatprep.subr.mxu0 0.0
        %6292 = vmatpush1.msra.mxu0 0.0
        %6293 = vmatprep.subr.mxu0 0.0
        %6294 = vmatpush1.msra.mxu0 0.0
        %6295 = vmatprep.subr.mxu0 0.0
        %6296 = vmatpush1.msra.mxu0 0.0
        %6297 = vmatprep.subr.mxu0 0.0
        %6298 = vmatpush1.msra.mxu0 0.0
        %6299 = vmatprep.subr.mxu0 0.0
        %6300 = vmatpush1.msra.mxu0 0.0
        %6301 = vmatprep.subr.mxu0 0.0
        %6302 = vmatpush1.msra.mxu0 0.0
        %6303 = vmatprep.subr.mxu0 0.0
        %6304 = vmatpush1.msra.mxu0 0.0
        %6305 = vmatprep.subr.mxu0 0.0
        %6306 = vmatpush1.msra.mxu0 0.0
        %6307 = vmatprep.subr.mxu0 0.0
        %6308 = vmatpush1.msra.mxu0 0.0
        %6309 = vmatprep.subr.mxu0 0.0
        %6310 = vmatpush1.msra.mxu0 0.0
        %6311 = vmatprep.subr.mxu0 0.0
        %6312 = vmatpush1.msra.mxu0 0.0
        %6313 = vmatprep.subr.mxu0 0.0
        %6314 = vmatpush1.msra.mxu0 0.0
        %6315 = vmatprep.subr.mxu0 0.0
        %6316 = vmatpush1.msra.mxu0 0.0
        %6317 = vmatprep.subr.mxu0 0.0
        %6318 = vmatpush1.msra.mxu0 0.0
        %6319 = vmatprep.subr.mxu0 0.0
        %6320 = vmatpush1.msra.mxu0 0.0
        %6321 = vmatprep.subr.mxu0 0.0
        %6322 = vmatpush1.msra.mxu0 0.0
        %6323 = vmatprep.subr.mxu0 0.0
        %6324 = vmatpush1.msra.mxu0 0.0
        %6325 = vmatprep.subr.mxu0 0.0
        %6326 = vmatpush1.msra.mxu0 0.0
        %6327 = vmatprep.subr.mxu0 0.0
        %6328 = vmatpush1.msra.mxu0 0.0
        %6329 = vmatprep.subr.mxu0 0.0
        %6330 = vmatpush1.msra.mxu0 0.0
        %6331 = vmatprep.subr.mxu0 0.0
        %6332 = vmatpush1.msra.mxu0 0.0
        %6333 = vmatprep.subr.mxu0 0.0
        %6334 = vmatpush1.msra.mxu0 0.0
        %6335 = vmatprep.subr.mxu0 0.0
        %6336 = vmatpush1.msra.mxu0 0.0
        %6337 = vmatprep.mubr.f32.mxu0 0.0
        %6338 = vmatmul.mubr.f32.gmra.mrb[0].mxu0 %v4969
        %v6339 = vpop.f32.mrb[0].mxu0
        %v6340 = vadd.f32 0.0, %v6339
        %v6341 = vpop.f32.mrb[0].mxu0
        %6342 = vmatprep.mubr.f32.mxu0 0.0
        %6343 = vmatmul.mubr.f32.gmra.mrb[0].mxu0 %v4971
        %v6344 = vpop.f32.mrb[0].mxu0
        %v6345 = vadd.f32 0.0, %v6344
        %v6346 = vpop.f32.mrb[0].mxu0
        %6347 = vmatprep.mubr.f32.mxu0 0.0
        %6348 = vmatmul.mubr.f32.gmra.mrb[0].mxu0 %v4973
        %v6349 = vpop.f32.mrb[0].mxu0
        %v6350 = vadd.f32 0.0, %v6349
        %v6351 = vpop.f32.mrb[0].mxu0
        %6352 = vmatprep.mubr.f32.mxu0 0.0
        %6353 = vmatmul.mubr.f32.gmra.mrb[0].mxu0 %v4975
        %v6354 = vpop.f32.mrb[0].mxu0
        %v6355 = vadd.f32 0.0, %v6354
        %v6356 = vpop.f32.mrb[0].mxu0
        %6357 = vmatprep.mubr.f32.mxu0 0.0
        %6358 = vmatmul.mubr.f32.gmra.mrb[0].mxu0 %v4977
        %v6359 = vpop.f32.mrb[0].mxu0
        %v6360 = vadd.f32 0.0, %v6359
        %v6361 = vpop.f32.mrb[0].mxu0
        %6362 = vmatprep.mubr.f32.mxu0 0.0
        %6363 = vmatmul.mubr.f32.gmra.mrb[0].mxu0 %v4979
        %v6364 = vpop.f32.mrb[0].mxu0
        %v6365 = vadd.f32 0.0, %v6364
        %v6366 = vpop.f32.mrb[0].mxu0
        %6367 = vmatprep.mubr.f32.mxu0 0.0
        %6368 = vmatmul.mubr.f32.gmra.mrb[0].mxu0 %v5659
        %v6369 = vpop.f32.mrb[0].mxu0
        %v6370 = vadd.f32 0.0, %v6369
        %v6371 = vpop.f32.mrb[0].mxu0
        %6372 = vmatprep.mubr.f32.mxu0 0.0
        %6373 = vmatmul.mubr.f32.gmra.mrb[0].mxu0 %v6268
        %v6374 = vpop.f32.mrb[0].mxu0
        %v6375 = vadd.f32 0.0, %v6374
        %v6376 = vpop.f32.mrb[0].mxu0
        %6377 = vdwg.mxu0
        %v6378 = vadd.f32 %v6257, %v6340
        %v6379 = vadd.f32 %v6258, %v6345
        %v6380 = vadd.f32 %v6259, %v6350
        %v6381 = vadd.f32 %v6260, %v6355
        %v6382 = vadd.f32 %v6261, %v6360
        %v6383 = vadd.f32 %v6262, %v6365
        %v6384 = vadd.f32 %v6263, %v6370
        %v6385 = vadd.f32 %v6264, %v6375
        %v6386 = vrot.slane %v4620, 3
        %v6387 = vrot.slane %v4621, 3
        %v6388 = vsel %vm900, %v6386, %v6387
        %v6390 = vrot.slane %v4635, 6
        %v6391 = vrot.slane %v4636, 6
        %v6392 = vsel %vm4687, %v6390, %v6391
        %v6393 = vsel %vm4426, %v6388, 0
        %v6395 = vsel %vm1899, %v6392, 0
        %6397 = vmatprep.subr.mxu0 0.0
        %6398 = vmatpush1.msra.mxu0 %v6395
        %6399 = vmatprep.subr.mxu0 0.0
        %6400 = vmatpush1.msra.mxu0 0.0
        %6401 = vmatprep.subr.mxu0 0.0
        %6402 = vmatpush1.msra.mxu0 0.0
        %6403 = vmatprep.subr.mxu0 0.0
        %6404 = vmatpush1.msra.mxu0 0.0
        %6405 = vmatprep.subr.mxu0 0.0
        %6406 = vmatpush1.msra.mxu0 0.0
        %6407 = vmatprep.subr.mxu0 0.0
        %6408 = vmatpush1.msra.mxu0 0.0
        %6409 = vmatprep.subr.mxu0 0.0
        %6410 = vmatpush1.msra.mxu0 0.0
        %6411 = vmatprep.subr.mxu0 0.0
        %6412 = vmatpush1.msra.mxu0 0.0
        %6413 = vmatprep.subr.mxu0 0.0
        %6414 = vmatpush1.msra.mxu0 0.0
        %6415 = vmatprep.subr.mxu0 0.0
        %6416 = vmatpush1.msra.mxu0 0.0
        %6417 = vmatprep.subr.mxu0 0.0
        %6418 = vmatpush1.msra.mxu0 0.0
        %6419 = vmatprep.subr.mxu0 0.0
        %6420 = vmatpush1.msra.mxu0 0.0
        %6421 = vmatprep.subr.mxu0 0.0
        %6422 = vmatpush1.msra.mxu0 0.0
        %6423 = vmatprep.subr.mxu0 0.0
        %6424 = vmatpush1.msra.mxu0 0.0
        %6425 = vmatprep.subr.mxu0 0.0
        %6426 = vmatpush1.msra.mxu0 0.0
        %6427 = vmatprep.subr.mxu0 0.0
        %6428 = vmatpush1.msra.mxu0 0.0
        %6429 = vmatprep.subr.mxu0 0.0
        %6430 = vmatpush1.msra.mxu0 0.0
        %6431 = vmatprep.subr.mxu0 0.0
        %6432 = vmatpush1.msra.mxu0 0.0
        %6433 = vmatprep.subr.mxu0 0.0
        %6434 = vmatpush1.msra.mxu0 0.0
        %6435 = vmatprep.subr.mxu0 0.0
        %6436 = vmatpush1.msra.mxu0 0.0
        %6437 = vmatprep.subr.mxu0 0.0
        %6438 = vmatpush1.msra.mxu0 0.0
        %6439 = vmatprep.subr.mxu0 0.0
        %6440 = vmatpush1.msra.mxu0 0.0
        %6441 = vmatprep.subr.mxu0 0.0
        %6442 = vmatpush1.msra.mxu0 0.0
        %6443 = vmatprep.subr.mxu0 0.0
        %6444 = vmatpush1.msra.mxu0 0.0
        %6445 = vmatprep.subr.mxu0 0.0
        %6446 = vmatpush1.msra.mxu0 0.0
        %6447 = vmatprep.subr.mxu0 0.0
        %6448 = vmatpush1.msra.mxu0 0.0
        %6449 = vmatprep.subr.mxu0 0.0
        %6450 = vmatpush1.msra.mxu0 0.0
        %6451 = vmatprep.subr.mxu0 0.0
        %6452 = vmatpush1.msra.mxu0 0.0
        %6453 = vmatprep.subr.mxu0 0.0
        %6454 = vmatpush1.msra.mxu0 0.0
        %6455 = vmatprep.subr.mxu0 0.0
        %6456 = vmatpush1.msra.mxu0 0.0
        %6457 = vmatprep.subr.mxu0 0.0
        %6458 = vmatpush1.msra.mxu0 0.0
        %6459 = vmatprep.subr.mxu0 0.0
        %6460 = vmatpush1.msra.mxu0 0.0
        %6461 = vmatprep.mubr.f32.mxu0 0.0
        %6462 = vmatmul.mubr.f32.gmra.mrb[0].mxu0 %v5125
        %v6463 = vpop.f32.mrb[0].mxu0
        %v6464 = vadd.f32 0.0, %v6463
        %v6465 = vpop.f32.mrb[0].mxu0
        %6466 = vmatprep.mubr.f32.mxu0 0.0
        %6467 = vmatmul.mubr.f32.gmra.mrb[0].mxu0 %v5127
        %v6468 = vpop.f32.mrb[0].mxu0
        %v6469 = vadd.f32 0.0, %v6468
        %v6470 = vpop.f32.mrb[0].mxu0
        %6471 = vmatprep.mubr.f32.mxu0 0.0
        %6472 = vmatmul.mubr.f32.gmra.mrb[0].mxu0 %v5129
        %v6473 = vpop.f32.mrb[0].mxu0
        %v6474 = vadd.f32 0.0, %v6473
        %v6475 = vpop.f32.mrb[0].mxu0
        %6476 = vmatprep.mubr.f32.mxu0 0.0
        %6477 = vmatmul.mubr.f32.gmra.mrb[0].mxu0 %v5131
        %v6478 = vpop.f32.mrb[0].mxu0
        %v6479 = vadd.f32 0.0, %v6478
        %v6480 = vpop.f32.mrb[0].mxu0
        %6481 = vmatprep.mubr.f32.mxu0 0.0
        %6482 = vmatmul.mubr.f32.gmra.mrb[0].mxu0 %v5133
        %v6483 = vpop.f32.mrb[0].mxu0
        %v6484 = vadd.f32 0.0, %v6483
        %v6485 = vpop.f32.mrb[0].mxu0
        %6486 = vmatprep.mubr.f32.mxu0 0.0
        %6487 = vmatmul.mubr.f32.gmra.mrb[0].mxu0 %v5135
        %v6488 = vpop.f32.mrb[0].mxu0
        %v6489 = vadd.f32 0.0, %v6488
        %v6490 = vpop.f32.mrb[0].mxu0
        %6491 = vmatprep.mubr.f32.mxu0 0.0
        %6492 = vmatmul.mubr.f32.gmra.mrb[0].mxu0 %v5779
        %v6493 = vpop.f32.mrb[0].mxu0
        %v6494 = vadd.f32 0.0, %v6493
        %v6495 = vpop.f32.mrb[0].mxu0
        %6496 = vmatprep.mubr.f32.mxu0 0.0
        %6497 = vmatmul.mubr.f32.gmra.mrb[0].mxu0 %v6393
        %v6498 = vpop.f32.mrb[0].mxu0
        %v6499 = vadd.f32 0.0, %v6498
        %v6500 = vpop.f32.mrb[0].mxu0
        %6501 = vdwg.mxu0
        %v6502 = vadd.f32 %v6378, %v6464
        %v6503 = vadd.f32 %v6379, %v6469
        %v6504 = vadd.f32 %v6380, %v6474
        %v6505 = vadd.f32 %v6381, %v6479
        %v6506 = vadd.f32 %v6382, %v6484
        %v6507 = vadd.f32 %v6383, %v6489
        %v6508 = vadd.f32 %v6384, %v6494
        %v6509 = vadd.f32 %v6385, %v6499
        %v6510 = vrot.slane %v4620, 4
        %v6511 = vrot.slane %v4621, 4
        %v6512 = vsel %vm3528, %v6510, %v6511
        %v6514 = vrot.slane %v4636, 4
        %v6515 = vrot.slane %v4637, 4
        %v6516 = vsel %vm3528, %v6514, %v6515
        %v6517 = vsel %vm4426, %v6512, 0
        %v6519 = vsel %vm1899, %v6516, 0
        %6521 = vmatprep.subr.mxu0 0.0
        %6522 = vmatpush1.msra.mxu0 %v6519
        %6523 = vmatprep.subr.mxu0 0.0
        %6524 = vmatpush1.msra.mxu0 0.0
        %6525 = vmatprep.subr.mxu0 0.0
        %6526 = vmatpush1.msra.mxu0 0.0
        %6527 = vmatprep.subr.mxu0 0.0
        %6528 = vmatpush1.msra.mxu0 0.0
        %6529 = vmatprep.subr.mxu0 0.0
        %6530 = vmatpush1.msra.mxu0 0.0
        %6531 = vmatprep.subr.mxu0 0.0
        %6532 = vmatpush1.msra.mxu0 0.0
        %6533 = vmatprep.subr.mxu0 0.0
        %6534 = vmatpush1.msra.mxu0 0.0
        %6535 = vmatprep.subr.mxu0 0.0
        %6536 = vmatpush1.msra.mxu0 0.0
        %6537 = vmatprep.subr.mxu0 0.0
        %6538 = vmatpush1.msra.mxu0 0.0
        %6539 = vmatprep.subr.mxu0 0.0
        %6540 = vmatpush1.msra.mxu0 0.0
        %6541 = vmatprep.subr.mxu0 0.0
        %6542 = vmatpush1.msra.mxu0 0.0
        %6543 = vmatprep.subr.mxu0 0.0
        %6544 = vmatpush1.msra.mxu0 0.0
        %6545 = vmatprep.subr.mxu0 0.0
        %6546 = vmatpush1.msra.mxu0 0.0
        %6547 = vmatprep.subr.mxu0 0.0
        %6548 = vmatpush1.msra.mxu0 0.0
        %6549 = vmatprep.subr.mxu0 0.0
        %6550 = vmatpush1.msra.mxu0 0.0
        %6551 = vmatprep.subr.mxu0 0.0
        %6552 = vmatpush1.msra.mxu0 0.0
        %6553 = vmatprep.subr.mxu0 0.0
        %6554 = vmatpush1.msra.mxu0 0.0
        %6555 = vmatprep.subr.mxu0 0.0
        %6556 = vmatpush1.msra.mxu0 0.0
        %6557 = vmatprep.subr.mxu0 0.0
        %6558 = vmatpush1.msra.mxu0 0.0
        %6559 = vmatprep.subr.mxu0 0.0
        %6560 = vmatpush1.msra.mxu0 0.0
        %6561 = vmatprep.subr.mxu0 0.0
        %6562 = vmatpush1.msra.mxu0 0.0
        %6563 = vmatprep.subr.mxu0 0.0
        %6564 = vmatpush1.msra.mxu0 0.0
        %6565 = vmatprep.subr.mxu0 0.0
        %6566 = vmatpush1.msra.mxu0 0.0
        %6567 = vmatprep.subr.mxu0 0.0
        %6568 = vmatpush1.msra.mxu0 0.0
        %6569 = vmatprep.subr.mxu0 0.0
        %6570 = vmatpush1.msra.mxu0 0.0
        %6571 = vmatprep.subr.mxu0 0.0
        %6572 = vmatpush1.msra.mxu0 0.0
        %6573 = vmatprep.subr.mxu0 0.0
        %6574 = vmatpush1.msra.mxu0 0.0
        %6575 = vmatprep.subr.mxu0 0.0
        %6576 = vmatpush1.msra.mxu0 0.0
        %6577 = vmatprep.subr.mxu0 0.0
        %6578 = vmatpush1.msra.mxu0 0.0
        %6579 = vmatprep.subr.mxu0 0.0
        %6580 = vmatpush1.msra.mxu0 0.0
        %6581 = vmatprep.subr.mxu0 0.0
        %6582 = vmatpush1.msra.mxu0 0.0
        %6583 = vmatprep.subr.mxu0 0.0
        %6584 = vmatpush1.msra.mxu0 0.0
        %6585 = vmatprep.mubr.f32.mxu0 0.0
        %6586 = vmatmul.mubr.f32.gmra.mrb[0].mxu0 %v5280
        %v6587 = vpop.f32.mrb[0].mxu0
        %v6588 = vadd.f32 0.0, %v6587
        %v6589 = vpop.f32.mrb[0].mxu0
        %6590 = vmatprep.mubr.f32.mxu0 0.0
        %6591 = vmatmul.mubr.f32.gmra.mrb[0].mxu0 %v5282
        %v6592 = vpop.f32.mrb[0].mxu0
        %v6593 = vadd.f32 0.0, %v6592
        %v6594 = vpop.f32.mrb[0].mxu0
        %6595 = vmatprep.mubr.f32.mxu0 0.0
        %6596 = vmatmul.mubr.f32.gmra.mrb[0].mxu0 %v5284
        %v6597 = vpop.f32.mrb[0].mxu0
        %v6598 = vadd.f32 0.0, %v6597
        %v6599 = vpop.f32.mrb[0].mxu0
        %6600 = vmatprep.mubr.f32.mxu0 0.0
        %6601 = vmatmul.mubr.f32.gmra.mrb[0].mxu0 %v5286
        %v6602 = vpop.f32.mrb[0].mxu0
        %v6603 = vadd.f32 0.0, %v6602
        %v6604 = vpop.f32.mrb[0].mxu0
        %6605 = vmatprep.mubr.f32.mxu0 0.0
        %6606 = vmatmul.mubr.f32.gmra.mrb[0].mxu0 %v5288
        %v6607 = vpop.f32.mrb[0].mxu0
        %v6608 = vadd.f32 0.0, %v6607
        %v6609 = vpop.f32.mrb[0].mxu0
        %6610 = vmatprep.mubr.f32.mxu0 0.0
        %6611 = vmatmul.mubr.f32.gmra.mrb[0].mxu0 %v5290
        %v6612 = vpop.f32.mrb[0].mxu0
        %v6613 = vadd.f32 0.0, %v6612
        %v6614 = vpop.f32.mrb[0].mxu0
        %6615 = vmatprep.mubr.f32.mxu0 0.0
        %6616 = vmatmul.mubr.f32.gmra.mrb[0].mxu0 %v5904
        %v6617 = vpop.f32.mrb[0].mxu0
        %v6618 = vadd.f32 0.0, %v6617
        %v6619 = vpop.f32.mrb[0].mxu0
        %6620 = vmatprep.mubr.f32.mxu0 0.0
        %6621 = vmatmul.mubr.f32.gmra.mrb[0].mxu0 %v6517
        %v6622 = vpop.f32.mrb[0].mxu0
        %v6623 = vadd.f32 0.0, %v6622
        %v6624 = vpop.f32.mrb[0].mxu0
        %6625 = vdwg.mxu0
        %v6626 = vadd.f32 %v6502, %v6588
        %v6627 = vadd.f32 %v6503, %v6593
        %v6628 = vadd.f32 %v6504, %v6598
        %v6629 = vadd.f32 %v6505, %v6603
        %v6630 = vadd.f32 %v6506, %v6608
        %v6631 = vadd.f32 %v6507, %v6613
        %v6632 = vadd.f32 %v6508, %v6618
        %v6633 = vadd.f32 %v6509, %v6623
        %v6634 = vrot.slane %v4637, 2
        %v6636 = vsel %vm4426, %v4622, 0
        %v6638 = vsel %vm1899, %v6634, 0
        %6640 = vmatprep.subr.mxu0 0.0
        %6641 = vmatpush1.msra.mxu0 %v6638
        %6642 = vmatprep.subr.mxu0 0.0
        %6643 = vmatpush1.msra.mxu0 0.0
        %6644 = vmatprep.subr.mxu0 0.0
        %6645 = vmatpush1.msra.mxu0 0.0
        %6646 = vmatprep.subr.mxu0 0.0
        %6647 = vmatpush1.msra.mxu0 0.0
        %6648 = vmatprep.subr.mxu0 0.0
        %6649 = vmatpush1.msra.mxu0 0.0
        %6650 = vmatprep.subr.mxu0 0.0
        %6651 = vmatpush1.msra.mxu0 0.0
        %6652 = vmatprep.subr.mxu0 0.0
        %6653 = vmatpush1.msra.mxu0 0.0
        %6654 = vmatprep.subr.mxu0 0.0
        %6655 = vmatpush1.msra.mxu0 0.0
        %6656 = vmatprep.subr.mxu0 0.0
        %6657 = vmatpush1.msra.mxu0 0.0
        %6658 = vmatprep.subr.mxu0 0.0
        %6659 = vmatpush1.msra.mxu0 0.0
        %6660 = vmatprep.subr.mxu0 0.0
        %6661 = vmatpush1.msra.mxu0 0.0
        %6662 = vmatprep.subr.mxu0 0.0
        %6663 = vmatpush1.msra.mxu0 0.0
        %6664 = vmatprep.subr.mxu0 0.0
        %6665 = vmatpush1.msra.mxu0 0.0
        %6666 = vmatprep.subr.mxu0 0.0
        %6667 = vmatpush1.msra.mxu0 0.0
        %6668 = vmatprep.subr.mxu0 0.0
        %6669 = vmatpush1.msra.mxu0 0.0
        %6670 = vmatprep.subr.mxu0 0.0
        %6671 = vmatpush1.msra.mxu0 0.0
        %6672 = vmatprep.subr.mxu0 0.0
        %6673 = vmatpush1.msra.mxu0 0.0
        %6674 = vmatprep.subr.mxu0 0.0
        %6675 = vmatpush1.msra.mxu0 0.0
        %6676 = vmatprep.subr.mxu0 0.0
        %6677 = vmatpush1.msra.mxu0 0.0
        %6678 = vmatprep.subr.mxu0 0.0
        %6679 = vmatpush1.msra.mxu0 0.0
        %6680 = vmatprep.subr.mxu0 0.0
        %6681 = vmatpush1.msra.mxu0 0.0
        %6682 = vmatprep.subr.mxu0 0.0
        %6683 = vmatpush1.msra.mxu0 0.0
        %6684 = vmatprep.subr.mxu0 0.0
        %6685 = vmatpush1.msra.mxu0 0.0
        %6686 = vmatprep.subr.mxu0 0.0
        %6687 = vmatpush1.msra.mxu0 0.0
        %6688 = vmatprep.subr.mxu0 0.0
        %6689 = vmatpush1.msra.mxu0 0.0
        %6690 = vmatprep.subr.mxu0 0.0
        %6691 = vmatpush1.msra.mxu0 0.0
        %6692 = vmatprep.subr.mxu0 0.0
        %6693 = vmatpush1.msra.mxu0 0.0
        %6694 = vmatprep.subr.mxu0 0.0
        %6695 = vmatpush1.msra.mxu0 0.0
        %6696 = vmatprep.subr.mxu0 0.0
        %6697 = vmatpush1.msra.mxu0 0.0
        %6698 = vmatprep.subr.mxu0 0.0
        %6699 = vmatpush1.msra.mxu0 0.0
        %6700 = vmatprep.subr.mxu0 0.0
        %6701 = vmatpush1.msra.mxu0 0.0
        %6702 = vmatprep.subr.mxu0 0.0
        %6703 = vmatpush1.msra.mxu0 0.0
        %6704 = vmatprep.mubr.f32.mxu0 0.0
        %6705 = vmatmul.mubr.f32.gmra.mrb[0].mxu0 %v4820
        %v6706 = vpop.f32.mrb[0].mxu0
        %v6707 = vadd.f32 0.0, %v6706
        %v6708 = vpop.f32.mrb[0].mxu0
        %6709 = vmatprep.mubr.f32.mxu0 0.0
        %6710 = vmatmul.mubr.f32.gmra.mrb[0].mxu0 %v4822
        %v6711 = vpop.f32.mrb[0].mxu0
        %v6712 = vadd.f32 0.0, %v6711
        %v6713 = vpop.f32.mrb[0].mxu0
        %6714 = vmatprep.mubr.f32.mxu0 0.0
        %6715 = vmatmul.mubr.f32.gmra.mrb[0].mxu0 %v4824
        %v6716 = vpop.f32.mrb[0].mxu0
        %v6717 = vadd.f32 0.0, %v6716
        %v6718 = vpop.f32.mrb[0].mxu0
        %6719 = vmatprep.mubr.f32.mxu0 0.0
        %6720 = vmatmul.mubr.f32.gmra.mrb[0].mxu0 %v4826
        %v6721 = vpop.f32.mrb[0].mxu0
        %v6722 = vadd.f32 0.0, %v6721
        %v6723 = vpop.f32.mrb[0].mxu0
        %6724 = vmatprep.mubr.f32.mxu0 0.0
        %6725 = vmatmul.mubr.f32.gmra.mrb[0].mxu0 %v4828
        %v6726 = vpop.f32.mrb[0].mxu0
        %v6727 = vadd.f32 0.0, %v6726
        %v6728 = vpop.f32.mrb[0].mxu0
        %6729 = vmatprep.mubr.f32.mxu0 0.0
        %6730 = vmatmul.mubr.f32.gmra.mrb[0].mxu0 %v5413
        %v6731 = vpop.f32.mrb[0].mxu0
        %v6732 = vadd.f32 0.0, %v6731
        %v6733 = vpop.f32.mrb[0].mxu0
        %6734 = vmatprep.mubr.f32.mxu0 0.0
        %6735 = vmatmul.mubr.f32.gmra.mrb[0].mxu0 %v6026
        %v6736 = vpop.f32.mrb[0].mxu0
        %v6737 = vadd.f32 0.0, %v6736
        %v6738 = vpop.f32.mrb[0].mxu0
        %6739 = vmatprep.mubr.f32.mxu0 0.0
        %6740 = vmatmul.mubr.f32.gmra.mrb[0].mxu0 %v6636
        %v6741 = vpop.f32.mrb[0].mxu0
        %v6742 = vadd.f32 0.0, %v6741
        %v6743 = vpop.f32.mrb[0].mxu0
        %6744 = vdwg.mxu0
        %v6745 = vadd.f32 %v6626, %v6707
        %v6746 = vadd.f32 %v6627, %v6712
        %v6747 = vadd.f32 %v6628, %v6717
        %v6748 = vadd.f32 %v6629, %v6722
        %v6749 = vadd.f32 %v6630, %v6727
        %v6750 = vadd.f32 %v6631, %v6732
        %v6751 = vadd.f32 %v6632, %v6737
        %v6752 = vadd.f32 %v6633, %v6742
        %v6754 = vrot.slane %v4622, 1
        %v6755 = vrot.slane %v4623, 1
        %v6756 = vsel %vm580, %v6754, %v6755
        %v6757 = vsel %vm4426, %v6756, 0
        %v6760 = vsel %vm1899, %v4638, 0
        %6762 = vmatprep.subr.mxu0 0.0
        %6763 = vmatpush1.msra.mxu0 %v6760
        %6764 = vmatprep.subr.mxu0 0.0
        %6765 = vmatpush1.msra.mxu0 0.0
        %6766 = vmatprep.subr.mxu0 0.0
        %6767 = vmatpush1.msra.mxu0 0.0
        %6768 = vmatprep.subr.mxu0 0.0
        %6769 = vmatpush1.msra.mxu0 0.0
        %6770 = vmatprep.subr.mxu0 0.0
        %6771 = vmatpush1.msra.mxu0 0.0
        %6772 = vmatprep.subr.mxu0 0.0
        %6773 = vmatpush1.msra.mxu0 0.0
        %6774 = vmatprep.subr.mxu0 0.0
        %6775 = vmatpush1.msra.mxu0 0.0
        %6776 = vmatprep.subr.mxu0 0.0
        %6777 = vmatpush1.msra.mxu0 0.0
        %6778 = vmatprep.subr.mxu0 0.0
        %6779 = vmatpush1.msra.mxu0 0.0
        %6780 = vmatprep.subr.mxu0 0.0
        %6781 = vmatpush1.msra.mxu0 0.0
        %6782 = vmatprep.subr.mxu0 0.0
        %6783 = vmatpush1.msra.mxu0 0.0
        %6784 = vmatprep.subr.mxu0 0.0
        %6785 = vmatpush1.msra.mxu0 0.0
        %6786 = vmatprep.subr.mxu0 0.0
        %6787 = vmatpush1.msra.mxu0 0.0
        %6788 = vmatprep.subr.mxu0 0.0
        %6789 = vmatpush1.msra.mxu0 0.0
        %6790 = vmatprep.subr.mxu0 0.0
        %6791 = vmatpush1.msra.mxu0 0.0
        %6792 = vmatprep.subr.mxu0 0.0
        %6793 = vmatpush1.msra.mxu0 0.0
        %6794 = vmatprep.subr.mxu0 0.0
        %6795 = vmatpush1.msra.mxu0 0.0
        %6796 = vmatprep.subr.mxu0 0.0
        %6797 = vmatpush1.msra.mxu0 0.0
        %6798 = vmatprep.subr.mxu0 0.0
        %6799 = vmatpush1.msra.mxu0 0.0
        %6800 = vmatprep.subr.mxu0 0.0
        %6801 = vmatpush1.msra.mxu0 0.0
        %6802 = vmatprep.subr.mxu0 0.0
        %6803 = vmatpush1.msra.mxu0 0.0
        %6804 = vmatprep.subr.mxu0 0.0
        %6805 = vmatpush1.msra.mxu0 0.0
        %6806 = vmatprep.subr.mxu0 0.0
        %6807 = vmatpush1.msra.mxu0 0.0
        %6808 = vmatprep.subr.mxu0 0.0
        %6809 = vmatpush1.msra.mxu0 0.0
        %6810 = vmatprep.subr.mxu0 0.0
        %6811 = vmatpush1.msra.mxu0 0.0
        %6812 = vmatprep.subr.mxu0 0.0
        %6813 = vmatpush1.msra.mxu0 0.0
        %6814 = vmatprep.subr.mxu0 0.0
        %6815 = vmatpush1.msra.mxu0 0.0
        %6816 = vmatprep.subr.mxu0 0.0
        %6817 = vmatpush1.msra.mxu0 0.0
        %6818 = vmatprep.subr.mxu0 0.0
        %6819 = vmatpush1.msra.mxu0 0.0
        %6820 = vmatprep.subr.mxu0 0.0
        %6821 = vmatpush1.msra.mxu0 0.0
        %6822 = vmatprep.subr.mxu0 0.0
        %6823 = vmatpush1.msra.mxu0 0.0
        %6824 = vmatprep.subr.mxu0 0.0
        %6825 = vmatpush1.msra.mxu0 0.0
        %6826 = vmatprep.mubr.f32.mxu0 0.0
        %6827 = vmatmul.mubr.f32.gmra.mrb[0].mxu0 %v4697
        %v6828 = vpop.f32.mrb[0].mxu0
        %v6829 = vadd.f32 0.0, %v6828
        %v6830 = vpop.f32.mrb[0].mxu0
        %6831 = vmatprep.mubr.f32.mxu0 0.0
        %6832 = vmatmul.mubr.f32.gmra.mrb[0].mxu0 %v4699
        %v6833 = vpop.f32.mrb[0].mxu0
        %v6834 = vadd.f32 0.0, %v6833
        %v6835 = vpop.f32.mrb[0].mxu0
        %6836 = vmatprep.mubr.f32.mxu0 0.0
        %6837 = vmatmul.mubr.f32.gmra.mrb[0].mxu0 %v4701
        %v6838 = vpop.f32.mrb[0].mxu0
        %v6839 = vadd.f32 0.0, %v6838
        %v6840 = vpop.f32.mrb[0].mxu0
        %6841 = vmatprep.mubr.f32.mxu0 0.0
        %6842 = vmatmul.mubr.f32.gmra.mrb[0].mxu0 %v4703
        %v6843 = vpop.f32.mrb[0].mxu0
        %v6844 = vadd.f32 0.0, %v6843
        %v6845 = vpop.f32.mrb[0].mxu0
        %6846 = vmatprep.mubr.f32.mxu0 0.0
        %6847 = vmatmul.mubr.f32.gmra.mrb[0].mxu0 %v4705
        %v6848 = vpop.f32.mrb[0].mxu0
        %v6849 = vadd.f32 0.0, %v6848
        %v6850 = vpop.f32.mrb[0].mxu0
        %6851 = vmatprep.mubr.f32.mxu0 0.0
        %6852 = vmatmul.mubr.f32.gmra.mrb[0].mxu0 %v5538
        %v6853 = vpop.f32.mrb[0].mxu0
        %v6854 = vadd.f32 0.0, %v6853
        %v6855 = vpop.f32.mrb[0].mxu0
        %6856 = vmatprep.mubr.f32.mxu0 0.0
        %6857 = vmatmul.mubr.f32.gmra.mrb[0].mxu0 %v6148
        %v6858 = vpop.f32.mrb[0].mxu0
        %v6859 = vadd.f32 0.0, %v6858
        %v6860 = vpop.f32.mrb[0].mxu0
        %6861 = vmatprep.mubr.f32.mxu0 0.0
        %6862 = vmatmul.mubr.f32.gmra.mrb[0].mxu0 %v6757
        %v6863 = vpop.f32.mrb[0].mxu0
        %v6864 = vadd.f32 0.0, %v6863
        %v6865 = vpop.f32.mrb[0].mxu0
        %6866 = vdwg.mxu0
        %v6867 = vadd.f32 %v6745, %v6829
        %v6868 = vadd.f32 %v6746, %v6834
        %v6869 = vadd.f32 %v6747, %v6839
        %v6870 = vadd.f32 %v6748, %v6844
        %v6871 = vadd.f32 %v6749, %v6849
        %v6872 = vadd.f32 %v6750, %v6854
        %v6873 = vadd.f32 %v6751, %v6859
        %v6874 = vadd.f32 %v6752, %v6864
        %v6875 = vrot.slane %v4622, 2
        %v6876 = vrot.slane %v4623, 2
        %v6877 = vsel %vm1899, %v6875, %v6876
        %v6879 = vrot.slane %v4638, 6
        %v6880 = vrot.slane %v4639, 6
        %v6881 = vsel %vm4687, %v6879, %v6880
        %v6882 = vsel %vm4426, %v6877, 0
        %v6884 = vsel %vm1899, %v6881, 0
        %6886 = vmatprep.subr.mxu0 0.0
        %6887 = vmatpush1.msra.mxu0 %v6884
        %6888 = vmatprep.subr.mxu0 0.0
        %6889 = vmatpush1.msra.mxu0 0.0
        %6890 = vmatprep.subr.mxu0 0.0
        %6891 = vmatpush1.msra.mxu0 0.0
        %6892 = vmatprep.subr.mxu0 0.0
        %6893 = vmatpush1.msra.mxu0 0.0
        %6894 = vmatprep.subr.mxu0 0.0
        %6895 = vmatpush1.msra.mxu0 0.0
        %6896 = vmatprep.subr.mxu0 0.0
        %6897 = vmatpush1.msra.mxu0 0.0
        %6898 = vmatprep.subr.mxu0 0.0
        %6899 = vmatpush1.msra.mxu0 0.0
        %6900 = vmatprep.subr.mxu0 0.0
        %6901 = vmatpush1.msra.mxu0 0.0
        %6902 = vmatprep.subr.mxu0 0.0
        %6903 = vmatpush1.msra.mxu0 0.0
        %6904 = vmatprep.subr.mxu0 0.0
        %6905 = vmatpush1.msra.mxu0 0.0
        %6906 = vmatprep.subr.mxu0 0.0
        %6907 = vmatpush1.msra.mxu0 0.0
        %6908 = vmatprep.subr.mxu0 0.0
        %6909 = vmatpush1.msra.mxu0 0.0
        %6910 = vmatprep.subr.mxu0 0.0
        %6911 = vmatpush1.msra.mxu0 0.0
        %6912 = vmatprep.subr.mxu0 0.0
        %6913 = vmatpush1.msra.mxu0 0.0
        %6914 = vmatprep.subr.mxu0 0.0
        %6915 = vmatpush1.msra.mxu0 0.0
        %6916 = vmatprep.subr.mxu0 0.0
        %6917 = vmatpush1.msra.mxu0 0.0
        %6918 = vmatprep.subr.mxu0 0.0
        %6919 = vmatpush1.msra.mxu0 0.0
        %6920 = vmatprep.subr.mxu0 0.0
        %6921 = vmatpush1.msra.mxu0 0.0
        %6922 = vmatprep.subr.mxu0 0.0
        %6923 = vmatpush1.msra.mxu0 0.0
        %6924 = vmatprep.subr.mxu0 0.0
        %6925 = vmatpush1.msra.mxu0 0.0
        %6926 = vmatprep.subr.mxu0 0.0
        %6927 = vmatpush1.msra.mxu0 0.0
        %6928 = vmatprep.subr.mxu0 0.0
        %6929 = vmatpush1.msra.mxu0 0.0
        %6930 = vmatprep.subr.mxu0 0.0
        %6931 = vmatpush1.msra.mxu0 0.0
        %6932 = vmatprep.subr.mxu0 0.0
        %6933 = vmatpush1.msra.mxu0 0.0
        %6934 = vmatprep.subr.mxu0 0.0
        %6935 = vmatpush1.msra.mxu0 0.0
        %6936 = vmatprep.subr.mxu0 0.0
        %6937 = vmatpush1.msra.mxu0 0.0
        %6938 = vmatprep.subr.mxu0 0.0
        %6939 = vmatpush1.msra.mxu0 0.0
        %6940 = vmatprep.subr.mxu0 0.0
        %6941 = vmatpush1.msra.mxu0 0.0
        %6942 = vmatprep.subr.mxu0 0.0
        %6943 = vmatpush1.msra.mxu0 0.0
        %6944 = vmatprep.subr.mxu0 0.0
        %6945 = vmatpush1.msra.mxu0 0.0
        %6946 = vmatprep.subr.mxu0 0.0
        %6947 = vmatpush1.msra.mxu0 0.0
        %6948 = vmatprep.subr.mxu0 0.0
        %6949 = vmatpush1.msra.mxu0 0.0
        %6950 = vmatprep.mubr.f32.mxu0 0.0
        %6951 = vmatmul.mubr.f32.gmra.mrb[0].mxu0 %v4971
        %v6952 = vpop.f32.mrb[0].mxu0
        %v6953 = vadd.f32 0.0, %v6952
        %v6954 = vpop.f32.mrb[0].mxu0
        %6955 = vmatprep.mubr.f32.mxu0 0.0
        %6956 = vmatmul.mubr.f32.gmra.mrb[0].mxu0 %v4973
        %v6957 = vpop.f32.mrb[0].mxu0
        %v6958 = vadd.f32 0.0, %v6957
        %v6959 = vpop.f32.mrb[0].mxu0
        %6960 = vmatprep.mubr.f32.mxu0 0.0
        %6961 = vmatmul.mubr.f32.gmra.mrb[0].mxu0 %v4975
        %v6962 = vpop.f32.mrb[0].mxu0
        %v6963 = vadd.f32 0.0, %v6962
        %v6964 = vpop.f32.mrb[0].mxu0
        %6965 = vmatprep.mubr.f32.mxu0 0.0
        %6966 = vmatmul.mubr.f32.gmra.mrb[0].mxu0 %v4977
        %v6967 = vpop.f32.mrb[0].mxu0
        %v6968 = vadd.f32 0.0, %v6967
        %v6969 = vpop.f32.mrb[0].mxu0
        %6970 = vmatprep.mubr.f32.mxu0 0.0
        %6971 = vmatmul.mubr.f32.gmra.mrb[0].mxu0 %v4979
        %v6972 = vpop.f32.mrb[0].mxu0
        %v6973 = vadd.f32 0.0, %v6972
        %v6974 = vpop.f32.mrb[0].mxu0
        %6975 = vmatprep.mubr.f32.mxu0 0.0
        %6976 = vmatmul.mubr.f32.gmra.mrb[0].mxu0 %v5659
        %v6977 = vpop.f32.mrb[0].mxu0
        %v6978 = vadd.f32 0.0, %v6977
        %v6979 = vpop.f32.mrb[0].mxu0
        %6980 = vmatprep.mubr.f32.mxu0 0.0
        %6981 = vmatmul.mubr.f32.gmra.mrb[0].mxu0 %v6268
        %v6982 = vpop.f32.mrb[0].mxu0
        %v6983 = vadd.f32 0.0, %v6982
        %v6984 = vpop.f32.mrb[0].mxu0
        %6985 = vmatprep.mubr.f32.mxu0 0.0
        %6986 = vmatmul.mubr.f32.gmra.mrb[0].mxu0 %v6882
        %v6987 = vpop.f32.mrb[0].mxu0
        %v6988 = vadd.f32 0.0, %v6987
        %v6989 = vpop.f32.mrb[0].mxu0
        %6990 = vdwg.mxu0
        %v6991 = vadd.f32 %v6867, %v6953
        %v6992 = vadd.f32 %v6868, %v6958
        %v6993 = vadd.f32 %v6869, %v6963
        %v6994 = vadd.f32 %v6870, %v6968
        %v6995 = vadd.f32 %v6871, %v6973
        %v6996 = vadd.f32 %v6872, %v6978
        %v6997 = vadd.f32 %v6873, %v6983
        %v6998 = vadd.f32 %v6874, %v6988
        %v6999 = vrot.slane %v4622, 3
        %v7000 = vrot.slane %v4623, 3
        %v7001 = vsel %vm900, %v6999, %v7000
        %v7003 = vrot.slane %v4639, 4
        %v7004 = vrot.slane %v4640, 4
        %v7005 = vsel %vm3528, %v7003, %v7004
        %v7006 = vsel %vm4426, %v7001, 0
        %v7008 = vsel %vm1899, %v7005, 0
        %7010 = vmatprep.subr.mxu0 0.0
        %7011 = vmatpush1.msra.mxu0 %v7008
        %7012 = vmatprep.subr.mxu0 0.0
        %7013 = vmatpush1.msra.mxu0 0.0
        %7014 = vmatprep.subr.mxu0 0.0
        %7015 = vmatpush1.msra.mxu0 0.0
        %7016 = vmatprep.subr.mxu0 0.0
        %7017 = vmatpush1.msra.mxu0 0.0
        %7018 = vmatprep.subr.mxu0 0.0
        %7019 = vmatpush1.msra.mxu0 0.0
        %7020 = vmatprep.subr.mxu0 0.0
        %7021 = vmatpush1.msra.mxu0 0.0
        %7022 = vmatprep.subr.mxu0 0.0
        %7023 = vmatpush1.msra.mxu0 0.0
        %7024 = vmatprep.subr.mxu0 0.0
        %7025 = vmatpush1.msra.mxu0 0.0
        %7026 = vmatprep.subr.mxu0 0.0
        %7027 = vmatpush1.msra.mxu0 0.0
        %7028 = vmatprep.subr.mxu0 0.0
        %7029 = vmatpush1.msra.mxu0 0.0
        %7030 = vmatprep.subr.mxu0 0.0
        %7031 = vmatpush1.msra.mxu0 0.0
        %7032 = vmatprep.subr.mxu0 0.0
        %7033 = vmatpush1.msra.mxu0 0.0
        %7034 = vmatprep.subr.mxu0 0.0
        %7035 = vmatpush1.msra.mxu0 0.0
        %7036 = vmatprep.subr.mxu0 0.0
        %7037 = vmatpush1.msra.mxu0 0.0
        %7038 = vmatprep.subr.mxu0 0.0
        %7039 = vmatpush1.msra.mxu0 0.0
        %7040 = vmatprep.subr.mxu0 0.0
        %7041 = vmatpush1.msra.mxu0 0.0
        %7042 = vmatprep.subr.mxu0 0.0
        %7043 = vmatpush1.msra.mxu0 0.0
        %7044 = vmatprep.subr.mxu0 0.0
        %7045 = vmatpush1.msra.mxu0 0.0
        %7046 = vmatprep.subr.mxu0 0.0
        %7047 = vmatpush1.msra.mxu0 0.0
        %7048 = vmatprep.subr.mxu0 0.0
        %7049 = vmatpush1.msra.mxu0 0.0
        %7050 = vmatprep.subr.mxu0 0.0
        %7051 = vmatpush1.msra.mxu0 0.0
        %7052 = vmatprep.subr.mxu0 0.0
        %7053 = vmatpush1.msra.mxu0 0.0
        %7054 = vmatprep.subr.mxu0 0.0
        %7055 = vmatpush1.msra.mxu0 0.0
        %7056 = vmatprep.subr.mxu0 0.0
        %7057 = vmatpush1.msra.mxu0 0.0
        %7058 = vmatprep.subr.mxu0 0.0
        %7059 = vmatpush1.msra.mxu0 0.0
        %7060 = vmatprep.subr.mxu0 0.0
        %7061 = vmatpush1.msra.mxu0 0.0
        %7062 = vmatprep.subr.mxu0 0.0
        %7063 = vmatpush1.msra.mxu0 0.0
        %7064 = vmatprep.subr.mxu0 0.0
        %7065 = vmatpush1.msra.mxu0 0.0
        %7066 = vmatprep.subr.mxu0 0.0
        %7067 = vmatpush1.msra.mxu0 0.0
        %7068 = vmatprep.subr.mxu0 0.0
        %7069 = vmatpush1.msra.mxu0 0.0
        %7070 = vmatprep.subr.mxu0 0.0
        %7071 = vmatpush1.msra.mxu0 0.0
        %7072 = vmatprep.subr.mxu0 0.0
        %7073 = vmatpush1.msra.mxu0 0.0
        %7074 = vmatprep.mubr.f32.mxu0 0.0
        %7075 = vmatmul.mubr.f32.gmra.mrb[0].mxu0 %v5127
        %v7076 = vpop.f32.mrb[0].mxu0
        %v7077 = vadd.f32 0.0, %v7076
        %v7078 = vpop.f32.mrb[0].mxu0
        %7079 = vmatprep.mubr.f32.mxu0 0.0
        %7080 = vmatmul.mubr.f32.gmra.mrb[0].mxu0 %v5129
        %v7081 = vpop.f32.mrb[0].mxu0
        %v7082 = vadd.f32 0.0, %v7081
        %v7083 = vpop.f32.mrb[0].mxu0
        %7084 = vmatprep.mubr.f32.mxu0 0.0
        %7085 = vmatmul.mubr.f32.gmra.mrb[0].mxu0 %v5131
        %v7086 = vpop.f32.mrb[0].mxu0
        %v7087 = vadd.f32 0.0, %v7086
        %v7088 = vpop.f32.mrb[0].mxu0
        %7089 = vmatprep.mubr.f32.mxu0 0.0
        %7090 = vmatmul.mubr.f32.gmra.mrb[0].mxu0 %v5133
        %v7091 = vpop.f32.mrb[0].mxu0
        %v7092 = vadd.f32 0.0, %v7091
        %v7093 = vpop.f32.mrb[0].mxu0
        %7094 = vmatprep.mubr.f32.mxu0 0.0
        %7095 = vmatmul.mubr.f32.gmra.mrb[0].mxu0 %v5135
        %v7096 = vpop.f32.mrb[0].mxu0
        %v7097 = vadd.f32 0.0, %v7096
        %v7098 = vpop.f32.mrb[0].mxu0
        %7099 = vmatprep.mubr.f32.mxu0 0.0
        %7100 = vmatmul.mubr.f32.gmra.mrb[0].mxu0 %v5779
        %v7101 = vpop.f32.mrb[0].mxu0
        %v7102 = vadd.f32 0.0, %v7101
        %v7103 = vpop.f32.mrb[0].mxu0
        %7104 = vmatprep.mubr.f32.mxu0 0.0
        %7105 = vmatmul.mubr.f32.gmra.mrb[0].mxu0 %v6393
        %v7106 = vpop.f32.mrb[0].mxu0
        %v7107 = vadd.f32 0.0, %v7106
        %v7108 = vpop.f32.mrb[0].mxu0
        %7109 = vmatprep.mubr.f32.mxu0 0.0
        %7110 = vmatmul.mubr.f32.gmra.mrb[0].mxu0 %v7006
        %v7111 = vpop.f32.mrb[0].mxu0
        %v7112 = vadd.f32 0.0, %v7111
        %v7113 = vpop.f32.mrb[0].mxu0
        %7114 = vdwg.mxu0
        %v7115 = vadd.f32 %v6991, %v7077
        %v7116 = vadd.f32 %v6992, %v7082
        %v7117 = vadd.f32 %v6993, %v7087
        %v7118 = vadd.f32 %v6994, %v7092
        %v7119 = vadd.f32 %v6995, %v7097
        %v7120 = vadd.f32 %v6996, %v7102
        %v7121 = vadd.f32 %v6997, %v7107
        %v7122 = vadd.f32 %v6998, %v7112
        %v7123 = vrot.slane %v4622, 4
        %v7124 = vrot.slane %v4623, 4
        %v7125 = vsel %vm3528, %v7123, %v7124
        %v7126 = vrot.slane %v4640, 2
        %v7127 = vsel %vm4426, %v7125, 0
        %v7129 = vsel %vm1899, %v7126, 0
        %7131 = vmatprep.subr.mxu0 0.0
        %7132 = vmatpush1.msra.mxu0 %v7129
        %7133 = vmatprep.subr.mxu0 0.0
        %7134 = vmatpush1.msra.mxu0 0.0
        %7135 = vmatprep.subr.mxu0 0.0
        %7136 = vmatpush1.msra.mxu0 0.0
        %7137 = vmatprep.subr.mxu0 0.0
        %7138 = vmatpush1.msra.mxu0 0.0
        %7139 = vmatprep.subr.mxu0 0.0
        %7140 = vmatpush1.msra.mxu0 0.0
        %7141 = vmatprep.subr.mxu0 0.0
        %7142 = vmatpush1.msra.mxu0 0.0
        %7143 = vmatprep.subr.mxu0 0.0
        %7144 = vmatpush1.msra.mxu0 0.0
        %7145 = vmatprep.subr.mxu0 0.0
        %7146 = vmatpush1.msra.mxu0 0.0
        %7147 = vmatprep.subr.mxu0 0.0
        %7148 = vmatpush1.msra.mxu0 0.0
        %7149 = vmatprep.subr.mxu0 0.0
        %7150 = vmatpush1.msra.mxu0 0.0
        %7151 = vmatprep.subr.mxu0 0.0
        %7152 = vmatpush1.msra.mxu0 0.0
        %7153 = vmatprep.subr.mxu0 0.0
        %7154 = vmatpush1.msra.mxu0 0.0
        %7155 = vmatprep.subr.mxu0 0.0
        %7156 = vmatpush1.msra.mxu0 0.0
        %7157 = vmatprep.subr.mxu0 0.0
        %7158 = vmatpush1.msra.mxu0 0.0
        %7159 = vmatprep.subr.mxu0 0.0
        %7160 = vmatpush1.msra.mxu0 0.0
        %7161 = vmatprep.subr.mxu0 0.0
        %7162 = vmatpush1.msra.mxu0 0.0
        %7163 = vmatprep.subr.mxu0 0.0
        %7164 = vmatpush1.msra.mxu0 0.0
        %7165 = vmatprep.subr.mxu0 0.0
        %7166 = vmatpush1.msra.mxu0 0.0
        %7167 = vmatprep.subr.mxu0 0.0
        %7168 = vmatpush1.msra.mxu0 0.0
        %7169 = vmatprep.subr.mxu0 0.0
        %7170 = vmatpush1.msra.mxu0 0.0
        %7171 = vmatprep.subr.mxu0 0.0
        %7172 = vmatpush1.msra.mxu0 0.0
        %7173 = vmatprep.subr.mxu0 0.0
        %7174 = vmatpush1.msra.mxu0 0.0
        %7175 = vmatprep.subr.mxu0 0.0
        %7176 = vmatpush1.msra.mxu0 0.0
        %7177 = vmatprep.subr.mxu0 0.0
        %7178 = vmatpush1.msra.mxu0 0.0
        %7179 = vmatprep.subr.mxu0 0.0
        %7180 = vmatpush1.msra.mxu0 0.0
        %7181 = vmatprep.subr.mxu0 0.0
        %7182 = vmatpush1.msra.mxu0 0.0
        %7183 = vmatprep.subr.mxu0 0.0
        %7184 = vmatpush1.msra.mxu0 0.0
        %7185 = vmatprep.subr.mxu0 0.0
        %7186 = vmatpush1.msra.mxu0 0.0
        %7187 = vmatprep.subr.mxu0 0.0
        %7188 = vmatpush1.msra.mxu0 0.0
        %7189 = vmatprep.subr.mxu0 0.0
        %7190 = vmatpush1.msra.mxu0 0.0
        %7191 = vmatprep.subr.mxu0 0.0
        %7192 = vmatpush1.msra.mxu0 0.0
        %7193 = vmatprep.subr.mxu0 0.0
        %7194 = vmatpush1.msra.mxu0 0.0
        %7195 = vmatprep.mubr.f32.mxu0 0.0
        %7196 = vmatmul.mubr.f32.gmra.mrb[0].mxu0 %v5282
        %v7197 = vpop.f32.mrb[0].mxu0
        %v7198 = vadd.f32 0.0, %v7197
        %v7199 = vpop.f32.mrb[0].mxu0
        %7200 = vmatprep.mubr.f32.mxu0 0.0
        %7201 = vmatmul.mubr.f32.gmra.mrb[0].mxu0 %v5284
        %v7202 = vpop.f32.mrb[0].mxu0
        %v7203 = vadd.f32 0.0, %v7202
        %v7204 = vpop.f32.mrb[0].mxu0
        %7205 = vmatprep.mubr.f32.mxu0 0.0
        %7206 = vmatmul.mubr.f32.gmra.mrb[0].mxu0 %v5286
        %v7207 = vpop.f32.mrb[0].mxu0
        %v7208 = vadd.f32 0.0, %v7207
        %v7209 = vpop.f32.mrb[0].mxu0
        %7210 = vmatprep.mubr.f32.mxu0 0.0
        %7211 = vmatmul.mubr.f32.gmra.mrb[0].mxu0 %v5288
        %v7212 = vpop.f32.mrb[0].mxu0
        %v7213 = vadd.f32 0.0, %v7212
        %v7214 = vpop.f32.mrb[0].mxu0
        %7215 = vmatprep.mubr.f32.mxu0 0.0
        %7216 = vmatmul.mubr.f32.gmra.mrb[0].mxu0 %v5290
        %v7217 = vpop.f32.mrb[0].mxu0
        %v7218 = vadd.f32 0.0, %v7217
        %v7219 = vpop.f32.mrb[0].mxu0
        %7220 = vmatprep.mubr.f32.mxu0 0.0
        %7221 = vmatmul.mubr.f32.gmra.mrb[0].mxu0 %v5904
        %v7222 = vpop.f32.mrb[0].mxu0
        %v7223 = vadd.f32 0.0, %v7222
        %v7224 = vpop.f32.mrb[0].mxu0
        %7225 = vmatprep.mubr.f32.mxu0 0.0
        %7226 = vmatmul.mubr.f32.gmra.mrb[0].mxu0 %v6517
        %v7227 = vpop.f32.mrb[0].mxu0
        %v7228 = vadd.f32 0.0, %v7227
        %v7229 = vpop.f32.mrb[0].mxu0
        %7230 = vmatprep.mubr.f32.mxu0 0.0
        %7231 = vmatmul.mubr.f32.gmra.mrb[0].mxu0 %v7127
        %v7232 = vpop.f32.mrb[0].mxu0
        %v7233 = vadd.f32 0.0, %v7232
        %v7234 = vpop.f32.mrb[0].mxu0
        %7235 = vdwg.mxu0
        %v7236 = vadd.f32 %v7115, %v7198
        %v7237 = vadd.f32 %v7116, %v7203
        %v7238 = vadd.f32 %v7117, %v7208
        %v7239 = vadd.f32 %v7118, %v7213
        %v7240 = vadd.f32 %v7119, %v7218
        %v7241 = vadd.f32 %v7120, %v7223
        %v7242 = vadd.f32 %v7121, %v7228
        %v7243 = vadd.f32 %v7122, %v7233
        %v7245 = vsel %vm4426, %v4624, 0
        %v7248 = vsel %vm1899, %v4641, 0
        %7250 = vmatprep.subr.mxu0 0.0
        %7251 = vmatpush1.msra.mxu0 %v7248
        %7252 = vmatprep.subr.mxu0 0.0
        %7253 = vmatpush1.msra.mxu0 0.0
        %7254 = vmatprep.subr.mxu0 0.0
        %7255 = vmatpush1.msra.mxu0 0.0
        %7256 = vmatprep.subr.mxu0 0.0
        %7257 = vmatpush1.msra.mxu0 0.0
        %7258 = vmatprep.subr.mxu0 0.0
        %7259 = vmatpush1.msra.mxu0 0.0
        %7260 = vmatprep.subr.mxu0 0.0
        %7261 = vmatpush1.msra.mxu0 0.0
        %7262 = vmatprep.subr.mxu0 0.0
        %7263 = vmatpush1.msra.mxu0 0.0
        %7264 = vmatprep.subr.mxu0 0.0
        %7265 = vmatpush1.msra.mxu0 0.0
        %7266 = vmatprep.subr.mxu0 0.0
        %7267 = vmatpush1.msra.mxu0 0.0
        %7268 = vmatprep.subr.mxu0 0.0
        %7269 = vmatpush1.msra.mxu0 0.0
        %7270 = vmatprep.subr.mxu0 0.0
        %7271 = vmatpush1.msra.mxu0 0.0
        %7272 = vmatprep.subr.mxu0 0.0
        %7273 = vmatpush1.msra.mxu0 0.0
        %7274 = vmatprep.subr.mxu0 0.0
        %7275 = vmatpush1.msra.mxu0 0.0
        %7276 = vmatprep.subr.mxu0 0.0
        %7277 = vmatpush1.msra.mxu0 0.0
        %7278 = vmatprep.subr.mxu0 0.0
        %7279 = vmatpush1.msra.mxu0 0.0
        %7280 = vmatprep.subr.mxu0 0.0
        %7281 = vmatpush1.msra.mxu0 0.0
        %7282 = vmatprep.subr.mxu0 0.0
        %7283 = vmatpush1.msra.mxu0 0.0
        %7284 = vmatprep.subr.mxu0 0.0
        %7285 = vmatpush1.msra.mxu0 0.0
        %7286 = vmatprep.subr.mxu0 0.0
        %7287 = vmatpush1.msra.mxu0 0.0
        %7288 = vmatprep.subr.mxu0 0.0
        %7289 = vmatpush1.msra.mxu0 0.0
        %7290 = vmatprep.subr.mxu0 0.0
        %7291 = vmatpush1.msra.mxu0 0.0
        %7292 = vmatprep.subr.mxu0 0.0
        %7293 = vmatpush1.msra.mxu0 0.0
        %7294 = vmatprep.subr.mxu0 0.0
        %7295 = vmatpush1.msra.mxu0 0.0
        %7296 = vmatprep.subr.mxu0 0.0
        %7297 = vmatpush1.msra.mxu0 0.0
        %7298 = vmatprep.subr.mxu0 0.0
        %7299 = vmatpush1.msra.mxu0 0.0
        %7300 = vmatprep.subr.mxu0 0.0
        %7301 = vmatpush1.msra.mxu0 0.0
        %7302 = vmatprep.subr.mxu0 0.0
        %7303 = vmatpush1.msra.mxu0 0.0
        %7304 = vmatprep.subr.mxu0 0.0
        %7305 = vmatpush1.msra.mxu0 0.0
        %7306 = vmatprep.subr.mxu0 0.0
        %7307 = vmatpush1.msra.mxu0 0.0
        %7308 = vmatprep.subr.mxu0 0.0
        %7309 = vmatpush1.msra.mxu0 0.0
        %7310 = vmatprep.subr.mxu0 0.0
        %7311 = vmatpush1.msra.mxu0 0.0
        %7312 = vmatprep.subr.mxu0 0.0
        %7313 = vmatpush1.msra.mxu0 0.0
        %7314 = vmatprep.mubr.f32.mxu0 0.0
        %7315 = vmatmul.mubr.f32.gmra.mrb[0].mxu0 %v4822
        %v7316 = vpop.f32.mrb[0].mxu0
        %v7317 = vadd.f32 0.0, %v7316
        %v7318 = vpop.f32.mrb[0].mxu0
        %7319 = vmatprep.mubr.f32.mxu0 0.0
        %7320 = vmatmul.mubr.f32.gmra.mrb[0].mxu0 %v4824
        %v7321 = vpop.f32.mrb[0].mxu0
        %v7322 = vadd.f32 0.0, %v7321
        %v7323 = vpop.f32.mrb[0].mxu0
        %7324 = vmatprep.mubr.f32.mxu0 0.0
        %7325 = vmatmul.mubr.f32.gmra.mrb[0].mxu0 %v4826
        %v7326 = vpop.f32.mrb[0].mxu0
        %v7327 = vadd.f32 0.0, %v7326
        %v7328 = vpop.f32.mrb[0].mxu0
        %7329 = vmatprep.mubr.f32.mxu0 0.0
        %7330 = vmatmul.mubr.f32.gmra.mrb[0].mxu0 %v4828
        %v7331 = vpop.f32.mrb[0].mxu0
        %v7332 = vadd.f32 0.0, %v7331
        %v7333 = vpop.f32.mrb[0].mxu0
        %7334 = vmatprep.mubr.f32.mxu0 0.0
        %7335 = vmatmul.mubr.f32.gmra.mrb[0].mxu0 %v5413
        %v7336 = vpop.f32.mrb[0].mxu0
        %v7337 = vadd.f32 0.0, %v7336
        %v7338 = vpop.f32.mrb[0].mxu0
        %7339 = vmatprep.mubr.f32.mxu0 0.0
        %7340 = vmatmul.mubr.f32.gmra.mrb[0].mxu0 %v6026
        %v7341 = vpop.f32.mrb[0].mxu0
        %v7342 = vadd.f32 0.0, %v7341
        %v7343 = vpop.f32.mrb[0].mxu0
        %7344 = vmatprep.mubr.f32.mxu0 0.0
        %7345 = vmatmul.mubr.f32.gmra.mrb[0].mxu0 %v6636
        %v7346 = vpop.f32.mrb[0].mxu0
        %v7347 = vadd.f32 0.0, %v7346
        %v7348 = vpop.f32.mrb[0].mxu0
        %7349 = vmatprep.mubr.f32.mxu0 0.0
        %7350 = vmatmul.mubr.f32.gmra.mrb[0].mxu0 %v7245
        %v7351 = vpop.f32.mrb[0].mxu0
        %v7352 = vadd.f32 0.0, %v7351
        %v7353 = vpop.f32.mrb[0].mxu0
        %7354 = vdwg.mxu0
        %v7355 = vadd.f32 %v7236, %v7317
        %v7356 = vadd.f32 %v7237, %v7322
        %v7357 = vadd.f32 %v7238, %v7327
        %v7358 = vadd.f32 %v7239, %v7332
        %v7359 = vadd.f32 %v7240, %v7337
        %v7360 = vadd.f32 %v7241, %v7342
        %v7361 = vadd.f32 %v7242, %v7347
        %v7362 = vadd.f32 %v7243, %v7352
        %v7364 = vrot.slane %v4624, 1
        %v7365 = vrot.slane %v4625, 1
        %v7366 = vsel %vm580, %v7364, %v7365
        %v7368 = vrot.slane %v4641, 6
        %v7369 = vrot.slane %v4642, 6
        %v7370 = vsel %vm4687, %v7368, %v7369
        %v7371 = vsel %vm4426, %v7366, 0
        %v7373 = vsel %vm1899, %v7370, 0
        %7375 = vmatprep.subr.mxu0 0.0
        %7376 = vmatpush1.msra.mxu0 %v7373
        %7377 = vmatprep.subr.mxu0 0.0
        %7378 = vmatpush1.msra.mxu0 0.0
        %7379 = vmatprep.subr.mxu0 0.0
        %7380 = vmatpush1.msra.mxu0 0.0
        %7381 = vmatprep.subr.mxu0 0.0
        %7382 = vmatpush1.msra.mxu0 0.0
        %7383 = vmatprep.subr.mxu0 0.0
        %7384 = vmatpush1.msra.mxu0 0.0
        %7385 = vmatprep.subr.mxu0 0.0
        %7386 = vmatpush1.msra.mxu0 0.0
        %7387 = vmatprep.subr.mxu0 0.0
        %7388 = vmatpush1.msra.mxu0 0.0
        %7389 = vmatprep.subr.mxu0 0.0
        %7390 = vmatpush1.msra.mxu0 0.0
        %7391 = vmatprep.subr.mxu0 0.0
        %7392 = vmatpush1.msra.mxu0 0.0
        %7393 = vmatprep.subr.mxu0 0.0
        %7394 = vmatpush1.msra.mxu0 0.0
        %7395 = vmatprep.subr.mxu0 0.0
        %7396 = vmatpush1.msra.mxu0 0.0
        %7397 = vmatprep.subr.mxu0 0.0
        %7398 = vmatpush1.msra.mxu0 0.0
        %7399 = vmatprep.subr.mxu0 0.0
        %7400 = vmatpush1.msra.mxu0 0.0
        %7401 = vmatprep.subr.mxu0 0.0
        %7402 = vmatpush1.msra.mxu0 0.0
        %7403 = vmatprep.subr.mxu0 0.0
        %7404 = vmatpush1.msra.mxu0 0.0
        %7405 = vmatprep.subr.mxu0 0.0
        %7406 = vmatpush1.msra.mxu0 0.0
        %7407 = vmatprep.subr.mxu0 0.0
        %7408 = vmatpush1.msra.mxu0 0.0
        %7409 = vmatprep.subr.mxu0 0.0
        %7410 = vmatpush1.msra.mxu0 0.0
        %7411 = vmatprep.subr.mxu0 0.0
        %7412 = vmatpush1.msra.mxu0 0.0
        %7413 = vmatprep.subr.mxu0 0.0
        %7414 = vmatpush1.msra.mxu0 0.0
        %7415 = vmatprep.subr.mxu0 0.0
        %7416 = vmatpush1.msra.mxu0 0.0
        %7417 = vmatprep.subr.mxu0 0.0
        %7418 = vmatpush1.msra.mxu0 0.0
        %7419 = vmatprep.subr.mxu0 0.0
        %7420 = vmatpush1.msra.mxu0 0.0
        %7421 = vmatprep.subr.mxu0 0.0
        %7422 = vmatpush1.msra.mxu0 0.0
        %7423 = vmatprep.subr.mxu0 0.0
        %7424 = vmatpush1.msra.mxu0 0.0
        %7425 = vmatprep.subr.mxu0 0.0
        %7426 = vmatpush1.msra.mxu0 0.0
        %7427 = vmatprep.subr.mxu0 0.0
        %7428 = vmatpush1.msra.mxu0 0.0
        %7429 = vmatprep.subr.mxu0 0.0
        %7430 = vmatpush1.msra.mxu0 0.0
        %7431 = vmatprep.subr.mxu0 0.0
        %7432 = vmatpush1.msra.mxu0 0.0
        %7433 = vmatprep.subr.mxu0 0.0
        %7434 = vmatpush1.msra.mxu0 0.0
        %7435 = vmatprep.subr.mxu0 0.0
        %7436 = vmatpush1.msra.mxu0 0.0
        %7437 = vmatprep.subr.mxu0 0.0
        %7438 = vmatpush1.msra.mxu0 0.0
        %7439 = vmatprep.mubr.f32.mxu0 0.0
        %7440 = vmatmul.mubr.f32.gmra.mrb[0].mxu0 %v4699
        %v7441 = vpop.f32.mrb[0].mxu0
        %v7442 = vadd.f32 0.0, %v7441
        %v7443 = vpop.f32.mrb[0].mxu0
        %7444 = vmatprep.mubr.f32.mxu0 0.0
        %7445 = vmatmul.mubr.f32.gmra.mrb[0].mxu0 %v4701
        %v7446 = vpop.f32.mrb[0].mxu0
        %v7447 = vadd.f32 0.0, %v7446
        %v7448 = vpop.f32.mrb[0].mxu0
        %7449 = vmatprep.mubr.f32.mxu0 0.0
        %7450 = vmatmul.mubr.f32.gmra.mrb[0].mxu0 %v4703
        %v7451 = vpop.f32.mrb[0].mxu0
        %v7452 = vadd.f32 0.0, %v7451
        %v7453 = vpop.f32.mrb[0].mxu0
        %7454 = vmatprep.mubr.f32.mxu0 0.0
        %7455 = vmatmul.mubr.f32.gmra.mrb[0].mxu0 %v4705
        %v7456 = vpop.f32.mrb[0].mxu0
        %v7457 = vadd.f32 0.0, %v7456
        %v7458 = vpop.f32.mrb[0].mxu0
        %7459 = vmatprep.mubr.f32.mxu0 0.0
        %7460 = vmatmul.mubr.f32.gmra.mrb[0].mxu0 %v5538
        %v7461 = vpop.f32.mrb[0].mxu0
        %v7462 = vadd.f32 0.0, %v7461
        %v7463 = vpop.f32.mrb[0].mxu0
        %7464 = vmatprep.mubr.f32.mxu0 0.0
        %7465 = vmatmul.mubr.f32.gmra.mrb[0].mxu0 %v6148
        %v7466 = vpop.f32.mrb[0].mxu0
        %v7467 = vadd.f32 0.0, %v7466
        %v7468 = vpop.f32.mrb[0].mxu0
        %7469 = vmatprep.mubr.f32.mxu0 0.0
        %7470 = vmatmul.mubr.f32.gmra.mrb[0].mxu0 %v6757
        %v7471 = vpop.f32.mrb[0].mxu0
        %v7472 = vadd.f32 0.0, %v7471
        %v7473 = vpop.f32.mrb[0].mxu0
        %7474 = vmatprep.mubr.f32.mxu0 0.0
        %7475 = vmatmul.mubr.f32.gmra.mrb[0].mxu0 %v7371
        %v7476 = vpop.f32.mrb[0].mxu0
        %v7477 = vadd.f32 0.0, %v7476
        %v7478 = vpop.f32.mrb[0].mxu0
        %7479 = vdwg.mxu0
        %v7480 = vadd.f32 %v7355, %v7442
        %v7481 = vadd.f32 %v7356, %v7447
        %v7482 = vadd.f32 %v7357, %v7452
        %v7483 = vadd.f32 %v7358, %v7457
        %v7484 = vadd.f32 %v7359, %v7462
        %v7485 = vadd.f32 %v7360, %v7467
        %v7486 = vadd.f32 %v7361, %v7472
        %v7487 = vadd.f32 %v7362, %v7477
        %v7488 = vrot.slane %v4624, 2
        %v7489 = vrot.slane %v4625, 2
        %v7490 = vsel %vm1899, %v7488, %v7489
        %v7492 = vrot.slane %v4642, 4
        %v7493 = vrot.slane %v4643, 4
        %v7494 = vsel %vm3528, %v7492, %v7493
        %v7495 = vsel %vm4426, %v7490, 0
        %v7497 = vsel %vm1899, %v7494, 0
        %7499 = vmatprep.subr.mxu0 0.0
        %7500 = vmatpush1.msra.mxu0 %v7497
        %7501 = vmatprep.subr.mxu0 0.0
        %7502 = vmatpush1.msra.mxu0 0.0
        %7503 = vmatprep.subr.mxu0 0.0
        %7504 = vmatpush1.msra.mxu0 0.0
        %7505 = vmatprep.subr.mxu0 0.0
        %7506 = vmatpush1.msra.mxu0 0.0
        %7507 = vmatprep.subr.mxu0 0.0
        %7508 = vmatpush1.msra.mxu0 0.0
        %7509 = vmatprep.subr.mxu0 0.0
        %7510 = vmatpush1.msra.mxu0 0.0
        %7511 = vmatprep.subr.mxu0 0.0
        %7512 = vmatpush1.msra.mxu0 0.0
        %7513 = vmatprep.subr.mxu0 0.0
        %7514 = vmatpush1.msra.mxu0 0.0
        %7515 = vmatprep.subr.mxu0 0.0
        %7516 = vmatpush1.msra.mxu0 0.0
        %7517 = vmatprep.subr.mxu0 0.0
        %7518 = vmatpush1.msra.mxu0 0.0
        %7519 = vmatprep.subr.mxu0 0.0
        %7520 = vmatpush1.msra.mxu0 0.0
        %7521 = vmatprep.subr.mxu0 0.0
        %7522 = vmatpush1.msra.mxu0 0.0
        %7523 = vmatprep.subr.mxu0 0.0
        %7524 = vmatpush1.msra.mxu0 0.0
        %7525 = vmatprep.subr.mxu0 0.0
        %7526 = vmatpush1.msra.mxu0 0.0
        %7527 = vmatprep.subr.mxu0 0.0
        %7528 = vmatpush1.msra.mxu0 0.0
        %7529 = vmatprep.subr.mxu0 0.0
        %7530 = vmatpush1.msra.mxu0 0.0
        %7531 = vmatprep.subr.mxu0 0.0
        %7532 = vmatpush1.msra.mxu0 0.0
        %7533 = vmatprep.subr.mxu0 0.0
        %7534 = vmatpush1.msra.mxu0 0.0
        %7535 = vmatprep.subr.mxu0 0.0
        %7536 = vmatpush1.msra.mxu0 0.0
        %7537 = vmatprep.subr.mxu0 0.0
        %7538 = vmatpush1.msra.mxu0 0.0
        %7539 = vmatprep.subr.mxu0 0.0
        %7540 = vmatpush1.msra.mxu0 0.0
        %7541 = vmatprep.subr.mxu0 0.0
        %7542 = vmatpush1.msra.mxu0 0.0
        %7543 = vmatprep.subr.mxu0 0.0
        %7544 = vmatpush1.msra.mxu0 0.0
        %7545 = vmatprep.subr.mxu0 0.0
        %7546 = vmatpush1.msra.mxu0 0.0
        %7547 = vmatprep.subr.mxu0 0.0
        %7548 = vmatpush1.msra.mxu0 0.0
        %7549 = vmatprep.subr.mxu0 0.0
        %7550 = vmatpush1.msra.mxu0 0.0
        %7551 = vmatprep.subr.mxu0 0.0
        %7552 = vmatpush1.msra.mxu0 0.0
        %7553 = vmatprep.subr.mxu0 0.0
        %7554 = vmatpush1.msra.mxu0 0.0
        %7555 = vmatprep.subr.mxu0 0.0
        %7556 = vmatpush1.msra.mxu0 0.0
        %7557 = vmatprep.subr.mxu0 0.0
        %7558 = vmatpush1.msra.mxu0 0.0
        %7559 = vmatprep.subr.mxu0 0.0
        %7560 = vmatpush1.msra.mxu0 0.0
        %7561 = vmatprep.subr.mxu0 0.0
        %7562 = vmatpush1.msra.mxu0 0.0
        %7563 = vmatprep.mubr.f32.mxu0 0.0
        %7564 = vmatmul.mubr.f32.gmra.mrb[0].mxu0 %v4973
        %v7565 = vpop.f32.mrb[0].mxu0
        %v7566 = vadd.f32 0.0, %v7565
        %v7567 = vpop.f32.mrb[0].mxu0
        %7568 = vmatprep.mubr.f32.mxu0 0.0
        %7569 = vmatmul.mubr.f32.gmra.mrb[0].mxu0 %v4975
        %v7570 = vpop.f32.mrb[0].mxu0
        %v7571 = vadd.f32 0.0, %v7570
        %v7572 = vpop.f32.mrb[0].mxu0
        %7573 = vmatprep.mubr.f32.mxu0 0.0
        %7574 = vmatmul.mubr.f32.gmra.mrb[0].mxu0 %v4977
        %v7575 = vpop.f32.mrb[0].mxu0
        %v7576 = vadd.f32 0.0, %v7575
        %v7577 = vpop.f32.mrb[0].mxu0
        %7578 = vmatprep.mubr.f32.mxu0 0.0
        %7579 = vmatmul.mubr.f32.gmra.mrb[0].mxu0 %v4979
        %v7580 = vpop.f32.mrb[0].mxu0
        %v7581 = vadd.f32 0.0, %v7580
        %v7582 = vpop.f32.mrb[0].mxu0
        %7583 = vmatprep.mubr.f32.mxu0 0.0
        %7584 = vmatmul.mubr.f32.gmra.mrb[0].mxu0 %v5659
        %v7585 = vpop.f32.mrb[0].mxu0
        %v7586 = vadd.f32 0.0, %v7585
        %v7587 = vpop.f32.mrb[0].mxu0
        %7588 = vmatprep.mubr.f32.mxu0 0.0
        %7589 = vmatmul.mubr.f32.gmra.mrb[0].mxu0 %v6268
        %v7590 = vpop.f32.mrb[0].mxu0
        %v7591 = vadd.f32 0.0, %v7590
        %v7592 = vpop.f32.mrb[0].mxu0
        %7593 = vmatprep.mubr.f32.mxu0 0.0
        %7594 = vmatmul.mubr.f32.gmra.mrb[0].mxu0 %v6882
        %v7595 = vpop.f32.mrb[0].mxu0
        %v7596 = vadd.f32 0.0, %v7595
        %v7597 = vpop.f32.mrb[0].mxu0
        %7598 = vmatprep.mubr.f32.mxu0 0.0
        %7599 = vmatmul.mubr.f32.gmra.mrb[0].mxu0 %v7495
        %v7600 = vpop.f32.mrb[0].mxu0
        %v7601 = vadd.f32 0.0, %v7600
        %v7602 = vpop.f32.mrb[0].mxu0
        %7603 = vdwg.mxu0
        %v7604 = vadd.f32 %v7480, %v7566
        %v7605 = vadd.f32 %v7481, %v7571
        %v7606 = vadd.f32 %v7482, %v7576
        %v7607 = vadd.f32 %v7483, %v7581
        %v7608 = vadd.f32 %v7484, %v7586
        %v7609 = vadd.f32 %v7485, %v7591
        %v7610 = vadd.f32 %v7486, %v7596
        %v7611 = vadd.f32 %v7487, %v7601
        %v7612 = vrot.slane %v4624, 3
        %v7613 = vrot.slane %v4625, 3
        %v7614 = vsel %vm900, %v7612, %v7613
        %v7615 = vrot.slane %v4643, 2
        %v7616 = vsel %vm4426, %v7614, 0
        %v7618 = vsel %vm1899, %v7615, 0
        %7620 = vmatprep.subr.mxu0 0.0
        %7621 = vmatpush1.msra.mxu0 %v7618
        %7622 = vmatprep.subr.mxu0 0.0
        %7623 = vmatpush1.msra.mxu0 0.0
        %7624 = vmatprep.subr.mxu0 0.0
        %7625 = vmatpush1.msra.mxu0 0.0
        %7626 = vmatprep.subr.mxu0 0.0
        %7627 = vmatpush1.msra.mxu0 0.0
        %7628 = vmatprep.subr.mxu0 0.0
        %7629 = vmatpush1.msra.mxu0 0.0
        %7630 = vmatprep.subr.mxu0 0.0
        %7631 = vmatpush1.msra.mxu0 0.0
        %7632 = vmatprep.subr.mxu0 0.0
        %7633 = vmatpush1.msra.mxu0 0.0
        %7634 = vmatprep.subr.mxu0 0.0
        %7635 = vmatpush1.msra.mxu0 0.0
        %7636 = vmatprep.subr.mxu0 0.0
        %7637 = vmatpush1.msra.mxu0 0.0
        %7638 = vmatprep.subr.mxu0 0.0
        %7639 = vmatpush1.msra.mxu0 0.0
        %7640 = vmatprep.subr.mxu0 0.0
        %7641 = vmatpush1.msra.mxu0 0.0
        %7642 = vmatprep.subr.mxu0 0.0
        %7643 = vmatpush1.msra.mxu0 0.0
        %7644 = vmatprep.subr.mxu0 0.0
        %7645 = vmatpush1.msra.mxu0 0.0
        %7646 = vmatprep.subr.mxu0 0.0
        %7647 = vmatpush1.msra.mxu0 0.0
        %7648 = vmatprep.subr.mxu0 0.0
        %7649 = vmatpush1.msra.mxu0 0.0
        %7650 = vmatprep.subr.mxu0 0.0
        %7651 = vmatpush1.msra.mxu0 0.0
        %7652 = vmatprep.subr.mxu0 0.0
        %7653 = vmatpush1.msra.mxu0 0.0
        %7654 = vmatprep.subr.mxu0 0.0
        %7655 = vmatpush1.msra.mxu0 0.0
        %7656 = vmatprep.subr.mxu0 0.0
        %7657 = vmatpush1.msra.mxu0 0.0
        %7658 = vmatprep.subr.mxu0 0.0
        %7659 = vmatpush1.msra.mxu0 0.0
        %7660 = vmatprep.subr.mxu0 0.0
        %7661 = vmatpush1.msra.mxu0 0.0
        %7662 = vmatprep.subr.mxu0 0.0
        %7663 = vmatpush1.msra.mxu0 0.0
        %7664 = vmatprep.subr.mxu0 0.0
        %7665 = vmatpush1.msra.mxu0 0.0
        %7666 = vmatprep.subr.mxu0 0.0
        %7667 = vmatpush1.msra.mxu0 0.0
        %7668 = vmatprep.subr.mxu0 0.0
        %7669 = vmatpush1.msra.mxu0 0.0
        %7670 = vmatprep.subr.mxu0 0.0
        %7671 = vmatpush1.msra.mxu0 0.0
        %7672 = vmatprep.subr.mxu0 0.0
        %7673 = vmatpush1.msra.mxu0 0.0
        %7674 = vmatprep.subr.mxu0 0.0
        %7675 = vmatpush1.msra.mxu0 0.0
        %7676 = vmatprep.subr.mxu0 0.0
        %7677 = vmatpush1.msra.mxu0 0.0
        %7678 = vmatprep.subr.mxu0 0.0
        %7679 = vmatpush1.msra.mxu0 0.0
        %7680 = vmatprep.subr.mxu0 0.0
        %7681 = vmatpush1.msra.mxu0 0.0
        %7682 = vmatprep.subr.mxu0 0.0
        %7683 = vmatpush1.msra.mxu0 0.0
        %7684 = vmatprep.mubr.f32.mxu0 0.0
        %7685 = vmatmul.mubr.f32.gmra.mrb[0].mxu0 %v5129
        %v7686 = vpop.f32.mrb[0].mxu0
        %v7687 = vadd.f32 0.0, %v7686
        %v7688 = vpop.f32.mrb[0].mxu0
        %7689 = vmatprep.mubr.f32.mxu0 0.0
        %7690 = vmatmul.mubr.f32.gmra.mrb[0].mxu0 %v5131
        %v7691 = vpop.f32.mrb[0].mxu0
        %v7692 = vadd.f32 0.0, %v7691
        %v7693 = vpop.f32.mrb[0].mxu0
        %7694 = vmatprep.mubr.f32.mxu0 0.0
        %7695 = vmatmul.mubr.f32.gmra.mrb[0].mxu0 %v5133
        %v7696 = vpop.f32.mrb[0].mxu0
        %v7697 = vadd.f32 0.0, %v7696
        %v7698 = vpop.f32.mrb[0].mxu0
        %7699 = vmatprep.mubr.f32.mxu0 0.0
        %7700 = vmatmul.mubr.f32.gmra.mrb[0].mxu0 %v5135
        %v7701 = vpop.f32.mrb[0].mxu0
        %v7702 = vadd.f32 0.0, %v7701
        %v7703 = vpop.f32.mrb[0].mxu0
        %7704 = vmatprep.mubr.f32.mxu0 0.0
        %7705 = vmatmul.mubr.f32.gmra.mrb[0].mxu0 %v5779
        %v7706 = vpop.f32.mrb[0].mxu0
        %v7707 = vadd.f32 0.0, %v7706
        %v7708 = vpop.f32.mrb[0].mxu0
        %7709 = vmatprep.mubr.f32.mxu0 0.0
        %7710 = vmatmul.mubr.f32.gmra.mrb[0].mxu0 %v6393
        %v7711 = vpop.f32.mrb[0].mxu0
        %v7712 = vadd.f32 0.0, %v7711
        %v7713 = vpop.f32.mrb[0].mxu0
        %7714 = vmatprep.mubr.f32.mxu0 0.0
        %7715 = vmatmul.mubr.f32.gmra.mrb[0].mxu0 %v7006
        %v7716 = vpop.f32.mrb[0].mxu0
        %v7717 = vadd.f32 0.0, %v7716
        %v7718 = vpop.f32.mrb[0].mxu0
        %7719 = vmatprep.mubr.f32.mxu0 0.0
        %7720 = vmatmul.mubr.f32.gmra.mrb[0].mxu0 %v7616
        %v7721 = vpop.f32.mrb[0].mxu0
        %v7722 = vadd.f32 0.0, %v7721
        %v7723 = vpop.f32.mrb[0].mxu0
        %7724 = vdwg.mxu0
        %v7725 = vadd.f32 %v7604, %v7687
        %v7726 = vadd.f32 %v7605, %v7692
        %v7727 = vadd.f32 %v7606, %v7697
        %v7728 = vadd.f32 %v7607, %v7702
        %v7729 = vadd.f32 %v7608, %v7707
        %v7730 = vadd.f32 %v7609, %v7712
        %v7731 = vadd.f32 %v7610, %v7717
        %v7732 = vadd.f32 %v7611, %v7722
        %v7733 = vrot.slane %v4624, 4
        %v7734 = vrot.slane %v4625, 4
        %v7735 = vsel %vm3528, %v7733, %v7734
        %v7736 = vsel %vm4426, %v7735, 0
        %v7739 = vsel %vm1899, %v4644, 0
        %7741 = vmatprep.subr.mxu0 0.0
        %7742 = vmatpush1.msra.mxu0 %v7739
        %7743 = vmatprep.subr.mxu0 0.0
        %7744 = vmatpush1.msra.mxu0 0.0
        %7745 = vmatprep.subr.mxu0 0.0
        %7746 = vmatpush1.msra.mxu0 0.0
        %7747 = vmatprep.subr.mxu0 0.0
        %7748 = vmatpush1.msra.mxu0 0.0
        %7749 = vmatprep.subr.mxu0 0.0
        %7750 = vmatpush1.msra.mxu0 0.0
        %7751 = vmatprep.subr.mxu0 0.0
        %7752 = vmatpush1.msra.mxu0 0.0
        %7753 = vmatprep.subr.mxu0 0.0
        %7754 = vmatpush1.msra.mxu0 0.0
        %7755 = vmatprep.subr.mxu0 0.0
        %7756 = vmatpush1.msra.mxu0 0.0
        %7757 = vmatprep.subr.mxu0 0.0
        %7758 = vmatpush1.msra.mxu0 0.0
        %7759 = vmatprep.subr.mxu0 0.0
        %7760 = vmatpush1.msra.mxu0 0.0
        %7761 = vmatprep.subr.mxu0 0.0
        %7762 = vmatpush1.msra.mxu0 0.0
        %7763 = vmatprep.subr.mxu0 0.0
        %7764 = vmatpush1.msra.mxu0 0.0
        %7765 = vmatprep.subr.mxu0 0.0
        %7766 = vmatpush1.msra.mxu0 0.0
        %7767 = vmatprep.subr.mxu0 0.0
        %7768 = vmatpush1.msra.mxu0 0.0
        %7769 = vmatprep.subr.mxu0 0.0
        %7770 = vmatpush1.msra.mxu0 0.0
        %7771 = vmatprep.subr.mxu0 0.0
        %7772 = vmatpush1.msra.mxu0 0.0
        %7773 = vmatprep.subr.mxu0 0.0
        %7774 = vmatpush1.msra.mxu0 0.0
        %7775 = vmatprep.subr.mxu0 0.0
        %7776 = vmatpush1.msra.mxu0 0.0
        %7777 = vmatprep.subr.mxu0 0.0
        %7778 = vmatpush1.msra.mxu0 0.0
        %7779 = vmatprep.subr.mxu0 0.0
        %7780 = vmatpush1.msra.mxu0 0.0
        %7781 = vmatprep.subr.mxu0 0.0
        %7782 = vmatpush1.msra.mxu0 0.0
        %7783 = vmatprep.subr.mxu0 0.0
        %7784 = vmatpush1.msra.mxu0 0.0
        %7785 = vmatprep.subr.mxu0 0.0
        %7786 = vmatpush1.msra.mxu0 0.0
        %7787 = vmatprep.subr.mxu0 0.0
        %7788 = vmatpush1.msra.mxu0 0.0
        %7789 = vmatprep.subr.mxu0 0.0
        %7790 = vmatpush1.msra.mxu0 0.0
        %7791 = vmatprep.subr.mxu0 0.0
        %7792 = vmatpush1.msra.mxu0 0.0
        %7793 = vmatprep.subr.mxu0 0.0
        %7794 = vmatpush1.msra.mxu0 0.0
        %7795 = vmatprep.subr.mxu0 0.0
        %7796 = vmatpush1.msra.mxu0 0.0
        %7797 = vmatprep.subr.mxu0 0.0
        %7798 = vmatpush1.msra.mxu0 0.0
        %7799 = vmatprep.subr.mxu0 0.0
        %7800 = vmatpush1.msra.mxu0 0.0
        %7801 = vmatprep.subr.mxu0 0.0
        %7802 = vmatpush1.msra.mxu0 0.0
        %7803 = vmatprep.subr.mxu0 0.0
        %7804 = vmatpush1.msra.mxu0 0.0
        %7805 = vmatprep.mubr.f32.mxu0 0.0
        %7806 = vmatmul.mubr.f32.gmra.mrb[0].mxu0 %v5284
        %v7807 = vpop.f32.mrb[0].mxu0
        %v7808 = vadd.f32 0.0, %v7807
        %v7809 = vpop.f32.mrb[0].mxu0
        %7810 = vmatprep.mubr.f32.mxu0 0.0
        %7811 = vmatmul.mubr.f32.gmra.mrb[0].mxu0 %v5286
        %v7812 = vpop.f32.mrb[0].mxu0
        %v7813 = vadd.f32 0.0, %v7812
        %v7814 = vpop.f32.mrb[0].mxu0
        %7815 = vmatprep.mubr.f32.mxu0 0.0
        %7816 = vmatmul.mubr.f32.gmra.mrb[0].mxu0 %v5288
        %v7817 = vpop.f32.mrb[0].mxu0
        %v7818 = vadd.f32 0.0, %v7817
        %v7819 = vpop.f32.mrb[0].mxu0
        %7820 = vmatprep.mubr.f32.mxu0 0.0
        %7821 = vmatmul.mubr.f32.gmra.mrb[0].mxu0 %v5290
        %v7822 = vpop.f32.mrb[0].mxu0
        %v7823 = vadd.f32 0.0, %v7822
        %v7824 = vpop.f32.mrb[0].mxu0
        %7825 = vmatprep.mubr.f32.mxu0 0.0
        %7826 = vmatmul.mubr.f32.gmra.mrb[0].mxu0 %v5904
        %v7827 = vpop.f32.mrb[0].mxu0
        %v7828 = vadd.f32 0.0, %v7827
        %v7829 = vpop.f32.mrb[0].mxu0
        %7830 = vmatprep.mubr.f32.mxu0 0.0
        %7831 = vmatmul.mubr.f32.gmra.mrb[0].mxu0 %v6517
        %v7832 = vpop.f32.mrb[0].mxu0
        %v7833 = vadd.f32 0.0, %v7832
        %v7834 = vpop.f32.mrb[0].mxu0
        %7835 = vmatprep.mubr.f32.mxu0 0.0
        %7836 = vmatmul.mubr.f32.gmra.mrb[0].mxu0 %v7127
        %v7837 = vpop.f32.mrb[0].mxu0
        %v7838 = vadd.f32 0.0, %v7837
        %v7839 = vpop.f32.mrb[0].mxu0
        %7840 = vmatprep.mubr.f32.mxu0 0.0
        %7841 = vmatmul.mubr.f32.gmra.mrb[0].mxu0 %v7736
        %v7842 = vpop.f32.mrb[0].mxu0
        %v7843 = vadd.f32 0.0, %v7842
        %v7844 = vpop.f32.mrb[0].mxu0
        %7845 = vdwg.mxu0
        %v7846 = vadd.f32 %v7725, %v7808
        %v7847 = vadd.f32 %v7726, %v7813
        %v7848 = vadd.f32 %v7727, %v7818
        %v7849 = vadd.f32 %v7728, %v7823
        %v7850 = vadd.f32 %v7729, %v7828
        %v7851 = vadd.f32 %v7730, %v7833
        %v7852 = vadd.f32 %v7731, %v7838
        %v7853 = vadd.f32 %v7732, %v7843
        %v7854 = vld [vmem:[%s4] sm:$0x1]
        %v7856 = vlaneseq
        %v7857 = vshrl.u32 %v7856, 7
        %v7858 = vsub.s32 0, %v7857
        %v7859 = vrot.slane %v7854, %v7858
        %v7861 = vadd.f32 %v7846, %v7859
        %v7862 = vadd.f32 %v7847, %v7859
        %v7863 = vadd.f32 %v7848, %v7859
        %v7864 = vadd.f32 %v7849, %v7859
        %v7865 = vadd.f32 %v7850, %v7859
        %v7866 = vadd.f32 %v7851, %v7859
        %v7867 = vadd.f32 %v7852, %v7859
        %v7868 = vadd.f32 %v7853, %v7859
        %v7869 = vmax.f32 %v7861, %v7862
        %vm7870 = vcmask 130048
        %7871 = vst.msk [vmem:[#allocation3] sm:$0xff] %vm7870, %v7869
        %v7872 = vmax.f32 %v7863, %v7864
        %s7873 = scalar_lea.vmem [#allocation3], 8
        %7874 = vst.msk [vmem:[%s7873] sm:$0xff] %vm7870, %v7872
        %v7875 = vmax.f32 %v7865, %v7866
        %s7876 = scalar_lea.vmem [#allocation3], 16
        %7877 = vst.msk [vmem:[%s7876] sm:$0xff] %vm7870, %v7875
        %v7878 = vmax.f32 %v7867, %v7868
        %s7879 = scalar_lea.vmem [#allocation3], 24
        %7880 = vst.msk [vmem:[%s7879] sm:$0xff] %vm7870, %v7878
        %v7881 = vld [vmem:[#allocation3] ss:$2 sm:$0xf]
        %s7882 = scalar_lea.vmem [#allocation3], 8
        %v7883 = vld [vmem:[%s7882] ss:$2 sm:$0xf]
        %s7884 = scalar_lea.vmem [#allocation3], 16
        %v7885 = vld [vmem:[%s7884] ss:$2 sm:$0xf]
        %s7886 = scalar_lea.vmem [#allocation3], 24
        %v7887 = vld [vmem:[%s7886] ss:$2 sm:$0xf]
        %s7888 = scalar_lea.vmem [#allocation3], 1
        %v7889 = vld [vmem:[%s7888] ss:$2 sm:$0xf]
        %s7890 = scalar_lea.vmem [#allocation3], 9
        %v7891 = vld [vmem:[%s7890] ss:$2 sm:$0xf]
        %s7892 = scalar_lea.vmem [#allocation3], 17
        %v7893 = vld [vmem:[%s7892] ss:$2 sm:$0xf]
        %s7894 = scalar_lea.vmem [#allocation3], 25
        %v7895 = vld [vmem:[%s7894] ss:$2 sm:$0xf]
        %v7896 = vmax.f32 %v7881, %v7889
        %v7897 = vmax.f32 %v7883, %v7891
        %v7898 = vmax.f32 %v7885, %v7893
        %v7899 = vmax.f32 %v7887, %v7895
        %v7900 = vld [vmem:[%s5] sm:$0xff]
        %v7901 = vld [vmem:[%s5 + $0x8] sm:$0xff]
        %v7902 = vld [vmem:[%s5 + $0x10] sm:$0xff]
        %v7903 = vld [vmem:[%s5 + $0x18] sm:$0xff]
        %v7904 = vld [vmem:[%s5 + $0x20] sm:$0xff]
        %v7905 = vld [vmem:[%s5 + $0x28] sm:$0xff]
        %v7906 = vld [vmem:[%s5 + $0x30] sm:$0xff]
        %v7907 = vld [vmem:[%s5 + $0x38] sm:$0xff]
        %v7908 = vld [vmem:[%s5 + $0x40] sm:$0xff]
        %v7909 = vld [vmem:[%s5 + $0x48] sm:$0xff]
        %v7910 = vld [vmem:[%s5 + $0x50] sm:$0xff]
        %v7911 = vld [vmem:[%s5 + $0x58] sm:$0xff]
        %v7912 = vld [vmem:[%s5 + $0x60] sm:$0xff]
        %v7913 = vld [vmem:[%s5 + $0x68] sm:$0xff]
        %v7914 = vld [vmem:[%s5 + $0x70] sm:$0xff]
        %v7915 = vld [vmem:[%s5 + $0x78] sm:$0xff]
        %v7916 = vld [vmem:[%s5 + $0x80] sm:$0xff]
        %v7917 = vld [vmem:[%s5 + $0x88] sm:$0xff]
        %v7918 = vld [vmem:[%s5 + $0x90] sm:$0xff]
        %v7919 = vld [vmem:[%s5 + $0x98] sm:$0xff]
        %v7920 = vld [vmem:[%s5 + $0xa0] sm:$0xff]
        %v7921 = vld [vmem:[%s5 + $0xa8] sm:$0xff]
        %v7922 = vld [vmem:[%s5 + $0xb0] sm:$0xff]
        %v7923 = vld [vmem:[%s5 + $0xb8] sm:$0xff]
        %v7924 = vld [vmem:[%s5 + $0xc0] sm:$0xff]
        %v7925 = vld [vmem:[%s5 + $0xc8] sm:$0xff]
        %v7926 = vld [vmem:[%s5 + $0xd0] sm:$0xff]
        %v7927 = vld [vmem:[%s5 + $0xd8] sm:$0xff]
        %v7928 = vld [vmem:[%s5 + $0xe0] sm:$0xff]
        %v7929 = vld [vmem:[%s5 + $0xe8] sm:$0xff]
        %v7930 = vld [vmem:[%s5 + $0xf0] sm:$0xff]
        %v7931 = vld [vmem:[%s5 + $0xf8] sm:$0xff]
        %v7932 = vld [vmem:[%s6] sm:$0x1]
        %v7933 = vadd.f32 %v7932, 0.0
        %v7935 = vsel %vm7870, %v7896, 0
        %7937 = vmatprep.subr.mxu0 0.0
        %7938 = vmatpush1.msra.mxu0 %v7900
        %7939 = vmatprep.subr.mxu0 0.0
        %7940 = vmatpush1.msra.mxu0 %v7901
        %7941 = vmatprep.subr.mxu0 0.0
        %7942 = vmatpush1.msra.mxu0 0.0
        %7943 = vmatprep.subr.mxu0 0.0
        %7944 = vmatpush1.msra.mxu0 0.0
        %7945 = vmatprep.subr.mxu0 0.0
        %7946 = vmatpush1.msra.mxu0 0.0
        %7947 = vmatprep.subr.mxu0 0.0
        %7948 = vmatpush1.msra.mxu0 0.0
        %7949 = vmatprep.subr.mxu0 0.0
        %7950 = vmatpush1.msra.mxu0 0.0
        %7951 = vmatprep.subr.mxu0 0.0
        %7952 = vmatpush1.msra.mxu0 0.0
        %7953 = vmatprep.subr.mxu0 0.0
        %7954 = vmatpush1.msra.mxu0 0.0
        %7955 = vmatprep.subr.mxu0 0.0
        %7956 = vmatpush1.msra.mxu0 0.0
        %7957 = vmatprep.subr.mxu0 0.0
        %7958 = vmatpush1.msra.mxu0 0.0
        %7959 = vmatprep.subr.mxu0 0.0
        %7960 = vmatpush1.msra.mxu0 0.0
        %7961 = vmatprep.subr.mxu0 0.0
        %7962 = vmatpush1.msra.mxu0 0.0
        %7963 = vmatprep.subr.mxu0 0.0
        %7964 = vmatpush1.msra.mxu0 0.0
        %7965 = vmatprep.subr.mxu0 0.0
        %7966 = vmatpush1.msra.mxu0 0.0
        %7967 = vmatprep.subr.mxu0 0.0
        %7968 = vmatpush1.msra.mxu0 0.0
        %7969 = vmatprep.subr.mxu0 0.0
        %7970 = vmatpush1.msra.mxu0 0.0
        %7971 = vmatprep.subr.mxu0 0.0
        %7972 = vmatpush1.msra.mxu0 0.0
        %7973 = vmatprep.subr.mxu0 0.0
        %7974 = vmatpush1.msra.mxu0 0.0
        %7975 = vmatprep.subr.mxu0 0.0
        %7976 = vmatpush1.msra.mxu0 0.0
        %7977 = vmatprep.subr.mxu0 0.0
        %7978 = vmatpush1.msra.mxu0 0.0
        %7979 = vmatprep.subr.mxu0 0.0
        %7980 = vmatpush1.msra.mxu0 0.0
        %7981 = vmatprep.subr.mxu0 0.0
        %7982 = vmatpush1.msra.mxu0 0.0
        %7983 = vmatprep.subr.mxu0 0.0
        %7984 = vmatpush1.msra.mxu0 0.0
        %7985 = vmatprep.subr.mxu0 0.0
        %7986 = vmatpush1.msra.mxu0 0.0
        %7987 = vmatprep.subr.mxu0 0.0
        %7988 = vmatpush1.msra.mxu0 0.0
        %7989 = vmatprep.subr.mxu0 0.0
        %7990 = vmatpush1.msra.mxu0 0.0
        %7991 = vmatprep.subr.mxu0 0.0
        %7992 = vmatpush1.msra.mxu0 0.0
        %7993 = vmatprep.subr.mxu0 0.0
        %7994 = vmatpush1.msra.mxu0 0.0
        %7995 = vmatprep.subr.mxu0 0.0
        %7996 = vmatpush1.msra.mxu0 0.0
        %7997 = vmatprep.subr.mxu0 0.0
        %7998 = vmatpush1.msra.mxu0 0.0
        %7999 = vmatprep.subr.mxu0 0.0
        %8000 = vmatpush1.msra.mxu0 0.0
        %8001 = vmatprep.mubr.f32.mxu0 0.0
        %8002 = vmatmul.mubr.f32.gmra.mrb[0].mxu0 %v7935
        %v8003 = vpop.f32.mrb[0].mxu0
        %v8004 = vadd.f32 0.0, %v8003
        %v8005 = vpop.f32.mrb[0].mxu0
        %8006 = vdwg.mxu0
        %v8007 = vadd.f32 %v7933, %v8004
        %v8008 = vrot.slane %v7896, 1
        %v8009 = vsel %vm7870, %v8008, 0
        %8011 = vmatprep.subr.mxu0 0.0
        %8012 = vmatpush1.msra.mxu0 %v7902
        %8013 = vmatprep.subr.mxu0 0.0
        %8014 = vmatpush1.msra.mxu0 %v7903
        %8015 = vmatprep.subr.mxu0 0.0
        %8016 = vmatpush1.msra.mxu0 0.0
        %8017 = vmatprep.subr.mxu0 0.0
        %8018 = vmatpush1.msra.mxu0 0.0
        %8019 = vmatprep.subr.mxu0 0.0
        %8020 = vmatpush1.msra.mxu0 0.0
        %8021 = vmatprep.subr.mxu0 0.0
        %8022 = vmatpush1.msra.mxu0 0.0
        %8023 = vmatprep.subr.mxu0 0.0
        %8024 = vmatpush1.msra.mxu0 0.0
        %8025 = vmatprep.subr.mxu0 0.0
        %8026 = vmatpush1.msra.mxu0 0.0
        %8027 = vmatprep.subr.mxu0 0.0
        %8028 = vmatpush1.msra.mxu0 0.0
        %8029 = vmatprep.subr.mxu0 0.0
        %8030 = vmatpush1.msra.mxu0 0.0
        %8031 = vmatprep.subr.mxu0 0.0
        %8032 = vmatpush1.msra.mxu0 0.0
        %8033 = vmatprep.subr.mxu0 0.0
        %8034 = vmatpush1.msra.mxu0 0.0
        %8035 = vmatprep.subr.mxu0 0.0
        %8036 = vmatpush1.msra.mxu0 0.0
        %8037 = vmatprep.subr.mxu0 0.0
        %8038 = vmatpush1.msra.mxu0 0.0
        %8039 = vmatprep.subr.mxu0 0.0
        %8040 = vmatpush1.msra.mxu0 0.0
        %8041 = vmatprep.subr.mxu0 0.0
        %8042 = vmatpush1.msra.mxu0 0.0
        %8043 = vmatprep.subr.mxu0 0.0
        %8044 = vmatpush1.msra.mxu0 0.0
        %8045 = vmatprep.subr.mxu0 0.0
        %8046 = vmatpush1.msra.mxu0 0.0
        %8047 = vmatprep.subr.mxu0 0.0
        %8048 = vmatpush1.msra.mxu0 0.0
        %8049 = vmatprep.subr.mxu0 0.0
        %8050 = vmatpush1.msra.mxu0 0.0
        %8051 = vmatprep.subr.mxu0 0.0
        %8052 = vmatpush1.msra.mxu0 0.0
        %8053 = vmatprep.subr.mxu0 0.0
        %8054 = vmatpush1.msra.mxu0 0.0
        %8055 = vmatprep.subr.mxu0 0.0
        %8056 = vmatpush1.msra.mxu0 0.0
        %8057 = vmatprep.subr.mxu0 0.0
        %8058 = vmatpush1.msra.mxu0 0.0
        %8059 = vmatprep.subr.mxu0 0.0
        %8060 = vmatpush1.msra.mxu0 0.0
        %8061 = vmatprep.subr.mxu0 0.0
        %8062 = vmatpush1.msra.mxu0 0.0
        %8063 = vmatprep.subr.mxu0 0.0
        %8064 = vmatpush1.msra.mxu0 0.0
        %8065 = vmatprep.subr.mxu0 0.0
        %8066 = vmatpush1.msra.mxu0 0.0
        %8067 = vmatprep.subr.mxu0 0.0
        %8068 = vmatpush1.msra.mxu0 0.0
        %8069 = vmatprep.subr.mxu0 0.0
        %8070 = vmatpush1.msra.mxu0 0.0
        %8071 = vmatprep.subr.mxu0 0.0
        %8072 = vmatpush1.msra.mxu0 0.0
        %8073 = vmatprep.subr.mxu0 0.0
        %8074 = vmatpush1.msra.mxu0 0.0
        %8075 = vmatprep.mubr.f32.mxu0 0.0
        %8076 = vmatmul.mubr.f32.gmra.mrb[0].mxu0 %v8009
        %v8077 = vpop.f32.mrb[0].mxu0
        %v8078 = vadd.f32 0.0, %v8077
        %v8079 = vpop.f32.mrb[0].mxu0
        %8080 = vdwg.mxu0
        %v8081 = vadd.f32 %v8007, %v8078
        %v8082 = vrot.slane %v7896, 2
        %v8083 = vsel %vm7870, %v8082, 0
        %8085 = vmatprep.subr.mxu0 0.0
        %8086 = vmatpush1.msra.mxu0 %v7904
        %8087 = vmatprep.subr.mxu0 0.0
        %8088 = vmatpush1.msra.mxu0 %v7905
        %8089 = vmatprep.subr.mxu0 0.0
        %8090 = vmatpush1.msra.mxu0 0.0
        %8091 = vmatprep.subr.mxu0 0.0
        %8092 = vmatpush1.msra.mxu0 0.0
        %8093 = vmatprep.subr.mxu0 0.0
        %8094 = vmatpush1.msra.mxu0 0.0
        %8095 = vmatprep.subr.mxu0 0.0
        %8096 = vmatpush1.msra.mxu0 0.0
        %8097 = vmatprep.subr.mxu0 0.0
        %8098 = vmatpush1.msra.mxu0 0.0
        %8099 = vmatprep.subr.mxu0 0.0
        %8100 = vmatpush1.msra.mxu0 0.0
        %8101 = vmatprep.subr.mxu0 0.0
        %8102 = vmatpush1.msra.mxu0 0.0
        %8103 = vmatprep.subr.mxu0 0.0
        %8104 = vmatpush1.msra.mxu0 0.0
        %8105 = vmatprep.subr.mxu0 0.0
        %8106 = vmatpush1.msra.mxu0 0.0
        %8107 = vmatprep.subr.mxu0 0.0
        %8108 = vmatpush1.msra.mxu0 0.0
        %8109 = vmatprep.subr.mxu0 0.0
        %8110 = vmatpush1.msra.mxu0 0.0
        %8111 = vmatprep.subr.mxu0 0.0
        %8112 = vmatpush1.msra.mxu0 0.0
        %8113 = vmatprep.subr.mxu0 0.0
        %8114 = vmatpush1.msra.mxu0 0.0
        %8115 = vmatprep.subr.mxu0 0.0
        %8116 = vmatpush1.msra.mxu0 0.0
        %8117 = vmatprep.subr.mxu0 0.0
        %8118 = vmatpush1.msra.mxu0 0.0
        %8119 = vmatprep.subr.mxu0 0.0
        %8120 = vmatpush1.msra.mxu0 0.0
        %8121 = vmatprep.subr.mxu0 0.0
        %8122 = vmatpush1.msra.mxu0 0.0
        %8123 = vmatprep.subr.mxu0 0.0
        %8124 = vmatpush1.msra.mxu0 0.0
        %8125 = vmatprep.subr.mxu0 0.0
        %8126 = vmatpush1.msra.mxu0 0.0
        %8127 = vmatprep.subr.mxu0 0.0
        %8128 = vmatpush1.msra.mxu0 0.0
        %8129 = vmatprep.subr.mxu0 0.0
        %8130 = vmatpush1.msra.mxu0 0.0
        %8131 = vmatprep.subr.mxu0 0.0
        %8132 = vmatpush1.msra.mxu0 0.0
        %8133 = vmatprep.subr.mxu0 0.0
        %8134 = vmatpush1.msra.mxu0 0.0
        %8135 = vmatprep.subr.mxu0 0.0
        %8136 = vmatpush1.msra.mxu0 0.0
        %8137 = vmatprep.subr.mxu0 0.0
        %8138 = vmatpush1.msra.mxu0 0.0
        %8139 = vmatprep.subr.mxu0 0.0
        %8140 = vmatpush1.msra.mxu0 0.0
        %8141 = vmatprep.subr.mxu0 0.0
        %8142 = vmatpush1.msra.mxu0 0.0
        %8143 = vmatprep.subr.mxu0 0.0
        %8144 = vmatpush1.msra.mxu0 0.0
        %8145 = vmatprep.subr.mxu0 0.0
        %8146 = vmatpush1.msra.mxu0 0.0
        %8147 = vmatprep.subr.mxu0 0.0
        %8148 = vmatpush1.msra.mxu0 0.0
        %8149 = vmatprep.mubr.f32.mxu0 0.0
        %8150 = vmatmul.mubr.f32.gmra.mrb[0].mxu0 %v8083
        %v8151 = vpop.f32.mrb[0].mxu0
        %v8152 = vadd.f32 0.0, %v8151
        %v8153 = vpop.f32.mrb[0].mxu0
        %8154 = vdwg.mxu0
        %v8155 = vadd.f32 %v8081, %v8152
        %v8156 = vrot.slane %v7896, 3
        %v8157 = vsel %vm7870, %v8156, 0
        %8159 = vmatprep.subr.mxu0 0.0
        %8160 = vmatpush1.msra.mxu0 %v7906
        %8161 = vmatprep.subr.mxu0 0.0
        %8162 = vmatpush1.msra.mxu0 %v7907
        %8163 = vmatprep.subr.mxu0 0.0
        %8164 = vmatpush1.msra.mxu0 0.0
        %8165 = vmatprep.subr.mxu0 0.0
        %8166 = vmatpush1.msra.mxu0 0.0
        %8167 = vmatprep.subr.mxu0 0.0
        %8168 = vmatpush1.msra.mxu0 0.0
        %8169 = vmatprep.subr.mxu0 0.0
        %8170 = vmatpush1.msra.mxu0 0.0
        %8171 = vmatprep.subr.mxu0 0.0
        %8172 = vmatpush1.msra.mxu0 0.0
        %8173 = vmatprep.subr.mxu0 0.0
        %8174 = vmatpush1.msra.mxu0 0.0
        %8175 = vmatprep.subr.mxu0 0.0
        %8176 = vmatpush1.msra.mxu0 0.0
        %8177 = vmatprep.subr.mxu0 0.0
        %8178 = vmatpush1.msra.mxu0 0.0
        %8179 = vmatprep.subr.mxu0 0.0
        %8180 = vmatpush1.msra.mxu0 0.0
        %8181 = vmatprep.subr.mxu0 0.0
        %8182 = vmatpush1.msra.mxu0 0.0
        %8183 = vmatprep.subr.mxu0 0.0
        %8184 = vmatpush1.msra.mxu0 0.0
        %8185 = vmatprep.subr.mxu0 0.0
        %8186 = vmatpush1.msra.mxu0 0.0
        %8187 = vmatprep.subr.mxu0 0.0
        %8188 = vmatpush1.msra.mxu0 0.0
        %8189 = vmatprep.subr.mxu0 0.0
        %8190 = vmatpush1.msra.mxu0 0.0
        %8191 = vmatprep.subr.mxu0 0.0
        %8192 = vmatpush1.msra.mxu0 0.0
        %8193 = vmatprep.subr.mxu0 0.0
        %8194 = vmatpush1.msra.mxu0 0.0
        %8195 = vmatprep.subr.mxu0 0.0
        %8196 = vmatpush1.msra.mxu0 0.0
        %8197 = vmatprep.subr.mxu0 0.0
        %8198 = vmatpush1.msra.mxu0 0.0
        %8199 = vmatprep.subr.mxu0 0.0
        %8200 = vmatpush1.msra.mxu0 0.0
        %8201 = vmatprep.subr.mxu0 0.0
        %8202 = vmatpush1.msra.mxu0 0.0
        %8203 = vmatprep.subr.mxu0 0.0
        %8204 = vmatpush1.msra.mxu0 0.0
        %8205 = vmatprep.subr.mxu0 0.0
        %8206 = vmatpush1.msra.mxu0 0.0
        %8207 = vmatprep.subr.mxu0 0.0
        %8208 = vmatpush1.msra.mxu0 0.0
        %8209 = vmatprep.subr.mxu0 0.0
        %8210 = vmatpush1.msra.mxu0 0.0
        %8211 = vmatprep.subr.mxu0 0.0
        %8212 = vmatpush1.msra.mxu0 0.0
        %8213 = vmatprep.subr.mxu0 0.0
        %8214 = vmatpush1.msra.mxu0 0.0
        %8215 = vmatprep.subr.mxu0 0.0
        %8216 = vmatpush1.msra.mxu0 0.0
        %8217 = vmatprep.subr.mxu0 0.0
        %8218 = vmatpush1.msra.mxu0 0.0
        %8219 = vmatprep.subr.mxu0 0.0
        %8220 = vmatpush1.msra.mxu0 0.0
        %8221 = vmatprep.subr.mxu0 0.0
        %8222 = vmatpush1.msra.mxu0 0.0
        %8223 = vmatprep.mubr.f32.mxu0 0.0
        %8224 = vmatmul.mubr.f32.gmra.mrb[0].mxu0 %v8157
        %v8225 = vpop.f32.mrb[0].mxu0
        %v8226 = vadd.f32 0.0, %v8225
        %v8227 = vpop.f32.mrb[0].mxu0
        %8228 = vdwg.mxu0
        %v8229 = vadd.f32 %v8155, %v8226
        %v8231 = vsel %vm7870, %v7897, 0
        %8233 = vmatprep.subr.mxu0 0.0
        %8234 = vmatpush1.msra.mxu0 %v7908
        %8235 = vmatprep.subr.mxu0 0.0
        %8236 = vmatpush1.msra.mxu0 %v7909
        %8237 = vmatprep.subr.mxu0 0.0
        %8238 = vmatpush1.msra.mxu0 0.0
        %8239 = vmatprep.subr.mxu0 0.0
        %8240 = vmatpush1.msra.mxu0 0.0
        %8241 = vmatprep.subr.mxu0 0.0
        %8242 = vmatpush1.msra.mxu0 0.0
        %8243 = vmatprep.subr.mxu0 0.0
        %8244 = vmatpush1.msra.mxu0 0.0
        %8245 = vmatprep.subr.mxu0 0.0
        %8246 = vmatpush1.msra.mxu0 0.0
        %8247 = vmatprep.subr.mxu0 0.0
        %8248 = vmatpush1.msra.mxu0 0.0
        %8249 = vmatprep.subr.mxu0 0.0
        %8250 = vmatpush1.msra.mxu0 0.0
        %8251 = vmatprep.subr.mxu0 0.0
        %8252 = vmatpush1.msra.mxu0 0.0
        %8253 = vmatprep.subr.mxu0 0.0
        %8254 = vmatpush1.msra.mxu0 0.0
        %8255 = vmatprep.subr.mxu0 0.0
        %8256 = vmatpush1.msra.mxu0 0.0
        %8257 = vmatprep.subr.mxu0 0.0
        %8258 = vmatpush1.msra.mxu0 0.0
        %8259 = vmatprep.subr.mxu0 0.0
        %8260 = vmatpush1.msra.mxu0 0.0
        %8261 = vmatprep.subr.mxu0 0.0
        %8262 = vmatpush1.msra.mxu0 0.0
        %8263 = vmatprep.subr.mxu0 0.0
        %8264 = vmatpush1.msra.mxu0 0.0
        %8265 = vmatprep.subr.mxu0 0.0
        %8266 = vmatpush1.msra.mxu0 0.0
        %8267 = vmatprep.subr.mxu0 0.0
        %8268 = vmatpush1.msra.mxu0 0.0
        %8269 = vmatprep.subr.mxu0 0.0
        %8270 = vmatpush1.msra.mxu0 0.0
        %8271 = vmatprep.subr.mxu0 0.0
        %8272 = vmatpush1.msra.mxu0 0.0
        %8273 = vmatprep.subr.mxu0 0.0
        %8274 = vmatpush1.msra.mxu0 0.0
        %8275 = vmatprep.subr.mxu0 0.0
        %8276 = vmatpush1.msra.mxu0 0.0
        %8277 = vmatprep.subr.mxu0 0.0
        %8278 = vmatpush1.msra.mxu0 0.0
        %8279 = vmatprep.subr.mxu0 0.0
        %8280 = vmatpush1.msra.mxu0 0.0
        %8281 = vmatprep.subr.mxu0 0.0
        %8282 = vmatpush1.msra.mxu0 0.0
        %8283 = vmatprep.subr.mxu0 0.0
        %8284 = vmatpush1.msra.mxu0 0.0
        %8285 = vmatprep.subr.mxu0 0.0
        %8286 = vmatpush1.msra.mxu0 0.0
        %8287 = vmatprep.subr.mxu0 0.0
        %8288 = vmatpush1.msra.mxu0 0.0
        %8289 = vmatprep.subr.mxu0 0.0
        %8290 = vmatpush1.msra.mxu0 0.0
        %8291 = vmatprep.subr.mxu0 0.0
        %8292 = vmatpush1.msra.mxu0 0.0
        %8293 = vmatprep.subr.mxu0 0.0
        %8294 = vmatpush1.msra.mxu0 0.0
        %8295 = vmatprep.subr.mxu0 0.0
        %8296 = vmatpush1.msra.mxu0 0.0
        %8297 = vmatprep.mubr.f32.mxu0 0.0
        %8298 = vmatmul.mubr.f32.gmra.mrb[0].mxu0 %v8231
        %v8299 = vpop.f32.mrb[0].mxu0
        %v8300 = vadd.f32 0.0, %v8299
        %v8301 = vpop.f32.mrb[0].mxu0
        %8302 = vdwg.mxu0
        %v8303 = vadd.f32 %v8229, %v8300
        %v8304 = vrot.slane %v7897, 1
        %v8305 = vsel %vm7870, %v8304, 0
        %8307 = vmatprep.subr.mxu0 0.0
        %8308 = vmatpush1.msra.mxu0 %v7910
        %8309 = vmatprep.subr.mxu0 0.0
        %8310 = vmatpush1.msra.mxu0 %v7911
        %8311 = vmatprep.subr.mxu0 0.0
        %8312 = vmatpush1.msra.mxu0 0.0
        %8313 = vmatprep.subr.mxu0 0.0
        %8314 = vmatpush1.msra.mxu0 0.0
        %8315 = vmatprep.subr.mxu0 0.0
        %8316 = vmatpush1.msra.mxu0 0.0
        %8317 = vmatprep.subr.mxu0 0.0
        %8318 = vmatpush1.msra.mxu0 0.0
        %8319 = vmatprep.subr.mxu0 0.0
        %8320 = vmatpush1.msra.mxu0 0.0
        %8321 = vmatprep.subr.mxu0 0.0
        %8322 = vmatpush1.msra.mxu0 0.0
        %8323 = vmatprep.subr.mxu0 0.0
        %8324 = vmatpush1.msra.mxu0 0.0
        %8325 = vmatprep.subr.mxu0 0.0
        %8326 = vmatpush1.msra.mxu0 0.0
        %8327 = vmatprep.subr.mxu0 0.0
        %8328 = vmatpush1.msra.mxu0 0.0
        %8329 = vmatprep.subr.mxu0 0.0
        %8330 = vmatpush1.msra.mxu0 0.0
        %8331 = vmatprep.subr.mxu0 0.0
        %8332 = vmatpush1.msra.mxu0 0.0
        %8333 = vmatprep.subr.mxu0 0.0
        %8334 = vmatpush1.msra.mxu0 0.0
        %8335 = vmatprep.subr.mxu0 0.0
        %8336 = vmatpush1.msra.mxu0 0.0
        %8337 = vmatprep.subr.mxu0 0.0
        %8338 = vmatpush1.msra.mxu0 0.0
        %8339 = vmatprep.subr.mxu0 0.0
        %8340 = vmatpush1.msra.mxu0 0.0
        %8341 = vmatprep.subr.mxu0 0.0
        %8342 = vmatpush1.msra.mxu0 0.0
        %8343 = vmatprep.subr.mxu0 0.0
        %8344 = vmatpush1.msra.mxu0 0.0
        %8345 = vmatprep.subr.mxu0 0.0
        %8346 = vmatpush1.msra.mxu0 0.0
        %8347 = vmatprep.subr.mxu0 0.0
        %8348 = vmatpush1.msra.mxu0 0.0
        %8349 = vmatprep.subr.mxu0 0.0
        %8350 = vmatpush1.msra.mxu0 0.0
        %8351 = vmatprep.subr.mxu0 0.0
        %8352 = vmatpush1.msra.mxu0 0.0
        %8353 = vmatprep.subr.mxu0 0.0
        %8354 = vmatpush1.msra.mxu0 0.0
        %8355 = vmatprep.subr.mxu0 0.0
        %8356 = vmatpush1.msra.mxu0 0.0
        %8357 = vmatprep.subr.mxu0 0.0
        %8358 = vmatpush1.msra.mxu0 0.0
        %8359 = vmatprep.subr.mxu0 0.0
        %8360 = vmatpush1.msra.mxu0 0.0
        %8361 = vmatprep.subr.mxu0 0.0
        %8362 = vmatpush1.msra.mxu0 0.0
        %8363 = vmatprep.subr.mxu0 0.0
        %8364 = vmatpush1.msra.mxu0 0.0
        %8365 = vmatprep.subr.mxu0 0.0
        %8366 = vmatpush1.msra.mxu0 0.0
        %8367 = vmatprep.subr.mxu0 0.0
        %8368 = vmatpush1.msra.mxu0 0.0
        %8369 = vmatprep.subr.mxu0 0.0
        %8370 = vmatpush1.msra.mxu0 0.0
        %8371 = vmatprep.mubr.f32.mxu0 0.0
        %8372 = vmatmul.mubr.f32.gmra.mrb[0].mxu0 %v8305
        %v8373 = vpop.f32.mrb[0].mxu0
        %v8374 = vadd.f32 0.0, %v8373
        %v8375 = vpop.f32.mrb[0].mxu0
        %8376 = vdwg.mxu0
        %v8377 = vadd.f32 %v8303, %v8374
        %v8378 = vrot.slane %v7897, 2
        %v8379 = vsel %vm7870, %v8378, 0
        %8381 = vmatprep.subr.mxu0 0.0
        %8382 = vmatpush1.msra.mxu0 %v7912
        %8383 = vmatprep.subr.mxu0 0.0
        %8384 = vmatpush1.msra.mxu0 %v7913
        %8385 = vmatprep.subr.mxu0 0.0
        %8386 = vmatpush1.msra.mxu0 0.0
        %8387 = vmatprep.subr.mxu0 0.0
        %8388 = vmatpush1.msra.mxu0 0.0
        %8389 = vmatprep.subr.mxu0 0.0
        %8390 = vmatpush1.msra.mxu0 0.0
        %8391 = vmatprep.subr.mxu0 0.0
        %8392 = vmatpush1.msra.mxu0 0.0
        %8393 = vmatprep.subr.mxu0 0.0
        %8394 = vmatpush1.msra.mxu0 0.0
        %8395 = vmatprep.subr.mxu0 0.0
        %8396 = vmatpush1.msra.mxu0 0.0
        %8397 = vmatprep.subr.mxu0 0.0
        %8398 = vmatpush1.msra.mxu0 0.0
        %8399 = vmatprep.subr.mxu0 0.0
        %8400 = vmatpush1.msra.mxu0 0.0
        %8401 = vmatprep.subr.mxu0 0.0
        %8402 = vmatpush1.msra.mxu0 0.0
        %8403 = vmatprep.subr.mxu0 0.0
        %8404 = vmatpush1.msra.mxu0 0.0
        %8405 = vmatprep.subr.mxu0 0.0
        %8406 = vmatpush1.msra.mxu0 0.0
        %8407 = vmatprep.subr.mxu0 0.0
        %8408 = vmatpush1.msra.mxu0 0.0
        %8409 = vmatprep.subr.mxu0 0.0
        %8410 = vmatpush1.msra.mxu0 0.0
        %8411 = vmatprep.subr.mxu0 0.0
        %8412 = vmatpush1.msra.mxu0 0.0
        %8413 = vmatprep.subr.mxu0 0.0
        %8414 = vmatpush1.msra.mxu0 0.0
        %8415 = vmatprep.subr.mxu0 0.0
        %8416 = vmatpush1.msra.mxu0 0.0
        %8417 = vmatprep.subr.mxu0 0.0
        %8418 = vmatpush1.msra.mxu0 0.0
        %8419 = vmatprep.subr.mxu0 0.0
        %8420 = vmatpush1.msra.mxu0 0.0
        %8421 = vmatprep.subr.mxu0 0.0
        %8422 = vmatpush1.msra.mxu0 0.0
        %8423 = vmatprep.subr.mxu0 0.0
        %8424 = vmatpush1.msra.mxu0 0.0
        %8425 = vmatprep.subr.mxu0 0.0
        %8426 = vmatpush1.msra.mxu0 0.0
        %8427 = vmatprep.subr.mxu0 0.0
        %8428 = vmatpush1.msra.mxu0 0.0
        %8429 = vmatprep.subr.mxu0 0.0
        %8430 = vmatpush1.msra.mxu0 0.0
        %8431 = vmatprep.subr.mxu0 0.0
        %8432 = vmatpush1.msra.mxu0 0.0
        %8433 = vmatprep.subr.mxu0 0.0
        %8434 = vmatpush1.msra.mxu0 0.0
        %8435 = vmatprep.subr.mxu0 0.0
        %8436 = vmatpush1.msra.mxu0 0.0
        %8437 = vmatprep.subr.mxu0 0.0
        %8438 = vmatpush1.msra.mxu0 0.0
        %8439 = vmatprep.subr.mxu0 0.0
        %8440 = vmatpush1.msra.mxu0 0.0
        %8441 = vmatprep.subr.mxu0 0.0
        %8442 = vmatpush1.msra.mxu0 0.0
        %8443 = vmatprep.subr.mxu0 0.0
        %8444 = vmatpush1.msra.mxu0 0.0
        %8445 = vmatprep.mubr.f32.mxu0 0.0
        %8446 = vmatmul.mubr.f32.gmra.mrb[0].mxu0 %v8379
        %v8447 = vpop.f32.mrb[0].mxu0
        %v8448 = vadd.f32 0.0, %v8447
        %v8449 = vpop.f32.mrb[0].mxu0
        %8450 = vdwg.mxu0
        %v8451 = vadd.f32 %v8377, %v8448
        %v8452 = vrot.slane %v7897, 3
        %v8453 = vsel %vm7870, %v8452, 0
        %8455 = vmatprep.subr.mxu0 0.0
        %8456 = vmatpush1.msra.mxu0 %v7914
        %8457 = vmatprep.subr.mxu0 0.0
        %8458 = vmatpush1.msra.mxu0 %v7915
        %8459 = vmatprep.subr.mxu0 0.0
        %8460 = vmatpush1.msra.mxu0 0.0
        %8461 = vmatprep.subr.mxu0 0.0
        %8462 = vmatpush1.msra.mxu0 0.0
        %8463 = vmatprep.subr.mxu0 0.0
        %8464 = vmatpush1.msra.mxu0 0.0
        %8465 = vmatprep.subr.mxu0 0.0
        %8466 = vmatpush1.msra.mxu0 0.0
        %8467 = vmatprep.subr.mxu0 0.0
        %8468 = vmatpush1.msra.mxu0 0.0
        %8469 = vmatprep.subr.mxu0 0.0
        %8470 = vmatpush1.msra.mxu0 0.0
        %8471 = vmatprep.subr.mxu0 0.0
        %8472 = vmatpush1.msra.mxu0 0.0
        %8473 = vmatprep.subr.mxu0 0.0
        %8474 = vmatpush1.msra.mxu0 0.0
        %8475 = vmatprep.subr.mxu0 0.0
        %8476 = vmatpush1.msra.mxu0 0.0
        %8477 = vmatprep.subr.mxu0 0.0
        %8478 = vmatpush1.msra.mxu0 0.0
        %8479 = vmatprep.subr.mxu0 0.0
        %8480 = vmatpush1.msra.mxu0 0.0
        %8481 = vmatprep.subr.mxu0 0.0
        %8482 = vmatpush1.msra.mxu0 0.0
        %8483 = vmatprep.subr.mxu0 0.0
        %8484 = vmatpush1.msra.mxu0 0.0
        %8485 = vmatprep.subr.mxu0 0.0
        %8486 = vmatpush1.msra.mxu0 0.0
        %8487 = vmatprep.subr.mxu0 0.0
        %8488 = vmatpush1.msra.mxu0 0.0
        %8489 = vmatprep.subr.mxu0 0.0
        %8490 = vmatpush1.msra.mxu0 0.0
        %8491 = vmatprep.subr.mxu0 0.0
        %8492 = vmatpush1.msra.mxu0 0.0
        %8493 = vmatprep.subr.mxu0 0.0
        %8494 = vmatpush1.msra.mxu0 0.0
        %8495 = vmatprep.subr.mxu0 0.0
        %8496 = vmatpush1.msra.mxu0 0.0
        %8497 = vmatprep.subr.mxu0 0.0
        %8498 = vmatpush1.msra.mxu0 0.0
        %8499 = vmatprep.subr.mxu0 0.0
        %8500 = vmatpush1.msra.mxu0 0.0
        %8501 = vmatprep.subr.mxu0 0.0
        %8502 = vmatpush1.msra.mxu0 0.0
        %8503 = vmatprep.subr.mxu0 0.0
        %8504 = vmatpush1.msra.mxu0 0.0
        %8505 = vmatprep.subr.mxu0 0.0
        %8506 = vmatpush1.msra.mxu0 0.0
        %8507 = vmatprep.subr.mxu0 0.0
        %8508 = vmatpush1.msra.mxu0 0.0
        %8509 = vmatprep.subr.mxu0 0.0
        %8510 = vmatpush1.msra.mxu0 0.0
        %8511 = vmatprep.subr.mxu0 0.0
        %8512 = vmatpush1.msra.mxu0 0.0
        %8513 = vmatprep.subr.mxu0 0.0
        %8514 = vmatpush1.msra.mxu0 0.0
        %8515 = vmatprep.subr.mxu0 0.0
        %8516 = vmatpush1.msra.mxu0 0.0
        %8517 = vmatprep.subr.mxu0 0.0
        %8518 = vmatpush1.msra.mxu0 0.0
        %8519 = vmatprep.mubr.f32.mxu0 0.0
        %8520 = vmatmul.mubr.f32.gmra.mrb[0].mxu0 %v8453
        %v8521 = vpop.f32.mrb[0].mxu0
        %v8522 = vadd.f32 0.0, %v8521
        %v8523 = vpop.f32.mrb[0].mxu0
        %8524 = vdwg.mxu0
        %v8525 = vadd.f32 %v8451, %v8522
        %v8527 = vsel %vm7870, %v7898, 0
        %8529 = vmatprep.subr.mxu0 0.0
        %8530 = vmatpush1.msra.mxu0 %v7916
        %8531 = vmatprep.subr.mxu0 0.0
        %8532 = vmatpush1.msra.mxu0 %v7917
        %8533 = vmatprep.subr.mxu0 0.0
        %8534 = vmatpush1.msra.mxu0 0.0
        %8535 = vmatprep.subr.mxu0 0.0
        %8536 = vmatpush1.msra.mxu0 0.0
        %8537 = vmatprep.subr.mxu0 0.0
        %8538 = vmatpush1.msra.mxu0 0.0
        %8539 = vmatprep.subr.mxu0 0.0
        %8540 = vmatpush1.msra.mxu0 0.0
        %8541 = vmatprep.subr.mxu0 0.0
        %8542 = vmatpush1.msra.mxu0 0.0
        %8543 = vmatprep.subr.mxu0 0.0
        %8544 = vmatpush1.msra.mxu0 0.0
        %8545 = vmatprep.subr.mxu0 0.0
        %8546 = vmatpush1.msra.mxu0 0.0
        %8547 = vmatprep.subr.mxu0 0.0
        %8548 = vmatpush1.msra.mxu0 0.0
        %8549 = vmatprep.subr.mxu0 0.0
        %8550 = vmatpush1.msra.mxu0 0.0
        %8551 = vmatprep.subr.mxu0 0.0
        %8552 = vmatpush1.msra.mxu0 0.0
        %8553 = vmatprep.subr.mxu0 0.0
        %8554 = vmatpush1.msra.mxu0 0.0
        %8555 = vmatprep.subr.mxu0 0.0
        %8556 = vmatpush1.msra.mxu0 0.0
        %8557 = vmatprep.subr.mxu0 0.0
        %8558 = vmatpush1.msra.mxu0 0.0
        %8559 = vmatprep.subr.mxu0 0.0
        %8560 = vmatpush1.msra.mxu0 0.0
        %8561 = vmatprep.subr.mxu0 0.0
        %8562 = vmatpush1.msra.mxu0 0.0
        %8563 = vmatprep.subr.mxu0 0.0
        %8564 = vmatpush1.msra.mxu0 0.0
        %8565 = vmatprep.subr.mxu0 0.0
        %8566 = vmatpush1.msra.mxu0 0.0
        %8567 = vmatprep.subr.mxu0 0.0
        %8568 = vmatpush1.msra.mxu0 0.0
        %8569 = vmatprep.subr.mxu0 0.0
        %8570 = vmatpush1.msra.mxu0 0.0
        %8571 = vmatprep.subr.mxu0 0.0
        %8572 = vmatpush1.msra.mxu0 0.0
        %8573 = vmatprep.subr.mxu0 0.0
        %8574 = vmatpush1.msra.mxu0 0.0
        %8575 = vmatprep.subr.mxu0 0.0
        %8576 = vmatpush1.msra.mxu0 0.0
        %8577 = vmatprep.subr.mxu0 0.0
        %8578 = vmatpush1.msra.mxu0 0.0
        %8579 = vmatprep.subr.mxu0 0.0
        %8580 = vmatpush1.msra.mxu0 0.0
        %8581 = vmatprep.subr.mxu0 0.0
        %8582 = vmatpush1.msra.mxu0 0.0
        %8583 = vmatprep.subr.mxu0 0.0
        %8584 = vmatpush1.msra.mxu0 0.0
        %8585 = vmatprep.subr.mxu0 0.0
        %8586 = vmatpush1.msra.mxu0 0.0
        %8587 = vmatprep.subr.mxu0 0.0
        %8588 = vmatpush1.msra.mxu0 0.0
        %8589 = vmatprep.subr.mxu0 0.0
        %8590 = vmatpush1.msra.mxu0 0.0
        %8591 = vmatprep.subr.mxu0 0.0
        %8592 = vmatpush1.msra.mxu0 0.0
        %8593 = vmatprep.mubr.f32.mxu0 0.0
        %8594 = vmatmul.mubr.f32.gmra.mrb[0].mxu0 %v8527
        %v8595 = vpop.f32.mrb[0].mxu0
        %v8596 = vadd.f32 0.0, %v8595
        %v8597 = vpop.f32.mrb[0].mxu0
        %8598 = vdwg.mxu0
        %v8599 = vadd.f32 %v8525, %v8596
        %v8600 = vrot.slane %v7898, 1
        %v8601 = vsel %vm7870, %v8600, 0
        %8603 = vmatprep.subr.mxu0 0.0
        %8604 = vmatpush1.msra.mxu0 %v7918
        %8605 = vmatprep.subr.mxu0 0.0
        %8606 = vmatpush1.msra.mxu0 %v7919
        %8607 = vmatprep.subr.mxu0 0.0
        %8608 = vmatpush1.msra.mxu0 0.0
        %8609 = vmatprep.subr.mxu0 0.0
        %8610 = vmatpush1.msra.mxu0 0.0
        %8611 = vmatprep.subr.mxu0 0.0
        %8612 = vmatpush1.msra.mxu0 0.0
        %8613 = vmatprep.subr.mxu0 0.0
        %8614 = vmatpush1.msra.mxu0 0.0
        %8615 = vmatprep.subr.mxu0 0.0
        %8616 = vmatpush1.msra.mxu0 0.0
        %8617 = vmatprep.subr.mxu0 0.0
        %8618 = vmatpush1.msra.mxu0 0.0
        %8619 = vmatprep.subr.mxu0 0.0
        %8620 = vmatpush1.msra.mxu0 0.0
        %8621 = vmatprep.subr.mxu0 0.0
        %8622 = vmatpush1.msra.mxu0 0.0
        %8623 = vmatprep.subr.mxu0 0.0
        %8624 = vmatpush1.msra.mxu0 0.0
        %8625 = vmatprep.subr.mxu0 0.0
        %8626 = vmatpush1.msra.mxu0 0.0
        %8627 = vmatprep.subr.mxu0 0.0
        %8628 = vmatpush1.msra.mxu0 0.0
        %8629 = vmatprep.subr.mxu0 0.0
        %8630 = vmatpush1.msra.mxu0 0.0
        %8631 = vmatprep.subr.mxu0 0.0
        %8632 = vmatpush1.msra.mxu0 0.0
        %8633 = vmatprep.subr.mxu0 0.0
        %8634 = vmatpush1.msra.mxu0 0.0
        %8635 = vmatprep.subr.mxu0 0.0
        %8636 = vmatpush1.msra.mxu0 0.0
        %8637 = vmatprep.subr.mxu0 0.0
        %8638 = vmatpush1.msra.mxu0 0.0
        %8639 = vmatprep.subr.mxu0 0.0
        %8640 = vmatpush1.msra.mxu0 0.0
        %8641 = vmatprep.subr.mxu0 0.0
        %8642 = vmatpush1.msra.mxu0 0.0
        %8643 = vmatprep.subr.mxu0 0.0
        %8644 = vmatpush1.msra.mxu0 0.0
        %8645 = vmatprep.subr.mxu0 0.0
        %8646 = vmatpush1.msra.mxu0 0.0
        %8647 = vmatprep.subr.mxu0 0.0
        %8648 = vmatpush1.msra.mxu0 0.0
        %8649 = vmatprep.subr.mxu0 0.0
        %8650 = vmatpush1.msra.mxu0 0.0
        %8651 = vmatprep.subr.mxu0 0.0
        %8652 = vmatpush1.msra.mxu0 0.0
        %8653 = vmatprep.subr.mxu0 0.0
        %8654 = vmatpush1.msra.mxu0 0.0
        %8655 = vmatprep.subr.mxu0 0.0
        %8656 = vmatpush1.msra.mxu0 0.0
        %8657 = vmatprep.subr.mxu0 0.0
        %8658 = vmatpush1.msra.mxu0 0.0
        %8659 = vmatprep.subr.mxu0 0.0
        %8660 = vmatpush1.msra.mxu0 0.0
        %8661 = vmatprep.subr.mxu0 0.0
        %8662 = vmatpush1.msra.mxu0 0.0
        %8663 = vmatprep.subr.mxu0 0.0
        %8664 = vmatpush1.msra.mxu0 0.0
        %8665 = vmatprep.subr.mxu0 0.0
        %8666 = vmatpush1.msra.mxu0 0.0
        %8667 = vmatprep.mubr.f32.mxu0 0.0
        %8668 = vmatmul.mubr.f32.gmra.mrb[0].mxu0 %v8601
        %v8669 = vpop.f32.mrb[0].mxu0
        %v8670 = vadd.f32 0.0, %v8669
        %v8671 = vpop.f32.mrb[0].mxu0
        %8672 = vdwg.mxu0
        %v8673 = vadd.f32 %v8599, %v8670
        %v8674 = vrot.slane %v7898, 2
        %v8675 = vsel %vm7870, %v8674, 0
        %8677 = vmatprep.subr.mxu0 0.0
        %8678 = vmatpush1.msra.mxu0 %v7920
        %8679 = vmatprep.subr.mxu0 0.0
        %8680 = vmatpush1.msra.mxu0 %v7921
        %8681 = vmatprep.subr.mxu0 0.0
        %8682 = vmatpush1.msra.mxu0 0.0
        %8683 = vmatprep.subr.mxu0 0.0
        %8684 = vmatpush1.msra.mxu0 0.0
        %8685 = vmatprep.subr.mxu0 0.0
        %8686 = vmatpush1.msra.mxu0 0.0
        %8687 = vmatprep.subr.mxu0 0.0
        %8688 = vmatpush1.msra.mxu0 0.0
        %8689 = vmatprep.subr.mxu0 0.0
        %8690 = vmatpush1.msra.mxu0 0.0
        %8691 = vmatprep.subr.mxu0 0.0
        %8692 = vmatpush1.msra.mxu0 0.0
        %8693 = vmatprep.subr.mxu0 0.0
        %8694 = vmatpush1.msra.mxu0 0.0
        %8695 = vmatprep.subr.mxu0 0.0
        %8696 = vmatpush1.msra.mxu0 0.0
        %8697 = vmatprep.subr.mxu0 0.0
        %8698 = vmatpush1.msra.mxu0 0.0
        %8699 = vmatprep.subr.mxu0 0.0
        %8700 = vmatpush1.msra.mxu0 0.0
        %8701 = vmatprep.subr.mxu0 0.0
        %8702 = vmatpush1.msra.mxu0 0.0
        %8703 = vmatprep.subr.mxu0 0.0
        %8704 = vmatpush1.msra.mxu0 0.0
        %8705 = vmatprep.subr.mxu0 0.0
        %8706 = vmatpush1.msra.mxu0 0.0
        %8707 = vmatprep.subr.mxu0 0.0
        %8708 = vmatpush1.msra.mxu0 0.0
        %8709 = vmatprep.subr.mxu0 0.0
        %8710 = vmatpush1.msra.mxu0 0.0
        %8711 = vmatprep.subr.mxu0 0.0
        %8712 = vmatpush1.msra.mxu0 0.0
        %8713 = vmatprep.subr.mxu0 0.0
        %8714 = vmatpush1.msra.mxu0 0.0
        %8715 = vmatprep.subr.mxu0 0.0
        %8716 = vmatpush1.msra.mxu0 0.0
        %8717 = vmatprep.subr.mxu0 0.0
        %8718 = vmatpush1.msra.mxu0 0.0
        %8719 = vmatprep.subr.mxu0 0.0
        %8720 = vmatpush1.msra.mxu0 0.0
        %8721 = vmatprep.subr.mxu0 0.0
        %8722 = vmatpush1.msra.mxu0 0.0
        %8723 = vmatprep.subr.mxu0 0.0
        %8724 = vmatpush1.msra.mxu0 0.0
        %8725 = vmatprep.subr.mxu0 0.0
        %8726 = vmatpush1.msra.mxu0 0.0
        %8727 = vmatprep.subr.mxu0 0.0
        %8728 = vmatpush1.msra.mxu0 0.0
        %8729 = vmatprep.subr.mxu0 0.0
        %8730 = vmatpush1.msra.mxu0 0.0
        %8731 = vmatprep.subr.mxu0 0.0
        %8732 = vmatpush1.msra.mxu0 0.0
        %8733 = vmatprep.subr.mxu0 0.0
        %8734 = vmatpush1.msra.mxu0 0.0
        %8735 = vmatprep.subr.mxu0 0.0
        %8736 = vmatpush1.msra.mxu0 0.0
        %8737 = vmatprep.subr.mxu0 0.0
        %8738 = vmatpush1.msra.mxu0 0.0
        %8739 = vmatprep.subr.mxu0 0.0
        %8740 = vmatpush1.msra.mxu0 0.0
        %8741 = vmatprep.mubr.f32.mxu0 0.0
        %8742 = vmatmul.mubr.f32.gmra.mrb[0].mxu0 %v8675
        %v8743 = vpop.f32.mrb[0].mxu0
        %v8744 = vadd.f32 0.0, %v8743
        %v8745 = vpop.f32.mrb[0].mxu0
        %8746 = vdwg.mxu0
        %v8747 = vadd.f32 %v8673, %v8744
        %v8748 = vrot.slane %v7898, 3
        %v8749 = vsel %vm7870, %v8748, 0
        %8751 = vmatprep.subr.mxu0 0.0
        %8752 = vmatpush1.msra.mxu0 %v7922
        %8753 = vmatprep.subr.mxu0 0.0
        %8754 = vmatpush1.msra.mxu0 %v7923
        %8755 = vmatprep.subr.mxu0 0.0
        %8756 = vmatpush1.msra.mxu0 0.0
        %8757 = vmatprep.subr.mxu0 0.0
        %8758 = vmatpush1.msra.mxu0 0.0
        %8759 = vmatprep.subr.mxu0 0.0
        %8760 = vmatpush1.msra.mxu0 0.0
        %8761 = vmatprep.subr.mxu0 0.0
        %8762 = vmatpush1.msra.mxu0 0.0
        %8763 = vmatprep.subr.mxu0 0.0
        %8764 = vmatpush1.msra.mxu0 0.0
        %8765 = vmatprep.subr.mxu0 0.0
        %8766 = vmatpush1.msra.mxu0 0.0
        %8767 = vmatprep.subr.mxu0 0.0
        %8768 = vmatpush1.msra.mxu0 0.0
        %8769 = vmatprep.subr.mxu0 0.0
        %8770 = vmatpush1.msra.mxu0 0.0
        %8771 = vmatprep.subr.mxu0 0.0
        %8772 = vmatpush1.msra.mxu0 0.0
        %8773 = vmatprep.subr.mxu0 0.0
        %8774 = vmatpush1.msra.mxu0 0.0
        %8775 = vmatprep.subr.mxu0 0.0
        %8776 = vmatpush1.msra.mxu0 0.0
        %8777 = vmatprep.subr.mxu0 0.0
        %8778 = vmatpush1.msra.mxu0 0.0
        %8779 = vmatprep.subr.mxu0 0.0
        %8780 = vmatpush1.msra.mxu0 0.0
        %8781 = vmatprep.subr.mxu0 0.0
        %8782 = vmatpush1.msra.mxu0 0.0
        %8783 = vmatprep.subr.mxu0 0.0
        %8784 = vmatpush1.msra.mxu0 0.0
        %8785 = vmatprep.subr.mxu0 0.0
        %8786 = vmatpush1.msra.mxu0 0.0
        %8787 = vmatprep.subr.mxu0 0.0
        %8788 = vmatpush1.msra.mxu0 0.0
        %8789 = vmatprep.subr.mxu0 0.0
        %8790 = vmatpush1.msra.mxu0 0.0
        %8791 = vmatprep.subr.mxu0 0.0
        %8792 = vmatpush1.msra.mxu0 0.0
        %8793 = vmatprep.subr.mxu0 0.0
        %8794 = vmatpush1.msra.mxu0 0.0
        %8795 = vmatprep.subr.mxu0 0.0
        %8796 = vmatpush1.msra.mxu0 0.0
        %8797 = vmatprep.subr.mxu0 0.0
        %8798 = vmatpush1.msra.mxu0 0.0
        %8799 = vmatprep.subr.mxu0 0.0
        %8800 = vmatpush1.msra.mxu0 0.0
        %8801 = vmatprep.subr.mxu0 0.0
        %8802 = vmatpush1.msra.mxu0 0.0
        %8803 = vmatprep.subr.mxu0 0.0
        %8804 = vmatpush1.msra.mxu0 0.0
        %8805 = vmatprep.subr.mxu0 0.0
        %8806 = vmatpush1.msra.mxu0 0.0
        %8807 = vmatprep.subr.mxu0 0.0
        %8808 = vmatpush1.msra.mxu0 0.0
        %8809 = vmatprep.subr.mxu0 0.0
        %8810 = vmatpush1.msra.mxu0 0.0
        %8811 = vmatprep.subr.mxu0 0.0
        %8812 = vmatpush1.msra.mxu0 0.0
        %8813 = vmatprep.subr.mxu0 0.0
        %8814 = vmatpush1.msra.mxu0 0.0
        %8815 = vmatprep.mubr.f32.mxu0 0.0
        %8816 = vmatmul.mubr.f32.gmra.mrb[0].mxu0 %v8749
        %v8817 = vpop.f32.mrb[0].mxu0
        %v8818 = vadd.f32 0.0, %v8817
        %v8819 = vpop.f32.mrb[0].mxu0
        %8820 = vdwg.mxu0
        %v8821 = vadd.f32 %v8747, %v8818
        %v8823 = vsel %vm7870, %v7899, 0
        %8825 = vmatprep.subr.mxu0 0.0
        %8826 = vmatpush1.msra.mxu0 %v7924
        %8827 = vmatprep.subr.mxu0 0.0
        %8828 = vmatpush1.msra.mxu0 %v7925
        %8829 = vmatprep.subr.mxu0 0.0
        %8830 = vmatpush1.msra.mxu0 0.0
        %8831 = vmatprep.subr.mxu0 0.0
        %8832 = vmatpush1.msra.mxu0 0.0
        %8833 = vmatprep.subr.mxu0 0.0
        %8834 = vmatpush1.msra.mxu0 0.0
        %8835 = vmatprep.subr.mxu0 0.0
        %8836 = vmatpush1.msra.mxu0 0.0
        %8837 = vmatprep.subr.mxu0 0.0
        %8838 = vmatpush1.msra.mxu0 0.0
        %8839 = vmatprep.subr.mxu0 0.0
        %8840 = vmatpush1.msra.mxu0 0.0
        %8841 = vmatprep.subr.mxu0 0.0
        %8842 = vmatpush1.msra.mxu0 0.0
        %8843 = vmatprep.subr.mxu0 0.0
        %8844 = vmatpush1.msra.mxu0 0.0
        %8845 = vmatprep.subr.mxu0 0.0
        %8846 = vmatpush1.msra.mxu0 0.0
        %8847 = vmatprep.subr.mxu0 0.0
        %8848 = vmatpush1.msra.mxu0 0.0
        %8849 = vmatprep.subr.mxu0 0.0
        %8850 = vmatpush1.msra.mxu0 0.0
        %8851 = vmatprep.subr.mxu0 0.0
        %8852 = vmatpush1.msra.mxu0 0.0
        %8853 = vmatprep.subr.mxu0 0.0
        %8854 = vmatpush1.msra.mxu0 0.0
        %8855 = vmatprep.subr.mxu0 0.0
        %8856 = vmatpush1.msra.mxu0 0.0
        %8857 = vmatprep.subr.mxu0 0.0
        %8858 = vmatpush1.msra.mxu0 0.0
        %8859 = vmatprep.subr.mxu0 0.0
        %8860 = vmatpush1.msra.mxu0 0.0
        %8861 = vmatprep.subr.mxu0 0.0
        %8862 = vmatpush1.msra.mxu0 0.0
        %8863 = vmatprep.subr.mxu0 0.0
        %8864 = vmatpush1.msra.mxu0 0.0
        %8865 = vmatprep.subr.mxu0 0.0
        %8866 = vmatpush1.msra.mxu0 0.0
        %8867 = vmatprep.subr.mxu0 0.0
        %8868 = vmatpush1.msra.mxu0 0.0
        %8869 = vmatprep.subr.mxu0 0.0
        %8870 = vmatpush1.msra.mxu0 0.0
        %8871 = vmatprep.subr.mxu0 0.0
        %8872 = vmatpush1.msra.mxu0 0.0
        %8873 = vmatprep.subr.mxu0 0.0
        %8874 = vmatpush1.msra.mxu0 0.0
        %8875 = vmatprep.subr.mxu0 0.0
        %8876 = vmatpush1.msra.mxu0 0.0
        %8877 = vmatprep.subr.mxu0 0.0
        %8878 = vmatpush1.msra.mxu0 0.0
        %8879 = vmatprep.subr.mxu0 0.0
        %8880 = vmatpush1.msra.mxu0 0.0
        %8881 = vmatprep.subr.mxu0 0.0
        %8882 = vmatpush1.msra.mxu0 0.0
        %8883 = vmatprep.subr.mxu0 0.0
        %8884 = vmatpush1.msra.mxu0 0.0
        %8885 = vmatprep.subr.mxu0 0.0
        %8886 = vmatpush1.msra.mxu0 0.0
        %8887 = vmatprep.subr.mxu0 0.0
        %8888 = vmatpush1.msra.mxu0 0.0
        %8889 = vmatprep.mubr.f32.mxu0 0.0
        %8890 = vmatmul.mubr.f32.gmra.mrb[0].mxu0 %v8823
        %v8891 = vpop.f32.mrb[0].mxu0
        %v8892 = vadd.f32 0.0, %v8891
        %v8893 = vpop.f32.mrb[0].mxu0
        %8894 = vdwg.mxu0
        %v8895 = vadd.f32 %v8821, %v8892
        %v8896 = vrot.slane %v7899, 1
        %v8897 = vsel %vm7870, %v8896, 0
        %8899 = vmatprep.subr.mxu0 0.0
        %8900 = vmatpush1.msra.mxu0 %v7926
        %8901 = vmatprep.subr.mxu0 0.0
        %8902 = vmatpush1.msra.mxu0 %v7927
        %8903 = vmatprep.subr.mxu0 0.0
        %8904 = vmatpush1.msra.mxu0 0.0
        %8905 = vmatprep.subr.mxu0 0.0
        %8906 = vmatpush1.msra.mxu0 0.0
        %8907 = vmatprep.subr.mxu0 0.0
        %8908 = vmatpush1.msra.mxu0 0.0
        %8909 = vmatprep.subr.mxu0 0.0
        %8910 = vmatpush1.msra.mxu0 0.0
        %8911 = vmatprep.subr.mxu0 0.0
        %8912 = vmatpush1.msra.mxu0 0.0
        %8913 = vmatprep.subr.mxu0 0.0
        %8914 = vmatpush1.msra.mxu0 0.0
        %8915 = vmatprep.subr.mxu0 0.0
        %8916 = vmatpush1.msra.mxu0 0.0
        %8917 = vmatprep.subr.mxu0 0.0
        %8918 = vmatpush1.msra.mxu0 0.0
        %8919 = vmatprep.subr.mxu0 0.0
        %8920 = vmatpush1.msra.mxu0 0.0
        %8921 = vmatprep.subr.mxu0 0.0
        %8922 = vmatpush1.msra.mxu0 0.0
        %8923 = vmatprep.subr.mxu0 0.0
        %8924 = vmatpush1.msra.mxu0 0.0
        %8925 = vmatprep.subr.mxu0 0.0
        %8926 = vmatpush1.msra.mxu0 0.0
        %8927 = vmatprep.subr.mxu0 0.0
        %8928 = vmatpush1.msra.mxu0 0.0
        %8929 = vmatprep.subr.mxu0 0.0
        %8930 = vmatpush1.msra.mxu0 0.0
        %8931 = vmatprep.subr.mxu0 0.0
        %8932 = vmatpush1.msra.mxu0 0.0
        %8933 = vmatprep.subr.mxu0 0.0
        %8934 = vmatpush1.msra.mxu0 0.0
        %8935 = vmatprep.subr.mxu0 0.0
        %8936 = vmatpush1.msra.mxu0 0.0
        %8937 = vmatprep.subr.mxu0 0.0
        %8938 = vmatpush1.msra.mxu0 0.0
        %8939 = vmatprep.subr.mxu0 0.0
        %8940 = vmatpush1.msra.mxu0 0.0
        %8941 = vmatprep.subr.mxu0 0.0
        %8942 = vmatpush1.msra.mxu0 0.0
        %8943 = vmatprep.subr.mxu0 0.0
        %8944 = vmatpush1.msra.mxu0 0.0
        %8945 = vmatprep.subr.mxu0 0.0
        %8946 = vmatpush1.msra.mxu0 0.0
        %8947 = vmatprep.subr.mxu0 0.0
        %8948 = vmatpush1.msra.mxu0 0.0
        %8949 = vmatprep.subr.mxu0 0.0
        %8950 = vmatpush1.msra.mxu0 0.0
        %8951 = vmatprep.subr.mxu0 0.0
        %8952 = vmatpush1.msra.mxu0 0.0
        %8953 = vmatprep.subr.mxu0 0.0
        %8954 = vmatpush1.msra.mxu0 0.0
        %8955 = vmatprep.subr.mxu0 0.0
        %8956 = vmatpush1.msra.mxu0 0.0
        %8957 = vmatprep.subr.mxu0 0.0
        %8958 = vmatpush1.msra.mxu0 0.0
        %8959 = vmatprep.subr.mxu0 0.0
        %8960 = vmatpush1.msra.mxu0 0.0
        %8961 = vmatprep.subr.mxu0 0.0
        %8962 = vmatpush1.msra.mxu0 0.0
        %8963 = vmatprep.mubr.f32.mxu0 0.0
        %8964 = vmatmul.mubr.f32.gmra.mrb[0].mxu0 %v8897
        %v8965 = vpop.f32.mrb[0].mxu0
        %v8966 = vadd.f32 0.0, %v8965
        %v8967 = vpop.f32.mrb[0].mxu0
        %8968 = vdwg.mxu0
        %v8969 = vadd.f32 %v8895, %v8966
        %v8970 = vrot.slane %v7899, 2
        %v8971 = vsel %vm7870, %v8970, 0
        %8973 = vmatprep.subr.mxu0 0.0
        %8974 = vmatpush1.msra.mxu0 %v7928
        %8975 = vmatprep.subr.mxu0 0.0
        %8976 = vmatpush1.msra.mxu0 %v7929
        %8977 = vmatprep.subr.mxu0 0.0
        %8978 = vmatpush1.msra.mxu0 0.0
        %8979 = vmatprep.subr.mxu0 0.0
        %8980 = vmatpush1.msra.mxu0 0.0
        %8981 = vmatprep.subr.mxu0 0.0
        %8982 = vmatpush1.msra.mxu0 0.0
        %8983 = vmatprep.subr.mxu0 0.0
        %8984 = vmatpush1.msra.mxu0 0.0
        %8985 = vmatprep.subr.mxu0 0.0
        %8986 = vmatpush1.msra.mxu0 0.0
        %8987 = vmatprep.subr.mxu0 0.0
        %8988 = vmatpush1.msra.mxu0 0.0
        %8989 = vmatprep.subr.mxu0 0.0
        %8990 = vmatpush1.msra.mxu0 0.0
        %8991 = vmatprep.subr.mxu0 0.0
        %8992 = vmatpush1.msra.mxu0 0.0
        %8993 = vmatprep.subr.mxu0 0.0
        %8994 = vmatpush1.msra.mxu0 0.0
        %8995 = vmatprep.subr.mxu0 0.0
        %8996 = vmatpush1.msra.mxu0 0.0
        %8997 = vmatprep.subr.mxu0 0.0
        %8998 = vmatpush1.msra.mxu0 0.0
        %8999 = vmatprep.subr.mxu0 0.0
        %9000 = vmatpush1.msra.mxu0 0.0
        %9001 = vmatprep.subr.mxu0 0.0
        %9002 = vmatpush1.msra.mxu0 0.0
        %9003 = vmatprep.subr.mxu0 0.0
        %9004 = vmatpush1.msra.mxu0 0.0
        %9005 = vmatprep.subr.mxu0 0.0
        %9006 = vmatpush1.msra.mxu0 0.0
        %9007 = vmatprep.subr.mxu0 0.0
        %9008 = vmatpush1.msra.mxu0 0.0
        %9009 = vmatprep.subr.mxu0 0.0
        %9010 = vmatpush1.msra.mxu0 0.0
        %9011 = vmatprep.subr.mxu0 0.0
        %9012 = vmatpush1.msra.mxu0 0.0
        %9013 = vmatprep.subr.mxu0 0.0
        %9014 = vmatpush1.msra.mxu0 0.0
        %9015 = vmatprep.subr.mxu0 0.0
        %9016 = vmatpush1.msra.mxu0 0.0
        %9017 = vmatprep.subr.mxu0 0.0
        %9018 = vmatpush1.msra.mxu0 0.0
        %9019 = vmatprep.subr.mxu0 0.0
        %9020 = vmatpush1.msra.mxu0 0.0
        %9021 = vmatprep.subr.mxu0 0.0
        %9022 = vmatpush1.msra.mxu0 0.0
        %9023 = vmatprep.subr.mxu0 0.0
        %9024 = vmatpush1.msra.mxu0 0.0
        %9025 = vmatprep.subr.mxu0 0.0
        %9026 = vmatpush1.msra.mxu0 0.0
        %9027 = vmatprep.subr.mxu0 0.0
        %9028 = vmatpush1.msra.mxu0 0.0
        %9029 = vmatprep.subr.mxu0 0.0
        %9030 = vmatpush1.msra.mxu0 0.0
        %9031 = vmatprep.subr.mxu0 0.0
        %9032 = vmatpush1.msra.mxu0 0.0
        %9033 = vmatprep.subr.mxu0 0.0
        %9034 = vmatpush1.msra.mxu0 0.0
        %9035 = vmatprep.subr.mxu0 0.0
        %9036 = vmatpush1.msra.mxu0 0.0
        %9037 = vmatprep.mubr.f32.mxu0 0.0
        %9038 = vmatmul.mubr.f32.gmra.mrb[0].mxu0 %v8971
        %v9039 = vpop.f32.mrb[0].mxu0
        %v9040 = vadd.f32 0.0, %v9039
        %v9041 = vpop.f32.mrb[0].mxu0
        %9042 = vdwg.mxu0
        %v9043 = vadd.f32 %v8969, %v9040
        %v9044 = vrot.slane %v7899, 3
        %v9045 = vsel %vm7870, %v9044, 0
        %9047 = vmatprep.subr.mxu0 0.0
        %9048 = vmatpush1.msra.mxu0 %v7930
        %9049 = vmatprep.subr.mxu0 0.0
        %9050 = vmatpush1.msra.mxu0 %v7931
        %9051 = vmatprep.subr.mxu0 0.0
        %9052 = vmatpush1.msra.mxu0 0.0
        %9053 = vmatprep.subr.mxu0 0.0
        %9054 = vmatpush1.msra.mxu0 0.0
        %9055 = vmatprep.subr.mxu0 0.0
        %9056 = vmatpush1.msra.mxu0 0.0
        %9057 = vmatprep.subr.mxu0 0.0
        %9058 = vmatpush1.msra.mxu0 0.0
        %9059 = vmatprep.subr.mxu0 0.0
        %9060 = vmatpush1.msra.mxu0 0.0
        %9061 = vmatprep.subr.mxu0 0.0
        %9062 = vmatpush1.msra.mxu0 0.0
        %9063 = vmatprep.subr.mxu0 0.0
        %9064 = vmatpush1.msra.mxu0 0.0
        %9065 = vmatprep.subr.mxu0 0.0
        %9066 = vmatpush1.msra.mxu0 0.0
        %9067 = vmatprep.subr.mxu0 0.0
        %9068 = vmatpush1.msra.mxu0 0.0
        %9069 = vmatprep.subr.mxu0 0.0
        %9070 = vmatpush1.msra.mxu0 0.0
        %9071 = vmatprep.subr.mxu0 0.0
        %9072 = vmatpush1.msra.mxu0 0.0
        %9073 = vmatprep.subr.mxu0 0.0
        %9074 = vmatpush1.msra.mxu0 0.0
        %9075 = vmatprep.subr.mxu0 0.0
        %9076 = vmatpush1.msra.mxu0 0.0
        %9077 = vmatprep.subr.mxu0 0.0
        %9078 = vmatpush1.msra.mxu0 0.0
        %9079 = vmatprep.subr.mxu0 0.0
        %9080 = vmatpush1.msra.mxu0 0.0
        %9081 = vmatprep.subr.mxu0 0.0
        %9082 = vmatpush1.msra.mxu0 0.0
        %9083 = vmatprep.subr.mxu0 0.0
        %9084 = vmatpush1.msra.mxu0 0.0
        %9085 = vmatprep.subr.mxu0 0.0
        %9086 = vmatpush1.msra.mxu0 0.0
        %9087 = vmatprep.subr.mxu0 0.0
        %9088 = vmatpush1.msra.mxu0 0.0
        %9089 = vmatprep.subr.mxu0 0.0
        %9090 = vmatpush1.msra.mxu0 0.0
        %9091 = vmatprep.subr.mxu0 0.0
        %9092 = vmatpush1.msra.mxu0 0.0
        %9093 = vmatprep.subr.mxu0 0.0
        %9094 = vmatpush1.msra.mxu0 0.0
        %9095 = vmatprep.subr.mxu0 0.0
        %9096 = vmatpush1.msra.mxu0 0.0
        %9097 = vmatprep.subr.mxu0 0.0
        %9098 = vmatpush1.msra.mxu0 0.0
        %9099 = vmatprep.subr.mxu0 0.0
        %9100 = vmatpush1.msra.mxu0 0.0
        %9101 = vmatprep.subr.mxu0 0.0
        %9102 = vmatpush1.msra.mxu0 0.0
        %9103 = vmatprep.subr.mxu0 0.0
        %9104 = vmatpush1.msra.mxu0 0.0
        %9105 = vmatprep.subr.mxu0 0.0
        %9106 = vmatpush1.msra.mxu0 0.0
        %9107 = vmatprep.subr.mxu0 0.0
        %9108 = vmatpush1.msra.mxu0 0.0
        %9109 = vmatprep.subr.mxu0 0.0
        %9110 = vmatpush1.msra.mxu0 0.0
        %9111 = vmatprep.mubr.f32.mxu0 0.0
        %9112 = vmatmul.mubr.f32.gmra.mrb[0].mxu0 %v9045
        %v9113 = vpop.f32.mrb[0].mxu0
        %v9114 = vadd.f32 0.0, %v9113
        %v9115 = vpop.f32.mrb[0].mxu0
        %9116 = vdwg.mxu0
        %v9117 = vadd.f32 %v9043, %v9114
        %v9118 = vld [vmem:[%s7] sm:$0xff]
        %v9119 = vld [vmem:[%s7 + $0x8] sm:$0xff]
        %v9120 = vld [vmem:[%s7 + $0x10] sm:$0xff]
        %v9121 = vld [vmem:[%s7 + $0x18] sm:$0xff]
        %v9122 = vld [vmem:[%s7 + $0x20] sm:$0xff]
        %v9123 = vld [vmem:[%s7 + $0x28] sm:$0xff]
        %v9124 = vld [vmem:[%s7 + $0x30] sm:$0xff]
        %v9125 = vld [vmem:[%s7 + $0x38] sm:$0xff]
        %v9126 = vld [vmem:[%s7 + $0x40] sm:$0xff]
        %v9127 = vld [vmem:[%s7 + $0x48] sm:$0xff]
        %v9128 = vld [vmem:[%s7 + $0x50] sm:$0xff]
        %v9129 = vld [vmem:[%s7 + $0x58] sm:$0xff]
        %v9130 = vld [vmem:[%s7 + $0x60] sm:$0xff]
        %v9131 = vld [vmem:[%s7 + $0x68] sm:$0xff]
        %v9132 = vld [vmem:[%s7 + $0x70] sm:$0xff]
        %v9133 = vld [vmem:[%s8] sm:$0x1]
        %vm9134 = vcmask 982016
        %v9136 = vsel %vm9134, %v9117, 0
        %9138 = vmatprep.subr.mxu0 0.0
        %9139 = vmatpush1.msra.mxu0 %v9118
        %9140 = vmatprep.subr.mxu0 0.0
        %9141 = vmatpush1.msra.mxu0 %v9119
        %9142 = vmatprep.subr.mxu0 0.0
        %9143 = vmatpush1.msra.mxu0 %v9120
        %9144 = vmatprep.subr.mxu0 0.0
        %9145 = vmatpush1.msra.mxu0 %v9121
        %9146 = vmatprep.subr.mxu0 0.0
        %9147 = vmatpush1.msra.mxu0 %v9122
        %9148 = vmatprep.subr.mxu0 0.0
        %9149 = vmatpush1.msra.mxu0 %v9123
        %9150 = vmatprep.subr.mxu0 0.0
        %9151 = vmatpush1.msra.mxu0 %v9124
        %9152 = vmatprep.subr.mxu0 0.0
        %9153 = vmatpush1.msra.mxu0 %v9125
        %9154 = vmatprep.subr.mxu0 0.0
        %9155 = vmatpush1.msra.mxu0 %v9126
        %9156 = vmatprep.subr.mxu0 0.0
        %9157 = vmatpush1.msra.mxu0 %v9127
        %9158 = vmatprep.subr.mxu0 0.0
        %9159 = vmatpush1.msra.mxu0 %v9128
        %9160 = vmatprep.subr.mxu0 0.0
        %9161 = vmatpush1.msra.mxu0 %v9129
        %9162 = vmatprep.subr.mxu0 0.0
        %9163 = vmatpush1.msra.mxu0 %v9130
        %9164 = vmatprep.subr.mxu0 0.0
        %9165 = vmatpush1.msra.mxu0 %v9131
        %9166 = vmatprep.subr.mxu0 0.0
        %9167 = vmatpush1.msra.mxu0 %v9132
        %9168 = vmatprep.subr.mxu0 0.0
        %9169 = vmatpush1.msra.mxu0 0.0
        %9170 = vmatprep.subr.mxu0 0.0
        %9171 = vmatpush1.msra.mxu0 0.0
        %9172 = vmatprep.subr.mxu0 0.0
        %9173 = vmatpush1.msra.mxu0 0.0
        %9174 = vmatprep.subr.mxu0 0.0
        %9175 = vmatpush1.msra.mxu0 0.0
        %9176 = vmatprep.subr.mxu0 0.0
        %9177 = vmatpush1.msra.mxu0 0.0
        %9178 = vmatprep.subr.mxu0 0.0
        %9179 = vmatpush1.msra.mxu0 0.0
        %9180 = vmatprep.subr.mxu0 0.0
        %9181 = vmatpush1.msra.mxu0 0.0
        %9182 = vmatprep.subr.mxu0 0.0
        %9183 = vmatpush1.msra.mxu0 0.0
        %9184 = vmatprep.subr.mxu0 0.0
        %9185 = vmatpush1.msra.mxu0 0.0
        %9186 = vmatprep.subr.mxu0 0.0
        %9187 = vmatpush1.msra.mxu0 0.0
        %9188 = vmatprep.subr.mxu0 0.0
        %9189 = vmatpush1.msra.mxu0 0.0
        %9190 = vmatprep.subr.mxu0 0.0
        %9191 = vmatpush1.msra.mxu0 0.0
        %9192 = vmatprep.subr.mxu0 0.0
        %9193 = vmatpush1.msra.mxu0 0.0
        %9194 = vmatprep.subr.mxu0 0.0
        %9195 = vmatpush1.msra.mxu0 0.0
        %9196 = vmatprep.subr.mxu0 0.0
        %9197 = vmatpush1.msra.mxu0 0.0
        %9198 = vmatprep.subr.mxu0 0.0
        %9199 = vmatpush1.msra.mxu0 0.0
        %9200 = vmatprep.subr.mxu0 0.0
        %9201 = vmatpush1.msra.mxu0 0.0
        %9202 = vmatprep.mubr.f32.mxu0 0.0
        %9203 = vmatmul.mubr.f32.gmra.mrb[0].mxu0 %v9136
        %v9204 = vpop.f32.mrb[0].mxu0
        %v9205 = vadd.f32 %v9133, %v9204
        %v9206 = vpop.f32.mrb[0].mxu0
        %9207 = vdwg.mxu0
        %v9208 = vld [vmem:[%s9] sm:$0xff]
        %v9209 = vld [vmem:[%s9 + $0x8] sm:$0xff]
        %v9210 = vld [vmem:[%s9 + $0x10] sm:$0xff]
        %v9211 = vld [vmem:[%s9 + $0x18] sm:$0xff]
        %v9212 = vld [vmem:[%s9 + $0x20] sm:$0xff]
        %v9213 = vld [vmem:[%s9 + $0x28] sm:$0xff]
        %v9214 = vld [vmem:[%s9 + $0x30] sm:$0xff]
        %v9215 = vld [vmem:[%s9 + $0x38] sm:$0xff]
        %v9216 = vld [vmem:[%s9 + $0x40] sm:$0xff]
        %v9217 = vld [vmem:[%s9 + $0x48] sm:$0xff]
        %v9218 = vld [vmem:[%s9 + $0x50] sm:$0xf]
        %v9219 = vld [vmem:[%s10] sm:$0x1]
        %vm9220 = vcmask 687104
        %v9222 = vsel %vm9220, %v9205, 0
        %v9225 = vsel %vm3528, %v9218, 0
        %9227 = vmatprep.subr.mxu0 0.0
        %9228 = vmatpush1.msra.mxu0 %v9208
        %9229 = vmatprep.subr.mxu0 0.0
        %9230 = vmatpush1.msra.mxu0 %v9209
        %9231 = vmatprep.subr.mxu0 0.0
        %9232 = vmatpush1.msra.mxu0 %v9210
        %9233 = vmatprep.subr.mxu0 0.0
        %9234 = vmatpush1.msra.mxu0 %v9211
        %9235 = vmatprep.subr.mxu0 0.0
        %9236 = vmatpush1.msra.mxu0 %v9212
        %9237 = vmatprep.subr.mxu0 0.0
        %9238 = vmatpush1.msra.mxu0 %v9213
        %9239 = vmatprep.subr.mxu0 0.0
        %9240 = vmatpush1.msra.mxu0 %v9214
        %9241 = vmatprep.subr.mxu0 0.0
        %9242 = vmatpush1.msra.mxu0 %v9215
        %9243 = vmatprep.subr.mxu0 0.0
        %9244 = vmatpush1.msra.mxu0 %v9216
        %9245 = vmatprep.subr.mxu0 0.0
        %9246 = vmatpush1.msra.mxu0 %v9217
        %9247 = vmatprep.subr.mxu0 0.0
        %9248 = vmatpush1.msra.mxu0 %v9225
        %9249 = vmatprep.subr.mxu0 0.0
        %9250 = vmatpush1.msra.mxu0 0.0
        %9251 = vmatprep.subr.mxu0 0.0
        %9252 = vmatpush1.msra.mxu0 0.0
        %9253 = vmatprep.subr.mxu0 0.0
        %9254 = vmatpush1.msra.mxu0 0.0
        %9255 = vmatprep.subr.mxu0 0.0
        %9256 = vmatpush1.msra.mxu0 0.0
        %9257 = vmatprep.subr.mxu0 0.0
        %9258 = vmatpush1.msra.mxu0 0.0
        %9259 = vmatprep.subr.mxu0 0.0
        %9260 = vmatpush1.msra.mxu0 0.0
        %9261 = vmatprep.subr.mxu0 0.0
        %9262 = vmatpush1.msra.mxu0 0.0
        %9263 = vmatprep.subr.mxu0 0.0
        %9264 = vmatpush1.msra.mxu0 0.0
        %9265 = vmatprep.subr.mxu0 0.0
        %9266 = vmatpush1.msra.mxu0 0.0
        %9267 = vmatprep.subr.mxu0 0.0
        %9268 = vmatpush1.msra.mxu0 0.0
        %9269 = vmatprep.subr.mxu0 0.0
        %9270 = vmatpush1.msra.mxu0 0.0
        %9271 = vmatprep.subr.mxu0 0.0
        %9272 = vmatpush1.msra.mxu0 0.0
        %9273 = vmatprep.subr.mxu0 0.0
        %9274 = vmatpush1.msra.mxu0 0.0
        %9275 = vmatprep.subr.mxu0 0.0
        %9276 = vmatpush1.msra.mxu0 0.0
        %9277 = vmatprep.subr.mxu0 0.0
        %9278 = vmatpush1.msra.mxu0 0.0
        %9279 = vmatprep.subr.mxu0 0.0
        %9280 = vmatpush1.msra.mxu0 0.0
        %9281 = vmatprep.subr.mxu0 0.0
        %9282 = vmatpush1.msra.mxu0 0.0
        %9283 = vmatprep.subr.mxu0 0.0
        %9284 = vmatpush1.msra.mxu0 0.0
        %9285 = vmatprep.subr.mxu0 0.0
        %9286 = vmatpush1.msra.mxu0 0.0
        %9287 = vmatprep.subr.mxu0 0.0
        %9288 = vmatpush1.msra.mxu0 0.0
        %9289 = vmatprep.subr.mxu0 0.0
        %9290 = vmatpush1.msra.mxu0 0.0
        %9291 = vmatprep.mubr.f32.mxu0 0.0
        %9292 = vmatmul.mubr.f32.gmra.mrb[0].mxu0 %v9222
        %v9293 = vpop.f32.mrb[0].mxu0
        %v9294 = vadd.f32 %v9219, %v9293
        %v9295 = vpop.f32.mrb[0].mxu0
        %9296 = vdwg.mxu0
        %vm9297 = vcmask 73728
        %9298 = vst.msk [vmem:[%s378] sm:$0x1] %vm9297, %v9294
        %s9299 = sand.u32 %s269, 1
        %s9300 = scalar_lea.sflag [#allocation5], %s9299
        %s9301 = sand.u32 %s269, 1
        %s9302 = scalar_lea.vmem [#allocation4], %s9301
        // Predicated region
        $region65: #{lenet5_forward.1} parent=63 // pred_check
          %p9303 = pneg %p279
        $region66: #{lenet5_forward.1} parent=63 // pred_check_branch
          %9305 = sbr.rel (%p9303) target = $region68
        $region67: #{lenet5_forward.1} parent=63 // pred_region
          %s9307 = ssub.s32 16, 16
          %9308 = vsyncadd %s9300, %s9307
          %s9309 = smul.addr %s25, 16
          %s9310 = scalar_lea.hbm %s11, %s9309
          %s9312 = sshll.u32 %s9302, 4
          %s9313 = int_to_ptr.vmem [resolvable:$true] %s9312
          %9315 = dma.vmem_to_hbm [thread:$0]  %s9313, 16, %s9310, %s9300
        $region68: #{lenet5_forward.1} parent=63 // pred_fallthru
          _
      $region64: #{lenet5_forward.1} parent=5 // pred_fallthru
        _
      %p9316 = scmp.le.s32.totalorder 2, %s20
      // Predicated region
      $region69: #{lenet5_forward.1} parent=5 // pred_check
        %p9317 = pneg %p9316
      $region70: #{lenet5_forward.1} parent=5 // pred_check_branch
        %9319 = sbr.rel (%p9317) target = $region72
      $region71: #{lenet5_forward.1} parent=5 // pred_region
        %s9320 = ssub.s32 %s20, 2
        // Predicated region
        $region73: #{lenet5_forward.1} parent=71 // pred_check
          %p9321 = pneg %p285
        $region74: #{lenet5_forward.1} parent=71 // pred_check_branch
          %9323 = sbr.rel (%p9321) target = $region76
        $region75: #{lenet5_forward.1} parent=71 // pred_region
          %s9324 = sand.u32 %s270, 1
          %s9325 = scalar_lea.sflag [#allocation5], %s9324
          %s9326 = sand.u32 %s270, 1
          %s9327 = scalar_lea.vmem [#allocation4], %s9326
          %9328 = dma.done %s9325, 16
        $region76: #{lenet5_forward.1} parent=71 // pred_fallthru
          _
      $region72: #{lenet5_forward.1} parent=5 // pred_fallthru
        _
    $region6: #{lenet5_forward.1} parent=1 // loop_footer
      %s24 = sadd.s32 1, %s20
    $region7: #{lenet5_forward.1} parent=1 // loop_footer_branch
      %19 = sbr.rel target = $region3
    $region8: #{lenet5_forward.1} parent=1 // loop_exit
      _
    %9329 = vsyncpa [#allocation5], 1
    %s9330 = scalar_lea.sflag [#allocation5], 1
    %9331 = vsyncpa %s9330, 1

</llo_original>
